<compile_context>
chip_gen: v6e
topology: v6e:2x2x1
jax: 0.10.0
libtpu: 0.0.40
codegen_flags: <defaults>
</compile_context>

<pallas_src>
import functools

import jax
import jax.numpy as jnp
from jax.experimental import pallas as pl
from jax.experimental.pallas import tpu as pltpu


# ----------------------------------------------------------------------------
# Runtime probe: is pltpu.roll supported on the sublane axis, and does it use
# jnp.roll's direction convention?  (If anything is off we fall back to the
# in-kernel zero-padded-scratch slicing path, which is known-good.)
# ----------------------------------------------------------------------------
_ROLL_MODE_CACHE = None


def _probe_roll_mode():
    def k(x_ref, o_ref):
        o_ref[...] = pltpu.roll(x_ref[...], 5, 0)

    try:
        x = jnp.broadcast_to(jnp.arange(16, dtype=jnp.float32)[:, None], (16, 128))
        y = pl.pallas_call(
            k, out_shape=jax.ShapeDtypeStruct((16, 128), jnp.float32))(x)
        y = jax.device_get(jax.block_until_ready(y))
        fwd = jax.device_get(jnp.roll(x, 5, 0))
        bwd = jax.device_get(jnp.roll(x, -5, 0))
        if (y == fwd).all():
            return True, True      # supported, jnp.roll convention
        if (y == bwd).all():
            return True, False     # supported, opposite convention
        return False, True
    except Exception:              # lowering / runtime failure -> fallback path
        return False, True


def _roll_mode():
    global _ROLL_MODE_CACHE
    if _ROLL_MODE_CACHE is None:
        _ROLL_MODE_CACHE = _probe_roll_mode()
    return _ROLL_MODE_CACHE


# ----------------------------------------------------------------------------
# Fused per-level kernel: refine1 (1x1) + average + refine3 (3x3) + residual.
# ----------------------------------------------------------------------------
def _fused_refine_kernel(g_ref, a_ref, res_ref, w1_ref, b1_ref, w3_ref, b3_ref,
                         o_ref, pad_ref, *, H, W, use_roll, roll_forward):
    HW = H * W
    C = o_ref.shape[-1]

    # refine1[i]: 1x1 conv + bias + ReLU (fused -- no HBM round trip for g2).
    # bf16 operands, f32 accumulation (MXU-native on v6e/v7x).
    g2 = jnp.dot(g_ref[0].astype(jnp.bfloat16), w1_ref[...],
                 preferred_element_type=jnp.float32)
    g2 = jnp.maximum(g2 + b1_ref[...], 0.0)

    # bsf = sum(feat) / len(feat)  (two gathered maps per level).
    xp = (a_ref[0] + g2) * 0.5                               # (HW, C) f32

    acc = jnp.zeros((HW, C), jnp.float32)

    if use_roll:
        # Conv halo (padding=1) via whole-plane rolls + border masks.
        m = jax.lax.broadcasted_iota(jnp.int32, (HW, 1), 0)
        if (W & (W - 1)) == 0:
            x_idx = jnp.bitwise_and(m, W - 1)                # m % W, W pow-2
        else:
            x_idx = m % W  # TODO(synk): non-pow2 W untested on this path
        row_ok = (m >= W, None, m < (H - 1) * W)             # y>=1 / all / y<=H-2
        col_ok = (x_idx >= 1, None, x_idx <= W - 2)          # x>=1 / all / x<=W-2
    else:
        # Fallback: zero-pad into a VMEM scratch and take 9 shifted windows.
        pad_ref[...] = jnp.zeros(pad_ref.shape, pad_ref.dtype)
        pad_ref[1:H + 1, 1:W + 1, :] = xp.reshape(H, W, C)
        xpad = pad_ref[...]

    for dy in range(3):
        for dx in range(3):
            if use_roll:
                off = (dy - 1) * W + (dx - 1)
                if off == 0:
                    tap = xp
                else:
                    shift = (-off) % HW if roll_forward else off % HW
                    tap = pltpu.roll(xp, shift, 0)
                ok = row_ok[dy]
                if col_ok[dx] is not None:
                    ok = col_ok[dx] if ok is None else jnp.logical_and(ok, col_ok[dx])
                if ok is not None:
                    tap = jnp.where(ok, tap, 0.0)
            else:
                tap = xpad[dy:dy + H, dx:dx + W, :].reshape(HW, C)
            acc = acc + jnp.dot(tap.astype(jnp.bfloat16), w3_ref[dy * 3 + dx],
                                preferred_element_type=jnp.float32)

    # refine3 epilogue (bias + ReLU) and residual add, all in f32.
    out = jnp.maximum(acc + b3_ref[...], 0.0) + res_ref[0]
    o_ref[0] = out.astype(o_ref.dtype)


def fused_refine_level(a, g, residual, w1b, b1, w3b, b3):
    """One pyramid level: refine1(g), average with a, refine3, add residual."""
    N, H, W, C = a.shape
    assert g.shape == a.shape == residual.shape
    HW = H * W
    use_roll, roll_forward = _roll_mode()

    kern = functools.partial(_fused_refine_kernel, H=H, W=W,
                             use_roll=use_roll, roll_forward=roll_forward)
    out = pl.pallas_call(
        kern,
        out_shape=jax.ShapeDtypeStruct((N, HW, C), a.dtype),
        grid=(N,),
        in_specs=[
            pl.BlockSpec((1, HW, C), lambda n: (n, 0, 0)),   # gathered2 (pre-1x1)
            pl.BlockSpec((1, HW, C), lambda n: (n, 0, 0)),   # gathered1
            pl.BlockSpec((1, HW, C), lambda n: (n, 0, 0)),   # residual inputs[i]
            pl.BlockSpec((C, C), lambda n: (0, 0)),          # w1 (bf16)
            pl.BlockSpec((1, C), lambda n: (0, 0)),          # b1 (f32)
            pl.BlockSpec((9, C, C), lambda n: (0, 0, 0)),    # w3 (bf16)
            pl.BlockSpec((1, C), lambda n: (0, 0)),          # b3 (f32)
        ],
        out_specs=pl.BlockSpec((1, HW, C), lambda n: (n, 0, 0)),
        scratch_shapes=[pltpu.VMEM((H + 2, W + 2, C), jnp.float32)],
        compiler_params=pltpu.CompilerParams(
            dimension_semantics=("parallel",)),
    )(g.reshape(N, HW, C), a.reshape(N, HW, C), residual.reshape(N, HW, C),
      w1b, b1.reshape(1, C), w3b, b3.reshape(1, C))
    # TODO(synk): for production shapes (C=256, H*W ~ 1e4+) tile H*W across the
    # grid with a 1-row halo so per-step VMEM stays within v7x's 64 MiB budget.
    return out.reshape(N, H, W, C)


# ----------------------------------------------------------------------------
# JAX glue (resizing / pooling / orchestration)
# ----------------------------------------------------------------------------
def nearest_resize(x, out_h, out_w):
    """F.interpolate(mode='nearest'): src = floor(dst * in / out)."""
    _, H, W, _ = x.shape
    hi = (jnp.arange(out_h) * H) // out_h
    wi = (jnp.arange(out_w) * W) // out_w
    return x[:, hi][:, :, wi]


def adaptive_max_pool_2x(x, out_h, out_w):
    """F.adaptive_max_pool2d for the exact 2x-downsample pyramid case."""
    N, H, W, C = x.shape
    assert H == 2 * out_h and W == 2 * out_w  # TODO(synk): general adaptive pooling
    return x.reshape(N, out_h, 2, out_w, 2, C).max(axis=(2, 4))


def _gather_pair(inputs, i):
    """(gathered1, gathered2-before-refine1) for level i, per B2FPn.forward."""
    L = len(inputs)
    gh, gw = inputs[i].shape[1:3]
    if i == 0:
        return inputs[0], nearest_resize(inputs[1], gh, gw)
    if i == L - 1:
        return inputs[i], adaptive_max_pool_2x(inputs[i - 1], gh, gw)
    return (adaptive_max_pool_2x(inputs[i - 1], gh, gw),
            nearest_resize(inputs[i + 1], gh, gw))


def b2fpn_forward(inputs, params):
    """Mirrors B2FPn.forward (one fused Pallas call per level)."""
    w1b, b1, w3b, b3 = params["w1"], params["b1"], params["w3"], params["b3"]
    outs = []
    for i in range(len(inputs)):
        a, g = _gather_pair(inputs, i)
        outs.append(fused_refine_level(a, g, inputs[i], w1b[i], b1[i], w3b, b3))
    return tuple(outs)


# ----------------------------------------------------------------------------
# Pure-JAX reference (same bf16 operand rounding, f32 accumulation)
# ----------------------------------------------------------------------------
def _ref_level(a, g, res, w1b, b1, w3b, b3):
    C = a.shape[-1]
    g2 = jnp.einsum("nhwc,cd->nhwd", g.astype(jnp.bfloat16), w1b,
                    preferred_element_type=jnp.float32) + b1
    g2 = jnp.maximum(g2, 0.0)
    bsf = (a + g2) * 0.5
    y = jax.lax.conv_general_dilated(
        bsf.astype(jnp.bfloat16), w3b.reshape(3, 3, C, C),
        window_strides=(1, 1), padding="SAME",
        dimension_numbers=("NHWC", "HWIO", "NHWC"),
        preferred_element_type=jnp.float32)
    return jnp.maximum(y + b3, 0.0) + res


def b2fpn_reference(inputs, params):
    w1b, b1, w3b, b3 = params["w1"], params["b1"], params["w3"], params["b3"]
    outs = []
    for i in range(len(inputs)):
        a, g = _gather_pair(inputs, i)
        outs.append(_ref_level(a, g, inputs[i], w1b[i], b1[i], w3b, b3))
    return tuple(outs)


# ----------------------------------------------------------------------------
# Main
# ----------------------------------------------------------------------------
if __name__ == "__main__":
    key = jax.random.PRNGKey(0)
    # C=128 keeps the channel (lane) dimension dense; real BFP uses C=256.
    N, C, num_levels, base = 2, 128, 4, 32

    keys = jax.random.split(key, 3 * num_levels + 2)

    # Multi-level pyramid inputs, NHWC, each level half the spatial size.
    inputs = []
    for lvl in range(num_levels):
        s = base >> lvl
        inputs.append(jax.random.normal(keys[lvl], (N, s, s, C), jnp.float32))

    # Deterministic "xavier-uniform"-style parameters (weights kept in bf16).
    a1 = (6.0 / (C + C)) ** 0.5
    w1 = [jax.random.uniform(keys[num_levels + i], (C, C), jnp.float32, -a1, a1)
              .astype(jnp.bfloat16)
          for i in range(num_levels)]
    b1 = [jax.random.uniform(keys[2 * num_levels + i], (C,), jnp.float32, -0.1, 0.1)
          for i in range(num_levels)]
    a3 = (6.0 / (9 * C + 9 * C)) ** 0.5
    w3 = jax.random.uniform(keys[-2], (9, C, C), jnp.float32, -a3, a3
                            ).astype(jnp.bfloat16)
    b3 = jax.random.uniform(keys[-1], (C,), jnp.float32, -0.1, 0.1)
    params = {"w1": w1, "b1": b1, "w3": w3, "b3": b3}

    outs = jax.block_until_ready(b2fpn_forward(inputs, params))
    refs = jax.block_until_ready(b2fpn_reference(inputs, params))

    for o, r in zip(outs, refs):
        assert o.shape == r.shape and o.dtype == r.dtype
        err = float(jnp.max(jnp.abs(o - r)))
        assert err < 1e-2, f"mismatch vs reference: max|diff|={err}"

    print("KERNEL_OK")
</pallas_src>

<mosaic_0001>
module attributes {stable_mosaic.version = 11 : i64} {
  func.func @k(%arg0: memref<16x128xf32, #tpu.memory_space<vmem>>, %arg1: memref<16x128xf32, #tpu.memory_space<vmem>>) attributes {dimension_semantics = [], scalar_prefetch = 0 : i64, scratch_operands = 0 : i64, tpu.core_type = #tpu.core_type<tc>} {
    %c0 = arith.constant 0 : index
    %c0_0 = arith.constant 0 : index
    %0 = vector.load %arg0[%c0, %c0_0] : memref<16x128xf32, #tpu.memory_space<vmem>>, vector<16x128xf32>
    %c5_i32 = arith.constant 5 : i32
    %1 = tpu.dynamic_rotate %0 by %c5_i32 dim 0 : vector<16x128xf32>, i32 -> vector<16x128xf32>
    %c0_1 = arith.constant 0 : index
    %c0_2 = arith.constant 0 : index
    %2 = vector.load %arg1[%c0_1, %c0_2] : memref<16x128xf32, #tpu.memory_space<vmem>>, vector<16x128xf32>
    tpu.vector_store %arg1[%c0_1, %c0_2], %1 {strides = array<i32>} : memref<16x128xf32, #tpu.memory_space<vmem>>, vector<16x128xf32>,
    return
  }
}

module attributes {stable_mosaic.version = 11 : i64} {
  func.func @_fused_refine_kernel(%arg0: i32, %arg1: memref<1x1024x128xf32, #tpu.memory_space<vmem>>, %arg2: memref<1x1024x128xf32, #tpu.memory_space<vmem>>, %arg3: memref<1x1024x128xf32, #tpu.memory_space<vmem>>, %arg4: memref<128x128xbf16, #tpu.memory_space<vmem>>, %arg5: memref<1x128xf32, #tpu.memory_space<vmem>>, %arg6: memref<9x128x128xbf16, #tpu.memory_space<vmem>>, %arg7: memref<1x128xf32, #tpu.memory_space<vmem>>, %arg8: memref<1x1024x128xf32, #tpu.memory_space<vmem>>, %arg9: memref<34x34x128xf32, #tpu.memory_space<vmem>>) attributes {dimension_semantics = [#tpu.dimension_semantics<parallel>], iteration_bounds = array<i64: 2>, scalar_prefetch = 0 : i64, scratch_operands = 1 : i64, tpu.core_type = #tpu.core_type<tc>, window_params = [{transform_indices = @transform_0, window_bounds = array<i64: 1, 1024, 128>}, {transform_indices = @transform_1, window_bounds = array<i64: 1, 1024, 128>}, {transform_indices = @transform_2, window_bounds = array<i64: 1, 1024, 128>}, {pipeline_mode = #tpu.pipeline_mode<synchronous>, transform_indices = @transform_3, window_bounds = array<i64: 128, 128>}, {pipeline_mode = #tpu.pipeline_mode<synchronous>, transform_indices = @transform_4, window_bounds = array<i64: 1, 128>}, {pipeline_mode = #tpu.pipeline_mode<synchronous>, transform_indices = @transform_5, window_bounds = array<i64: 9, 128, 128>}, {pipeline_mode = #tpu.pipeline_mode<synchronous>, transform_indices = @transform_6, window_bounds = array<i64: 1, 128>}, {transform_indices = @transform_7, window_bounds = array<i64: 1, 1024, 128>}]} {
    %c0 = arith.constant 0 : index
    %c0_0 = arith.constant 0 : index
    %c0_1 = arith.constant 0 : index
    %0 = vector.load %arg1[%c0, %c0_0, %c0_1] : memref<1x1024x128xf32, #tpu.memory_space<vmem>>, vector<1x1024x128xf32>
    %1 = vector.shape_cast %0 : vector<1x1024x128xf32> to vector<1024x128xf32>
    %2 = arith.truncf %1 : vector<1024x128xf32> to vector<1024x128xbf16>
    %c0_2 = arith.constant 0 : index
    %c0_3 = arith.constant 0 : index
    %3 = vector.load %arg4[%c0_2, %c0_3] : memref<128x128xbf16, #tpu.memory_space<vmem>>, vector<128x128xbf16>
    %cst = arith.constant dense<0.000000e+00> : vector<1024x128xf32>
    %4 = tpu.matmul %2, %3, %cst {dimension_numbers = #tpu.dot_dimension_numbers<[1], [0], [0], [1], [0, 0, 1, 1], [], []>} : vector<1024x128xbf16>, vector<128x128xbf16>, vector<1024x128xf32> -> vector<1024x128xf32>
    %c0_4 = arith.constant 0 : index
    %c0_5 = arith.constant 0 : index
    %5 = vector.load %arg5[%c0_4, %c0_5] : memref<1x128xf32, #tpu.memory_space<vmem>>, vector<1x128xf32>
    %6 = vector.broadcast %5 : vector<1x128xf32> to vector<1024x128xf32>
    %7 = arith.addf %4, %6 : vector<1024x128xf32>
    %cst_6 = arith.constant 0.000000e+00 : f32
    %8 = vector.broadcast %cst_6 : f32 to vector<1024x128xf32>
    %9 = arith.maximumf %7, %8 : vector<1024x128xf32>
    %c0_7 = arith.constant 0 : index
    %c0_8 = arith.constant 0 : index
    %c0_9 = arith.constant 0 : index
    %10 = vector.load %arg2[%c0_7, %c0_8, %c0_9] : memref<1x1024x128xf32, #tpu.memory_space<vmem>>, vector<1x1024x128xf32>
    %11 = vector.shape_cast %10 : vector<1x1024x128xf32> to vector<1024x128xf32>
    %12 = arith.addf %11, %9 : vector<1024x128xf32>
    %cst_10 = arith.constant 5.000000e-01 : f32
    %13 = vector.broadcast %cst_10 : f32 to vector<1024x128xf32>
    %14 = arith.mulf %12, %13 : vector<1024x128xf32>
    %cst_11 = arith.constant 0.000000e+00 : f32
    %15 = vector.broadcast %cst_11 : f32 to vector<1024x128xf32>
    %cst_12 = arith.constant 0.000000e+00 : f32
    %16 = vector.broadcast %cst_12 : f32 to vector<34x34x128xf32>
    %c0_13 = arith.constant 0 : index
    %c0_14 = arith.constant 0 : index
    %c0_15 = arith.constant 0 : index
    %17 = vector.load %arg9[%c0_13, %c0_14, %c0_15] : memref<34x34x128xf32, #tpu.memory_space<vmem>>, vector<34x34x128xf32>
    tpu.vector_store %arg9[%c0_13, %c0_14, %c0_15], %16 {strides = array<i32>} : memref<34x34x128xf32, #tpu.memory_space<vmem>>, vector<34x34x128xf32>,
    %18 = vector.shape_cast %14 : vector<1024x128xf32> to vector<32x32x128xf32>
    %c1 = arith.constant 1 : index
    %c1_16 = arith.constant 1 : index
    %c0_17 = arith.constant 0 : index
    %19 = vector.load %arg9[%c1, %c1_16, %c0_17] : memref<34x34x128xf32, #tpu.memory_space<vmem>>, vector<32x32x128xf32>
    tpu.vector_store %arg9[%c1, %c1_16, %c0_17], %18 {strides = array<i32>} : memref<34x34x128xf32, #tpu.memory_space<vmem>>, vector<32x32x128xf32>,
    %c0_18 = arith.constant 0 : index
    %c0_19 = arith.constant 0 : index
    %c0_20 = arith.constant 0 : index
    %20 = vector.load %arg9[%c0_18, %c0_19, %c0_20] : memref<34x34x128xf32, #tpu.memory_space<vmem>>, vector<34x34x128xf32>
    %21 = vector.extract_strided_slice %20 {offsets = [0, 0, 0], sizes = [32, 32, 128], strides = [1, 1, 1]} : vector<34x34x128xf32> to vector<32x32x128xf32>
    %22 = vector.shape_cast %21 : vector<32x32x128xf32> to vector<1024x128xf32>
    %23 = arith.truncf %22 : vector<1024x128xf32> to vector<1024x128xbf16>
    %c0_21 = arith.constant 0 : index
    %c0_22 = arith.constant 0 : index
    %c0_23 = arith.constant 0 : index
    %24 = vector.load %arg6[%c0_21, %c0_22, %c0_23] : memref<9x128x128xbf16, #tpu.memory_space<vmem>>, vector<1x128x128xbf16>
    %25 = vector.shape_cast %24 : vector<1x128x128xbf16> to vector<128x128xbf16>
    %cst_24 = arith.constant dense<0.000000e+00> : vector<1024x128xf32>
    %26 = tpu.matmul %23, %25, %cst_24 {dimension_numbers = #tpu.dot_dimension_numbers<[1], [0], [0], [1], [0, 0, 1, 1], [], []>} : vector<1024x128xbf16>, vector<128x128xbf16>, vector<1024x128xf32> -> vector<1024x128xf32>
    %27 = arith.addf %15, %26 : vector<1024x128xf32>
    %28 = vector.extract_strided_slice %20 {offsets = [0, 1, 0], sizes = [32, 32, 128], strides = [1, 1, 1]} : vector<34x34x128xf32> to vector<32x32x128xf32>
    %29 = vector.shape_cast %28 : vector<32x32x128xf32> to vector<1024x128xf32>
    %30 = arith.truncf %29 : vector<1024x128xf32> to vector<1024x128xbf16>
    %c1_25 = arith.constant 1 : index
    %c0_26 = arith.constant 0 : index
    %c0_27 = arith.constant 0 : index
    %31 = vector.load %arg6[%c1_25, %c0_26, %c0_27] : memref<9x128x128xbf16, #tpu.memory_space<vmem>>, vector<1x128x128xbf16>
    %32 = vector.shape_cast %31 : vector<1x128x128xbf16> to vector<128x128xbf16>
    %cst_28 = arith.constant dense<0.000000e+00> : vector<1024x128xf32>
    %33 = tpu.matmul %30, %32, %cst_28 {dimension_numbers = #tpu.dot_dimension_numbers<[1], [0], [0], [1], [0, 0, 1, 1], [], []>} : vector<1024x128xbf16>, vector<128x128xbf16>, vector<1024x128xf32> -> vector<1024x128xf32>
    %34 = arith.addf %27, %33 : vector<1024x128xf32>
    %35 = vector.extract_strided_slice %20 {offsets = [0, 2, 0], sizes = [32, 32, 128], strides = [1, 1, 1]} : vector<34x34x128xf32> to vector<32x32x128xf32>
    %36 = vector.shape_cast %35 : vector<32x32x128xf32> to vector<1024x128xf32>
    %37 = arith.truncf %36 : vector<1024x128xf32> to vector<1024x128xbf16>
    %c2 = arith.constant 2 : index
    %c0_29 = arith.constant 0 : index
    %c0_30 = arith.constant 0 : index
    %38 = vector.load %arg6[%c2, %c0_29, %c0_30] : memref<9x128x128xbf16, #tpu.memory_space<vmem>>, vector<1x128x128xbf16>
    %39 = vector.shape_cast %38 : vector<1x128x128xbf16> to vector<128x128xbf16>
    %cst_31 = arith.constant dense<0.000000e+00> : vector<1024x128xf32>
    %40 = tpu.matmul %37, %39, %cst_31 {dimension_numbers = #tpu.dot_dimension_numbers<[1], [0], [0], [1], [0, 0, 1, 1], [], []>} : vector<1024x128xbf16>, vector<128x128xbf16>, vector<1024x128xf32> -> vector<1024x128xf32>
    %41 = arith.addf %34, %40 : vector<1024x128xf32>
    %42 = vector.extract_strided_slice %20 {offsets = [1, 0, 0], sizes = [32, 32, 128], strides = [1, 1, 1]} : vector<34x34x128xf32> to vector<32x32x128xf32>
    %43 = vector.shape_cast %42 : vector<32x32x128xf32> to vector<1024x128xf32>
    %44 = arith.truncf %43 : vector<1024x128xf32> to vector<1024x128xbf16>
    %c3 = arith.constant 3 : index
    %c0_32 = arith.constant 0 : index
    %c0_33 = arith.constant 0 : index
    %45 = vector.load %arg6[%c3, %c0_32, %c0_33] : memref<9x128x128xbf16, #tpu.memory_space<vmem>>, vector<1x128x128xbf16>
    %46 = vector.shape_cast %45 : vector<1x128x128xbf16> to vector<128x128xbf16>
    %cst_34 = arith.constant dense<0.000000e+00> : vector<1024x128xf32>
    %47 = tpu.matmul %44, %46, %cst_34 {dimension_numbers = #tpu.dot_dimension_numbers<[1], [0], [0], [1], [0, 0, 1, 1], [], []>} : vector<1024x128xbf16>, vector<128x128xbf16>, vector<1024x128xf32> -> vector<1024x128xf32>
    %48 = arith.addf %41, %47 : vector<1024x128xf32>
    %49 = vector.extract_strided_slice %20 {offsets = [1, 1, 0], sizes = [32, 32, 128], strides = [1, 1, 1]} : vector<34x34x128xf32> to vector<32x32x128xf32>
    %50 = vector.shape_cast %49 : vector<32x32x128xf32> to vector<1024x128xf32>
    %51 = arith.truncf %50 : vector<1024x128xf32> to vector<1024x128xbf16>
    %c4 = arith.constant 4 : index
    %c0_35 = arith.constant 0 : index
    %c0_36 = arith.constant 0 : index
    %52 = vector.load %arg6[%c4, %c0_35, %c0_36] : memref<9x128x128xbf16, #tpu.memory_space<vmem>>, vector<1x128x128xbf16>
    %53 = vector.shape_cast %52 : vector<1x128x128xbf16> to vector<128x128xbf16>
    %cst_37 = arith.constant dense<0.000000e+00> : vector<1024x128xf32>
    %54 = tpu.matmul %51, %53, %cst_37 {dimension_numbers = #tpu.dot_dimension_numbers<[1], [0], [0], [1], [0, 0, 1, 1], [], []>} : vector<1024x128xbf16>, vector<128x128xbf16>, vector<1024x128xf32> -> vector<1024x128xf32>
    %55 = arith.addf %48, %54 : vector<1024x128xf32>
    %56 = vector.extract_strided_slice %20 {offsets = [1, 2, 0], sizes = [32, 32, 128], strides = [1, 1, 1]} : vector<34x34x128xf32> to vector<32x32x128xf32>
    %57 = vector.shape_cast %56 : vector<32x32x128xf32> to vector<1024x128xf32>
    %58 = arith.truncf %57 : vector<1024x128xf32> to vector<1024x128xbf16>
    %c5 = arith.constant 5 : index
    %c0_38 = arith.constant 0 : index
    %c0_39 = arith.constant 0 : index
    %59 = vector.load %arg6[%c5, %c0_38, %c0_39] : memref<9x128x128xbf16, #tpu.memory_space<vmem>>, vector<1x128x128xbf16>
    %60 = vector.shape_cast %59 : vector<1x128x128xbf16> to vector<128x128xbf16>
    %cst_40 = arith.constant dense<0.000000e+00> : vector<1024x128xf32>
    %61 = tpu.matmul %58, %60, %cst_40 {dimension_numbers = #tpu.dot_dimension_numbers<[1], [0], [0], [1], [0, 0, 1, 1], [], []>} : vector<1024x128xbf16>, vector<128x128xbf16>, vector<1024x128xf32> -> vector<1024x128xf32>
    %62 = arith.addf %55, %61 : vector<1024x128xf32>
    %63 = vector.extract_strided_slice %20 {offsets = [2, 0, 0], sizes = [32, 32, 128], strides = [1, 1, 1]} : vector<34x34x128xf32> to vector<32x32x128xf32>
    %64 = vector.shape_cast %63 : vector<32x32x128xf32> to vector<1024x128xf32>
    %65 = arith.truncf %64 : vector<1024x128xf32> to vector<1024x128xbf16>
    %c6 = arith.constant 6 : index
    %c0_41 = arith.constant 0 : index
    %c0_42 = arith.constant 0 : index
    %66 = vector.load %arg6[%c6, %c0_41, %c0_42] : memref<9x128x128xbf16, #tpu.memory_space<vmem>>, vector<1x128x128xbf16>
    %67 = vector.shape_cast %66 : vector<1x128x128xbf16> to vector<128x128xbf16>
    %cst_43 = arith.constant dense<0.000000e+00> : vector<1024x128xf32>
    %68 = tpu.matmul %65, %67, %cst_43 {dimension_numbers = #tpu.dot_dimension_numbers<[1], [0], [0], [1], [0, 0, 1, 1], [], []>} : vector<1024x128xbf16>, vector<128x128xbf16>, vector<1024x128xf32> -> vector<1024x128xf32>
    %69 = arith.addf %62, %68 : vector<1024x128xf32>
    %70 = vector.extract_strided_slice %20 {offsets = [2, 1, 0], sizes = [32, 32, 128], strides = [1, 1, 1]} : vector<34x34x128xf32> to vector<32x32x128xf32>
    %71 = vector.shape_cast %70 : vector<32x32x128xf32> to vector<1024x128xf32>
    %72 = arith.truncf %71 : vector<1024x128xf32> to vector<1024x128xbf16>
    %c7 = arith.constant 7 : index
    %c0_44 = arith.constant 0 : index
    %c0_45 = arith.constant 0 : index
    %73 = vector.load %arg6[%c7, %c0_44, %c0_45] : memref<9x128x128xbf16, #tpu.memory_space<vmem>>, vector<1x128x128xbf16>
    %74 = vector.shape_cast %73 : vector<1x128x128xbf16> to vector<128x128xbf16>
    %cst_46 = arith.constant dense<0.000000e+00> : vector<1024x128xf32>
    %75 = tpu.matmul %72, %74, %cst_46 {dimension_numbers = #tpu.dot_dimension_numbers<[1], [0], [0], [1], [0, 0, 1, 1], [], []>} : vector<1024x128xbf16>, vector<128x128xbf16>, vector<1024x128xf32> -> vector<1024x128xf32>
    %76 = arith.addf %69, %75 : vector<1024x128xf32>
    %77 = vector.extract_strided_slice %20 {offsets = [2, 2, 0], sizes = [32, 32, 128], strides = [1, 1, 1]} : vector<34x34x128xf32> to vector<32x32x128xf32>
    %78 = vector.shape_cast %77 : vector<32x32x128xf32> to vector<1024x128xf32>
    %79 = arith.truncf %78 : vector<1024x128xf32> to vector<1024x128xbf16>
    %c8 = arith.constant 8 : index
    %c0_47 = arith.constant 0 : index
    %c0_48 = arith.constant 0 : index
    %80 = vector.load %arg6[%c8, %c0_47, %c0_48] : memref<9x128x128xbf16, #tpu.memory_space<vmem>>, vector<1x128x128xbf16>
    %81 = vector.shape_cast %80 : vector<1x128x128xbf16> to vector<128x128xbf16>
    %cst_49 = arith.constant dense<0.000000e+00> : vector<1024x128xf32>
    %82 = tpu.matmul %79, %81, %cst_49 {dimension_numbers = #tpu.dot_dimension_numbers<[1], [0], [0], [1], [0, 0, 1, 1], [], []>} : vector<1024x128xbf16>, vector<128x128xbf16>, vector<1024x128xf32> -> vector<1024x128xf32>
    %83 = arith.addf %76, %82 : vector<1024x128xf32>
    %c0_50 = arith.constant 0 : index
    %c0_51 = arith.constant 0 : index
    %84 = vector.load %arg7[%c0_50, %c0_51] : memref<1x128xf32, #tpu.memory_space<vmem>>, vector<1x128xf32>
    %85 = vector.broadcast %84 : vector<1x128xf32> to vector<1024x128xf32>
    %86 = arith.addf %83, %85 : vector<1024x128xf32>
    %cst_52 = arith.constant 0.000000e+00 : f32
    %87 = vector.broadcast %cst_52 : f32 to vector<1024x128xf32>
    %88 = arith.maximumf %86, %87 : vector<1024x128xf32>
    %c0_53 = arith.constant 0 : index
    %c0_54 = arith.constant 0 : index
    %c0_55 = arith.constant 0 : index
    %89 = vector.load %arg3[%c0_53, %c0_54, %c0_55] : memref<1x1024x128xf32, #tpu.memory_space<vmem>>, vector<1x1024x128xf32>
    %90 = vector.shape_cast %89 : vector<1x1024x128xf32> to vector<1024x128xf32>
    %91 = arith.addf %88, %90 : vector<1024x128xf32>
    %c0_56 = arith.constant 0 : index
    %c0_57 = arith.constant 0 : index
    %c0_58 = arith.constant 0 : index
    %92 = vector.load %arg8[%c0_56, %c0_57, %c0_58] : memref<1x1024x128xf32, #tpu.memory_space<vmem>>, vector<1x1024x128xf32>
    %93 = vector.shape_cast %92 : vector<1x1024x128xf32> to vector<1024x128xf32>
    %94 = vector.shape_cast %91 : vector<1024x128xf32> to vector<1x1024x128xf32>
    tpu.vector_store %arg8[%c0_56, %c0_57, %c0_58], %94 {strides = array<i32>} : memref<1x1024x128xf32, #tpu.memory_space<vmem>>, vector<1x1024x128xf32>,
    return
  }
  func.func @transform_0(%arg0: i32) -> (i32, i32, i32) {
    %c0_i32 = arith.constant 0 : i32
    %c0_i32_0 = arith.constant 0 : i32
    %c0_i32_1 = arith.constant 0 : i32
    return %arg0, %c0_i32, %c0_i32_0 : i32, i32, i32
  }
  func.func @transform_1(%arg0: i32) -> (i32, i32, i32) {
    %c0_i32 = arith.constant 0 : i32
    %c0_i32_0 = arith.constant 0 : i32
    %c0_i32_1 = arith.constant 0 : i32
    return %arg0, %c0_i32, %c0_i32_0 : i32, i32, i32
  }
  func.func @transform_2(%arg0: i32) -> (i32, i32, i32) {
    %c0_i32 = arith.constant 0 : i32
    %c0_i32_0 = arith.constant 0 : i32
    %c0_i32_1 = arith.constant 0 : i32
    return %arg0, %c0_i32, %c0_i32_0 : i32, i32, i32
  }
  func.func @transform_3(%arg0: i32) -> (i32, i32) {
    %c0_i32 = arith.constant 0 : i32
    %c0_i32_0 = arith.constant 0 : i32
    %c0_i32_1 = arith.constant 0 : i32
    return %c0_i32, %c0_i32_0 : i32, i32
  }
  func.func @transform_4(%arg0: i32) -> (i32, i32) {
    %c0_i32 = arith.constant 0 : i32
    %c0_i32_0 = arith.constant 0 : i32
    %c0_i32_1 = arith.constant 0 : i32
    return %c0_i32, %c0_i32_0 : i32, i32
  }
  func.func @transform_5(%arg0: i32) -> (i32, i32, i32) {
    %c0_i32 = arith.constant 0 : i32
    %c0_i32_0 = arith.constant 0 : i32
    %c0_i32_1 = arith.constant 0 : i32
    %c0_i32_2 = arith.constant 0 : i32
    return %c0_i32, %c0_i32_0, %c0_i32_1 : i32, i32, i32
  }
  func.func @transform_6(%arg0: i32) -> (i32, i32) {
    %c0_i32 = arith.constant 0 : i32
    %c0_i32_0 = arith.constant 0 : i32
    %c0_i32_1 = arith.constant 0 : i32
    return %c0_i32, %c0_i32_0 : i32, i32
  }
  func.func @transform_7(%arg0: i32) -> (i32, i32, i32) {
    %c0_i32 = arith.constant 0 : i32
    %c0_i32_0 = arith.constant 0 : i32
    %c0_i32_1 = arith.constant 0 : i32
    return %arg0, %c0_i32, %c0_i32_0 : i32, i32, i32
  }
}

</mosaic_0001>

<llo_original>
// kernel: tpu_custom_call.1
$region0: #{tpu_custom_call.1}
  #allocation0 [shape = 'u32[]', space=smem, size = 0x4, offset = 0x4, fixed_abs, tag = 'smem constant byte address 0x4 - core index']
  #allocation1 [shape = 'u32[144,128]{1,0:T(1,128)}', space=vmem, size = 0x12000, scoped, tag = 'internal scratch']
  %s0 = inlined_call_operand.hbm [shape: f32[16,128], index: 0, kind: input, shape index: {}]
  %s1 = inlined_call_operand.hbm [shape: f32[16,128], index: 1, kind: output, shape index: {}]
  %s2 = sld [smem:[#allocation0]]
  $region18: #{tpu_custom_call.1} parent=0
    _
  %s4 = ssub.s32 1, %s2
  %s5 = scalar_select 0, %s4, %s2
  $region1: #{tpu_custom_call.1} parent=0
    #allocation2 [shape = 'u8[8192]{0}', space=vmem, size = 0x2000, scoped, tag = 'input window, operand 0, single buffered']
    #allocation3 [shape = 's32[1]{0}', space=sflag, size = 0x4, scoped, tag = 'scoped memory for tpu_custom_call.1']
    #allocation4 [shape = 's32[1]{0}', space=sflag, size = 0x4, scoped, tag = 'scoped memory for tpu_custom_call.1']
    #allocation5 [shape = 'u8[8192]{0}', space=vmem, size = 0x2000, scoped, tag = 'output window, operand 0, single buffered']
    %6 = vsyncpa [#allocation3], 0
    %7 = vsyncpa [#allocation4], 0
    // Predicated region
    $region2: #{tpu_custom_call.1} parent=1 // pred_check
      _
    $region3: #{tpu_custom_call.1} parent=1 // pred_check_branch
      %9 = sbr.rel (0) target = $region5
    $region4: #{tpu_custom_call.1} parent=1 // pred_region
      %s11 = ssub.s32 256, 256
      %12 = vsyncadd [#allocation3], %s11
      %s13 = sshll.u32 [#allocation2], 4
      %s14 = int_to_ptr.vmem [resolvable:$true] %s13
      %19 = dma.hbm_to_vmem [thread:$0]  %s0, 256, %s14, [#allocation3], 128, 128, 8
    $region5: #{tpu_custom_call.1} parent=1 // pred_fallthru
      _
    // Predicated region
    $region6: #{tpu_custom_call.1} parent=1 // pred_check
      _
    $region7: #{tpu_custom_call.1} parent=1 // pred_check_branch
      %21 = sbr.rel (0) target = $region9
    $region8: #{tpu_custom_call.1} parent=1 // pred_region
      %22 = dma.done [#allocation3], 256
    $region9: #{tpu_custom_call.1} parent=1 // pred_fallthru
      _
    %v23 = vld [vmem:[#allocation2] sm:$0xff]
    %v24 = vld [vmem:[#allocation2 + $0x8] sm:$0xff]
    %v25 = vrot.slane %v23, 3
    %v26 = vrot.slane %v24, 3
    %v27 = vlaneseq
    %v28 = vshrl.u32 %v27, 7
    %vm29 = vcmp.lt.s32.totalorder %v28, 5
    %v30 = vsel %vm29, %v25, %v26
    %v31 = vsel %vm29, %v26, %v25
    %32 = vst [vmem:[#allocation5] sm:$0xff] %v31
    %33 = vst [vmem:[#allocation5 + $0x8] sm:$0xff] %v30
    // Predicated region
    $region10: #{tpu_custom_call.1} parent=1 // pred_check
      _
    $region11: #{tpu_custom_call.1} parent=1 // pred_check_branch
      %35 = sbr.rel (0) target = $region13
    $region12: #{tpu_custom_call.1} parent=1 // pred_region
      %s37 = ssub.s32 256, 256
      %38 = vsyncadd [#allocation4], %s37
      %s39 = sshll.u32 [#allocation5], 4
      %s40 = int_to_ptr.vmem [resolvable:$true] %s39
      %45 = dma.vmem_to_hbm [thread:$0]  %s40, 256, %s1, [#allocation4], 128, 128, 8
    $region13: #{tpu_custom_call.1} parent=1 // pred_fallthru
      _
    // Predicated region
    $region14: #{tpu_custom_call.1} parent=1 // pred_check
      _
    $region15: #{tpu_custom_call.1} parent=1 // pred_check_branch
      %47 = sbr.rel (0) target = $region17
    $region16: #{tpu_custom_call.1} parent=1 // pred_region
      %48 = dma.done [#allocation4], 256
    $region17: #{tpu_custom_call.1} parent=1 // pred_fallthru
      _
    %49 = vsyncpa [#allocation3], 1
    %50 = vsyncpa [#allocation4], 1

// kernel: tpu_custom_call.1
$region0: #{tpu_custom_call.1}
  #allocation0 [shape = 'u32[]', space=smem, size = 0x4, offset = 0x4, fixed_abs, tag = 'smem constant byte address 0x4 - core index']
  #allocation1 [shape = 'u32[144,128]{1,0:T(1,128)}', space=vmem, size = 0x12000, scoped, tag = 'internal scratch']
  #allocation2 [shape = 'f32[34,34,128]{2,1,0:T(8,128)}', space=vmem, size = 0xaa000, scoped, tag = 'scratch operand']
  %s0 = inlined_call_operand.hbm [shape: f32[2,1024,128], index: 0, kind: input, shape index: {}]
  %s1 = inlined_call_operand.hbm [shape: f32[2,1024,128], index: 1, kind: input, shape index: {}]
  %s2 = inlined_call_operand.hbm [shape: f32[2,1024,128], index: 2, kind: input, shape index: {}]
  %s3 = inlined_call_operand.hbm [shape: bf16[128,128], index: 3, kind: input, shape index: {}]
  %s4 = inlined_call_operand.vmem [shape: f32[1,128], index: 4, kind: input, shape index: {}]
  %s5 = inlined_call_operand.hbm [shape: bf16[9,128,128], index: 5, kind: input, shape index: {}]
  %s6 = inlined_call_operand.vmem [shape: f32[1,128], index: 6, kind: input, shape index: {}]
  %s7 = inlined_call_operand.hbm [shape: f32[2,1024,128], index: 7, kind: output, shape index: {}]
  %s8 = sld [smem:[#allocation0]]
  $region81: #{tpu_custom_call.1} parent=0
    _
  %s10 = ssub.s32 1, %s8
  %s11 = scalar_select 0, %s10, %s8
  $region1: #{tpu_custom_call.1} parent=0
    #allocation3 [shape = 'u8[1048576]{0}', space=vmem, size = 0x100000, scoped, tag = 'input window, operand 0']
    #allocation4 [shape = 's32[2]{0}', space=sflag, size = 0x8, scoped, tag = 'scoped memory for tpu_custom_call.1']
    #allocation5 [shape = 's32[2]{0}', space=sflag, size = 0x8, scoped, tag = 'scoped memory for tpu_custom_call.1']
    #allocation6 [shape = 'u8[1048576]{0}', space=vmem, size = 0x100000, scoped, tag = 'input window, operand 1']
    #allocation7 [shape = 's32[2]{0}', space=sflag, size = 0x8, scoped, tag = 'scoped memory for tpu_custom_call.1']
    #allocation8 [shape = 'u8[1048576]{0}', space=vmem, size = 0x100000, scoped, tag = 'input window, operand 2']
    #allocation9 [shape = 'u8[32768]{0}', space=vmem, size = 0x8000, scoped, tag = 'input window, operand 3, single buffered']
    #allocation10 [shape = 's32[1]{0}', space=sflag, size = 0x4, scoped, tag = 'scoped memory for tpu_custom_call.1']
    #allocation11 [shape = 'u8[294912]{0}', space=vmem, size = 0x48000, scoped, tag = 'input window, operand 5, single buffered']
    #allocation12 [shape = 'u8[1048576]{0}', space=vmem, size = 0x100000, scoped, tag = 'output window, operand 0']
    %12 = vsyncpa [#allocation4], 0
    %s13 = scalar_lea.sflag [#allocation4], 1
    %14 = vsyncpa %s13, 0
    %15 = vsyncpa [#allocation7], 0
    %s16 = scalar_lea.sflag [#allocation7], 1
    %17 = vsyncpa %s16, 0
    %18 = vsyncpa [#allocation10], 0
    %19 = vsyncpa [#allocation5], 0
    %s20 = scalar_lea.sflag [#allocation5], 1
    %21 = vsyncpa %s20, 0
    loop: start=0, step=1, limit=4
    $region2: #{tpu_custom_call.1} parent=1 // loop_pre_header
      _
    $region3: #{tpu_custom_call.1} parent=1 // loop_header
      %s23 = sphi 0, %s27
      %p24 = scmp.ge.s32.totalorder %s23, 4
      %s33 = sphi 0, %s35
      %s36 = sphi 0, %s33
      %s37 = sphi 0, %s36
      %s53 = sphi 0, %s37
      %s59 = sphi 0, %s61
      %s62 = sphi 0, %s59
      %s63 = sphi 0, %s62
      %s79 = sphi 0, %s63
      %s85 = sphi 0, %s87
      %s88 = sphi 0, %s85
      %s89 = sphi 0, %s88
      %s105 = sphi 0, %s89
      %s109 = sphi 0, %s109
      %s111 = sphi 0, %s109
      %s112 = sphi 0, %s111
      %s126 = sphi 0, %s112
      %s130 = sphi 0, %s130
      %s132 = sphi 0, %s130
      %s133 = sphi 0, %s132
      %s147 = sphi 0, %s133
      %s151 = sphi 0, %s151
      %s153 = sphi 0, %s151
      %s154 = sphi 0, %s153
      %s168 = sphi 0, %s154
      %s172 = sphi 0, %s172
      %s174 = sphi 0, %s172
      %s175 = sphi 0, %s174
      %s189 = sphi 0, %s175
      %s195 = sphi 0, %s197
      %s198 = sphi 0, %s195
      %s199 = sphi 0, %s198
      %s215 = sphi 0, %s199
    $region4: #{tpu_custom_call.1} parent=1 // loop_header_branch
      %26 = sbr.rel (%p24) target = $region8
    $region5: #{tpu_custom_call.1} parent=1 // loop_body
      %s28 = ssub.s32 %s23, 1
      %s29 = ssub.s32 %s23, 2
      %s30 = sadd.s32 %s23, 1
      %s31 = ssub.s32 %s23, %s30
      %p32 = scmp.eq.s32.totalorder %s31, 0
      %s34 = sadd.s32 %s33, 1
      %s35 = scalar_select %p32, %s33, %s34
      %p38 = pneg %p32
      %p39 = scmp.eq.s32.totalorder %s23, 1
      %p40 = por %p38, %p39
      %p41 = scmp.ne.s32.totalorder %s33, %s36
      %p42 = scmp.eq.s32.totalorder %s23, 0
      %p43 = por %p41, %p42
      %p44 = scmp.ne.s32.totalorder %s33, %s36
      %p45 = scmp.eq.s32.totalorder %s28, 1
      %p46 = por %p44, %p45
      %p47 = scmp.ne.s32.totalorder %s36, %s37
      %p48 = scmp.eq.s32.totalorder %s28, 0
      %p49 = por %p47, %p48
      %p50 = scmp.ne.s32.totalorder %s36, %s37
      %p51 = scmp.eq.s32.totalorder %s29, 1
      %p52 = por %p50, %p51
      %p54 = scmp.ne.s32.totalorder %s37, %s53
      %p55 = scmp.eq.s32.totalorder %s29, 0
      %p56 = por %p54, %p55
      %s57 = ssub.s32 %s23, %s30
      %p58 = scmp.eq.s32.totalorder %s57, 0
      %s60 = sadd.s32 %s59, 1
      %s61 = scalar_select %p58, %s59, %s60
      %p64 = pneg %p58
      %p65 = scmp.eq.s32.totalorder %s23, 1
      %p66 = por %p64, %p65
      %p67 = scmp.ne.s32.totalorder %s59, %s62
      %p68 = scmp.eq.s32.totalorder %s23, 0
      %p69 = por %p67, %p68
      %p70 = scmp.ne.s32.totalorder %s59, %s62
      %p71 = scmp.eq.s32.totalorder %s28, 1
      %p72 = por %p70, %p71
      %p73 = scmp.ne.s32.totalorder %s62, %s63
      %p74 = scmp.eq.s32.totalorder %s28, 0
      %p75 = por %p73, %p74
      %p76 = scmp.ne.s32.totalorder %s62, %s63
      %p77 = scmp.eq.s32.totalorder %s29, 1
      %p78 = por %p76, %p77
      %p80 = scmp.ne.s32.totalorder %s63, %s79
      %p81 = scmp.eq.s32.totalorder %s29, 0
      %p82 = por %p80, %p81
      %s83 = ssub.s32 %s23, %s30
      %p84 = scmp.eq.s32.totalorder %s83, 0
      %s86 = sadd.s32 %s85, 1
      %s87 = scalar_select %p84, %s85, %s86
      %p90 = pneg %p84
      %p91 = scmp.eq.s32.totalorder %s23, 1
      %p92 = por %p90, %p91
      %p93 = scmp.ne.s32.totalorder %s85, %s88
      %p94 = scmp.eq.s32.totalorder %s23, 0
      %p95 = por %p93, %p94
      %p96 = scmp.ne.s32.totalorder %s85, %s88
      %p97 = scmp.eq.s32.totalorder %s28, 1
      %p98 = por %p96, %p97
      %p99 = scmp.ne.s32.totalorder %s88, %s89
      %p100 = scmp.eq.s32.totalorder %s28, 0
      %p101 = por %p99, %p100
      %p102 = scmp.ne.s32.totalorder %s88, %s89
      %p103 = scmp.eq.s32.totalorder %s29, 1
      %p104 = por %p102, %p103
      %p106 = scmp.ne.s32.totalorder %s89, %s105
      %p107 = scmp.eq.s32.totalorder %s29, 0
      %p108 = por %p106, %p107
      %s110 = sadd.s32 %s109, 1
      %p113 = scmp.eq.s32.totalorder %s23, 1
      %p114 = scmp.ne.s32.totalorder %s109, %s111
      %p115 = scmp.eq.s32.totalorder %s23, 0
      %p116 = por %p114, %p115
      %p117 = scmp.ne.s32.totalorder %s109, %s111
      %p118 = scmp.eq.s32.totalorder %s28, 1
      %p119 = por %p117, %p118
      %p120 = scmp.ne.s32.totalorder %s111, %s112
      %p121 = scmp.eq.s32.totalorder %s28, 0
      %p122 = por %p120, %p121
      %p123 = scmp.ne.s32.totalorder %s111, %s112
      %p124 = scmp.eq.s32.totalorder %s29, 1
      %p125 = por %p123, %p124
      %p127 = scmp.ne.s32.totalorder %s112, %s126
      %p128 = scmp.eq.s32.totalorder %s29, 0
      %p129 = por %p127, %p128
      %s131 = sadd.s32 %s130, 1
      %p134 = scmp.eq.s32.totalorder %s23, 1
      %p135 = scmp.ne.s32.totalorder %s130, %s132
      %p136 = scmp.eq.s32.totalorder %s23, 0
      %p137 = por %p135, %p136
      %p138 = scmp.ne.s32.totalorder %s130, %s132
      %p139 = scmp.eq.s32.totalorder %s28, 1
      %p140 = por %p138, %p139
      %p141 = scmp.ne.s32.totalorder %s132, %s133
      %p142 = scmp.eq.s32.totalorder %s28, 0
      %p143 = por %p141, %p142
      %p144 = scmp.ne.s32.totalorder %s132, %s133
      %p145 = scmp.eq.s32.totalorder %s29, 1
      %p146 = por %p144, %p145
      %p148 = scmp.ne.s32.totalorder %s133, %s147
      %p149 = scmp.eq.s32.totalorder %s29, 0
      %p150 = por %p148, %p149
      %s152 = sadd.s32 %s151, 1
      %p155 = scmp.eq.s32.totalorder %s23, 1
      %p156 = scmp.ne.s32.totalorder %s151, %s153
      %p157 = scmp.eq.s32.totalorder %s23, 0
      %p158 = por %p156, %p157
      %p159 = scmp.ne.s32.totalorder %s151, %s153
      %p160 = scmp.eq.s32.totalorder %s28, 1
      %p161 = por %p159, %p160
      %p162 = scmp.ne.s32.totalorder %s153, %s154
      %p163 = scmp.eq.s32.totalorder %s28, 0
      %p164 = por %p162, %p163
      %p165 = scmp.ne.s32.totalorder %s153, %s154
      %p166 = scmp.eq.s32.totalorder %s29, 1
      %p167 = por %p165, %p166
      %p169 = scmp.ne.s32.totalorder %s154, %s168
      %p170 = scmp.eq.s32.totalorder %s29, 0
      %p171 = por %p169, %p170
      %s173 = sadd.s32 %s172, 1
      %p176 = scmp.eq.s32.totalorder %s23, 1
      %p177 = scmp.ne.s32.totalorder %s172, %s174
      %p178 = scmp.eq.s32.totalorder %s23, 0
      %p179 = por %p177, %p178
      %p180 = scmp.ne.s32.totalorder %s172, %s174
      %p181 = scmp.eq.s32.totalorder %s28, 1
      %p182 = por %p180, %p181
      %p183 = scmp.ne.s32.totalorder %s174, %s175
      %p184 = scmp.eq.s32.totalorder %s28, 0
      %p185 = por %p183, %p184
      %p186 = scmp.ne.s32.totalorder %s174, %s175
      %p187 = scmp.eq.s32.totalorder %s29, 1
      %p188 = por %p186, %p187
      %p190 = scmp.ne.s32.totalorder %s175, %s189
      %p191 = scmp.eq.s32.totalorder %s29, 0
      %p192 = por %p190, %p191
      %s193 = ssub.s32 %s23, %s30
      %p194 = scmp.eq.s32.totalorder %s193, 0
      %s196 = sadd.s32 %s195, 1
      %s197 = scalar_select %p194, %s195, %s196
      %p200 = pneg %p194
      %p201 = scmp.eq.s32.totalorder %s23, 1
      %p202 = por %p200, %p201
      %p203 = scmp.ne.s32.totalorder %s195, %s198
      %p204 = scmp.eq.s32.totalorder %s23, 0
      %p205 = por %p203, %p204
      %p206 = scmp.ne.s32.totalorder %s195, %s198
      %p207 = scmp.eq.s32.totalorder %s28, 1
      %p208 = por %p206, %p207
      %p209 = scmp.ne.s32.totalorder %s198, %s199
      %p210 = scmp.eq.s32.totalorder %s28, 0
      %p211 = por %p209, %p210
      %p212 = scmp.ne.s32.totalorder %s198, %s199
      %p213 = scmp.eq.s32.totalorder %s29, 1
      %p214 = por %p212, %p213
      %p216 = scmp.ne.s32.totalorder %s199, %s215
      %p217 = scmp.eq.s32.totalorder %s29, 0
      %p218 = por %p216, %p217
      %p219 = scmp.le.s32.totalorder 1, %s23
      %p220 = scmp.lt.s32.totalorder %s23, 3
      %p221 = pnand %p219, %p220
      %p222 = pneg %p221
      // Predicated region
      $region9: #{tpu_custom_call.1} parent=5 // pred_check
        _
      $region10: #{tpu_custom_call.1} parent=5 // pred_check_branch
        %224 = sbr.rel (%p221) target = $region12
      $region11: #{tpu_custom_call.1} parent=5 // pred_region
        %s225 = ssub.s32 %s23, 1
        // Predicated region
        $region13: #{tpu_custom_call.1} parent=11 // pred_check
          %p226 = pneg %p122
        $region14: #{tpu_custom_call.1} parent=11 // pred_check_branch
          %228 = sbr.rel (%p226) target = $region16
        $region15: #{tpu_custom_call.1} parent=11 // pred_region
          %s230 = ssub.s32 1024, 1024
          %231 = vsyncadd [#allocation10], %s230
          %s232 = sshll.u32 [#allocation9], 4
          %s233 = int_to_ptr.vmem [resolvable:$true] %s232
          %238 = dma.hbm_to_vmem [thread:$0]  %s3, 1024, %s233, [#allocation10], 64, 64, 4
        $region16: #{tpu_custom_call.1} parent=11 // pred_fallthru
          _
        // Predicated region
        $region17: #{tpu_custom_call.1} parent=11 // pred_check
          %p239 = pneg %p143
        $region18: #{tpu_custom_call.1} parent=11 // pred_check_branch
          %241 = sbr.rel (%p239) target = $region20
        $region19: #{tpu_custom_call.1} parent=11 // pred_region
          _
        $region20: #{tpu_custom_call.1} parent=11 // pred_fallthru
          _
        // Predicated region
        $region21: #{tpu_custom_call.1} parent=11 // pred_check
          %p242 = pneg %p164
        $region22: #{tpu_custom_call.1} parent=11 // pred_check_branch
          %244 = sbr.rel (%p242) target = $region24
        $region23: #{tpu_custom_call.1} parent=11 // pred_region
          %s246 = ssub.s32 9216, 9216
          %247 = vsyncadd [#allocation10], %s246
          %s248 = sshll.u32 [#allocation11], 4
          %s249 = int_to_ptr.vmem [resolvable:$true] %s248
          %254 = dma.hbm_to_vmem [thread:$0]  %s5, 9216, %s249, [#allocation10], 64, 64, 4
        $region24: #{tpu_custom_call.1} parent=11 // pred_fallthru
          _
        // Predicated region
        $region25: #{tpu_custom_call.1} parent=11 // pred_check
          %p255 = pneg %p185
        $region26: #{tpu_custom_call.1} parent=11 // pred_check_branch
          %257 = sbr.rel (%p255) target = $region28
        $region27: #{tpu_custom_call.1} parent=11 // pred_region
          _
        $region28: #{tpu_custom_call.1} parent=11 // pred_fallthru
          _
      $region12: #{tpu_custom_call.1} parent=5 // pred_fallthru
        _
      %p258 = scmp.lt.s32.totalorder %s23, 2
      // Predicated region
      $region29: #{tpu_custom_call.1} parent=5 // pred_check
        %p259 = pneg %p258
      $region30: #{tpu_custom_call.1} parent=5 // pred_check_branch
        %261 = sbr.rel (%p259) target = $region32
      $region31: #{tpu_custom_call.1} parent=5 // pred_region
        // Predicated region
        $region33: #{tpu_custom_call.1} parent=31 // pred_check
          %p262 = pneg %p43
        $region34: #{tpu_custom_call.1} parent=31 // pred_check_branch
          %264 = sbr.rel (%p262) target = $region36
        $region35: #{tpu_custom_call.1} parent=31 // pred_region
          %s265 = sand.u32 %s33, 1
          %s266 = scalar_lea.sflag [#allocation4], %s265
          %s267 = sand.u32 %s33, 1
          %s268 = smul.addr %s267, 1024
          %s269 = scalar_lea.vmem [#allocation3], %s268
          %s271 = ssub.s32 16384, 16384
          %272 = vsyncadd %s266, %s271
          %s273 = smul.addr %s23, 128
          %s274 = smul.addr %s273, 128
          %s275 = scalar_lea.hbm %s0, %s274
          %s276 = sshll.u32 %s269, 4
          %s277 = int_to_ptr.vmem [resolvable:$true] %s276
          %282 = dma.hbm_to_vmem [thread:$0]  %s275, 16384, %s277, %s266, 128, 128, 8
        $region36: #{tpu_custom_call.1} parent=31 // pred_fallthru
          _
        // Predicated region
        $region37: #{tpu_custom_call.1} parent=31 // pred_check
          %p283 = pneg %p69
        $region38: #{tpu_custom_call.1} parent=31 // pred_check_branch
          %285 = sbr.rel (%p283) target = $region40
        $region39: #{tpu_custom_call.1} parent=31 // pred_region
          %s286 = sand.u32 %s23, 1
          %s287 = scalar_lea.sflag [#allocation7], %s286
          %s288 = sand.u32 %s59, 1
          %s289 = smul.addr %s288, 1024
          %s290 = scalar_lea.vmem [#allocation6], %s289
          %s292 = ssub.s32 16384, 16384
          %293 = vsyncadd %s287, %s292
          %s294 = smul.addr %s23, 128
          %s295 = smul.addr %s294, 128
          %s296 = scalar_lea.hbm %s1, %s295
          %s297 = sshll.u32 %s290, 4
          %s298 = int_to_ptr.vmem [resolvable:$true] %s297
          %303 = dma.hbm_to_vmem [thread:$0]  %s296, 16384, %s298, %s287, 128, 128, 8
        $region40: #{tpu_custom_call.1} parent=31 // pred_fallthru
          _
        // Predicated region
        $region41: #{tpu_custom_call.1} parent=31 // pred_check
          %p304 = pneg %p95
        $region42: #{tpu_custom_call.1} parent=31 // pred_check_branch
          %306 = sbr.rel (%p304) target = $region44
        $region43: #{tpu_custom_call.1} parent=31 // pred_region
          %s307 = sand.u32 %s23, 1
          %s308 = scalar_lea.sflag [#allocation7], %s307
          %s309 = sand.u32 %s85, 1
          %s310 = smul.addr %s309, 1024
          %s311 = scalar_lea.vmem [#allocation8], %s310
          %s313 = ssub.s32 16384, 16384
          %314 = vsyncadd %s308, %s313
          %s315 = smul.addr %s23, 128
          %s316 = smul.addr %s315, 128
          %s317 = scalar_lea.hbm %s2, %s316
          %s318 = sshll.u32 %s311, 4
          %s319 = int_to_ptr.vmem [resolvable:$true] %s318
          %324 = dma.hbm_to_vmem [thread:$0]  %s317, 16384, %s319, %s308, 128, 128, 8
        $region44: #{tpu_custom_call.1} parent=31 // pred_fallthru
          _
      $region32: #{tpu_custom_call.1} parent=5 // pred_fallthru
        _
      %p325 = scmp.le.s32.totalorder 1, %s23
      %p326 = scmp.lt.s32.totalorder %s23, 3
      %p327 = pnand %p325, %p326
      %p328 = pneg %p327
      // Predicated region
      $region45: #{tpu_custom_call.1} parent=5 // pred_check
        _
      $region46: #{tpu_custom_call.1} parent=5 // pred_check_branch
        %330 = sbr.rel (%p327) target = $region48
      $region47: #{tpu_custom_call.1} parent=5 // pred_region
        %s331 = ssub.s32 %s23, 1
        %s332 = sand.u32 %s36, 1
        %s333 = scalar_lea.sflag [#allocation4], %s332
        %s334 = sand.u32 %s36, 1
        %s335 = smul.addr %s334, 1024
        %s336 = scalar_lea.vmem [#allocation3], %s335
        // Predicated region
        $region49: #{tpu_custom_call.1} parent=47 // pred_check
          %p337 = pneg %p49
        $region50: #{tpu_custom_call.1} parent=47 // pred_check_branch
          %339 = sbr.rel (%p337) target = $region52
        $region51: #{tpu_custom_call.1} parent=47 // pred_region
          %340 = dma.done %s333, 16384
        $region52: #{tpu_custom_call.1} parent=47 // pred_fallthru
          _
        %s341 = sand.u32 %s28, 1
        %s342 = scalar_lea.sflag [#allocation7], %s341
        %s343 = sand.u32 %s62, 1
        %s344 = smul.addr %s343, 1024
        %s345 = scalar_lea.vmem [#allocation6], %s344
        // Predicated region
        $region53: #{tpu_custom_call.1} parent=47 // pred_check
          %p346 = pneg %p75
        $region54: #{tpu_custom_call.1} parent=47 // pred_check_branch
          %348 = sbr.rel (%p346) target = $region56
        $region55: #{tpu_custom_call.1} parent=47 // pred_region
          %349 = dma.done %s342, 16384
        $region56: #{tpu_custom_call.1} parent=47 // pred_fallthru
          _
        %s350 = sand.u32 %s28, 1
        %s351 = scalar_lea.sflag [#allocation7], %s350
        %s352 = sand.u32 %s88, 1
        %s353 = smul.addr %s352, 1024
        %s354 = scalar_lea.vmem [#allocation8], %s353
        // Predicated region
        $region57: #{tpu_custom_call.1} parent=47 // pred_check
          %p355 = pneg %p101
        $region58: #{tpu_custom_call.1} parent=47 // pred_check_branch
          %357 = sbr.rel (%p355) target = $region60
        $region59: #{tpu_custom_call.1} parent=47 // pred_region
          %358 = dma.done %s351, 16384
        $region60: #{tpu_custom_call.1} parent=47 // pred_fallthru
          _
        // Predicated region
        $region61: #{tpu_custom_call.1} parent=47 // pred_check
          %p359 = pneg %p122
        $region62: #{tpu_custom_call.1} parent=47 // pred_check_branch
          %361 = sbr.rel (%p359) target = $region64
        $region63: #{tpu_custom_call.1} parent=47 // pred_region
          %362 = dma.done [#allocation10], 1024
        $region64: #{tpu_custom_call.1} parent=47 // pred_fallthru
          _
        // Predicated region
        $region65: #{tpu_custom_call.1} parent=47 // pred_check
          %p363 = pneg %p164
        $region66: #{tpu_custom_call.1} parent=47 // pred_check_branch
          %365 = sbr.rel (%p363) target = $region68
        $region67: #{tpu_custom_call.1} parent=47 // pred_region
          %366 = dma.done [#allocation10], 9216
        $region68: #{tpu_custom_call.1} parent=47 // pred_fallthru
          _
        %s367 = sand.u32 %s36, 1
        %s368 = scalar_lea.sflag [#allocation4], %s367
        %s369 = sand.u32 %s36, 1
        %s370 = smul.addr %s369, 1024
        %s371 = scalar_lea.vmem [#allocation3], %s370
        %p372 = pneg %p49
        %p373 = pneg %p46
        %s374 = sand.u32 %s28, 1
        %s375 = scalar_lea.sflag [#allocation7], %s374
        %s376 = sand.u32 %s62, 1
        %s377 = smul.addr %s376, 1024
        %s378 = scalar_lea.vmem [#allocation6], %s377
        %p379 = pneg %p75
        %p380 = pneg %p72
        %s381 = sand.u32 %s28, 1
        %s382 = scalar_lea.sflag [#allocation7], %s381
        %s383 = sand.u32 %s88, 1
        %s384 = smul.addr %s383, 1024
        %s385 = scalar_lea.vmem [#allocation8], %s384
        %p386 = pneg %p101
        %p387 = pneg %p98
        %p388 = pneg %p122
        %p389 = pneg %p119
        %p390 = pneg %p143
        %p391 = pneg %p140
        %p392 = pneg %p164
        %p393 = pneg %p161
        %p394 = pneg %p185
        %p395 = pneg %p182
        %p396 = pneg %p211
        %p397 = pneg %p208
        %s398 = sand.u32 %s198, 1
        %s399 = scalar_lea.sflag [#allocation5], %s398
        %s400 = sand.u32 %s198, 1
        %s401 = smul.addr %s400, 1024
        %s402 = scalar_lea.vmem [#allocation12], %s401
        %v404 = vld [vmem:[%s336] sm:$0xff]
        %v405 = vld [vmem:[%s336 + $0x8] sm:$0xff]
        %v406 = vld [vmem:[%s336 + $0x10] sm:$0xff]
        %v407 = vld [vmem:[%s336 + $0x18] sm:$0xff]
        %v408 = vld [vmem:[%s336 + $0x20] sm:$0xff]
        %v409 = vld [vmem:[%s336 + $0x28] sm:$0xff]
        %v410 = vld [vmem:[%s336 + $0x30] sm:$0xff]
        %v411 = vld [vmem:[%s336 + $0x38] sm:$0xff]
        %v412 = vld [vmem:[%s336 + $0x40] sm:$0xff]
        %v413 = vld [vmem:[%s336 + $0x48] sm:$0xff]
        %v414 = vld [vmem:[%s336 + $0x50] sm:$0xff]
        %v415 = vld [vmem:[%s336 + $0x58] sm:$0xff]
        %v416 = vld [vmem:[%s336 + $0x60] sm:$0xff]
        %v417 = vld [vmem:[%s336 + $0x68] sm:$0xff]
        %v418 = vld [vmem:[%s336 + $0x70] sm:$0xff]
        %v419 = vld [vmem:[%s336 + $0x78] sm:$0xff]
        %v420 = vld [vmem:[%s336 + $0x80] sm:$0xff]
        %v421 = vld [vmem:[%s336 + $0x88] sm:$0xff]
        %v422 = vld [vmem:[%s336 + $0x90] sm:$0xff]
        %v423 = vld [vmem:[%s336 + $0x98] sm:$0xff]
        %v424 = vld [vmem:[%s336 + $0xa0] sm:$0xff]
        %v425 = vld [vmem:[%s336 + $0xa8] sm:$0xff]
        %v426 = vld [vmem:[%s336 + $0xb0] sm:$0xff]
        %v427 = vld [vmem:[%s336 + $0xb8] sm:$0xff]
        %v428 = vld [vmem:[%s336 + $0xc0] sm:$0xff]
        %v429 = vld [vmem:[%s336 + $0xc8] sm:$0xff]
        %v430 = vld [vmem:[%s336 + $0xd0] sm:$0xff]
        %v431 = vld [vmem:[%s336 + $0xd8] sm:$0xff]
        %v432 = vld [vmem:[%s336 + $0xe0] sm:$0xff]
        %v433 = vld [vmem:[%s336 + $0xe8] sm:$0xff]
        %v434 = vld [vmem:[%s336 + $0xf0] sm:$0xff]
        %v435 = vld [vmem:[%s336 + $0xf8] sm:$0xff]
        %v436 = vld [vmem:[%s336 + $0x100] sm:$0xff]
        %v437 = vld [vmem:[%s336 + $0x108] sm:$0xff]
        %v438 = vld [vmem:[%s336 + $0x110] sm:$0xff]
        %v439 = vld [vmem:[%s336 + $0x118] sm:$0xff]
        %v440 = vld [vmem:[%s336 + $0x120] sm:$0xff]
        %v441 = vld [vmem:[%s336 + $0x128] sm:$0xff]
        %v442 = vld [vmem:[%s336 + $0x130] sm:$0xff]
        %v443 = vld [vmem:[%s336 + $0x138] sm:$0xff]
        %v444 = vld [vmem:[%s336 + $0x140] sm:$0xff]
        %v445 = vld [vmem:[%s336 + $0x148] sm:$0xff]
        %v446 = vld [vmem:[%s336 + $0x150] sm:$0xff]
        %v447 = vld [vmem:[%s336 + $0x158] sm:$0xff]
        %v448 = vld [vmem:[%s336 + $0x160] sm:$0xff]
        %v449 = vld [vmem:[%s336 + $0x168] sm:$0xff]
        %v450 = vld [vmem:[%s336 + $0x170] sm:$0xff]
        %v451 = vld [vmem:[%s336 + $0x178] sm:$0xff]
        %v452 = vld [vmem:[%s336 + $0x180] sm:$0xff]
        %v453 = vld [vmem:[%s336 + $0x188] sm:$0xff]
        %v454 = vld [vmem:[%s336 + $0x190] sm:$0xff]
        %v455 = vld [vmem:[%s336 + $0x198] sm:$0xff]
        %v456 = vld [vmem:[%s336 + $0x1a0] sm:$0xff]
        %v457 = vld [vmem:[%s336 + $0x1a8] sm:$0xff]
        %v458 = vld [vmem:[%s336 + $0x1b0] sm:$0xff]
        %v459 = vld [vmem:[%s336 + $0x1b8] sm:$0xff]
        %v460 = vld [vmem:[%s336 + $0x1c0] sm:$0xff]
        %v461 = vld [vmem:[%s336 + $0x1c8] sm:$0xff]
        %v462 = vld [vmem:[%s336 + $0x1d0] sm:$0xff]
        %v463 = vld [vmem:[%s336 + $0x1d8] sm:$0xff]
        %v464 = vld [vmem:[%s336 + $0x1e0] sm:$0xff]
        %v465 = vld [vmem:[%s336 + $0x1e8] sm:$0xff]
        %v466 = vld [vmem:[%s336 + $0x1f0] sm:$0xff]
        %v467 = vld [vmem:[%s336 + $0x1f8] sm:$0xff]
        %v468 = vld [vmem:[%s336 + $0x200] sm:$0xff]
        %v469 = vld [vmem:[%s336 + $0x208] sm:$0xff]
        %v470 = vld [vmem:[%s336 + $0x210] sm:$0xff]
        %v471 = vld [vmem:[%s336 + $0x218] sm:$0xff]
        %v472 = vld [vmem:[%s336 + $0x220] sm:$0xff]
        %v473 = vld [vmem:[%s336 + $0x228] sm:$0xff]
        %v474 = vld [vmem:[%s336 + $0x230] sm:$0xff]
        %v475 = vld [vmem:[%s336 + $0x238] sm:$0xff]
        %v476 = vld [vmem:[%s336 + $0x240] sm:$0xff]
        %v477 = vld [vmem:[%s336 + $0x248] sm:$0xff]
        %v478 = vld [vmem:[%s336 + $0x250] sm:$0xff]
        %v479 = vld [vmem:[%s336 + $0x258] sm:$0xff]
        %v480 = vld [vmem:[%s336 + $0x260] sm:$0xff]
        %v481 = vld [vmem:[%s336 + $0x268] sm:$0xff]
        %v482 = vld [vmem:[%s336 + $0x270] sm:$0xff]
        %v483 = vld [vmem:[%s336 + $0x278] sm:$0xff]
        %v484 = vld [vmem:[%s336 + $0x280] sm:$0xff]
        %v485 = vld [vmem:[%s336 + $0x288] sm:$0xff]
        %v486 = vld [vmem:[%s336 + $0x290] sm:$0xff]
        %v487 = vld [vmem:[%s336 + $0x298] sm:$0xff]
        %v488 = vld [vmem:[%s336 + $0x2a0] sm:$0xff]
        %v489 = vld [vmem:[%s336 + $0x2a8] sm:$0xff]
        %v490 = vld [vmem:[%s336 + $0x2b0] sm:$0xff]
        %v491 = vld [vmem:[%s336 + $0x2b8] sm:$0xff]
        %v492 = vld [vmem:[%s336 + $0x2c0] sm:$0xff]
        %v493 = vld [vmem:[%s336 + $0x2c8] sm:$0xff]
        %v494 = vld [vmem:[%s336 + $0x2d0] sm:$0xff]
        %v495 = vld [vmem:[%s336 + $0x2d8] sm:$0xff]
        %v496 = vld [vmem:[%s336 + $0x2e0] sm:$0xff]
        %v497 = vld [vmem:[%s336 + $0x2e8] sm:$0xff]
        %v498 = vld [vmem:[%s336 + $0x2f0] sm:$0xff]
        %v499 = vld [vmem:[%s336 + $0x2f8] sm:$0xff]
        %v500 = vld [vmem:[%s336 + $0x300] sm:$0xff]
        %v501 = vld [vmem:[%s336 + $0x308] sm:$0xff]
        %v502 = vld [vmem:[%s336 + $0x310] sm:$0xff]
        %v503 = vld [vmem:[%s336 + $0x318] sm:$0xff]
        %v504 = vld [vmem:[%s336 + $0x320] sm:$0xff]
        %v505 = vld [vmem:[%s336 + $0x328] sm:$0xff]
        %v506 = vld [vmem:[%s336 + $0x330] sm:$0xff]
        %v507 = vld [vmem:[%s336 + $0x338] sm:$0xff]
        %v508 = vld [vmem:[%s336 + $0x340] sm:$0xff]
        %v509 = vld [vmem:[%s336 + $0x348] sm:$0xff]
        %v510 = vld [vmem:[%s336 + $0x350] sm:$0xff]
        %v511 = vld [vmem:[%s336 + $0x358] sm:$0xff]
        %v512 = vld [vmem:[%s336 + $0x360] sm:$0xff]
        %v513 = vld [vmem:[%s336 + $0x368] sm:$0xff]
        %v514 = vld [vmem:[%s336 + $0x370] sm:$0xff]
        %v515 = vld [vmem:[%s336 + $0x378] sm:$0xff]
        %v516 = vld [vmem:[%s336 + $0x380] sm:$0xff]
        %v517 = vld [vmem:[%s336 + $0x388] sm:$0xff]
        %v518 = vld [vmem:[%s336 + $0x390] sm:$0xff]
        %v519 = vld [vmem:[%s336 + $0x398] sm:$0xff]
        %v520 = vld [vmem:[%s336 + $0x3a0] sm:$0xff]
        %v521 = vld [vmem:[%s336 + $0x3a8] sm:$0xff]
        %v522 = vld [vmem:[%s336 + $0x3b0] sm:$0xff]
        %v523 = vld [vmem:[%s336 + $0x3b8] sm:$0xff]
        %v524 = vld [vmem:[%s336 + $0x3c0] sm:$0xff]
        %v525 = vld [vmem:[%s336 + $0x3c8] sm:$0xff]
        %v526 = vld [vmem:[%s336 + $0x3d0] sm:$0xff]
        %v527 = vld [vmem:[%s336 + $0x3d8] sm:$0xff]
        %v528 = vld [vmem:[%s336 + $0x3e0] sm:$0xff]
        %v529 = vld [vmem:[%s336 + $0x3e8] sm:$0xff]
        %v530 = vld [vmem:[%s336 + $0x3f0] sm:$0xff]
        %v531 = vld [vmem:[%s336 + $0x3f8] sm:$0xff]
        %v532 = vpack.c.bf16 %v405, %v404
        %v533 = vpack.c.bf16 %v407, %v406
        %v534 = vpack.c.bf16 %v409, %v408
        %v535 = vpack.c.bf16 %v411, %v410
        %v536 = vpack.c.bf16 %v413, %v412
        %v537 = vpack.c.bf16 %v415, %v414
        %v538 = vpack.c.bf16 %v417, %v416
        %v539 = vpack.c.bf16 %v419, %v418
        %v540 = vpack.c.bf16 %v421, %v420
        %v541 = vpack.c.bf16 %v423, %v422
        %v542 = vpack.c.bf16 %v425, %v424
        %v543 = vpack.c.bf16 %v427, %v426
        %v544 = vpack.c.bf16 %v429, %v428
        %v545 = vpack.c.bf16 %v431, %v430
        %v546 = vpack.c.bf16 %v433, %v432
        %v547 = vpack.c.bf16 %v435, %v434
        %v548 = vpack.c.bf16 %v437, %v436
        %v549 = vpack.c.bf16 %v439, %v438
        %v550 = vpack.c.bf16 %v441, %v440
        %v551 = vpack.c.bf16 %v443, %v442
        %v552 = vpack.c.bf16 %v445, %v444
        %v553 = vpack.c.bf16 %v447, %v446
        %v554 = vpack.c.bf16 %v449, %v448
        %v555 = vpack.c.bf16 %v451, %v450
        %v556 = vpack.c.bf16 %v453, %v452
        %v557 = vpack.c.bf16 %v455, %v454
        %v558 = vpack.c.bf16 %v457, %v456
        %v559 = vpack.c.bf16 %v459, %v458
        %v560 = vpack.c.bf16 %v461, %v460
        %v561 = vpack.c.bf16 %v463, %v462
        %v562 = vpack.c.bf16 %v465, %v464
        %v563 = vpack.c.bf16 %v467, %v466
        %v564 = vpack.c.bf16 %v469, %v468
        %v565 = vpack.c.bf16 %v471, %v470
        %v566 = vpack.c.bf16 %v473, %v472
        %v567 = vpack.c.bf16 %v475, %v474
        %v568 = vpack.c.bf16 %v477, %v476
        %v569 = vpack.c.bf16 %v479, %v478
        %v570 = vpack.c.bf16 %v481, %v480
        %v571 = vpack.c.bf16 %v483, %v482
        %v572 = vpack.c.bf16 %v485, %v484
        %v573 = vpack.c.bf16 %v487, %v486
        %v574 = vpack.c.bf16 %v489, %v488
        %v575 = vpack.c.bf16 %v491, %v490
        %v576 = vpack.c.bf16 %v493, %v492
        %v577 = vpack.c.bf16 %v495, %v494
        %v578 = vpack.c.bf16 %v497, %v496
        %v579 = vpack.c.bf16 %v499, %v498
        %v580 = vpack.c.bf16 %v501, %v500
        %v581 = vpack.c.bf16 %v503, %v502
        %v582 = vpack.c.bf16 %v505, %v504
        %v583 = vpack.c.bf16 %v507, %v506
        %v584 = vpack.c.bf16 %v509, %v508
        %v585 = vpack.c.bf16 %v511, %v510
        %v586 = vpack.c.bf16 %v513, %v512
        %v587 = vpack.c.bf16 %v515, %v514
        %v588 = vpack.c.bf16 %v517, %v516
        %v589 = vpack.c.bf16 %v519, %v518
        %v590 = vpack.c.bf16 %v521, %v520
        %v591 = vpack.c.bf16 %v523, %v522
        %v592 = vpack.c.bf16 %v525, %v524
        %v593 = vpack.c.bf16 %v527, %v526
        %v594 = vpack.c.bf16 %v529, %v528
        %v595 = vpack.c.bf16 %v531, %v530
        %v596 = vld [vmem:[#allocation9] sm:$0xf]
        %v597 = vld [vmem:[#allocation9 + $0x4] sm:$0xf]
        %v598 = vld [vmem:[#allocation9 + $0x8] sm:$0xf]
        %v599 = vld [vmem:[#allocation9 + $0xc] sm:$0xf]
        %v600 = vld [vmem:[#allocation9 + $0x10] sm:$0xf]
        %v601 = vld [vmem:[#allocation9 + $0x14] sm:$0xf]
        %v602 = vld [vmem:[#allocation9 + $0x18] sm:$0xf]
        %v603 = vld [vmem:[#allocation9 + $0x1c] sm:$0xf]
        %v604 = vld [vmem:[#allocation9 + $0x20] sm:$0xf]
        %v605 = vld [vmem:[#allocation9 + $0x24] sm:$0xf]
        %v606 = vld [vmem:[#allocation9 + $0x28] sm:$0xf]
        %v607 = vld [vmem:[#allocation9 + $0x2c] sm:$0xf]
        %v608 = vld [vmem:[#allocation9 + $0x30] sm:$0xf]
        %v609 = vld [vmem:[#allocation9 + $0x34] sm:$0xf]
        %v610 = vld [vmem:[#allocation9 + $0x38] sm:$0xf]
        %v611 = vld [vmem:[#allocation9 + $0x3c] sm:$0xf]
        %v612 = vld [vmem:[%s4] sm:$0x1]
        %v614 = vlaneseq
        %v615 = vshrl.u32 %v614, 7
        %v616 = vsub.s32 0, %v615
        %v617 = vrot.slane %v612, %v616
        %v635 = vunpack.c.l.b16 %v596
        %v636 = vunpack.c.l.b16 %v597
        %v637 = vunpack.c.l.b16 %v598
        %v638 = vunpack.c.l.b16 %v599
        %v639 = vunpack.c.l.b16 %v600
        %v640 = vunpack.c.l.b16 %v601
        %v641 = vunpack.c.l.b16 %v602
        %v642 = vunpack.c.l.b16 %v603
        %v643 = vunpack.c.l.b16 %v604
        %v644 = vunpack.c.l.b16 %v605
        %v645 = vunpack.c.l.b16 %v606
        %v646 = vunpack.c.l.b16 %v607
        %v647 = vunpack.c.l.b16 %v608
        %v648 = vunpack.c.l.b16 %v609
        %v649 = vunpack.c.l.b16 %v610
        %v650 = vunpack.c.l.b16 %v611
        %v651 = vpack.c.b16 %v636, %v635
        %v652 = vpack.c.b16 %v638, %v637
        %v653 = vpack.c.b16 %v640, %v639
        %v654 = vpack.c.b16 %v642, %v641
        %v655 = vpack.c.b16 %v644, %v643
        %v656 = vpack.c.b16 %v646, %v645
        %v657 = vpack.c.b16 %v648, %v647
        %v658 = vpack.c.b16 %v650, %v649
        %667 = vmatprep.subr.bf16.mxu0 0
        %668 = vmatpush1.bf16.msra.mxu0 %v658
        %669 = vmatprep.subr.bf16.mxu0 0
        %670 = vmatpush1.bf16.msra.mxu0 %v657
        %671 = vmatprep.subr.bf16.mxu0 0
        %672 = vmatpush1.bf16.msra.mxu0 %v656
        %673 = vmatprep.subr.bf16.mxu0 0
        %674 = vmatpush1.bf16.msra.mxu0 %v655
        %675 = vmatprep.subr.bf16.mxu0 0
        %676 = vmatpush1.bf16.msra.mxu0 %v654
        %677 = vmatprep.subr.bf16.mxu0 0
        %678 = vmatpush1.bf16.msra.mxu0 %v653
        %679 = vmatprep.subr.bf16.mxu0 0
        %680 = vmatpush1.bf16.msra.mxu0 %v652
        %681 = vmatprep.subr.bf16.mxu0 0
        %682 = vmatpush1.bf16.msra.mxu0 %v651
        %683 = vmatprep.subr.bf16.mxu0 0
        %684 = vmatpush2.bf16.msra.mxu0 0
        %685 = vmatprep.subr.bf16.mxu0 0
        %686 = vmatpush2.bf16.msra.mxu0 0
        %687 = vmatprep.subr.bf16.mxu0 0
        %688 = vmatpush2.bf16.msra.mxu0 0
        %689 = vmatprep.subr.bf16.mxu0 0
        %690 = vmatpush2.bf16.msra.mxu0 0
        %691 = vmatprep.subr.bf16.mxu0 0
        %692 = vmatpush2.bf16.msra.mxu0 0
        %693 = vmatprep.subr.bf16.mxu0 0
        %694 = vmatpush2.bf16.msra.mxu0 0
        %695 = vmatprep.subr.bf16.mxu0 0
        %696 = vmatpush2.bf16.msra.mxu0 0
        %697 = vmatprep.subr.bf16.mxu0 0
        %698 = vmatpush2.bf16.msra.mxu0 0
        %699 = vmatprep.mubr.bf16.mxu0 0
        %700 = vmatmul.mubr.bf16.gmra.mxu0 %v532
        %v701 = vpop.f32.mrf.mxu0
        %v702 = vadd.f32 %v617, %v701
        %v703 = vpop.f32.mrf.mxu0
        %v704 = vpop.f32.mrf.mxu0
        %v705 = vadd.f32 %v617, %v704
        %v706 = vpop.f32.mrf.mxu0
        %707 = vmatprep.mubr.bf16.mxu0 0
        %708 = vmatmul.mubr.bf16.gmra.mxu0 %v533
        %v709 = vpop.f32.mrf.mxu0
        %v710 = vadd.f32 %v617, %v709
        %v711 = vpop.f32.mrf.mxu0
        %v712 = vpop.f32.mrf.mxu0
        %v713 = vadd.f32 %v617, %v712
        %v714 = vpop.f32.mrf.mxu0
        %715 = vmatprep.mubr.bf16.mxu0 0
        %716 = vmatmul.mubr.bf16.gmra.mxu0 %v534
        %v717 = vpop.f32.mrf.mxu0
        %v718 = vadd.f32 %v617, %v717
        %v719 = vpop.f32.mrf.mxu0
        %v720 = vpop.f32.mrf.mxu0
        %v721 = vadd.f32 %v617, %v720
        %v722 = vpop.f32.mrf.mxu0
        %723 = vmatprep.mubr.bf16.mxu0 0
        %724 = vmatmul.mubr.bf16.gmra.mxu0 %v535
        %v725 = vpop.f32.mrf.mxu0
        %v726 = vadd.f32 %v617, %v725
        %v727 = vpop.f32.mrf.mxu0
        %v728 = vpop.f32.mrf.mxu0
        %v729 = vadd.f32 %v617, %v728
        %v730 = vpop.f32.mrf.mxu0
        %731 = vmatprep.mubr.bf16.mxu0 0
        %732 = vmatmul.mubr.bf16.gmra.mxu0 %v536
        %v733 = vpop.f32.mrf.mxu0
        %v734 = vadd.f32 %v617, %v733
        %v735 = vpop.f32.mrf.mxu0
        %v736 = vpop.f32.mrf.mxu0
        %v737 = vadd.f32 %v617, %v736
        %v738 = vpop.f32.mrf.mxu0
        %739 = vmatprep.mubr.bf16.mxu0 0
        %740 = vmatmul.mubr.bf16.gmra.mxu0 %v537
        %v741 = vpop.f32.mrf.mxu0
        %v742 = vadd.f32 %v617, %v741
        %v743 = vpop.f32.mrf.mxu0
        %v744 = vpop.f32.mrf.mxu0
        %v745 = vadd.f32 %v617, %v744
        %v746 = vpop.f32.mrf.mxu0
        %747 = vmatprep.mubr.bf16.mxu0 0
        %748 = vmatmul.mubr.bf16.gmra.mxu0 %v538
        %v749 = vpop.f32.mrf.mxu0
        %v750 = vadd.f32 %v617, %v749
        %v751 = vpop.f32.mrf.mxu0
        %v752 = vpop.f32.mrf.mxu0
        %v753 = vadd.f32 %v617, %v752
        %v754 = vpop.f32.mrf.mxu0
        %755 = vmatprep.mubr.bf16.mxu0 0
        %756 = vmatmul.mubr.bf16.gmra.mxu0 %v539
        %v757 = vpop.f32.mrf.mxu0
        %v758 = vadd.f32 %v617, %v757
        %v759 = vpop.f32.mrf.mxu0
        %v760 = vpop.f32.mrf.mxu0
        %v761 = vadd.f32 %v617, %v760
        %v762 = vpop.f32.mrf.mxu0
        %763 = vmatprep.mubr.bf16.mxu0 0
        %764 = vmatmul.mubr.bf16.gmra.mxu0 %v540
        %v765 = vpop.f32.mrf.mxu0
        %v766 = vadd.f32 %v617, %v765
        %v767 = vpop.f32.mrf.mxu0
        %v768 = vpop.f32.mrf.mxu0
        %v769 = vadd.f32 %v617, %v768
        %v770 = vpop.f32.mrf.mxu0
        %771 = vmatprep.mubr.bf16.mxu0 0
        %772 = vmatmul.mubr.bf16.gmra.mxu0 %v541
        %v773 = vpop.f32.mrf.mxu0
        %v774 = vadd.f32 %v617, %v773
        %v775 = vpop.f32.mrf.mxu0
        %v776 = vpop.f32.mrf.mxu0
        %v777 = vadd.f32 %v617, %v776
        %v778 = vpop.f32.mrf.mxu0
        %779 = vmatprep.mubr.bf16.mxu0 0
        %780 = vmatmul.mubr.bf16.gmra.mxu0 %v542
        %v781 = vpop.f32.mrf.mxu0
        %v782 = vadd.f32 %v617, %v781
        %v783 = vpop.f32.mrf.mxu0
        %v784 = vpop.f32.mrf.mxu0
        %v785 = vadd.f32 %v617, %v784
        %v786 = vpop.f32.mrf.mxu0
        %787 = vmatprep.mubr.bf16.mxu0 0
        %788 = vmatmul.mubr.bf16.gmra.mxu0 %v543
        %v789 = vpop.f32.mrf.mxu0
        %v790 = vadd.f32 %v617, %v789
        %v791 = vpop.f32.mrf.mxu0
        %v792 = vpop.f32.mrf.mxu0
        %v793 = vadd.f32 %v617, %v792
        %v794 = vpop.f32.mrf.mxu0
        %795 = vmatprep.mubr.bf16.mxu0 0
        %796 = vmatmul.mubr.bf16.gmra.mxu0 %v544
        %v797 = vpop.f32.mrf.mxu0
        %v798 = vadd.f32 %v617, %v797
        %v799 = vpop.f32.mrf.mxu0
        %v800 = vpop.f32.mrf.mxu0
        %v801 = vadd.f32 %v617, %v800
        %v802 = vpop.f32.mrf.mxu0
        %803 = vmatprep.mubr.bf16.mxu0 0
        %804 = vmatmul.mubr.bf16.gmra.mxu0 %v545
        %v805 = vpop.f32.mrf.mxu0
        %v806 = vadd.f32 %v617, %v805
        %v807 = vpop.f32.mrf.mxu0
        %v808 = vpop.f32.mrf.mxu0
        %v809 = vadd.f32 %v617, %v808
        %v810 = vpop.f32.mrf.mxu0
        %811 = vmatprep.mubr.bf16.mxu0 0
        %812 = vmatmul.mubr.bf16.gmra.mxu0 %v546
        %v813 = vpop.f32.mrf.mxu0
        %v814 = vadd.f32 %v617, %v813
        %v815 = vpop.f32.mrf.mxu0
        %v816 = vpop.f32.mrf.mxu0
        %v817 = vadd.f32 %v617, %v816
        %v818 = vpop.f32.mrf.mxu0
        %819 = vmatprep.mubr.bf16.mxu0 0
        %820 = vmatmul.mubr.bf16.gmra.mxu0 %v547
        %v821 = vpop.f32.mrf.mxu0
        %v822 = vadd.f32 %v617, %v821
        %v823 = vpop.f32.mrf.mxu0
        %v824 = vpop.f32.mrf.mxu0
        %v825 = vadd.f32 %v617, %v824
        %v826 = vpop.f32.mrf.mxu0
        %827 = vmatprep.mubr.bf16.mxu0 0
        %828 = vmatmul.mubr.bf16.gmra.mxu0 %v548
        %v829 = vpop.f32.mrf.mxu0
        %v830 = vadd.f32 %v617, %v829
        %v831 = vpop.f32.mrf.mxu0
        %v832 = vpop.f32.mrf.mxu0
        %v833 = vadd.f32 %v617, %v832
        %v834 = vpop.f32.mrf.mxu0
        %835 = vmatprep.mubr.bf16.mxu0 0
        %836 = vmatmul.mubr.bf16.gmra.mxu0 %v549
        %v837 = vpop.f32.mrf.mxu0
        %v838 = vadd.f32 %v617, %v837
        %v839 = vpop.f32.mrf.mxu0
        %v840 = vpop.f32.mrf.mxu0
        %v841 = vadd.f32 %v617, %v840
        %v842 = vpop.f32.mrf.mxu0
        %843 = vmatprep.mubr.bf16.mxu0 0
        %844 = vmatmul.mubr.bf16.gmra.mxu0 %v550
        %v845 = vpop.f32.mrf.mxu0
        %v846 = vadd.f32 %v617, %v845
        %v847 = vpop.f32.mrf.mxu0
        %v848 = vpop.f32.mrf.mxu0
        %v849 = vadd.f32 %v617, %v848
        %v850 = vpop.f32.mrf.mxu0
        %851 = vmatprep.mubr.bf16.mxu0 0
        %852 = vmatmul.mubr.bf16.gmra.mxu0 %v551
        %v853 = vpop.f32.mrf.mxu0
        %v854 = vadd.f32 %v617, %v853
        %v855 = vpop.f32.mrf.mxu0
        %v856 = vpop.f32.mrf.mxu0
        %v857 = vadd.f32 %v617, %v856
        %v858 = vpop.f32.mrf.mxu0
        %859 = vmatprep.mubr.bf16.mxu0 0
        %860 = vmatmul.mubr.bf16.gmra.mxu0 %v552
        %v861 = vpop.f32.mrf.mxu0
        %v862 = vadd.f32 %v617, %v861
        %v863 = vpop.f32.mrf.mxu0
        %v864 = vpop.f32.mrf.mxu0
        %v865 = vadd.f32 %v617, %v864
        %v866 = vpop.f32.mrf.mxu0
        %867 = vmatprep.mubr.bf16.mxu0 0
        %868 = vmatmul.mubr.bf16.gmra.mxu0 %v553
        %v869 = vpop.f32.mrf.mxu0
        %v870 = vadd.f32 %v617, %v869
        %v871 = vpop.f32.mrf.mxu0
        %v872 = vpop.f32.mrf.mxu0
        %v873 = vadd.f32 %v617, %v872
        %v874 = vpop.f32.mrf.mxu0
        %875 = vmatprep.mubr.bf16.mxu0 0
        %876 = vmatmul.mubr.bf16.gmra.mxu0 %v554
        %v877 = vpop.f32.mrf.mxu0
        %v878 = vadd.f32 %v617, %v877
        %v879 = vpop.f32.mrf.mxu0
        %v880 = vpop.f32.mrf.mxu0
        %v881 = vadd.f32 %v617, %v880
        %v882 = vpop.f32.mrf.mxu0
        %883 = vmatprep.mubr.bf16.mxu0 0
        %884 = vmatmul.mubr.bf16.gmra.mxu0 %v555
        %v885 = vpop.f32.mrf.mxu0
        %v886 = vadd.f32 %v617, %v885
        %v887 = vpop.f32.mrf.mxu0
        %v888 = vpop.f32.mrf.mxu0
        %v889 = vadd.f32 %v617, %v888
        %v890 = vpop.f32.mrf.mxu0
        %891 = vmatprep.mubr.bf16.mxu0 0
        %892 = vmatmul.mubr.bf16.gmra.mxu0 %v556
        %v893 = vpop.f32.mrf.mxu0
        %v894 = vadd.f32 %v617, %v893
        %v895 = vpop.f32.mrf.mxu0
        %v896 = vpop.f32.mrf.mxu0
        %v897 = vadd.f32 %v617, %v896
        %v898 = vpop.f32.mrf.mxu0
        %899 = vmatprep.mubr.bf16.mxu0 0
        %900 = vmatmul.mubr.bf16.gmra.mxu0 %v557
        %v901 = vpop.f32.mrf.mxu0
        %v902 = vadd.f32 %v617, %v901
        %v903 = vpop.f32.mrf.mxu0
        %v904 = vpop.f32.mrf.mxu0
        %v905 = vadd.f32 %v617, %v904
        %v906 = vpop.f32.mrf.mxu0
        %907 = vmatprep.mubr.bf16.mxu0 0
        %908 = vmatmul.mubr.bf16.gmra.mxu0 %v558
        %v909 = vpop.f32.mrf.mxu0
        %v910 = vadd.f32 %v617, %v909
        %v911 = vpop.f32.mrf.mxu0
        %v912 = vpop.f32.mrf.mxu0
        %v913 = vadd.f32 %v617, %v912
        %v914 = vpop.f32.mrf.mxu0
        %915 = vmatprep.mubr.bf16.mxu0 0
        %916 = vmatmul.mubr.bf16.gmra.mxu0 %v559
        %v917 = vpop.f32.mrf.mxu0
        %v918 = vadd.f32 %v617, %v917
        %v919 = vpop.f32.mrf.mxu0
        %v920 = vpop.f32.mrf.mxu0
        %v921 = vadd.f32 %v617, %v920
        %v922 = vpop.f32.mrf.mxu0
        %923 = vmatprep.mubr.bf16.mxu0 0
        %924 = vmatmul.mubr.bf16.gmra.mxu0 %v560
        %v925 = vpop.f32.mrf.mxu0
        %v926 = vadd.f32 %v617, %v925
        %v927 = vpop.f32.mrf.mxu0
        %v928 = vpop.f32.mrf.mxu0
        %v929 = vadd.f32 %v617, %v928
        %v930 = vpop.f32.mrf.mxu0
        %931 = vmatprep.mubr.bf16.mxu0 0
        %932 = vmatmul.mubr.bf16.gmra.mxu0 %v561
        %v933 = vpop.f32.mrf.mxu0
        %v934 = vadd.f32 %v617, %v933
        %v935 = vpop.f32.mrf.mxu0
        %v936 = vpop.f32.mrf.mxu0
        %v937 = vadd.f32 %v617, %v936
        %v938 = vpop.f32.mrf.mxu0
        %939 = vmatprep.mubr.bf16.mxu0 0
        %940 = vmatmul.mubr.bf16.gmra.mxu0 %v562
        %v941 = vpop.f32.mrf.mxu0
        %v942 = vadd.f32 %v617, %v941
        %v943 = vpop.f32.mrf.mxu0
        %v944 = vpop.f32.mrf.mxu0
        %v945 = vadd.f32 %v617, %v944
        %v946 = vpop.f32.mrf.mxu0
        %947 = vmatprep.mubr.bf16.mxu0 0
        %948 = vmatmul.mubr.bf16.gmra.mxu0 %v563
        %v949 = vpop.f32.mrf.mxu0
        %v950 = vadd.f32 %v617, %v949
        %v951 = vpop.f32.mrf.mxu0
        %v952 = vpop.f32.mrf.mxu0
        %v953 = vadd.f32 %v617, %v952
        %v954 = vpop.f32.mrf.mxu0
        %955 = vmatprep.mubr.bf16.mxu0 0
        %956 = vmatmul.mubr.bf16.gmra.mxu0 %v564
        %v957 = vpop.f32.mrf.mxu0
        %v958 = vadd.f32 %v617, %v957
        %v959 = vpop.f32.mrf.mxu0
        %v960 = vpop.f32.mrf.mxu0
        %v961 = vadd.f32 %v617, %v960
        %v962 = vpop.f32.mrf.mxu0
        %963 = vmatprep.mubr.bf16.mxu0 0
        %964 = vmatmul.mubr.bf16.gmra.mxu0 %v565
        %v965 = vpop.f32.mrf.mxu0
        %v966 = vadd.f32 %v617, %v965
        %v967 = vpop.f32.mrf.mxu0
        %v968 = vpop.f32.mrf.mxu0
        %v969 = vadd.f32 %v617, %v968
        %v970 = vpop.f32.mrf.mxu0
        %971 = vmatprep.mubr.bf16.mxu0 0
        %972 = vmatmul.mubr.bf16.gmra.mxu0 %v566
        %v973 = vpop.f32.mrf.mxu0
        %v974 = vadd.f32 %v617, %v973
        %v975 = vpop.f32.mrf.mxu0
        %v976 = vpop.f32.mrf.mxu0
        %v977 = vadd.f32 %v617, %v976
        %v978 = vpop.f32.mrf.mxu0
        %979 = vmatprep.mubr.bf16.mxu0 0
        %980 = vmatmul.mubr.bf16.gmra.mxu0 %v567
        %v981 = vpop.f32.mrf.mxu0
        %v982 = vadd.f32 %v617, %v981
        %v983 = vpop.f32.mrf.mxu0
        %v984 = vpop.f32.mrf.mxu0
        %v985 = vadd.f32 %v617, %v984
        %v986 = vpop.f32.mrf.mxu0
        %987 = vmatprep.mubr.bf16.mxu0 0
        %988 = vmatmul.mubr.bf16.gmra.mxu0 %v568
        %v989 = vpop.f32.mrf.mxu0
        %v990 = vadd.f32 %v617, %v989
        %v991 = vpop.f32.mrf.mxu0
        %v992 = vpop.f32.mrf.mxu0
        %v993 = vadd.f32 %v617, %v992
        %v994 = vpop.f32.mrf.mxu0
        %995 = vmatprep.mubr.bf16.mxu0 0
        %996 = vmatmul.mubr.bf16.gmra.mxu0 %v569
        %v997 = vpop.f32.mrf.mxu0
        %v998 = vadd.f32 %v617, %v997
        %v999 = vpop.f32.mrf.mxu0
        %v1000 = vpop.f32.mrf.mxu0
        %v1001 = vadd.f32 %v617, %v1000
        %v1002 = vpop.f32.mrf.mxu0
        %1003 = vmatprep.mubr.bf16.mxu0 0
        %1004 = vmatmul.mubr.bf16.gmra.mxu0 %v570
        %v1005 = vpop.f32.mrf.mxu0
        %v1006 = vadd.f32 %v617, %v1005
        %v1007 = vpop.f32.mrf.mxu0
        %v1008 = vpop.f32.mrf.mxu0
        %v1009 = vadd.f32 %v617, %v1008
        %v1010 = vpop.f32.mrf.mxu0
        %1011 = vmatprep.mubr.bf16.mxu0 0
        %1012 = vmatmul.mubr.bf16.gmra.mxu0 %v571
        %v1013 = vpop.f32.mrf.mxu0
        %v1014 = vadd.f32 %v617, %v1013
        %v1015 = vpop.f32.mrf.mxu0
        %v1016 = vpop.f32.mrf.mxu0
        %v1017 = vadd.f32 %v617, %v1016
        %v1018 = vpop.f32.mrf.mxu0
        %1019 = vmatprep.mubr.bf16.mxu0 0
        %1020 = vmatmul.mubr.bf16.gmra.mxu0 %v572
        %v1021 = vpop.f32.mrf.mxu0
        %v1022 = vadd.f32 %v617, %v1021
        %v1023 = vpop.f32.mrf.mxu0
        %v1024 = vpop.f32.mrf.mxu0
        %v1025 = vadd.f32 %v617, %v1024
        %v1026 = vpop.f32.mrf.mxu0
        %1027 = vmatprep.mubr.bf16.mxu0 0
        %1028 = vmatmul.mubr.bf16.gmra.mxu0 %v573
        %v1029 = vpop.f32.mrf.mxu0
        %v1030 = vadd.f32 %v617, %v1029
        %v1031 = vpop.f32.mrf.mxu0
        %v1032 = vpop.f32.mrf.mxu0
        %v1033 = vadd.f32 %v617, %v1032
        %v1034 = vpop.f32.mrf.mxu0
        %1035 = vmatprep.mubr.bf16.mxu0 0
        %1036 = vmatmul.mubr.bf16.gmra.mxu0 %v574
        %v1037 = vpop.f32.mrf.mxu0
        %v1038 = vadd.f32 %v617, %v1037
        %v1039 = vpop.f32.mrf.mxu0
        %v1040 = vpop.f32.mrf.mxu0
        %v1041 = vadd.f32 %v617, %v1040
        %v1042 = vpop.f32.mrf.mxu0
        %1043 = vmatprep.mubr.bf16.mxu0 0
        %1044 = vmatmul.mubr.bf16.gmra.mxu0 %v575
        %v1045 = vpop.f32.mrf.mxu0
        %v1046 = vadd.f32 %v617, %v1045
        %v1047 = vpop.f32.mrf.mxu0
        %v1048 = vpop.f32.mrf.mxu0
        %v1049 = vadd.f32 %v617, %v1048
        %v1050 = vpop.f32.mrf.mxu0
        %1051 = vmatprep.mubr.bf16.mxu0 0
        %1052 = vmatmul.mubr.bf16.gmra.mxu0 %v576
        %v1053 = vpop.f32.mrf.mxu0
        %v1054 = vadd.f32 %v617, %v1053
        %v1055 = vpop.f32.mrf.mxu0
        %v1056 = vpop.f32.mrf.mxu0
        %v1057 = vadd.f32 %v617, %v1056
        %v1058 = vpop.f32.mrf.mxu0
        %1059 = vmatprep.mubr.bf16.mxu0 0
        %1060 = vmatmul.mubr.bf16.gmra.mxu0 %v577
        %v1061 = vpop.f32.mrf.mxu0
        %v1062 = vadd.f32 %v617, %v1061
        %v1063 = vpop.f32.mrf.mxu0
        %v1064 = vpop.f32.mrf.mxu0
        %v1065 = vadd.f32 %v617, %v1064
        %v1066 = vpop.f32.mrf.mxu0
        %1067 = vmatprep.mubr.bf16.mxu0 0
        %1068 = vmatmul.mubr.bf16.gmra.mxu0 %v578
        %v1069 = vpop.f32.mrf.mxu0
        %v1070 = vadd.f32 %v617, %v1069
        %v1071 = vpop.f32.mrf.mxu0
        %v1072 = vpop.f32.mrf.mxu0
        %v1073 = vadd.f32 %v617, %v1072
        %v1074 = vpop.f32.mrf.mxu0
        %1075 = vmatprep.mubr.bf16.mxu0 0
        %1076 = vmatmul.mubr.bf16.gmra.mxu0 %v579
        %v1077 = vpop.f32.mrf.mxu0
        %v1078 = vadd.f32 %v617, %v1077
        %v1079 = vpop.f32.mrf.mxu0
        %v1080 = vpop.f32.mrf.mxu0
        %v1081 = vadd.f32 %v617, %v1080
        %v1082 = vpop.f32.mrf.mxu0
        %1083 = vmatprep.mubr.bf16.mxu0 0
        %1084 = vmatmul.mubr.bf16.gmra.mxu0 %v580
        %v1085 = vpop.f32.mrf.mxu0
        %v1086 = vadd.f32 %v617, %v1085
        %v1087 = vpop.f32.mrf.mxu0
        %v1088 = vpop.f32.mrf.mxu0
        %v1089 = vadd.f32 %v617, %v1088
        %v1090 = vpop.f32.mrf.mxu0
        %1091 = vmatprep.mubr.bf16.mxu0 0
        %1092 = vmatmul.mubr.bf16.gmra.mxu0 %v581
        %v1093 = vpop.f32.mrf.mxu0
        %v1094 = vadd.f32 %v617, %v1093
        %v1095 = vpop.f32.mrf.mxu0
        %v1096 = vpop.f32.mrf.mxu0
        %v1097 = vadd.f32 %v617, %v1096
        %v1098 = vpop.f32.mrf.mxu0
        %1099 = vmatprep.mubr.bf16.mxu0 0
        %1100 = vmatmul.mubr.bf16.gmra.mxu0 %v582
        %v1101 = vpop.f32.mrf.mxu0
        %v1102 = vadd.f32 %v617, %v1101
        %v1103 = vpop.f32.mrf.mxu0
        %v1104 = vpop.f32.mrf.mxu0
        %v1105 = vadd.f32 %v617, %v1104
        %v1106 = vpop.f32.mrf.mxu0
        %1107 = vmatprep.mubr.bf16.mxu0 0
        %1108 = vmatmul.mubr.bf16.gmra.mxu0 %v583
        %v1109 = vpop.f32.mrf.mxu0
        %v1110 = vadd.f32 %v617, %v1109
        %v1111 = vpop.f32.mrf.mxu0
        %v1112 = vpop.f32.mrf.mxu0
        %v1113 = vadd.f32 %v617, %v1112
        %v1114 = vpop.f32.mrf.mxu0
        %1115 = vmatprep.mubr.bf16.mxu0 0
        %1116 = vmatmul.mubr.bf16.gmra.mxu0 %v584
        %v1117 = vpop.f32.mrf.mxu0
        %v1118 = vadd.f32 %v617, %v1117
        %v1119 = vpop.f32.mrf.mxu0
        %v1120 = vpop.f32.mrf.mxu0
        %v1121 = vadd.f32 %v617, %v1120
        %v1122 = vpop.f32.mrf.mxu0
        %1123 = vmatprep.mubr.bf16.mxu0 0
        %1124 = vmatmul.mubr.bf16.gmra.mxu0 %v585
        %v1125 = vpop.f32.mrf.mxu0
        %v1126 = vadd.f32 %v617, %v1125
        %v1127 = vpop.f32.mrf.mxu0
        %v1128 = vpop.f32.mrf.mxu0
        %v1129 = vadd.f32 %v617, %v1128
        %v1130 = vpop.f32.mrf.mxu0
        %1131 = vmatprep.mubr.bf16.mxu0 0
        %1132 = vmatmul.mubr.bf16.gmra.mxu0 %v586
        %v1133 = vpop.f32.mrf.mxu0
        %v1134 = vadd.f32 %v617, %v1133
        %v1135 = vpop.f32.mrf.mxu0
        %v1136 = vpop.f32.mrf.mxu0
        %v1137 = vadd.f32 %v617, %v1136
        %v1138 = vpop.f32.mrf.mxu0
        %1139 = vmatprep.mubr.bf16.mxu0 0
        %1140 = vmatmul.mubr.bf16.gmra.mxu0 %v587
        %v1141 = vpop.f32.mrf.mxu0
        %v1142 = vadd.f32 %v617, %v1141
        %v1143 = vpop.f32.mrf.mxu0
        %v1144 = vpop.f32.mrf.mxu0
        %v1145 = vadd.f32 %v617, %v1144
        %v1146 = vpop.f32.mrf.mxu0
        %1147 = vmatprep.mubr.bf16.mxu0 0
        %1148 = vmatmul.mubr.bf16.gmra.mxu0 %v588
        %v1149 = vpop.f32.mrf.mxu0
        %v1150 = vadd.f32 %v617, %v1149
        %v1151 = vpop.f32.mrf.mxu0
        %v1152 = vpop.f32.mrf.mxu0
        %v1153 = vadd.f32 %v617, %v1152
        %v1154 = vpop.f32.mrf.mxu0
        %1155 = vmatprep.mubr.bf16.mxu0 0
        %1156 = vmatmul.mubr.bf16.gmra.mxu0 %v589
        %v1157 = vpop.f32.mrf.mxu0
        %v1158 = vadd.f32 %v617, %v1157
        %v1159 = vpop.f32.mrf.mxu0
        %v1160 = vpop.f32.mrf.mxu0
        %v1161 = vadd.f32 %v617, %v1160
        %v1162 = vpop.f32.mrf.mxu0
        %1163 = vmatprep.mubr.bf16.mxu0 0
        %1164 = vmatmul.mubr.bf16.gmra.mxu0 %v590
        %v1165 = vpop.f32.mrf.mxu0
        %v1166 = vadd.f32 %v617, %v1165
        %v1167 = vpop.f32.mrf.mxu0
        %v1168 = vpop.f32.mrf.mxu0
        %v1169 = vadd.f32 %v617, %v1168
        %v1170 = vpop.f32.mrf.mxu0
        %1171 = vmatprep.mubr.bf16.mxu0 0
        %1172 = vmatmul.mubr.bf16.gmra.mxu0 %v591
        %v1173 = vpop.f32.mrf.mxu0
        %v1174 = vadd.f32 %v617, %v1173
        %v1175 = vpop.f32.mrf.mxu0
        %v1176 = vpop.f32.mrf.mxu0
        %v1177 = vadd.f32 %v617, %v1176
        %v1178 = vpop.f32.mrf.mxu0
        %1179 = vmatprep.mubr.bf16.mxu0 0
        %1180 = vmatmul.mubr.bf16.gmra.mxu0 %v592
        %v1181 = vpop.f32.mrf.mxu0
        %v1182 = vadd.f32 %v617, %v1181
        %v1183 = vpop.f32.mrf.mxu0
        %v1184 = vpop.f32.mrf.mxu0
        %v1185 = vadd.f32 %v617, %v1184
        %v1186 = vpop.f32.mrf.mxu0
        %1187 = vmatprep.mubr.bf16.mxu0 0
        %1188 = vmatmul.mubr.bf16.gmra.mxu0 %v593
        %v1189 = vpop.f32.mrf.mxu0
        %v1190 = vadd.f32 %v617, %v1189
        %v1191 = vpop.f32.mrf.mxu0
        %v1192 = vpop.f32.mrf.mxu0
        %v1193 = vadd.f32 %v617, %v1192
        %v1194 = vpop.f32.mrf.mxu0
        %1195 = vmatprep.mubr.bf16.mxu0 0
        %1196 = vmatmul.mubr.bf16.gmra.mxu0 %v594
        %v1197 = vpop.f32.mrf.mxu0
        %v1198 = vadd.f32 %v617, %v1197
        %v1199 = vpop.f32.mrf.mxu0
        %v1200 = vpop.f32.mrf.mxu0
        %v1201 = vadd.f32 %v617, %v1200
        %v1202 = vpop.f32.mrf.mxu0
        %1203 = vmatprep.mubr.bf16.mxu0 0
        %1204 = vmatmul.mubr.bf16.gmra.mxu0 %v595
        %v1205 = vpop.f32.mrf.mxu0
        %v1206 = vadd.f32 %v617, %v1205
        %v1207 = vpop.f32.mrf.mxu0
        %v1208 = vpop.f32.mrf.mxu0
        %v1209 = vadd.f32 %v617, %v1208
        %v1210 = vpop.f32.mrf.mxu0
        %1211 = vdwg.mxu0
        %v1212 = vmax.f32 %v702, 0.0
        %v1213 = vmax.f32 %v705, 0.0
        %v1214 = vmax.f32 %v710, 0.0
        %v1215 = vmax.f32 %v713, 0.0
        %v1216 = vmax.f32 %v718, 0.0
        %v1217 = vmax.f32 %v721, 0.0
        %v1218 = vmax.f32 %v726, 0.0
        %v1219 = vmax.f32 %v729, 0.0
        %v1220 = vmax.f32 %v734, 0.0
        %v1221 = vmax.f32 %v737, 0.0
        %v1222 = vmax.f32 %v742, 0.0
        %v1223 = vmax.f32 %v745, 0.0
        %v1224 = vmax.f32 %v750, 0.0
        %v1225 = vmax.f32 %v753, 0.0
        %v1226 = vmax.f32 %v758, 0.0
        %v1227 = vmax.f32 %v761, 0.0
        %v1228 = vmax.f32 %v766, 0.0
        %v1229 = vmax.f32 %v769, 0.0
        %v1230 = vmax.f32 %v774, 0.0
        %v1231 = vmax.f32 %v777, 0.0
        %v1232 = vmax.f32 %v782, 0.0
        %v1233 = vmax.f32 %v785, 0.0
        %v1234 = vmax.f32 %v790, 0.0
        %v1235 = vmax.f32 %v793, 0.0
        %v1236 = vmax.f32 %v798, 0.0
        %v1237 = vmax.f32 %v801, 0.0
        %v1238 = vmax.f32 %v806, 0.0
        %v1239 = vmax.f32 %v809, 0.0
        %v1240 = vmax.f32 %v814, 0.0
        %v1241 = vmax.f32 %v817, 0.0
        %v1242 = vmax.f32 %v822, 0.0
        %v1243 = vmax.f32 %v825, 0.0
        %v1244 = vmax.f32 %v830, 0.0
        %v1245 = vmax.f32 %v833, 0.0
        %v1246 = vmax.f32 %v838, 0.0
        %v1247 = vmax.f32 %v841, 0.0
        %v1248 = vmax.f32 %v846, 0.0
        %v1249 = vmax.f32 %v849, 0.0
        %v1250 = vmax.f32 %v854, 0.0
        %v1251 = vmax.f32 %v857, 0.0
        %v1252 = vmax.f32 %v862, 0.0
        %v1253 = vmax.f32 %v865, 0.0
        %v1254 = vmax.f32 %v870, 0.0
        %v1255 = vmax.f32 %v873, 0.0
        %v1256 = vmax.f32 %v878, 0.0
        %v1257 = vmax.f32 %v881, 0.0
        %v1258 = vmax.f32 %v886, 0.0
        %v1259 = vmax.f32 %v889, 0.0
        %v1260 = vmax.f32 %v894, 0.0
        %v1261 = vmax.f32 %v897, 0.0
        %v1262 = vmax.f32 %v902, 0.0
        %v1263 = vmax.f32 %v905, 0.0
        %v1264 = vmax.f32 %v910, 0.0
        %v1265 = vmax.f32 %v913, 0.0
        %v1266 = vmax.f32 %v918, 0.0
        %v1267 = vmax.f32 %v921, 0.0
        %v1268 = vmax.f32 %v926, 0.0
        %v1269 = vmax.f32 %v929, 0.0
        %v1270 = vmax.f32 %v934, 0.0
        %v1271 = vmax.f32 %v937, 0.0
        %v1272 = vmax.f32 %v942, 0.0
        %v1273 = vmax.f32 %v945, 0.0
        %v1274 = vmax.f32 %v950, 0.0
        %v1275 = vmax.f32 %v953, 0.0
        %v1276 = vmax.f32 %v958, 0.0
        %v1277 = vmax.f32 %v961, 0.0
        %v1278 = vmax.f32 %v966, 0.0
        %v1279 = vmax.f32 %v969, 0.0
        %v1280 = vmax.f32 %v974, 0.0
        %v1281 = vmax.f32 %v977, 0.0
        %v1282 = vmax.f32 %v982, 0.0
        %v1283 = vmax.f32 %v985, 0.0
        %v1284 = vmax.f32 %v990, 0.0
        %v1285 = vmax.f32 %v993, 0.0
        %v1286 = vmax.f32 %v998, 0.0
        %v1287 = vmax.f32 %v1001, 0.0
        %v1288 = vmax.f32 %v1006, 0.0
        %v1289 = vmax.f32 %v1009, 0.0
        %v1290 = vmax.f32 %v1014, 0.0
        %v1291 = vmax.f32 %v1017, 0.0
        %v1292 = vmax.f32 %v1022, 0.0
        %v1293 = vmax.f32 %v1025, 0.0
        %v1294 = vmax.f32 %v1030, 0.0
        %v1295 = vmax.f32 %v1033, 0.0
        %v1296 = vmax.f32 %v1038, 0.0
        %v1297 = vmax.f32 %v1041, 0.0
        %v1298 = vmax.f32 %v1046, 0.0
        %v1299 = vmax.f32 %v1049, 0.0
        %v1300 = vmax.f32 %v1054, 0.0
        %v1301 = vmax.f32 %v1057, 0.0
        %v1302 = vmax.f32 %v1062, 0.0
        %v1303 = vmax.f32 %v1065, 0.0
        %v1304 = vmax.f32 %v1070, 0.0
        %v1305 = vmax.f32 %v1073, 0.0
        %v1306 = vmax.f32 %v1078, 0.0
        %v1307 = vmax.f32 %v1081, 0.0
        %v1308 = vmax.f32 %v1086, 0.0
        %v1309 = vmax.f32 %v1089, 0.0
        %v1310 = vmax.f32 %v1094, 0.0
        %v1311 = vmax.f32 %v1097, 0.0
        %v1312 = vmax.f32 %v1102, 0.0
        %v1313 = vmax.f32 %v1105, 0.0
        %v1314 = vmax.f32 %v1110, 0.0
        %v1315 = vmax.f32 %v1113, 0.0
        %v1316 = vmax.f32 %v1118, 0.0
        %v1317 = vmax.f32 %v1121, 0.0
        %v1318 = vmax.f32 %v1126, 0.0
        %v1319 = vmax.f32 %v1129, 0.0
        %v1320 = vmax.f32 %v1134, 0.0
        %v1321 = vmax.f32 %v1137, 0.0
        %v1322 = vmax.f32 %v1142, 0.0
        %v1323 = vmax.f32 %v1145, 0.0
        %v1324 = vmax.f32 %v1150, 0.0
        %v1325 = vmax.f32 %v1153, 0.0
        %v1326 = vmax.f32 %v1158, 0.0
        %v1327 = vmax.f32 %v1161, 0.0
        %v1328 = vmax.f32 %v1166, 0.0
        %v1329 = vmax.f32 %v1169, 0.0
        %v1330 = vmax.f32 %v1174, 0.0
        %v1331 = vmax.f32 %v1177, 0.0
        %v1332 = vmax.f32 %v1182, 0.0
        %v1333 = vmax.f32 %v1185, 0.0
        %v1334 = vmax.f32 %v1190, 0.0
        %v1335 = vmax.f32 %v1193, 0.0
        %v1336 = vmax.f32 %v1198, 0.0
        %v1337 = vmax.f32 %v1201, 0.0
        %v1338 = vmax.f32 %v1206, 0.0
        %v1339 = vmax.f32 %v1209, 0.0
        %v1340 = vld [vmem:[%s345] sm:$0xff]
        %v1341 = vld [vmem:[%s345 + $0x8] sm:$0xff]
        %v1342 = vld [vmem:[%s345 + $0x10] sm:$0xff]
        %v1343 = vld [vmem:[%s345 + $0x18] sm:$0xff]
        %v1344 = vld [vmem:[%s345 + $0x20] sm:$0xff]
        %v1345 = vld [vmem:[%s345 + $0x28] sm:$0xff]
        %v1346 = vld [vmem:[%s345 + $0x30] sm:$0xff]
        %v1347 = vld [vmem:[%s345 + $0x38] sm:$0xff]
        %v1348 = vld [vmem:[%s345 + $0x40] sm:$0xff]
        %v1349 = vld [vmem:[%s345 + $0x48] sm:$0xff]
        %v1350 = vld [vmem:[%s345 + $0x50] sm:$0xff]
        %v1351 = vld [vmem:[%s345 + $0x58] sm:$0xff]
        %v1352 = vld [vmem:[%s345 + $0x60] sm:$0xff]
        %v1353 = vld [vmem:[%s345 + $0x68] sm:$0xff]
        %v1354 = vld [vmem:[%s345 + $0x70] sm:$0xff]
        %v1355 = vld [vmem:[%s345 + $0x78] sm:$0xff]
        %v1356 = vld [vmem:[%s345 + $0x80] sm:$0xff]
        %v1357 = vld [vmem:[%s345 + $0x88] sm:$0xff]
        %v1358 = vld [vmem:[%s345 + $0x90] sm:$0xff]
        %v1359 = vld [vmem:[%s345 + $0x98] sm:$0xff]
        %v1360 = vld [vmem:[%s345 + $0xa0] sm:$0xff]
        %v1361 = vld [vmem:[%s345 + $0xa8] sm:$0xff]
        %v1362 = vld [vmem:[%s345 + $0xb0] sm:$0xff]
        %v1363 = vld [vmem:[%s345 + $0xb8] sm:$0xff]
        %v1364 = vld [vmem:[%s345 + $0xc0] sm:$0xff]
        %v1365 = vld [vmem:[%s345 + $0xc8] sm:$0xff]
        %v1366 = vld [vmem:[%s345 + $0xd0] sm:$0xff]
        %v1367 = vld [vmem:[%s345 + $0xd8] sm:$0xff]
        %v1368 = vld [vmem:[%s345 + $0xe0] sm:$0xff]
        %v1369 = vld [vmem:[%s345 + $0xe8] sm:$0xff]
        %v1370 = vld [vmem:[%s345 + $0xf0] sm:$0xff]
        %v1371 = vld [vmem:[%s345 + $0xf8] sm:$0xff]
        %v1372 = vld [vmem:[%s345 + $0x100] sm:$0xff]
        %v1373 = vld [vmem:[%s345 + $0x108] sm:$0xff]
        %v1374 = vld [vmem:[%s345 + $0x110] sm:$0xff]
        %v1375 = vld [vmem:[%s345 + $0x118] sm:$0xff]
        %v1376 = vld [vmem:[%s345 + $0x120] sm:$0xff]
        %v1377 = vld [vmem:[%s345 + $0x128] sm:$0xff]
        %v1378 = vld [vmem:[%s345 + $0x130] sm:$0xff]
        %v1379 = vld [vmem:[%s345 + $0x138] sm:$0xff]
        %v1380 = vld [vmem:[%s345 + $0x140] sm:$0xff]
        %v1381 = vld [vmem:[%s345 + $0x148] sm:$0xff]
        %v1382 = vld [vmem:[%s345 + $0x150] sm:$0xff]
        %v1383 = vld [vmem:[%s345 + $0x158] sm:$0xff]
        %v1384 = vld [vmem:[%s345 + $0x160] sm:$0xff]
        %v1385 = vld [vmem:[%s345 + $0x168] sm:$0xff]
        %v1386 = vld [vmem:[%s345 + $0x170] sm:$0xff]
        %v1387 = vld [vmem:[%s345 + $0x178] sm:$0xff]
        %v1388 = vld [vmem:[%s345 + $0x180] sm:$0xff]
        %v1389 = vld [vmem:[%s345 + $0x188] sm:$0xff]
        %v1390 = vld [vmem:[%s345 + $0x190] sm:$0xff]
        %v1391 = vld [vmem:[%s345 + $0x198] sm:$0xff]
        %v1392 = vld [vmem:[%s345 + $0x1a0] sm:$0xff]
        %v1393 = vld [vmem:[%s345 + $0x1a8] sm:$0xff]
        %v1394 = vld [vmem:[%s345 + $0x1b0] sm:$0xff]
        %v1395 = vld [vmem:[%s345 + $0x1b8] sm:$0xff]
        %v1396 = vld [vmem:[%s345 + $0x1c0] sm:$0xff]
        %v1397 = vld [vmem:[%s345 + $0x1c8] sm:$0xff]
        %v1398 = vld [vmem:[%s345 + $0x1d0] sm:$0xff]
        %v1399 = vld [vmem:[%s345 + $0x1d8] sm:$0xff]
        %v1400 = vld [vmem:[%s345 + $0x1e0] sm:$0xff]
        %v1401 = vld [vmem:[%s345 + $0x1e8] sm:$0xff]
        %v1402 = vld [vmem:[%s345 + $0x1f0] sm:$0xff]
        %v1403 = vld [vmem:[%s345 + $0x1f8] sm:$0xff]
        %v1404 = vld [vmem:[%s345 + $0x200] sm:$0xff]
        %v1405 = vld [vmem:[%s345 + $0x208] sm:$0xff]
        %v1406 = vld [vmem:[%s345 + $0x210] sm:$0xff]
        %v1407 = vld [vmem:[%s345 + $0x218] sm:$0xff]
        %v1408 = vld [vmem:[%s345 + $0x220] sm:$0xff]
        %v1409 = vld [vmem:[%s345 + $0x228] sm:$0xff]
        %v1410 = vld [vmem:[%s345 + $0x230] sm:$0xff]
        %v1411 = vld [vmem:[%s345 + $0x238] sm:$0xff]
        %v1412 = vld [vmem:[%s345 + $0x240] sm:$0xff]
        %v1413 = vld [vmem:[%s345 + $0x248] sm:$0xff]
        %v1414 = vld [vmem:[%s345 + $0x250] sm:$0xff]
        %v1415 = vld [vmem:[%s345 + $0x258] sm:$0xff]
        %v1416 = vld [vmem:[%s345 + $0x260] sm:$0xff]
        %v1417 = vld [vmem:[%s345 + $0x268] sm:$0xff]
        %v1418 = vld [vmem:[%s345 + $0x270] sm:$0xff]
        %v1419 = vld [vmem:[%s345 + $0x278] sm:$0xff]
        %v1420 = vld [vmem:[%s345 + $0x280] sm:$0xff]
        %v1421 = vld [vmem:[%s345 + $0x288] sm:$0xff]
        %v1422 = vld [vmem:[%s345 + $0x290] sm:$0xff]
        %v1423 = vld [vmem:[%s345 + $0x298] sm:$0xff]
        %v1424 = vld [vmem:[%s345 + $0x2a0] sm:$0xff]
        %v1425 = vld [vmem:[%s345 + $0x2a8] sm:$0xff]
        %v1426 = vld [vmem:[%s345 + $0x2b0] sm:$0xff]
        %v1427 = vld [vmem:[%s345 + $0x2b8] sm:$0xff]
        %v1428 = vld [vmem:[%s345 + $0x2c0] sm:$0xff]
        %v1429 = vld [vmem:[%s345 + $0x2c8] sm:$0xff]
        %v1430 = vld [vmem:[%s345 + $0x2d0] sm:$0xff]
        %v1431 = vld [vmem:[%s345 + $0x2d8] sm:$0xff]
        %v1432 = vld [vmem:[%s345 + $0x2e0] sm:$0xff]
        %v1433 = vld [vmem:[%s345 + $0x2e8] sm:$0xff]
        %v1434 = vld [vmem:[%s345 + $0x2f0] sm:$0xff]
        %v1435 = vld [vmem:[%s345 + $0x2f8] sm:$0xff]
        %v1436 = vld [vmem:[%s345 + $0x300] sm:$0xff]
        %v1437 = vld [vmem:[%s345 + $0x308] sm:$0xff]
        %v1438 = vld [vmem:[%s345 + $0x310] sm:$0xff]
        %v1439 = vld [vmem:[%s345 + $0x318] sm:$0xff]
        %v1440 = vld [vmem:[%s345 + $0x320] sm:$0xff]
        %v1441 = vld [vmem:[%s345 + $0x328] sm:$0xff]
        %v1442 = vld [vmem:[%s345 + $0x330] sm:$0xff]
        %v1443 = vld [vmem:[%s345 + $0x338] sm:$0xff]
        %v1444 = vld [vmem:[%s345 + $0x340] sm:$0xff]
        %v1445 = vld [vmem:[%s345 + $0x348] sm:$0xff]
        %v1446 = vld [vmem:[%s345 + $0x350] sm:$0xff]
        %v1447 = vld [vmem:[%s345 + $0x358] sm:$0xff]
        %v1448 = vld [vmem:[%s345 + $0x360] sm:$0xff]
        %v1449 = vld [vmem:[%s345 + $0x368] sm:$0xff]
        %v1450 = vld [vmem:[%s345 + $0x370] sm:$0xff]
        %v1451 = vld [vmem:[%s345 + $0x378] sm:$0xff]
        %v1452 = vld [vmem:[%s345 + $0x380] sm:$0xff]
        %v1453 = vld [vmem:[%s345 + $0x388] sm:$0xff]
        %v1454 = vld [vmem:[%s345 + $0x390] sm:$0xff]
        %v1455 = vld [vmem:[%s345 + $0x398] sm:$0xff]
        %v1456 = vld [vmem:[%s345 + $0x3a0] sm:$0xff]
        %v1457 = vld [vmem:[%s345 + $0x3a8] sm:$0xff]
        %v1458 = vld [vmem:[%s345 + $0x3b0] sm:$0xff]
        %v1459 = vld [vmem:[%s345 + $0x3b8] sm:$0xff]
        %v1460 = vld [vmem:[%s345 + $0x3c0] sm:$0xff]
        %v1461 = vld [vmem:[%s345 + $0x3c8] sm:$0xff]
        %v1462 = vld [vmem:[%s345 + $0x3d0] sm:$0xff]
        %v1463 = vld [vmem:[%s345 + $0x3d8] sm:$0xff]
        %v1464 = vld [vmem:[%s345 + $0x3e0] sm:$0xff]
        %v1465 = vld [vmem:[%s345 + $0x3e8] sm:$0xff]
        %v1466 = vld [vmem:[%s345 + $0x3f0] sm:$0xff]
        %v1467 = vld [vmem:[%s345 + $0x3f8] sm:$0xff]
        %v1468 = vadd.f32 %v1340, %v1212
        %v1469 = vadd.f32 %v1341, %v1213
        %v1470 = vadd.f32 %v1342, %v1214
        %v1471 = vadd.f32 %v1343, %v1215
        %v1472 = vadd.f32 %v1344, %v1216
        %v1473 = vadd.f32 %v1345, %v1217
        %v1474 = vadd.f32 %v1346, %v1218
        %v1475 = vadd.f32 %v1347, %v1219
        %v1476 = vadd.f32 %v1348, %v1220
        %v1477 = vadd.f32 %v1349, %v1221
        %v1478 = vadd.f32 %v1350, %v1222
        %v1479 = vadd.f32 %v1351, %v1223
        %v1480 = vadd.f32 %v1352, %v1224
        %v1481 = vadd.f32 %v1353, %v1225
        %v1482 = vadd.f32 %v1354, %v1226
        %v1483 = vadd.f32 %v1355, %v1227
        %v1484 = vadd.f32 %v1356, %v1228
        %v1485 = vadd.f32 %v1357, %v1229
        %v1486 = vadd.f32 %v1358, %v1230
        %v1487 = vadd.f32 %v1359, %v1231
        %v1488 = vadd.f32 %v1360, %v1232
        %v1489 = vadd.f32 %v1361, %v1233
        %v1490 = vadd.f32 %v1362, %v1234
        %v1491 = vadd.f32 %v1363, %v1235
        %v1492 = vadd.f32 %v1364, %v1236
        %v1493 = vadd.f32 %v1365, %v1237
        %v1494 = vadd.f32 %v1366, %v1238
        %v1495 = vadd.f32 %v1367, %v1239
        %v1496 = vadd.f32 %v1368, %v1240
        %v1497 = vadd.f32 %v1369, %v1241
        %v1498 = vadd.f32 %v1370, %v1242
        %v1499 = vadd.f32 %v1371, %v1243
        %v1500 = vadd.f32 %v1372, %v1244
        %v1501 = vadd.f32 %v1373, %v1245
        %v1502 = vadd.f32 %v1374, %v1246
        %v1503 = vadd.f32 %v1375, %v1247
        %v1504 = vadd.f32 %v1376, %v1248
        %v1505 = vadd.f32 %v1377, %v1249
        %v1506 = vadd.f32 %v1378, %v1250
        %v1507 = vadd.f32 %v1379, %v1251
        %v1508 = vadd.f32 %v1380, %v1252
        %v1509 = vadd.f32 %v1381, %v1253
        %v1510 = vadd.f32 %v1382, %v1254
        %v1511 = vadd.f32 %v1383, %v1255
        %v1512 = vadd.f32 %v1384, %v1256
        %v1513 = vadd.f32 %v1385, %v1257
        %v1514 = vadd.f32 %v1386, %v1258
        %v1515 = vadd.f32 %v1387, %v1259
        %v1516 = vadd.f32 %v1388, %v1260
        %v1517 = vadd.f32 %v1389, %v1261
        %v1518 = vadd.f32 %v1390, %v1262
        %v1519 = vadd.f32 %v1391, %v1263
        %v1520 = vadd.f32 %v1392, %v1264
        %v1521 = vadd.f32 %v1393, %v1265
        %v1522 = vadd.f32 %v1394, %v1266
        %v1523 = vadd.f32 %v1395, %v1267
        %v1524 = vadd.f32 %v1396, %v1268
        %v1525 = vadd.f32 %v1397, %v1269
        %v1526 = vadd.f32 %v1398, %v1270
        %v1527 = vadd.f32 %v1399, %v1271
        %v1528 = vadd.f32 %v1400, %v1272
        %v1529 = vadd.f32 %v1401, %v1273
        %v1530 = vadd.f32 %v1402, %v1274
        %v1531 = vadd.f32 %v1403, %v1275
        %v1532 = vadd.f32 %v1404, %v1276
        %v1533 = vadd.f32 %v1405, %v1277
        %v1534 = vadd.f32 %v1406, %v1278
        %v1535 = vadd.f32 %v1407, %v1279
        %v1536 = vadd.f32 %v1408, %v1280
        %v1537 = vadd.f32 %v1409, %v1281
        %v1538 = vadd.f32 %v1410, %v1282
        %v1539 = vadd.f32 %v1411, %v1283
        %v1540 = vadd.f32 %v1412, %v1284
        %v1541 = vadd.f32 %v1413, %v1285
        %v1542 = vadd.f32 %v1414, %v1286
        %v1543 = vadd.f32 %v1415, %v1287
        %v1544 = vadd.f32 %v1416, %v1288
        %v1545 = vadd.f32 %v1417, %v1289
        %v1546 = vadd.f32 %v1418, %v1290
        %v1547 = vadd.f32 %v1419, %v1291
        %v1548 = vadd.f32 %v1420, %v1292
        %v1549 = vadd.f32 %v1421, %v1293
        %v1550 = vadd.f32 %v1422, %v1294
        %v1551 = vadd.f32 %v1423, %v1295
        %v1552 = vadd.f32 %v1424, %v1296
        %v1553 = vadd.f32 %v1425, %v1297
        %v1554 = vadd.f32 %v1426, %v1298
        %v1555 = vadd.f32 %v1427, %v1299
        %v1556 = vadd.f32 %v1428, %v1300
        %v1557 = vadd.f32 %v1429, %v1301
        %v1558 = vadd.f32 %v1430, %v1302
        %v1559 = vadd.f32 %v1431, %v1303
        %v1560 = vadd.f32 %v1432, %v1304
        %v1561 = vadd.f32 %v1433, %v1305
        %v1562 = vadd.f32 %v1434, %v1306
        %v1563 = vadd.f32 %v1435, %v1307
        %v1564 = vadd.f32 %v1436, %v1308
        %v1565 = vadd.f32 %v1437, %v1309
        %v1566 = vadd.f32 %v1438, %v1310
        %v1567 = vadd.f32 %v1439, %v1311
        %v1568 = vadd.f32 %v1440, %v1312
        %v1569 = vadd.f32 %v1441, %v1313
        %v1570 = vadd.f32 %v1442, %v1314
        %v1571 = vadd.f32 %v1443, %v1315
        %v1572 = vadd.f32 %v1444, %v1316
        %v1573 = vadd.f32 %v1445, %v1317
        %v1574 = vadd.f32 %v1446, %v1318
        %v1575 = vadd.f32 %v1447, %v1319
        %v1576 = vadd.f32 %v1448, %v1320
        %v1577 = vadd.f32 %v1449, %v1321
        %v1578 = vadd.f32 %v1450, %v1322
        %v1579 = vadd.f32 %v1451, %v1323
        %v1580 = vadd.f32 %v1452, %v1324
        %v1581 = vadd.f32 %v1453, %v1325
        %v1582 = vadd.f32 %v1454, %v1326
        %v1583 = vadd.f32 %v1455, %v1327
        %v1584 = vadd.f32 %v1456, %v1328
        %v1585 = vadd.f32 %v1457, %v1329
        %v1586 = vadd.f32 %v1458, %v1330
        %v1587 = vadd.f32 %v1459, %v1331
        %v1588 = vadd.f32 %v1460, %v1332
        %v1589 = vadd.f32 %v1461, %v1333
        %v1590 = vadd.f32 %v1462, %v1334
        %v1591 = vadd.f32 %v1463, %v1335
        %v1592 = vadd.f32 %v1464, %v1336
        %v1593 = vadd.f32 %v1465, %v1337
        %v1594 = vadd.f32 %v1466, %v1338
        %v1595 = vadd.f32 %v1467, %v1339
        %v1596 = vmul.f32 %v1468, 0.5
        %v1597 = vmul.f32 %v1469, 0.5
        %v1598 = vmul.f32 %v1470, 0.5
        %v1599 = vmul.f32 %v1471, 0.5
        %v1600 = vmul.f32 %v1472, 0.5
        %v1601 = vmul.f32 %v1473, 0.5
        %v1602 = vmul.f32 %v1474, 0.5
        %v1603 = vmul.f32 %v1475, 0.5
        %v1604 = vmul.f32 %v1476, 0.5
        %v1605 = vmul.f32 %v1477, 0.5
        %v1606 = vmul.f32 %v1478, 0.5
        %v1607 = vmul.f32 %v1479, 0.5
        %v1608 = vmul.f32 %v1480, 0.5
        %v1609 = vmul.f32 %v1481, 0.5
        %v1610 = vmul.f32 %v1482, 0.5
        %v1611 = vmul.f32 %v1483, 0.5
        %v1612 = vmul.f32 %v1484, 0.5
        %v1613 = vmul.f32 %v1485, 0.5
        %v1614 = vmul.f32 %v1486, 0.5
        %v1615 = vmul.f32 %v1487, 0.5
        %v1616 = vmul.f32 %v1488, 0.5
        %v1617 = vmul.f32 %v1489, 0.5
        %v1618 = vmul.f32 %v1490, 0.5
        %v1619 = vmul.f32 %v1491, 0.5
        %v1620 = vmul.f32 %v1492, 0.5
        %v1621 = vmul.f32 %v1493, 0.5
        %v1622 = vmul.f32 %v1494, 0.5
        %v1623 = vmul.f32 %v1495, 0.5
        %v1624 = vmul.f32 %v1496, 0.5
        %v1625 = vmul.f32 %v1497, 0.5
        %v1626 = vmul.f32 %v1498, 0.5
        %v1627 = vmul.f32 %v1499, 0.5
        %v1628 = vmul.f32 %v1500, 0.5
        %v1629 = vmul.f32 %v1501, 0.5
        %v1630 = vmul.f32 %v1502, 0.5
        %v1631 = vmul.f32 %v1503, 0.5
        %v1632 = vmul.f32 %v1504, 0.5
        %v1633 = vmul.f32 %v1505, 0.5
        %v1634 = vmul.f32 %v1506, 0.5
        %v1635 = vmul.f32 %v1507, 0.5
        %v1636 = vmul.f32 %v1508, 0.5
        %v1637 = vmul.f32 %v1509, 0.5
        %v1638 = vmul.f32 %v1510, 0.5
        %v1639 = vmul.f32 %v1511, 0.5
        %v1640 = vmul.f32 %v1512, 0.5
        %v1641 = vmul.f32 %v1513, 0.5
        %v1642 = vmul.f32 %v1514, 0.5
        %v1643 = vmul.f32 %v1515, 0.5
        %v1644 = vmul.f32 %v1516, 0.5
        %v1645 = vmul.f32 %v1517, 0.5
        %v1646 = vmul.f32 %v1518, 0.5
        %v1647 = vmul.f32 %v1519, 0.5
        %v1648 = vmul.f32 %v1520, 0.5
        %v1649 = vmul.f32 %v1521, 0.5
        %v1650 = vmul.f32 %v1522, 0.5
        %v1651 = vmul.f32 %v1523, 0.5
        %v1652 = vmul.f32 %v1524, 0.5
        %v1653 = vmul.f32 %v1525, 0.5
        %v1654 = vmul.f32 %v1526, 0.5
        %v1655 = vmul.f32 %v1527, 0.5
        %v1656 = vmul.f32 %v1528, 0.5
        %v1657 = vmul.f32 %v1529, 0.5
        %v1658 = vmul.f32 %v1530, 0.5
        %v1659 = vmul.f32 %v1531, 0.5
        %v1660 = vmul.f32 %v1532, 0.5
        %v1661 = vmul.f32 %v1533, 0.5
        %v1662 = vmul.f32 %v1534, 0.5
        %v1663 = vmul.f32 %v1535, 0.5
        %v1664 = vmul.f32 %v1536, 0.5
        %v1665 = vmul.f32 %v1537, 0.5
        %v1666 = vmul.f32 %v1538, 0.5
        %v1667 = vmul.f32 %v1539, 0.5
        %v1668 = vmul.f32 %v1540, 0.5
        %v1669 = vmul.f32 %v1541, 0.5
        %v1670 = vmul.f32 %v1542, 0.5
        %v1671 = vmul.f32 %v1543, 0.5
        %v1672 = vmul.f32 %v1544, 0.5
        %v1673 = vmul.f32 %v1545, 0.5
        %v1674 = vmul.f32 %v1546, 0.5
        %v1675 = vmul.f32 %v1547, 0.5
        %v1676 = vmul.f32 %v1548, 0.5
        %v1677 = vmul.f32 %v1549, 0.5
        %v1678 = vmul.f32 %v1550, 0.5
        %v1679 = vmul.f32 %v1551, 0.5
        %v1680 = vmul.f32 %v1552, 0.5
        %v1681 = vmul.f32 %v1553, 0.5
        %v1682 = vmul.f32 %v1554, 0.5
        %v1683 = vmul.f32 %v1555, 0.5
        %v1684 = vmul.f32 %v1556, 0.5
        %v1685 = vmul.f32 %v1557, 0.5
        %v1686 = vmul.f32 %v1558, 0.5
        %v1687 = vmul.f32 %v1559, 0.5
        %v1688 = vmul.f32 %v1560, 0.5
        %v1689 = vmul.f32 %v1561, 0.5
        %v1690 = vmul.f32 %v1562, 0.5
        %v1691 = vmul.f32 %v1563, 0.5
        %v1692 = vmul.f32 %v1564, 0.5
        %v1693 = vmul.f32 %v1565, 0.5
        %v1694 = vmul.f32 %v1566, 0.5
        %v1695 = vmul.f32 %v1567, 0.5
        %v1696 = vmul.f32 %v1568, 0.5
        %v1697 = vmul.f32 %v1569, 0.5
        %v1698 = vmul.f32 %v1570, 0.5
        %v1699 = vmul.f32 %v1571, 0.5
        %v1700 = vmul.f32 %v1572, 0.5
        %v1701 = vmul.f32 %v1573, 0.5
        %v1702 = vmul.f32 %v1574, 0.5
        %v1703 = vmul.f32 %v1575, 0.5
        %v1704 = vmul.f32 %v1576, 0.5
        %v1705 = vmul.f32 %v1577, 0.5
        %v1706 = vmul.f32 %v1578, 0.5
        %v1707 = vmul.f32 %v1579, 0.5
        %v1708 = vmul.f32 %v1580, 0.5
        %v1709 = vmul.f32 %v1581, 0.5
        %v1710 = vmul.f32 %v1582, 0.5
        %v1711 = vmul.f32 %v1583, 0.5
        %v1712 = vmul.f32 %v1584, 0.5
        %v1713 = vmul.f32 %v1585, 0.5
        %v1714 = vmul.f32 %v1586, 0.5
        %v1715 = vmul.f32 %v1587, 0.5
        %v1716 = vmul.f32 %v1588, 0.5
        %v1717 = vmul.f32 %v1589, 0.5
        %v1718 = vmul.f32 %v1590, 0.5
        %v1719 = vmul.f32 %v1591, 0.5
        %v1720 = vmul.f32 %v1592, 0.5
        %v1721 = vmul.f32 %v1593, 0.5
        %v1722 = vmul.f32 %v1594, 0.5
        %v1723 = vmul.f32 %v1595, 0.5
        %1724 = vst [vmem:[#allocation2] sm:$0xff] 0.0
        %1725 = vst [vmem:[#allocation2 + $0x8] sm:$0xff] 0.0
        %1726 = vst [vmem:[#allocation2 + $0x10] sm:$0xff] 0.0
        %1727 = vst [vmem:[#allocation2 + $0x18] sm:$0xff] 0.0
        %1728 = vst [vmem:[#allocation2 + $0x20] sm:$0x3] 0.0
        %1729 = vst [vmem:[#allocation2 + $0x28] sm:$0xff] 0.0
        %1730 = vst [vmem:[#allocation2 + $0x30] sm:$0xff] 0.0
        %1731 = vst [vmem:[#allocation2 + $0x38] sm:$0xff] 0.0
        %1732 = vst [vmem:[#allocation2 + $0x40] sm:$0xff] 0.0
        %1733 = vst [vmem:[#allocation2 + $0x48] sm:$0x3] 0.0
        %1734 = vst [vmem:[#allocation2 + $0x50] sm:$0xff] 0.0
        %1735 = vst [vmem:[#allocation2 + $0x58] sm:$0xff] 0.0
        %1736 = vst [vmem:[#allocation2 + $0x60] sm:$0xff] 0.0
        %1737 = vst [vmem:[#allocation2 + $0x68] sm:$0xff] 0.0
        %1738 = vst [vmem:[#allocation2 + $0x70] sm:$0x3] 0.0
        %1739 = vst [vmem:[#allocation2 + $0x78] sm:$0xff] 0.0
        %1740 = vst [vmem:[#allocation2 + $0x80] sm:$0xff] 0.0
        %1741 = vst [vmem:[#allocation2 + $0x88] sm:$0xff] 0.0
        %1742 = vst [vmem:[#allocation2 + $0x90] sm:$0xff] 0.0
        %1743 = vst [vmem:[#allocation2 + $0x98] sm:$0x3] 0.0
        %1744 = vst [vmem:[#allocation2 + $0xa0] sm:$0xff] 0.0
        %1745 = vst [vmem:[#allocation2 + $0xa8] sm:$0xff] 0.0
        %1746 = vst [vmem:[#allocation2 + $0xb0] sm:$0xff] 0.0
        %1747 = vst [vmem:[#allocation2 + $0xb8] sm:$0xff] 0.0
        %1748 = vst [vmem:[#allocation2 + $0xc0] sm:$0x3] 0.0
        %1749 = vst [vmem:[#allocation2 + $0xc8] sm:$0xff] 0.0
        %1750 = vst [vmem:[#allocation2 + $0xd0] sm:$0xff] 0.0
        %1751 = vst [vmem:[#allocation2 + $0xd8] sm:$0xff] 0.0
        %1752 = vst [vmem:[#allocation2 + $0xe0] sm:$0xff] 0.0
        %1753 = vst [vmem:[#allocation2 + $0xe8] sm:$0x3] 0.0
        %1754 = vst [vmem:[#allocation2 + $0xf0] sm:$0xff] 0.0
        %1755 = vst [vmem:[#allocation2 + $0xf8] sm:$0xff] 0.0
        %1756 = vst [vmem:[#allocation2 + $0x100] sm:$0xff] 0.0
        %1757 = vst [vmem:[#allocation2 + $0x108] sm:$0xff] 0.0
        %1758 = vst [vmem:[#allocation2 + $0x110] sm:$0x3] 0.0
        %1759 = vst [vmem:[#allocation2 + $0x118] sm:$0xff] 0.0
        %1760 = vst [vmem:[#allocation2 + $0x120] sm:$0xff] 0.0
        %1761 = vst [vmem:[#allocation2 + $0x128] sm:$0xff] 0.0
        %1762 = vst [vmem:[#allocation2 + $0x130] sm:$0xff] 0.0
        %1763 = vst [vmem:[#allocation2 + $0x138] sm:$0x3] 0.0
        %1764 = vst [vmem:[#allocation2 + $0x140] sm:$0xff] 0.0
        %1765 = vst [vmem:[#allocation2 + $0x148] sm:$0xff] 0.0
        %1766 = vst [vmem:[#allocation2 + $0x150] sm:$0xff] 0.0
        %1767 = vst [vmem:[#allocation2 + $0x158] sm:$0xff] 0.0
        %1768 = vst [vmem:[#allocation2 + $0x160] sm:$0x3] 0.0
        %1769 = vst [vmem:[#allocation2 + $0x168] sm:$0xff] 0.0
        %1770 = vst [vmem:[#allocation2 + $0x170] sm:$0xff] 0.0
        %1771 = vst [vmem:[#allocation2 + $0x178] sm:$0xff] 0.0
        %1772 = vst [vmem:[#allocation2 + $0x180] sm:$0xff] 0.0
        %1773 = vst [vmem:[#allocation2 + $0x188] sm:$0x3] 0.0
        %1774 = vst [vmem:[#allocation2 + $0x190] sm:$0xff] 0.0
        %1775 = vst [vmem:[#allocation2 + $0x198] sm:$0xff] 0.0
        %1776 = vst [vmem:[#allocation2 + $0x1a0] sm:$0xff] 0.0
        %1777 = vst [vmem:[#allocation2 + $0x1a8] sm:$0xff] 0.0
        %1778 = vst [vmem:[#allocation2 + $0x1b0] sm:$0x3] 0.0
        %1779 = vst [vmem:[#allocation2 + $0x1b8] sm:$0xff] 0.0
        %1780 = vst [vmem:[#allocation2 + $0x1c0] sm:$0xff] 0.0
        %1781 = vst [vmem:[#allocation2 + $0x1c8] sm:$0xff] 0.0
        %1782 = vst [vmem:[#allocation2 + $0x1d0] sm:$0xff] 0.0
        %1783 = vst [vmem:[#allocation2 + $0x1d8] sm:$0x3] 0.0
        %1784 = vst [vmem:[#allocation2 + $0x1e0] sm:$0xff] 0.0
        %1785 = vst [vmem:[#allocation2 + $0x1e8] sm:$0xff] 0.0
        %1786 = vst [vmem:[#allocation2 + $0x1f0] sm:$0xff] 0.0
        %1787 = vst [vmem:[#allocation2 + $0x1f8] sm:$0xff] 0.0
        %1788 = vst [vmem:[#allocation2 + $0x200] sm:$0x3] 0.0
        %1789 = vst [vmem:[#allocation2 + $0x208] sm:$0xff] 0.0
        %1790 = vst [vmem:[#allocation2 + $0x210] sm:$0xff] 0.0
        %1791 = vst [vmem:[#allocation2 + $0x218] sm:$0xff] 0.0
        %1792 = vst [vmem:[#allocation2 + $0x220] sm:$0xff] 0.0
        %1793 = vst [vmem:[#allocation2 + $0x228] sm:$0x3] 0.0
        %1794 = vst [vmem:[#allocation2 + $0x230] sm:$0xff] 0.0
        %1795 = vst [vmem:[#allocation2 + $0x238] sm:$0xff] 0.0
        %1796 = vst [vmem:[#allocation2 + $0x240] sm:$0xff] 0.0
        %1797 = vst [vmem:[#allocation2 + $0x248] sm:$0xff] 0.0
        %1798 = vst [vmem:[#allocation2 + $0x250] sm:$0x3] 0.0
        %1799 = vst [vmem:[#allocation2 + $0x258] sm:$0xff] 0.0
        %1800 = vst [vmem:[#allocation2 + $0x260] sm:$0xff] 0.0
        %1801 = vst [vmem:[#allocation2 + $0x268] sm:$0xff] 0.0
        %1802 = vst [vmem:[#allocation2 + $0x270] sm:$0xff] 0.0
        %1803 = vst [vmem:[#allocation2 + $0x278] sm:$0x3] 0.0
        %1804 = vst [vmem:[#allocation2 + $0x280] sm:$0xff] 0.0
        %1805 = vst [vmem:[#allocation2 + $0x288] sm:$0xff] 0.0
        %1806 = vst [vmem:[#allocation2 + $0x290] sm:$0xff] 0.0
        %1807 = vst [vmem:[#allocation2 + $0x298] sm:$0xff] 0.0
        %1808 = vst [vmem:[#allocation2 + $0x2a0] sm:$0x3] 0.0
        %1809 = vst [vmem:[#allocation2 + $0x2a8] sm:$0xff] 0.0
        %1810 = vst [vmem:[#allocation2 + $0x2b0] sm:$0xff] 0.0
        %1811 = vst [vmem:[#allocation2 + $0x2b8] sm:$0xff] 0.0
        %1812 = vst [vmem:[#allocation2 + $0x2c0] sm:$0xff] 0.0
        %1813 = vst [vmem:[#allocation2 + $0x2c8] sm:$0x3] 0.0
        %1814 = vst [vmem:[#allocation2 + $0x2d0] sm:$0xff] 0.0
        %1815 = vst [vmem:[#allocation2 + $0x2d8] sm:$0xff] 0.0
        %1816 = vst [vmem:[#allocation2 + $0x2e0] sm:$0xff] 0.0
        %1817 = vst [vmem:[#allocation2 + $0x2e8] sm:$0xff] 0.0
        %1818 = vst [vmem:[#allocation2 + $0x2f0] sm:$0x3] 0.0
        %1819 = vst [vmem:[#allocation2 + $0x2f8] sm:$0xff] 0.0
        %1820 = vst [vmem:[#allocation2 + $0x300] sm:$0xff] 0.0
        %1821 = vst [vmem:[#allocation2 + $0x308] sm:$0xff] 0.0
        %1822 = vst [vmem:[#allocation2 + $0x310] sm:$0xff] 0.0
        %1823 = vst [vmem:[#allocation2 + $0x318] sm:$0x3] 0.0
        %1824 = vst [vmem:[#allocation2 + $0x320] sm:$0xff] 0.0
        %1825 = vst [vmem:[#allocation2 + $0x328] sm:$0xff] 0.0
        %1826 = vst [vmem:[#allocation2 + $0x330] sm:$0xff] 0.0
        %1827 = vst [vmem:[#allocation2 + $0x338] sm:$0xff] 0.0
        %1828 = vst [vmem:[#allocation2 + $0x340] sm:$0x3] 0.0
        %1829 = vst [vmem:[#allocation2 + $0x348] sm:$0xff] 0.0
        %1830 = vst [vmem:[#allocation2 + $0x350] sm:$0xff] 0.0
        %1831 = vst [vmem:[#allocation2 + $0x358] sm:$0xff] 0.0
        %1832 = vst [vmem:[#allocation2 + $0x360] sm:$0xff] 0.0
        %1833 = vst [vmem:[#allocation2 + $0x368] sm:$0x3] 0.0
        %1834 = vst [vmem:[#allocation2 + $0x370] sm:$0xff] 0.0
        %1835 = vst [vmem:[#allocation2 + $0x378] sm:$0xff] 0.0
        %1836 = vst [vmem:[#allocation2 + $0x380] sm:$0xff] 0.0
        %1837 = vst [vmem:[#allocation2 + $0x388] sm:$0xff] 0.0
        %1838 = vst [vmem:[#allocation2 + $0x390] sm:$0x3] 0.0
        %1839 = vst [vmem:[#allocation2 + $0x398] sm:$0xff] 0.0
        %1840 = vst [vmem:[#allocation2 + $0x3a0] sm:$0xff] 0.0
        %1841 = vst [vmem:[#allocation2 + $0x3a8] sm:$0xff] 0.0
        %1842 = vst [vmem:[#allocation2 + $0x3b0] sm:$0xff] 0.0
        %1843 = vst [vmem:[#allocation2 + $0x3b8] sm:$0x3] 0.0
        %1844 = vst [vmem:[#allocation2 + $0x3c0] sm:$0xff] 0.0
        %1845 = vst [vmem:[#allocation2 + $0x3c8] sm:$0xff] 0.0
        %1846 = vst [vmem:[#allocation2 + $0x3d0] sm:$0xff] 0.0
        %1847 = vst [vmem:[#allocation2 + $0x3d8] sm:$0xff] 0.0
        %1848 = vst [vmem:[#allocation2 + $0x3e0] sm:$0x3] 0.0
        %1849 = vst [vmem:[#allocation2 + $0x3e8] sm:$0xff] 0.0
        %1850 = vst [vmem:[#allocation2 + $0x3f0] sm:$0xff] 0.0
        %1851 = vst [vmem:[#allocation2 + $0x3f8] sm:$0xff] 0.0
        %1852 = vst [vmem:[#allocation2 + $0x400] sm:$0xff] 0.0
        %1853 = vst [vmem:[#allocation2 + $0x408] sm:$0x3] 0.0
        %1854 = vst [vmem:[#allocation2 + $0x410] sm:$0xff] 0.0
        %1855 = vst [vmem:[#allocation2 + $0x418] sm:$0xff] 0.0
        %1856 = vst [vmem:[#allocation2 + $0x420] sm:$0xff] 0.0
        %1857 = vst [vmem:[#allocation2 + $0x428] sm:$0xff] 0.0
        %1858 = vst [vmem:[#allocation2 + $0x430] sm:$0x3] 0.0
        %1859 = vst [vmem:[#allocation2 + $0x438] sm:$0xff] 0.0
        %1860 = vst [vmem:[#allocation2 + $0x440] sm:$0xff] 0.0
        %1861 = vst [vmem:[#allocation2 + $0x448] sm:$0xff] 0.0
        %1862 = vst [vmem:[#allocation2 + $0x450] sm:$0xff] 0.0
        %1863 = vst [vmem:[#allocation2 + $0x458] sm:$0x3] 0.0
        %1864 = vst [vmem:[#allocation2 + $0x460] sm:$0xff] 0.0
        %1865 = vst [vmem:[#allocation2 + $0x468] sm:$0xff] 0.0
        %1866 = vst [vmem:[#allocation2 + $0x470] sm:$0xff] 0.0
        %1867 = vst [vmem:[#allocation2 + $0x478] sm:$0xff] 0.0
        %1868 = vst [vmem:[#allocation2 + $0x480] sm:$0x3] 0.0
        %1869 = vst [vmem:[#allocation2 + $0x488] sm:$0xff] 0.0
        %1870 = vst [vmem:[#allocation2 + $0x490] sm:$0xff] 0.0
        %1871 = vst [vmem:[#allocation2 + $0x498] sm:$0xff] 0.0
        %1872 = vst [vmem:[#allocation2 + $0x4a0] sm:$0xff] 0.0
        %1873 = vst [vmem:[#allocation2 + $0x4a8] sm:$0x3] 0.0
        %1874 = vst [vmem:[#allocation2 + $0x4b0] sm:$0xff] 0.0
        %1875 = vst [vmem:[#allocation2 + $0x4b8] sm:$0xff] 0.0
        %1876 = vst [vmem:[#allocation2 + $0x4c0] sm:$0xff] 0.0
        %1877 = vst [vmem:[#allocation2 + $0x4c8] sm:$0xff] 0.0
        %1878 = vst [vmem:[#allocation2 + $0x4d0] sm:$0x3] 0.0
        %1879 = vst [vmem:[#allocation2 + $0x4d8] sm:$0xff] 0.0
        %1880 = vst [vmem:[#allocation2 + $0x4e0] sm:$0xff] 0.0
        %1881 = vst [vmem:[#allocation2 + $0x4e8] sm:$0xff] 0.0
        %1882 = vst [vmem:[#allocation2 + $0x4f0] sm:$0xff] 0.0
        %1883 = vst [vmem:[#allocation2 + $0x4f8] sm:$0x3] 0.0
        %1884 = vst [vmem:[#allocation2 + $0x500] sm:$0xff] 0.0
        %1885 = vst [vmem:[#allocation2 + $0x508] sm:$0xff] 0.0
        %1886 = vst [vmem:[#allocation2 + $0x510] sm:$0xff] 0.0
        %1887 = vst [vmem:[#allocation2 + $0x518] sm:$0xff] 0.0
        %1888 = vst [vmem:[#allocation2 + $0x520] sm:$0x3] 0.0
        %1889 = vst [vmem:[#allocation2 + $0x528] sm:$0xff] 0.0
        %1890 = vst [vmem:[#allocation2 + $0x530] sm:$0xff] 0.0
        %1891 = vst [vmem:[#allocation2 + $0x538] sm:$0xff] 0.0
        %1892 = vst [vmem:[#allocation2 + $0x540] sm:$0xff] 0.0
        %1893 = vst [vmem:[#allocation2 + $0x548] sm:$0x3] 0.0
        %s1894 = scalar_lea.vmem [#allocation2], 40
        %1895 = vst [vmem:[%s1894 + $0x1] sm:$0xff] %v1596
        %1896 = vst [vmem:[%s1894 + $0x9] sm:$0xff] %v1597
        %1897 = vst [vmem:[%s1894 + $0x11] sm:$0xff] %v1598
        %1898 = vst [vmem:[%s1894 + $0x19] sm:$0xff] %v1599
        %1899 = vst [vmem:[%s1894 + $0x29] sm:$0xff] %v1600
        %1900 = vst [vmem:[%s1894 + $0x31] sm:$0xff] %v1601
        %1901 = vst [vmem:[%s1894 + $0x39] sm:$0xff] %v1602
        %1902 = vst [vmem:[%s1894 + $0x41] sm:$0xff] %v1603
        %1903 = vst [vmem:[%s1894 + $0x51] sm:$0xff] %v1604
        %1904 = vst [vmem:[%s1894 + $0x59] sm:$0xff] %v1605
        %1905 = vst [vmem:[%s1894 + $0x61] sm:$0xff] %v1606
        %1906 = vst [vmem:[%s1894 + $0x69] sm:$0xff] %v1607
        %1907 = vst [vmem:[%s1894 + $0x79] sm:$0xff] %v1608
        %1908 = vst [vmem:[%s1894 + $0x81] sm:$0xff] %v1609
        %1909 = vst [vmem:[%s1894 + $0x89] sm:$0xff] %v1610
        %1910 = vst [vmem:[%s1894 + $0x91] sm:$0xff] %v1611
        %1911 = vst [vmem:[%s1894 + $0xa1] sm:$0xff] %v1612
        %1912 = vst [vmem:[%s1894 + $0xa9] sm:$0xff] %v1613
        %1913 = vst [vmem:[%s1894 + $0xb1] sm:$0xff] %v1614
        %1914 = vst [vmem:[%s1894 + $0xb9] sm:$0xff] %v1615
        %1915 = vst [vmem:[%s1894 + $0xc9] sm:$0xff] %v1616
        %1916 = vst [vmem:[%s1894 + $0xd1] sm:$0xff] %v1617
        %1917 = vst [vmem:[%s1894 + $0xd9] sm:$0xff] %v1618
        %1918 = vst [vmem:[%s1894 + $0xe1] sm:$0xff] %v1619
        %1919 = vst [vmem:[%s1894 + $0xf1] sm:$0xff] %v1620
        %1920 = vst [vmem:[%s1894 + $0xf9] sm:$0xff] %v1621
        %1921 = vst [vmem:[%s1894 + $0x101] sm:$0xff] %v1622
        %1922 = vst [vmem:[%s1894 + $0x109] sm:$0xff] %v1623
        %1923 = vst [vmem:[%s1894 + $0x119] sm:$0xff] %v1624
        %1924 = vst [vmem:[%s1894 + $0x121] sm:$0xff] %v1625
        %1925 = vst [vmem:[%s1894 + $0x129] sm:$0xff] %v1626
        %1926 = vst [vmem:[%s1894 + $0x131] sm:$0xff] %v1627
        %1927 = vst [vmem:[%s1894 + $0x141] sm:$0xff] %v1628
        %1928 = vst [vmem:[%s1894 + $0x149] sm:$0xff] %v1629
        %1929 = vst [vmem:[%s1894 + $0x151] sm:$0xff] %v1630
        %1930 = vst [vmem:[%s1894 + $0x159] sm:$0xff] %v1631
        %1931 = vst [vmem:[%s1894 + $0x169] sm:$0xff] %v1632
        %1932 = vst [vmem:[%s1894 + $0x171] sm:$0xff] %v1633
        %1933 = vst [vmem:[%s1894 + $0x179] sm:$0xff] %v1634
        %1934 = vst [vmem:[%s1894 + $0x181] sm:$0xff] %v1635
        %1935 = vst [vmem:[%s1894 + $0x191] sm:$0xff] %v1636
        %1936 = vst [vmem:[%s1894 + $0x199] sm:$0xff] %v1637
        %1937 = vst [vmem:[%s1894 + $0x1a1] sm:$0xff] %v1638
        %1938 = vst [vmem:[%s1894 + $0x1a9] sm:$0xff] %v1639
        %1939 = vst [vmem:[%s1894 + $0x1b9] sm:$0xff] %v1640
        %1940 = vst [vmem:[%s1894 + $0x1c1] sm:$0xff] %v1641
        %1941 = vst [vmem:[%s1894 + $0x1c9] sm:$0xff] %v1642
        %1942 = vst [vmem:[%s1894 + $0x1d1] sm:$0xff] %v1643
        %1943 = vst [vmem:[%s1894 + $0x1e1] sm:$0xff] %v1644
        %1944 = vst [vmem:[%s1894 + $0x1e9] sm:$0xff] %v1645
        %1945 = vst [vmem:[%s1894 + $0x1f1] sm:$0xff] %v1646
        %1946 = vst [vmem:[%s1894 + $0x1f9] sm:$0xff] %v1647
        %1947 = vst [vmem:[%s1894 + $0x209] sm:$0xff] %v1648
        %1948 = vst [vmem:[%s1894 + $0x211] sm:$0xff] %v1649
        %1949 = vst [vmem:[%s1894 + $0x219] sm:$0xff] %v1650
        %1950 = vst [vmem:[%s1894 + $0x221] sm:$0xff] %v1651
        %1951 = vst [vmem:[%s1894 + $0x231] sm:$0xff] %v1652
        %1952 = vst [vmem:[%s1894 + $0x239] sm:$0xff] %v1653
        %1953 = vst [vmem:[%s1894 + $0x241] sm:$0xff] %v1654
        %1954 = vst [vmem:[%s1894 + $0x249] sm:$0xff] %v1655
        %1955 = vst [vmem:[%s1894 + $0x259] sm:$0xff] %v1656
        %1956 = vst [vmem:[%s1894 + $0x261] sm:$0xff] %v1657
        %1957 = vst [vmem:[%s1894 + $0x269] sm:$0xff] %v1658
        %1958 = vst [vmem:[%s1894 + $0x271] sm:$0xff] %v1659
        %1959 = vst [vmem:[%s1894 + $0x281] sm:$0xff] %v1660
        %1960 = vst [vmem:[%s1894 + $0x289] sm:$0xff] %v1661
        %1961 = vst [vmem:[%s1894 + $0x291] sm:$0xff] %v1662
        %1962 = vst [vmem:[%s1894 + $0x299] sm:$0xff] %v1663
        %1963 = vst [vmem:[%s1894 + $0x2a9] sm:$0xff] %v1664
        %1964 = vst [vmem:[%s1894 + $0x2b1] sm:$0xff] %v1665
        %1965 = vst [vmem:[%s1894 + $0x2b9] sm:$0xff] %v1666
        %1966 = vst [vmem:[%s1894 + $0x2c1] sm:$0xff] %v1667
        %1967 = vst [vmem:[%s1894 + $0x2d1] sm:$0xff] %v1668
        %1968 = vst [vmem:[%s1894 + $0x2d9] sm:$0xff] %v1669
        %1969 = vst [vmem:[%s1894 + $0x2e1] sm:$0xff] %v1670
        %1970 = vst [vmem:[%s1894 + $0x2e9] sm:$0xff] %v1671
        %1971 = vst [vmem:[%s1894 + $0x2f9] sm:$0xff] %v1672
        %1972 = vst [vmem:[%s1894 + $0x301] sm:$0xff] %v1673
        %1973 = vst [vmem:[%s1894 + $0x309] sm:$0xff] %v1674
        %1974 = vst [vmem:[%s1894 + $0x311] sm:$0xff] %v1675
        %1975 = vst [vmem:[%s1894 + $0x321] sm:$0xff] %v1676
        %1976 = vst [vmem:[%s1894 + $0x329] sm:$0xff] %v1677
        %1977 = vst [vmem:[%s1894 + $0x331] sm:$0xff] %v1678
        %1978 = vst [vmem:[%s1894 + $0x339] sm:$0xff] %v1679
        %1979 = vst [vmem:[%s1894 + $0x349] sm:$0xff] %v1680
        %1980 = vst [vmem:[%s1894 + $0x351] sm:$0xff] %v1681
        %1981 = vst [vmem:[%s1894 + $0x359] sm:$0xff] %v1682
        %1982 = vst [vmem:[%s1894 + $0x361] sm:$0xff] %v1683
        %1983 = vst [vmem:[%s1894 + $0x371] sm:$0xff] %v1684
        %1984 = vst [vmem:[%s1894 + $0x379] sm:$0xff] %v1685
        %1985 = vst [vmem:[%s1894 + $0x381] sm:$0xff] %v1686
        %1986 = vst [vmem:[%s1894 + $0x389] sm:$0xff] %v1687
        %1987 = vst [vmem:[%s1894 + $0x399] sm:$0xff] %v1688
        %1988 = vst [vmem:[%s1894 + $0x3a1] sm:$0xff] %v1689
        %1989 = vst [vmem:[%s1894 + $0x3a9] sm:$0xff] %v1690
        %1990 = vst [vmem:[%s1894 + $0x3b1] sm:$0xff] %v1691
        %1991 = vst [vmem:[%s1894 + $0x3c1] sm:$0xff] %v1692
        %1992 = vst [vmem:[%s1894 + $0x3c9] sm:$0xff] %v1693
        %1993 = vst [vmem:[%s1894 + $0x3d1] sm:$0xff] %v1694
        %1994 = vst [vmem:[%s1894 + $0x3d9] sm:$0xff] %v1695
        %1995 = vst [vmem:[%s1894 + $0x3e9] sm:$0xff] %v1696
        %1996 = vst [vmem:[%s1894 + $0x3f1] sm:$0xff] %v1697
        %1997 = vst [vmem:[%s1894 + $0x3f9] sm:$0xff] %v1698
        %1998 = vst [vmem:[%s1894 + $0x401] sm:$0xff] %v1699
        %1999 = vst [vmem:[%s1894 + $0x411] sm:$0xff] %v1700
        %2000 = vst [vmem:[%s1894 + $0x419] sm:$0xff] %v1701
        %2001 = vst [vmem:[%s1894 + $0x421] sm:$0xff] %v1702
        %2002 = vst [vmem:[%s1894 + $0x429] sm:$0xff] %v1703
        %2003 = vst [vmem:[%s1894 + $0x439] sm:$0xff] %v1704
        %2004 = vst [vmem:[%s1894 + $0x441] sm:$0xff] %v1705
        %2005 = vst [vmem:[%s1894 + $0x449] sm:$0xff] %v1706
        %2006 = vst [vmem:[%s1894 + $0x451] sm:$0xff] %v1707
        %2007 = vst [vmem:[%s1894 + $0x461] sm:$0xff] %v1708
        %2008 = vst [vmem:[%s1894 + $0x469] sm:$0xff] %v1709
        %2009 = vst [vmem:[%s1894 + $0x471] sm:$0xff] %v1710
        %2010 = vst [vmem:[%s1894 + $0x479] sm:$0xff] %v1711
        %2011 = vst [vmem:[%s1894 + $0x489] sm:$0xff] %v1712
        %2012 = vst [vmem:[%s1894 + $0x491] sm:$0xff] %v1713
        %2013 = vst [vmem:[%s1894 + $0x499] sm:$0xff] %v1714
        %2014 = vst [vmem:[%s1894 + $0x4a1] sm:$0xff] %v1715
        %2015 = vst [vmem:[%s1894 + $0x4b1] sm:$0xff] %v1716
        %2016 = vst [vmem:[%s1894 + $0x4b9] sm:$0xff] %v1717
        %2017 = vst [vmem:[%s1894 + $0x4c1] sm:$0xff] %v1718
        %2018 = vst [vmem:[%s1894 + $0x4c9] sm:$0xff] %v1719
        %2019 = vst [vmem:[%s1894 + $0x4d9] sm:$0xff] %v1720
        %2020 = vst [vmem:[%s1894 + $0x4e1] sm:$0xff] %v1721
        %2021 = vst [vmem:[%s1894 + $0x4e9] sm:$0xff] %v1722
        %2022 = vst [vmem:[%s1894 + $0x4f1] sm:$0xff] %v1723
        %v2023 = vld [vmem:[#allocation2] sm:$0xff]
        %v2024 = vld [vmem:[#allocation2 + $0x8] sm:$0xff]
        %v2025 = vld [vmem:[#allocation2 + $0x10] sm:$0xff]
        %v2026 = vld [vmem:[#allocation2 + $0x18] sm:$0xff]
        %v2027 = vld [vmem:[#allocation2 + $0x20] sm:$0x3]
        %v2028 = vld [vmem:[#allocation2 + $0x28] sm:$0xff]
        %v2029 = vld [vmem:[#allocation2 + $0x30] sm:$0xff]
        %v2030 = vld [vmem:[#allocation2 + $0x38] sm:$0xff]
        %v2031 = vld [vmem:[#allocation2 + $0x40] sm:$0xff]
        %v2032 = vld [vmem:[#allocation2 + $0x48] sm:$0x3]
        %v2033 = vld [vmem:[#allocation2 + $0x50] sm:$0xff]
        %v2034 = vld [vmem:[#allocation2 + $0x58] sm:$0xff]
        %v2035 = vld [vmem:[#allocation2 + $0x60] sm:$0xff]
        %v2036 = vld [vmem:[#allocation2 + $0x68] sm:$0xff]
        %v2037 = vld [vmem:[#allocation2 + $0x70] sm:$0x3]
        %v2038 = vld [vmem:[#allocation2 + $0x78] sm:$0xff]
        %v2039 = vld [vmem:[#allocation2 + $0x80] sm:$0xff]
        %v2040 = vld [vmem:[#allocation2 + $0x88] sm:$0xff]
        %v2041 = vld [vmem:[#allocation2 + $0x90] sm:$0xff]
        %v2042 = vld [vmem:[#allocation2 + $0x98] sm:$0x3]
        %v2043 = vld [vmem:[#allocation2 + $0xa0] sm:$0xff]
        %v2044 = vld [vmem:[#allocation2 + $0xa8] sm:$0xff]
        %v2045 = vld [vmem:[#allocation2 + $0xb0] sm:$0xff]
        %v2046 = vld [vmem:[#allocation2 + $0xb8] sm:$0xff]
        %v2047 = vld [vmem:[#allocation2 + $0xc0] sm:$0x3]
        %v2048 = vld [vmem:[#allocation2 + $0xc8] sm:$0xff]
        %v2049 = vld [vmem:[#allocation2 + $0xd0] sm:$0xff]
        %v2050 = vld [vmem:[#allocation2 + $0xd8] sm:$0xff]
        %v2051 = vld [vmem:[#allocation2 + $0xe0] sm:$0xff]
        %v2052 = vld [vmem:[#allocation2 + $0xe8] sm:$0x3]
        %v2053 = vld [vmem:[#allocation2 + $0xf0] sm:$0xff]
        %v2054 = vld [vmem:[#allocation2 + $0xf8] sm:$0xff]
        %v2055 = vld [vmem:[#allocation2 + $0x100] sm:$0xff]
        %v2056 = vld [vmem:[#allocation2 + $0x108] sm:$0xff]
        %v2057 = vld [vmem:[#allocation2 + $0x110] sm:$0x3]
        %v2058 = vld [vmem:[#allocation2 + $0x118] sm:$0xff]
        %v2059 = vld [vmem:[#allocation2 + $0x120] sm:$0xff]
        %v2060 = vld [vmem:[#allocation2 + $0x128] sm:$0xff]
        %v2061 = vld [vmem:[#allocation2 + $0x130] sm:$0xff]
        %v2062 = vld [vmem:[#allocation2 + $0x138] sm:$0x3]
        %v2063 = vld [vmem:[#allocation2 + $0x140] sm:$0xff]
        %v2064 = vld [vmem:[#allocation2 + $0x148] sm:$0xff]
        %v2065 = vld [vmem:[#allocation2 + $0x150] sm:$0xff]
        %v2066 = vld [vmem:[#allocation2 + $0x158] sm:$0xff]
        %v2067 = vld [vmem:[#allocation2 + $0x160] sm:$0x3]
        %v2068 = vld [vmem:[#allocation2 + $0x168] sm:$0xff]
        %v2069 = vld [vmem:[#allocation2 + $0x170] sm:$0xff]
        %v2070 = vld [vmem:[#allocation2 + $0x178] sm:$0xff]
        %v2071 = vld [vmem:[#allocation2 + $0x180] sm:$0xff]
        %v2072 = vld [vmem:[#allocation2 + $0x188] sm:$0x3]
        %v2073 = vld [vmem:[#allocation2 + $0x190] sm:$0xff]
        %v2074 = vld [vmem:[#allocation2 + $0x198] sm:$0xff]
        %v2075 = vld [vmem:[#allocation2 + $0x1a0] sm:$0xff]
        %v2076 = vld [vmem:[#allocation2 + $0x1a8] sm:$0xff]
        %v2077 = vld [vmem:[#allocation2 + $0x1b0] sm:$0x3]
        %v2078 = vld [vmem:[#allocation2 + $0x1b8] sm:$0xff]
        %v2079 = vld [vmem:[#allocation2 + $0x1c0] sm:$0xff]
        %v2080 = vld [vmem:[#allocation2 + $0x1c8] sm:$0xff]
        %v2081 = vld [vmem:[#allocation2 + $0x1d0] sm:$0xff]
        %v2082 = vld [vmem:[#allocation2 + $0x1d8] sm:$0x3]
        %v2083 = vld [vmem:[#allocation2 + $0x1e0] sm:$0xff]
        %v2084 = vld [vmem:[#allocation2 + $0x1e8] sm:$0xff]
        %v2085 = vld [vmem:[#allocation2 + $0x1f0] sm:$0xff]
        %v2086 = vld [vmem:[#allocation2 + $0x1f8] sm:$0xff]
        %v2087 = vld [vmem:[#allocation2 + $0x200] sm:$0x3]
        %v2088 = vld [vmem:[#allocation2 + $0x208] sm:$0xff]
        %v2089 = vld [vmem:[#allocation2 + $0x210] sm:$0xff]
        %v2090 = vld [vmem:[#allocation2 + $0x218] sm:$0xff]
        %v2091 = vld [vmem:[#allocation2 + $0x220] sm:$0xff]
        %v2092 = vld [vmem:[#allocation2 + $0x228] sm:$0x3]
        %v2093 = vld [vmem:[#allocation2 + $0x230] sm:$0xff]
        %v2094 = vld [vmem:[#allocation2 + $0x238] sm:$0xff]
        %v2095 = vld [vmem:[#allocation2 + $0x240] sm:$0xff]
        %v2096 = vld [vmem:[#allocation2 + $0x248] sm:$0xff]
        %v2097 = vld [vmem:[#allocation2 + $0x250] sm:$0x3]
        %v2098 = vld [vmem:[#allocation2 + $0x258] sm:$0xff]
        %v2099 = vld [vmem:[#allocation2 + $0x260] sm:$0xff]
        %v2100 = vld [vmem:[#allocation2 + $0x268] sm:$0xff]
        %v2101 = vld [vmem:[#allocation2 + $0x270] sm:$0xff]
        %v2102 = vld [vmem:[#allocation2 + $0x278] sm:$0x3]
        %v2103 = vld [vmem:[#allocation2 + $0x280] sm:$0xff]
        %v2104 = vld [vmem:[#allocation2 + $0x288] sm:$0xff]
        %v2105 = vld [vmem:[#allocation2 + $0x290] sm:$0xff]
        %v2106 = vld [vmem:[#allocation2 + $0x298] sm:$0xff]
        %v2107 = vld [vmem:[#allocation2 + $0x2a0] sm:$0x3]
        %v2108 = vld [vmem:[#allocation2 + $0x2a8] sm:$0xff]
        %v2109 = vld [vmem:[#allocation2 + $0x2b0] sm:$0xff]
        %v2110 = vld [vmem:[#allocation2 + $0x2b8] sm:$0xff]
        %v2111 = vld [vmem:[#allocation2 + $0x2c0] sm:$0xff]
        %v2112 = vld [vmem:[#allocation2 + $0x2c8] sm:$0x3]
        %v2113 = vld [vmem:[#allocation2 + $0x2d0] sm:$0xff]
        %v2114 = vld [vmem:[#allocation2 + $0x2d8] sm:$0xff]
        %v2115 = vld [vmem:[#allocation2 + $0x2e0] sm:$0xff]
        %v2116 = vld [vmem:[#allocation2 + $0x2e8] sm:$0xff]
        %v2117 = vld [vmem:[#allocation2 + $0x2f0] sm:$0x3]
        %v2118 = vld [vmem:[#allocation2 + $0x2f8] sm:$0xff]
        %v2119 = vld [vmem:[#allocation2 + $0x300] sm:$0xff]
        %v2120 = vld [vmem:[#allocation2 + $0x308] sm:$0xff]
        %v2121 = vld [vmem:[#allocation2 + $0x310] sm:$0xff]
        %v2122 = vld [vmem:[#allocation2 + $0x318] sm:$0x3]
        %v2123 = vld [vmem:[#allocation2 + $0x320] sm:$0xff]
        %v2124 = vld [vmem:[#allocation2 + $0x328] sm:$0xff]
        %v2125 = vld [vmem:[#allocation2 + $0x330] sm:$0xff]
        %v2126 = vld [vmem:[#allocation2 + $0x338] sm:$0xff]
        %v2127 = vld [vmem:[#allocation2 + $0x340] sm:$0x3]
        %v2128 = vld [vmem:[#allocation2 + $0x348] sm:$0xff]
        %v2129 = vld [vmem:[#allocation2 + $0x350] sm:$0xff]
        %v2130 = vld [vmem:[#allocation2 + $0x358] sm:$0xff]
        %v2131 = vld [vmem:[#allocation2 + $0x360] sm:$0xff]
        %v2132 = vld [vmem:[#allocation2 + $0x368] sm:$0x3]
        %v2133 = vld [vmem:[#allocation2 + $0x370] sm:$0xff]
        %v2134 = vld [vmem:[#allocation2 + $0x378] sm:$0xff]
        %v2135 = vld [vmem:[#allocation2 + $0x380] sm:$0xff]
        %v2136 = vld [vmem:[#allocation2 + $0x388] sm:$0xff]
        %v2137 = vld [vmem:[#allocation2 + $0x390] sm:$0x3]
        %v2138 = vld [vmem:[#allocation2 + $0x398] sm:$0xff]
        %v2139 = vld [vmem:[#allocation2 + $0x3a0] sm:$0xff]
        %v2140 = vld [vmem:[#allocation2 + $0x3a8] sm:$0xff]
        %v2141 = vld [vmem:[#allocation2 + $0x3b0] sm:$0xff]
        %v2142 = vld [vmem:[#allocation2 + $0x3b8] sm:$0x3]
        %v2143 = vld [vmem:[#allocation2 + $0x3c0] sm:$0xff]
        %v2144 = vld [vmem:[#allocation2 + $0x3c8] sm:$0xff]
        %v2145 = vld [vmem:[#allocation2 + $0x3d0] sm:$0xff]
        %v2146 = vld [vmem:[#allocation2 + $0x3d8] sm:$0xff]
        %v2147 = vld [vmem:[#allocation2 + $0x3e0] sm:$0x3]
        %v2148 = vld [vmem:[#allocation2 + $0x3e8] sm:$0xff]
        %v2149 = vld [vmem:[#allocation2 + $0x3f0] sm:$0xff]
        %v2150 = vld [vmem:[#allocation2 + $0x3f8] sm:$0xff]
        %v2151 = vld [vmem:[#allocation2 + $0x400] sm:$0xff]
        %v2152 = vld [vmem:[#allocation2 + $0x408] sm:$0x3]
        %v2153 = vld [vmem:[#allocation2 + $0x410] sm:$0xff]
        %v2154 = vld [vmem:[#allocation2 + $0x418] sm:$0xff]
        %v2155 = vld [vmem:[#allocation2 + $0x420] sm:$0xff]
        %v2156 = vld [vmem:[#allocation2 + $0x428] sm:$0xff]
        %v2157 = vld [vmem:[#allocation2 + $0x430] sm:$0x3]
        %v2158 = vld [vmem:[#allocation2 + $0x438] sm:$0xff]
        %v2159 = vld [vmem:[#allocation2 + $0x440] sm:$0xff]
        %v2160 = vld [vmem:[#allocation2 + $0x448] sm:$0xff]
        %v2161 = vld [vmem:[#allocation2 + $0x450] sm:$0xff]
        %v2162 = vld [vmem:[#allocation2 + $0x458] sm:$0x3]
        %v2163 = vld [vmem:[#allocation2 + $0x460] sm:$0xff]
        %v2164 = vld [vmem:[#allocation2 + $0x468] sm:$0xff]
        %v2165 = vld [vmem:[#allocation2 + $0x470] sm:$0xff]
        %v2166 = vld [vmem:[#allocation2 + $0x478] sm:$0xff]
        %v2167 = vld [vmem:[#allocation2 + $0x480] sm:$0x3]
        %v2168 = vld [vmem:[#allocation2 + $0x488] sm:$0xff]
        %v2169 = vld [vmem:[#allocation2 + $0x490] sm:$0xff]
        %v2170 = vld [vmem:[#allocation2 + $0x498] sm:$0xff]
        %v2171 = vld [vmem:[#allocation2 + $0x4a0] sm:$0xff]
        %v2172 = vld [vmem:[#allocation2 + $0x4a8] sm:$0x3]
        %v2173 = vld [vmem:[#allocation2 + $0x4b0] sm:$0xff]
        %v2174 = vld [vmem:[#allocation2 + $0x4b8] sm:$0xff]
        %v2175 = vld [vmem:[#allocation2 + $0x4c0] sm:$0xff]
        %v2176 = vld [vmem:[#allocation2 + $0x4c8] sm:$0xff]
        %v2177 = vld [vmem:[#allocation2 + $0x4d0] sm:$0x3]
        %v2178 = vld [vmem:[#allocation2 + $0x4d8] sm:$0xff]
        %v2179 = vld [vmem:[#allocation2 + $0x4e0] sm:$0xff]
        %v2180 = vld [vmem:[#allocation2 + $0x4e8] sm:$0xff]
        %v2181 = vld [vmem:[#allocation2 + $0x4f0] sm:$0xff]
        %v2182 = vld [vmem:[#allocation2 + $0x4f8] sm:$0x3]
        %v2183 = vld [vmem:[#allocation2 + $0x500] sm:$0xff]
        %v2184 = vld [vmem:[#allocation2 + $0x508] sm:$0xff]
        %v2185 = vld [vmem:[#allocation2 + $0x510] sm:$0xff]
        %v2186 = vld [vmem:[#allocation2 + $0x518] sm:$0xff]
        %v2187 = vld [vmem:[#allocation2 + $0x520] sm:$0x3]
        %v2188 = vld [vmem:[#allocation2 + $0x528] sm:$0xff]
        %v2189 = vld [vmem:[#allocation2 + $0x530] sm:$0xff]
        %v2190 = vld [vmem:[#allocation2 + $0x538] sm:$0xff]
        %v2191 = vld [vmem:[#allocation2 + $0x540] sm:$0xff]
        %v2192 = vld [vmem:[#allocation2 + $0x548] sm:$0x3]
        %v2193 = vpack.c.bf16 %v2024, %v2023
        %v2194 = vpack.c.bf16 %v2026, %v2025
        %v2195 = vpack.c.bf16 %v2029, %v2028
        %v2196 = vpack.c.bf16 %v2031, %v2030
        %v2197 = vpack.c.bf16 %v2034, %v2033
        %v2198 = vpack.c.bf16 %v2036, %v2035
        %v2199 = vpack.c.bf16 %v2039, %v2038
        %v2200 = vpack.c.bf16 %v2041, %v2040
        %v2201 = vpack.c.bf16 %v2044, %v2043
        %v2202 = vpack.c.bf16 %v2046, %v2045
        %v2203 = vpack.c.bf16 %v2049, %v2048
        %v2204 = vpack.c.bf16 %v2051, %v2050
        %v2205 = vpack.c.bf16 %v2054, %v2053
        %v2206 = vpack.c.bf16 %v2056, %v2055
        %v2207 = vpack.c.bf16 %v2059, %v2058
        %v2208 = vpack.c.bf16 %v2061, %v2060
        %v2209 = vpack.c.bf16 %v2064, %v2063
        %v2210 = vpack.c.bf16 %v2066, %v2065
        %v2211 = vpack.c.bf16 %v2069, %v2068
        %v2212 = vpack.c.bf16 %v2071, %v2070
        %v2213 = vpack.c.bf16 %v2074, %v2073
        %v2214 = vpack.c.bf16 %v2076, %v2075
        %v2215 = vpack.c.bf16 %v2079, %v2078
        %v2216 = vpack.c.bf16 %v2081, %v2080
        %v2217 = vpack.c.bf16 %v2084, %v2083
        %v2218 = vpack.c.bf16 %v2086, %v2085
        %v2219 = vpack.c.bf16 %v2089, %v2088
        %v2220 = vpack.c.bf16 %v2091, %v2090
        %v2221 = vpack.c.bf16 %v2094, %v2093
        %v2222 = vpack.c.bf16 %v2096, %v2095
        %v2223 = vpack.c.bf16 %v2099, %v2098
        %v2224 = vpack.c.bf16 %v2101, %v2100
        %v2225 = vpack.c.bf16 %v2104, %v2103
        %v2226 = vpack.c.bf16 %v2106, %v2105
        %v2227 = vpack.c.bf16 %v2109, %v2108
        %v2228 = vpack.c.bf16 %v2111, %v2110
        %v2229 = vpack.c.bf16 %v2114, %v2113
        %v2230 = vpack.c.bf16 %v2116, %v2115
        %v2231 = vpack.c.bf16 %v2119, %v2118
        %v2232 = vpack.c.bf16 %v2121, %v2120
        %v2233 = vpack.c.bf16 %v2124, %v2123
        %v2234 = vpack.c.bf16 %v2126, %v2125
        %v2235 = vpack.c.bf16 %v2129, %v2128
        %v2236 = vpack.c.bf16 %v2131, %v2130
        %v2237 = vpack.c.bf16 %v2134, %v2133
        %v2238 = vpack.c.bf16 %v2136, %v2135
        %v2239 = vpack.c.bf16 %v2139, %v2138
        %v2240 = vpack.c.bf16 %v2141, %v2140
        %v2241 = vpack.c.bf16 %v2144, %v2143
        %v2242 = vpack.c.bf16 %v2146, %v2145
        %v2243 = vpack.c.bf16 %v2149, %v2148
        %v2244 = vpack.c.bf16 %v2151, %v2150
        %v2245 = vpack.c.bf16 %v2154, %v2153
        %v2246 = vpack.c.bf16 %v2156, %v2155
        %v2247 = vpack.c.bf16 %v2159, %v2158
        %v2248 = vpack.c.bf16 %v2161, %v2160
        %v2249 = vpack.c.bf16 %v2164, %v2163
        %v2250 = vpack.c.bf16 %v2166, %v2165
        %v2251 = vpack.c.bf16 %v2169, %v2168
        %v2252 = vpack.c.bf16 %v2171, %v2170
        %v2253 = vpack.c.bf16 %v2174, %v2173
        %v2254 = vpack.c.bf16 %v2176, %v2175
        %v2255 = vpack.c.bf16 %v2179, %v2178
        %v2256 = vpack.c.bf16 %v2181, %v2180
        %v2257 = vld [vmem:[#allocation11] sm:$0xf]
        %v2258 = vld [vmem:[#allocation11 + $0x4] sm:$0xf]
        %v2259 = vld [vmem:[#allocation11 + $0x8] sm:$0xf]
        %v2260 = vld [vmem:[#allocation11 + $0xc] sm:$0xf]
        %v2261 = vld [vmem:[#allocation11 + $0x10] sm:$0xf]
        %v2262 = vld [vmem:[#allocation11 + $0x14] sm:$0xf]
        %v2263 = vld [vmem:[#allocation11 + $0x18] sm:$0xf]
        %v2264 = vld [vmem:[#allocation11 + $0x1c] sm:$0xf]
        %v2265 = vld [vmem:[#allocation11 + $0x20] sm:$0xf]
        %v2266 = vld [vmem:[#allocation11 + $0x24] sm:$0xf]
        %v2267 = vld [vmem:[#allocation11 + $0x28] sm:$0xf]
        %v2268 = vld [vmem:[#allocation11 + $0x2c] sm:$0xf]
        %v2269 = vld [vmem:[#allocation11 + $0x30] sm:$0xf]
        %v2270 = vld [vmem:[#allocation11 + $0x34] sm:$0xf]
        %v2271 = vld [vmem:[#allocation11 + $0x38] sm:$0xf]
        %v2272 = vld [vmem:[#allocation11 + $0x3c] sm:$0xf]
        %vm2433 = vcmask 1046528
        %v2434 = vrot.slane %v2023, 1
        %v2435 = vrot.slane %v2024, 1
        %v2436 = vsel %vm2433, %v2434, %v2435
        %v2437 = vrot.slane %v2025, 1
        %v2438 = vsel %vm2433, %v2435, %v2437
        %v2439 = vrot.slane %v2026, 1
        %v2440 = vsel %vm2433, %v2437, %v2439
        %v2441 = vrot.slane %v2027, 1
        %v2442 = vsel %vm2433, %v2439, %v2441
        %v2443 = vrot.slane %v2028, 1
        %v2444 = vrot.slane %v2029, 1
        %v2445 = vsel %vm2433, %v2443, %v2444
        %v2446 = vrot.slane %v2030, 1
        %v2447 = vsel %vm2433, %v2444, %v2446
        %v2448 = vrot.slane %v2031, 1
        %v2449 = vsel %vm2433, %v2446, %v2448
        %v2450 = vrot.slane %v2032, 1
        %v2451 = vsel %vm2433, %v2448, %v2450
        %v2452 = vrot.slane %v2033, 1
        %v2453 = vrot.slane %v2034, 1
        %v2454 = vsel %vm2433, %v2452, %v2453
        %v2455 = vrot.slane %v2035, 1
        %v2456 = vsel %vm2433, %v2453, %v2455
        %v2457 = vrot.slane %v2036, 1
        %v2458 = vsel %vm2433, %v2455, %v2457
        %v2459 = vrot.slane %v2037, 1
        %v2460 = vsel %vm2433, %v2457, %v2459
        %v2461 = vrot.slane %v2038, 1
        %v2462 = vrot.slane %v2039, 1
        %v2463 = vsel %vm2433, %v2461, %v2462
        %v2464 = vrot.slane %v2040, 1
        %v2465 = vsel %vm2433, %v2462, %v2464
        %v2466 = vrot.slane %v2041, 1
        %v2467 = vsel %vm2433, %v2464, %v2466
        %v2468 = vrot.slane %v2042, 1
        %v2469 = vsel %vm2433, %v2466, %v2468
        %v2470 = vrot.slane %v2043, 1
        %v2471 = vrot.slane %v2044, 1
        %v2472 = vsel %vm2433, %v2470, %v2471
        %v2473 = vrot.slane %v2045, 1
        %v2474 = vsel %vm2433, %v2471, %v2473
        %v2475 = vrot.slane %v2046, 1
        %v2476 = vsel %vm2433, %v2473, %v2475
        %v2477 = vrot.slane %v2047, 1
        %v2478 = vsel %vm2433, %v2475, %v2477
        %v2479 = vrot.slane %v2048, 1
        %v2480 = vrot.slane %v2049, 1
        %v2481 = vsel %vm2433, %v2479, %v2480
        %v2482 = vrot.slane %v2050, 1
        %v2483 = vsel %vm2433, %v2480, %v2482
        %v2484 = vrot.slane %v2051, 1
        %v2485 = vsel %vm2433, %v2482, %v2484
        %v2486 = vrot.slane %v2052, 1
        %v2487 = vsel %vm2433, %v2484, %v2486
        %v2488 = vrot.slane %v2053, 1
        %v2489 = vrot.slane %v2054, 1
        %v2490 = vsel %vm2433, %v2488, %v2489
        %v2491 = vrot.slane %v2055, 1
        %v2492 = vsel %vm2433, %v2489, %v2491
        %v2493 = vrot.slane %v2056, 1
        %v2494 = vsel %vm2433, %v2491, %v2493
        %v2495 = vrot.slane %v2057, 1
        %v2496 = vsel %vm2433, %v2493, %v2495
        %v2497 = vrot.slane %v2058, 1
        %v2498 = vrot.slane %v2059, 1
        %v2499 = vsel %vm2433, %v2497, %v2498
        %v2500 = vrot.slane %v2060, 1
        %v2501 = vsel %vm2433, %v2498, %v2500
        %v2502 = vrot.slane %v2061, 1
        %v2503 = vsel %vm2433, %v2500, %v2502
        %v2504 = vrot.slane %v2062, 1
        %v2505 = vsel %vm2433, %v2502, %v2504
        %v2506 = vrot.slane %v2063, 1
        %v2507 = vrot.slane %v2064, 1
        %v2508 = vsel %vm2433, %v2506, %v2507
        %v2509 = vrot.slane %v2065, 1
        %v2510 = vsel %vm2433, %v2507, %v2509
        %v2511 = vrot.slane %v2066, 1
        %v2512 = vsel %vm2433, %v2509, %v2511
        %v2513 = vrot.slane %v2067, 1
        %v2514 = vsel %vm2433, %v2511, %v2513
        %v2515 = vrot.slane %v2068, 1
        %v2516 = vrot.slane %v2069, 1
        %v2517 = vsel %vm2433, %v2515, %v2516
        %v2518 = vrot.slane %v2070, 1
        %v2519 = vsel %vm2433, %v2516, %v2518
        %v2520 = vrot.slane %v2071, 1
        %v2521 = vsel %vm2433, %v2518, %v2520
        %v2522 = vrot.slane %v2072, 1
        %v2523 = vsel %vm2433, %v2520, %v2522
        %v2524 = vrot.slane %v2073, 1
        %v2525 = vrot.slane %v2074, 1
        %v2526 = vsel %vm2433, %v2524, %v2525
        %v2527 = vrot.slane %v2075, 1
        %v2528 = vsel %vm2433, %v2525, %v2527
        %v2529 = vrot.slane %v2076, 1
        %v2530 = vsel %vm2433, %v2527, %v2529
        %v2531 = vrot.slane %v2077, 1
        %v2532 = vsel %vm2433, %v2529, %v2531
        %v2533 = vrot.slane %v2078, 1
        %v2534 = vrot.slane %v2079, 1
        %v2535 = vsel %vm2433, %v2533, %v2534
        %v2536 = vrot.slane %v2080, 1
        %v2537 = vsel %vm2433, %v2534, %v2536
        %v2538 = vrot.slane %v2081, 1
        %v2539 = vsel %vm2433, %v2536, %v2538
        %v2540 = vrot.slane %v2082, 1
        %v2541 = vsel %vm2433, %v2538, %v2540
        %v2542 = vrot.slane %v2083, 1
        %v2543 = vrot.slane %v2084, 1
        %v2544 = vsel %vm2433, %v2542, %v2543
        %v2545 = vrot.slane %v2085, 1
        %v2546 = vsel %vm2433, %v2543, %v2545
        %v2547 = vrot.slane %v2086, 1
        %v2548 = vsel %vm2433, %v2545, %v2547
        %v2549 = vrot.slane %v2087, 1
        %v2550 = vsel %vm2433, %v2547, %v2549
        %v2551 = vrot.slane %v2088, 1
        %v2552 = vrot.slane %v2089, 1
        %v2553 = vsel %vm2433, %v2551, %v2552
        %v2554 = vrot.slane %v2090, 1
        %v2555 = vsel %vm2433, %v2552, %v2554
        %v2556 = vrot.slane %v2091, 1
        %v2557 = vsel %vm2433, %v2554, %v2556
        %v2558 = vrot.slane %v2092, 1
        %v2559 = vsel %vm2433, %v2556, %v2558
        %v2560 = vrot.slane %v2093, 1
        %v2561 = vrot.slane %v2094, 1
        %v2562 = vsel %vm2433, %v2560, %v2561
        %v2563 = vrot.slane %v2095, 1
        %v2564 = vsel %vm2433, %v2561, %v2563
        %v2565 = vrot.slane %v2096, 1
        %v2566 = vsel %vm2433, %v2563, %v2565
        %v2567 = vrot.slane %v2097, 1
        %v2568 = vsel %vm2433, %v2565, %v2567
        %v2569 = vrot.slane %v2098, 1
        %v2570 = vrot.slane %v2099, 1
        %v2571 = vsel %vm2433, %v2569, %v2570
        %v2572 = vrot.slane %v2100, 1
        %v2573 = vsel %vm2433, %v2570, %v2572
        %v2574 = vrot.slane %v2101, 1
        %v2575 = vsel %vm2433, %v2572, %v2574
        %v2576 = vrot.slane %v2102, 1
        %v2577 = vsel %vm2433, %v2574, %v2576
        %v2578 = vrot.slane %v2103, 1
        %v2579 = vrot.slane %v2104, 1
        %v2580 = vsel %vm2433, %v2578, %v2579
        %v2581 = vrot.slane %v2105, 1
        %v2582 = vsel %vm2433, %v2579, %v2581
        %v2583 = vrot.slane %v2106, 1
        %v2584 = vsel %vm2433, %v2581, %v2583
        %v2585 = vrot.slane %v2107, 1
        %v2586 = vsel %vm2433, %v2583, %v2585
        %v2587 = vrot.slane %v2108, 1
        %v2588 = vrot.slane %v2109, 1
        %v2589 = vsel %vm2433, %v2587, %v2588
        %v2590 = vrot.slane %v2110, 1
        %v2591 = vsel %vm2433, %v2588, %v2590
        %v2592 = vrot.slane %v2111, 1
        %v2593 = vsel %vm2433, %v2590, %v2592
        %v2594 = vrot.slane %v2112, 1
        %v2595 = vsel %vm2433, %v2592, %v2594
        %v2596 = vrot.slane %v2113, 1
        %v2597 = vrot.slane %v2114, 1
        %v2598 = vsel %vm2433, %v2596, %v2597
        %v2599 = vrot.slane %v2115, 1
        %v2600 = vsel %vm2433, %v2597, %v2599
        %v2601 = vrot.slane %v2116, 1
        %v2602 = vsel %vm2433, %v2599, %v2601
        %v2603 = vrot.slane %v2117, 1
        %v2604 = vsel %vm2433, %v2601, %v2603
        %v2605 = vrot.slane %v2118, 1
        %v2606 = vrot.slane %v2119, 1
        %v2607 = vsel %vm2433, %v2605, %v2606
        %v2608 = vrot.slane %v2120, 1
        %v2609 = vsel %vm2433, %v2606, %v2608
        %v2610 = vrot.slane %v2121, 1
        %v2611 = vsel %vm2433, %v2608, %v2610
        %v2612 = vrot.slane %v2122, 1
        %v2613 = vsel %vm2433, %v2610, %v2612
        %v2614 = vrot.slane %v2123, 1
        %v2615 = vrot.slane %v2124, 1
        %v2616 = vsel %vm2433, %v2614, %v2615
        %v2617 = vrot.slane %v2125, 1
        %v2618 = vsel %vm2433, %v2615, %v2617
        %v2619 = vrot.slane %v2126, 1
        %v2620 = vsel %vm2433, %v2617, %v2619
        %v2621 = vrot.slane %v2127, 1
        %v2622 = vsel %vm2433, %v2619, %v2621
        %v2623 = vrot.slane %v2128, 1
        %v2624 = vrot.slane %v2129, 1
        %v2625 = vsel %vm2433, %v2623, %v2624
        %v2626 = vrot.slane %v2130, 1
        %v2627 = vsel %vm2433, %v2624, %v2626
        %v2628 = vrot.slane %v2131, 1
        %v2629 = vsel %vm2433, %v2626, %v2628
        %v2630 = vrot.slane %v2132, 1
        %v2631 = vsel %vm2433, %v2628, %v2630
        %v2632 = vrot.slane %v2133, 1
        %v2633 = vrot.slane %v2134, 1
        %v2634 = vsel %vm2433, %v2632, %v2633
        %v2635 = vrot.slane %v2135, 1
        %v2636 = vsel %vm2433, %v2633, %v2635
        %v2637 = vrot.slane %v2136, 1
        %v2638 = vsel %vm2433, %v2635, %v2637
        %v2639 = vrot.slane %v2137, 1
        %v2640 = vsel %vm2433, %v2637, %v2639
        %v2641 = vrot.slane %v2138, 1
        %v2642 = vrot.slane %v2139, 1
        %v2643 = vsel %vm2433, %v2641, %v2642
        %v2644 = vrot.slane %v2140, 1
        %v2645 = vsel %vm2433, %v2642, %v2644
        %v2646 = vrot.slane %v2141, 1
        %v2647 = vsel %vm2433, %v2644, %v2646
        %v2648 = vrot.slane %v2142, 1
        %v2649 = vsel %vm2433, %v2646, %v2648
        %v2650 = vrot.slane %v2143, 1
        %v2651 = vrot.slane %v2144, 1
        %v2652 = vsel %vm2433, %v2650, %v2651
        %v2653 = vrot.slane %v2145, 1
        %v2654 = vsel %vm2433, %v2651, %v2653
        %v2655 = vrot.slane %v2146, 1
        %v2656 = vsel %vm2433, %v2653, %v2655
        %v2657 = vrot.slane %v2147, 1
        %v2658 = vsel %vm2433, %v2655, %v2657
        %v2659 = vrot.slane %v2148, 1
        %v2660 = vrot.slane %v2149, 1
        %v2661 = vsel %vm2433, %v2659, %v2660
        %v2662 = vrot.slane %v2150, 1
        %v2663 = vsel %vm2433, %v2660, %v2662
        %v2664 = vrot.slane %v2151, 1
        %v2665 = vsel %vm2433, %v2662, %v2664
        %v2666 = vrot.slane %v2152, 1
        %v2667 = vsel %vm2433, %v2664, %v2666
        %v2668 = vrot.slane %v2153, 1
        %v2669 = vrot.slane %v2154, 1
        %v2670 = vsel %vm2433, %v2668, %v2669
        %v2671 = vrot.slane %v2155, 1
        %v2672 = vsel %vm2433, %v2669, %v2671
        %v2673 = vrot.slane %v2156, 1
        %v2674 = vsel %vm2433, %v2671, %v2673
        %v2675 = vrot.slane %v2157, 1
        %v2676 = vsel %vm2433, %v2673, %v2675
        %v2677 = vrot.slane %v2158, 1
        %v2678 = vrot.slane %v2159, 1
        %v2679 = vsel %vm2433, %v2677, %v2678
        %v2680 = vrot.slane %v2160, 1
        %v2681 = vsel %vm2433, %v2678, %v2680
        %v2682 = vrot.slane %v2161, 1
        %v2683 = vsel %vm2433, %v2680, %v2682
        %v2684 = vrot.slane %v2162, 1
        %v2685 = vsel %vm2433, %v2682, %v2684
        %v2686 = vrot.slane %v2163, 1
        %v2687 = vrot.slane %v2164, 1
        %v2688 = vsel %vm2433, %v2686, %v2687
        %v2689 = vrot.slane %v2165, 1
        %v2690 = vsel %vm2433, %v2687, %v2689
        %v2691 = vrot.slane %v2166, 1
        %v2692 = vsel %vm2433, %v2689, %v2691
        %v2693 = vrot.slane %v2167, 1
        %v2694 = vsel %vm2433, %v2691, %v2693
        %v2695 = vrot.slane %v2168, 1
        %v2696 = vrot.slane %v2169, 1
        %v2697 = vsel %vm2433, %v2695, %v2696
        %v2698 = vrot.slane %v2170, 1
        %v2699 = vsel %vm2433, %v2696, %v2698
        %v2700 = vrot.slane %v2171, 1
        %v2701 = vsel %vm2433, %v2698, %v2700
        %v2702 = vrot.slane %v2172, 1
        %v2703 = vsel %vm2433, %v2700, %v2702
        %v2704 = vrot.slane %v2173, 1
        %v2705 = vrot.slane %v2174, 1
        %v2706 = vsel %vm2433, %v2704, %v2705
        %v2707 = vrot.slane %v2175, 1
        %v2708 = vsel %vm2433, %v2705, %v2707
        %v2709 = vrot.slane %v2176, 1
        %v2710 = vsel %vm2433, %v2707, %v2709
        %v2711 = vrot.slane %v2177, 1
        %v2712 = vsel %vm2433, %v2709, %v2711
        %v2713 = vrot.slane %v2178, 1
        %v2714 = vrot.slane %v2179, 1
        %v2715 = vsel %vm2433, %v2713, %v2714
        %v2716 = vrot.slane %v2180, 1
        %v2717 = vsel %vm2433, %v2714, %v2716
        %v2718 = vrot.slane %v2181, 1
        %v2719 = vsel %vm2433, %v2716, %v2718
        %v2720 = vrot.slane %v2182, 1
        %v2721 = vsel %vm2433, %v2718, %v2720
        %v2850 = vpack.c.bf16 %v2438, %v2436
        %v2851 = vpack.c.bf16 %v2442, %v2440
        %v2852 = vpack.c.bf16 %v2447, %v2445
        %v2853 = vpack.c.bf16 %v2451, %v2449
        %v2854 = vpack.c.bf16 %v2456, %v2454
        %v2855 = vpack.c.bf16 %v2460, %v2458
        %v2856 = vpack.c.bf16 %v2465, %v2463
        %v2857 = vpack.c.bf16 %v2469, %v2467
        %v2858 = vpack.c.bf16 %v2474, %v2472
        %v2859 = vpack.c.bf16 %v2478, %v2476
        %v2860 = vpack.c.bf16 %v2483, %v2481
        %v2861 = vpack.c.bf16 %v2487, %v2485
        %v2862 = vpack.c.bf16 %v2492, %v2490
        %v2863 = vpack.c.bf16 %v2496, %v2494
        %v2864 = vpack.c.bf16 %v2501, %v2499
        %v2865 = vpack.c.bf16 %v2505, %v2503
        %v2866 = vpack.c.bf16 %v2510, %v2508
        %v2867 = vpack.c.bf16 %v2514, %v2512
        %v2868 = vpack.c.bf16 %v2519, %v2517
        %v2869 = vpack.c.bf16 %v2523, %v2521
        %v2870 = vpack.c.bf16 %v2528, %v2526
        %v2871 = vpack.c.bf16 %v2532, %v2530
        %v2872 = vpack.c.bf16 %v2537, %v2535
        %v2873 = vpack.c.bf16 %v2541, %v2539
        %v2874 = vpack.c.bf16 %v2546, %v2544
        %v2875 = vpack.c.bf16 %v2550, %v2548
        %v2876 = vpack.c.bf16 %v2555, %v2553
        %v2877 = vpack.c.bf16 %v2559, %v2557
        %v2878 = vpack.c.bf16 %v2564, %v2562
        %v2879 = vpack.c.bf16 %v2568, %v2566
        %v2880 = vpack.c.bf16 %v2573, %v2571
        %v2881 = vpack.c.bf16 %v2577, %v2575
        %v2882 = vpack.c.bf16 %v2582, %v2580
        %v2883 = vpack.c.bf16 %v2586, %v2584
        %v2884 = vpack.c.bf16 %v2591, %v2589
        %v2885 = vpack.c.bf16 %v2595, %v2593
        %v2886 = vpack.c.bf16 %v2600, %v2598
        %v2887 = vpack.c.bf16 %v2604, %v2602
        %v2888 = vpack.c.bf16 %v2609, %v2607
        %v2889 = vpack.c.bf16 %v2613, %v2611
        %v2890 = vpack.c.bf16 %v2618, %v2616
        %v2891 = vpack.c.bf16 %v2622, %v2620
        %v2892 = vpack.c.bf16 %v2627, %v2625
        %v2893 = vpack.c.bf16 %v2631, %v2629
        %v2894 = vpack.c.bf16 %v2636, %v2634
        %v2895 = vpack.c.bf16 %v2640, %v2638
        %v2896 = vpack.c.bf16 %v2645, %v2643
        %v2897 = vpack.c.bf16 %v2649, %v2647
        %v2898 = vpack.c.bf16 %v2654, %v2652
        %v2899 = vpack.c.bf16 %v2658, %v2656
        %v2900 = vpack.c.bf16 %v2663, %v2661
        %v2901 = vpack.c.bf16 %v2667, %v2665
        %v2902 = vpack.c.bf16 %v2672, %v2670
        %v2903 = vpack.c.bf16 %v2676, %v2674
        %v2904 = vpack.c.bf16 %v2681, %v2679
        %v2905 = vpack.c.bf16 %v2685, %v2683
        %v2906 = vpack.c.bf16 %v2690, %v2688
        %v2907 = vpack.c.bf16 %v2694, %v2692
        %v2908 = vpack.c.bf16 %v2699, %v2697
        %v2909 = vpack.c.bf16 %v2703, %v2701
        %v2910 = vpack.c.bf16 %v2708, %v2706
        %v2911 = vpack.c.bf16 %v2712, %v2710
        %v2912 = vpack.c.bf16 %v2717, %v2715
        %v2913 = vpack.c.bf16 %v2721, %v2719
        %s2914 = scalar_lea.vmem [#allocation11], 64
        %v2915 = vld [vmem:[%s2914] sm:$0xf]
        %v2916 = vld [vmem:[%s2914 + $0x4] sm:$0xf]
        %v2917 = vld [vmem:[%s2914 + $0x8] sm:$0xf]
        %v2918 = vld [vmem:[%s2914 + $0xc] sm:$0xf]
        %v2919 = vld [vmem:[%s2914 + $0x10] sm:$0xf]
        %v2920 = vld [vmem:[%s2914 + $0x14] sm:$0xf]
        %v2921 = vld [vmem:[%s2914 + $0x18] sm:$0xf]
        %v2922 = vld [vmem:[%s2914 + $0x1c] sm:$0xf]
        %v2923 = vld [vmem:[%s2914 + $0x20] sm:$0xf]
        %v2924 = vld [vmem:[%s2914 + $0x24] sm:$0xf]
        %v2925 = vld [vmem:[%s2914 + $0x28] sm:$0xf]
        %v2926 = vld [vmem:[%s2914 + $0x2c] sm:$0xf]
        %v2927 = vld [vmem:[%s2914 + $0x30] sm:$0xf]
        %v2928 = vld [vmem:[%s2914 + $0x34] sm:$0xf]
        %v2929 = vld [vmem:[%s2914 + $0x38] sm:$0xf]
        %v2930 = vld [vmem:[%s2914 + $0x3c] sm:$0xf]
        %v2947 = vunpack.c.l.b16 %v2915
        %v2948 = vunpack.c.l.b16 %v2916
        %v2949 = vunpack.c.l.b16 %v2917
        %v2950 = vunpack.c.l.b16 %v2918
        %v2951 = vunpack.c.l.b16 %v2919
        %v2952 = vunpack.c.l.b16 %v2920
        %v2953 = vunpack.c.l.b16 %v2921
        %v2954 = vunpack.c.l.b16 %v2922
        %v2955 = vunpack.c.l.b16 %v2923
        %v2956 = vunpack.c.l.b16 %v2924
        %v2957 = vunpack.c.l.b16 %v2925
        %v2958 = vunpack.c.l.b16 %v2926
        %v2959 = vunpack.c.l.b16 %v2927
        %v2960 = vunpack.c.l.b16 %v2928
        %v2961 = vunpack.c.l.b16 %v2929
        %v2962 = vunpack.c.l.b16 %v2930
        %v2963 = vpack.c.b16 %v2948, %v2947
        %v2964 = vpack.c.b16 %v2950, %v2949
        %v2965 = vpack.c.b16 %v2952, %v2951
        %v2966 = vpack.c.b16 %v2954, %v2953
        %v2967 = vpack.c.b16 %v2956, %v2955
        %v2968 = vpack.c.b16 %v2958, %v2957
        %v2969 = vpack.c.b16 %v2960, %v2959
        %v2970 = vpack.c.b16 %v2962, %v2961
        %2979 = vmatprep.subr.bf16.mxu0 0
        %2980 = vmatpush1.bf16.msra.mxu0 %v2970
        %2981 = vmatprep.subr.bf16.mxu0 0
        %2982 = vmatpush1.bf16.msra.mxu0 %v2969
        %2983 = vmatprep.subr.bf16.mxu0 0
        %2984 = vmatpush1.bf16.msra.mxu0 %v2968
        %2985 = vmatprep.subr.bf16.mxu0 0
        %2986 = vmatpush1.bf16.msra.mxu0 %v2967
        %2987 = vmatprep.subr.bf16.mxu0 0
        %2988 = vmatpush1.bf16.msra.mxu0 %v2966
        %2989 = vmatprep.subr.bf16.mxu0 0
        %2990 = vmatpush1.bf16.msra.mxu0 %v2965
        %2991 = vmatprep.subr.bf16.mxu0 0
        %2992 = vmatpush1.bf16.msra.mxu0 %v2964
        %2993 = vmatprep.subr.bf16.mxu0 0
        %2994 = vmatpush1.bf16.msra.mxu0 %v2963
        %2995 = vmatprep.subr.bf16.mxu0 0
        %2996 = vmatpush2.bf16.msra.mxu0 0
        %2997 = vmatprep.subr.bf16.mxu0 0
        %2998 = vmatpush2.bf16.msra.mxu0 0
        %2999 = vmatprep.subr.bf16.mxu0 0
        %3000 = vmatpush2.bf16.msra.mxu0 0
        %3001 = vmatprep.subr.bf16.mxu0 0
        %3002 = vmatpush2.bf16.msra.mxu0 0
        %3003 = vmatprep.subr.bf16.mxu0 0
        %3004 = vmatpush2.bf16.msra.mxu0 0
        %3005 = vmatprep.subr.bf16.mxu0 0
        %3006 = vmatpush2.bf16.msra.mxu0 0
        %3007 = vmatprep.subr.bf16.mxu0 0
        %3008 = vmatpush2.bf16.msra.mxu0 0
        %3009 = vmatprep.subr.bf16.mxu0 0
        %3010 = vmatpush2.bf16.msra.mxu0 0
        %3011 = vmatprep.mubr.bf16.mxu0 0
        %3012 = vmatmul.mubr.bf16.gmra.mxu0 %v2850
        %v3013 = vpop.f32.mrf.mxu0
        %v3014 = vadd.f32 0.0, %v3013
        %v3015 = vpop.f32.mrf.mxu0
        %v3016 = vpop.f32.mrf.mxu0
        %v3017 = vadd.f32 0.0, %v3016
        %v3018 = vpop.f32.mrf.mxu0
        %3019 = vmatprep.mubr.bf16.mxu0 0
        %3020 = vmatmul.mubr.bf16.gmra.mxu0 %v2851
        %v3021 = vpop.f32.mrf.mxu0
        %v3022 = vadd.f32 0.0, %v3021
        %v3023 = vpop.f32.mrf.mxu0
        %v3024 = vpop.f32.mrf.mxu0
        %v3025 = vadd.f32 0.0, %v3024
        %v3026 = vpop.f32.mrf.mxu0
        %3027 = vmatprep.mubr.bf16.mxu0 0
        %3028 = vmatmul.mubr.bf16.gmra.mxu0 %v2852
        %v3029 = vpop.f32.mrf.mxu0
        %v3030 = vadd.f32 0.0, %v3029
        %v3031 = vpop.f32.mrf.mxu0
        %v3032 = vpop.f32.mrf.mxu0
        %v3033 = vadd.f32 0.0, %v3032
        %v3034 = vpop.f32.mrf.mxu0
        %3035 = vmatprep.mubr.bf16.mxu0 0
        %3036 = vmatmul.mubr.bf16.gmra.mxu0 %v2853
        %v3037 = vpop.f32.mrf.mxu0
        %v3038 = vadd.f32 0.0, %v3037
        %v3039 = vpop.f32.mrf.mxu0
        %v3040 = vpop.f32.mrf.mxu0
        %v3041 = vadd.f32 0.0, %v3040
        %v3042 = vpop.f32.mrf.mxu0
        %3043 = vmatprep.mubr.bf16.mxu0 0
        %3044 = vmatmul.mubr.bf16.gmra.mxu0 %v2854
        %v3045 = vpop.f32.mrf.mxu0
        %v3046 = vadd.f32 0.0, %v3045
        %v3047 = vpop.f32.mrf.mxu0
        %v3048 = vpop.f32.mrf.mxu0
        %v3049 = vadd.f32 0.0, %v3048
        %v3050 = vpop.f32.mrf.mxu0
        %3051 = vmatprep.mubr.bf16.mxu0 0
        %3052 = vmatmul.mubr.bf16.gmra.mxu0 %v2855
        %v3053 = vpop.f32.mrf.mxu0
        %v3054 = vadd.f32 0.0, %v3053
        %v3055 = vpop.f32.mrf.mxu0
        %v3056 = vpop.f32.mrf.mxu0
        %v3057 = vadd.f32 0.0, %v3056
        %v3058 = vpop.f32.mrf.mxu0
        %3059 = vmatprep.mubr.bf16.mxu0 0
        %3060 = vmatmul.mubr.bf16.gmra.mxu0 %v2856
        %v3061 = vpop.f32.mrf.mxu0
        %v3062 = vadd.f32 0.0, %v3061
        %v3063 = vpop.f32.mrf.mxu0
        %v3064 = vpop.f32.mrf.mxu0
        %v3065 = vadd.f32 0.0, %v3064
        %v3066 = vpop.f32.mrf.mxu0
        %3067 = vmatprep.mubr.bf16.mxu0 0
        %3068 = vmatmul.mubr.bf16.gmra.mxu0 %v2857
        %v3069 = vpop.f32.mrf.mxu0
        %v3070 = vadd.f32 0.0, %v3069
        %v3071 = vpop.f32.mrf.mxu0
        %v3072 = vpop.f32.mrf.mxu0
        %v3073 = vadd.f32 0.0, %v3072
        %v3074 = vpop.f32.mrf.mxu0
        %3075 = vmatprep.mubr.bf16.mxu0 0
        %3076 = vmatmul.mubr.bf16.gmra.mxu0 %v2858
        %v3077 = vpop.f32.mrf.mxu0
        %v3078 = vadd.f32 0.0, %v3077
        %v3079 = vpop.f32.mrf.mxu0
        %v3080 = vpop.f32.mrf.mxu0
        %v3081 = vadd.f32 0.0, %v3080
        %v3082 = vpop.f32.mrf.mxu0
        %3083 = vmatprep.mubr.bf16.mxu0 0
        %3084 = vmatmul.mubr.bf16.gmra.mxu0 %v2859
        %v3085 = vpop.f32.mrf.mxu0
        %v3086 = vadd.f32 0.0, %v3085
        %v3087 = vpop.f32.mrf.mxu0
        %v3088 = vpop.f32.mrf.mxu0
        %v3089 = vadd.f32 0.0, %v3088
        %v3090 = vpop.f32.mrf.mxu0
        %3091 = vmatprep.mubr.bf16.mxu0 0
        %3092 = vmatmul.mubr.bf16.gmra.mxu0 %v2860
        %v3093 = vpop.f32.mrf.mxu0
        %v3094 = vadd.f32 0.0, %v3093
        %v3095 = vpop.f32.mrf.mxu0
        %v3096 = vpop.f32.mrf.mxu0
        %v3097 = vadd.f32 0.0, %v3096
        %v3098 = vpop.f32.mrf.mxu0
        %3099 = vmatprep.mubr.bf16.mxu0 0
        %3100 = vmatmul.mubr.bf16.gmra.mxu0 %v2861
        %v3101 = vpop.f32.mrf.mxu0
        %v3102 = vadd.f32 0.0, %v3101
        %v3103 = vpop.f32.mrf.mxu0
        %v3104 = vpop.f32.mrf.mxu0
        %v3105 = vadd.f32 0.0, %v3104
        %v3106 = vpop.f32.mrf.mxu0
        %3107 = vmatprep.mubr.bf16.mxu0 0
        %3108 = vmatmul.mubr.bf16.gmra.mxu0 %v2862
        %v3109 = vpop.f32.mrf.mxu0
        %v3110 = vadd.f32 0.0, %v3109
        %v3111 = vpop.f32.mrf.mxu0
        %v3112 = vpop.f32.mrf.mxu0
        %v3113 = vadd.f32 0.0, %v3112
        %v3114 = vpop.f32.mrf.mxu0
        %3115 = vmatprep.mubr.bf16.mxu0 0
        %3116 = vmatmul.mubr.bf16.gmra.mxu0 %v2863
        %v3117 = vpop.f32.mrf.mxu0
        %v3118 = vadd.f32 0.0, %v3117
        %v3119 = vpop.f32.mrf.mxu0
        %v3120 = vpop.f32.mrf.mxu0
        %v3121 = vadd.f32 0.0, %v3120
        %v3122 = vpop.f32.mrf.mxu0
        %3123 = vmatprep.mubr.bf16.mxu0 0
        %3124 = vmatmul.mubr.bf16.gmra.mxu0 %v2864
        %v3125 = vpop.f32.mrf.mxu0
        %v3126 = vadd.f32 0.0, %v3125
        %v3127 = vpop.f32.mrf.mxu0
        %v3128 = vpop.f32.mrf.mxu0
        %v3129 = vadd.f32 0.0, %v3128
        %v3130 = vpop.f32.mrf.mxu0
        %3131 = vmatprep.mubr.bf16.mxu0 0
        %3132 = vmatmul.mubr.bf16.gmra.mxu0 %v2865
        %v3133 = vpop.f32.mrf.mxu0
        %v3134 = vadd.f32 0.0, %v3133
        %v3135 = vpop.f32.mrf.mxu0
        %v3136 = vpop.f32.mrf.mxu0
        %v3137 = vadd.f32 0.0, %v3136
        %v3138 = vpop.f32.mrf.mxu0
        %3139 = vmatprep.mubr.bf16.mxu0 0
        %3140 = vmatmul.mubr.bf16.gmra.mxu0 %v2866
        %v3141 = vpop.f32.mrf.mxu0
        %v3142 = vadd.f32 0.0, %v3141
        %v3143 = vpop.f32.mrf.mxu0
        %v3144 = vpop.f32.mrf.mxu0
        %v3145 = vadd.f32 0.0, %v3144
        %v3146 = vpop.f32.mrf.mxu0
        %3147 = vmatprep.mubr.bf16.mxu0 0
        %3148 = vmatmul.mubr.bf16.gmra.mxu0 %v2867
        %v3149 = vpop.f32.mrf.mxu0
        %v3150 = vadd.f32 0.0, %v3149
        %v3151 = vpop.f32.mrf.mxu0
        %v3152 = vpop.f32.mrf.mxu0
        %v3153 = vadd.f32 0.0, %v3152
        %v3154 = vpop.f32.mrf.mxu0
        %3155 = vmatprep.mubr.bf16.mxu0 0
        %3156 = vmatmul.mubr.bf16.gmra.mxu0 %v2868
        %v3157 = vpop.f32.mrf.mxu0
        %v3158 = vadd.f32 0.0, %v3157
        %v3159 = vpop.f32.mrf.mxu0
        %v3160 = vpop.f32.mrf.mxu0
        %v3161 = vadd.f32 0.0, %v3160
        %v3162 = vpop.f32.mrf.mxu0
        %3163 = vmatprep.mubr.bf16.mxu0 0
        %3164 = vmatmul.mubr.bf16.gmra.mxu0 %v2869
        %v3165 = vpop.f32.mrf.mxu0
        %v3166 = vadd.f32 0.0, %v3165
        %v3167 = vpop.f32.mrf.mxu0
        %v3168 = vpop.f32.mrf.mxu0
        %v3169 = vadd.f32 0.0, %v3168
        %v3170 = vpop.f32.mrf.mxu0
        %3171 = vmatprep.mubr.bf16.mxu0 0
        %3172 = vmatmul.mubr.bf16.gmra.mxu0 %v2870
        %v3173 = vpop.f32.mrf.mxu0
        %v3174 = vadd.f32 0.0, %v3173
        %v3175 = vpop.f32.mrf.mxu0
        %v3176 = vpop.f32.mrf.mxu0
        %v3177 = vadd.f32 0.0, %v3176
        %v3178 = vpop.f32.mrf.mxu0
        %3179 = vmatprep.mubr.bf16.mxu0 0
        %3180 = vmatmul.mubr.bf16.gmra.mxu0 %v2871
        %v3181 = vpop.f32.mrf.mxu0
        %v3182 = vadd.f32 0.0, %v3181
        %v3183 = vpop.f32.mrf.mxu0
        %v3184 = vpop.f32.mrf.mxu0
        %v3185 = vadd.f32 0.0, %v3184
        %v3186 = vpop.f32.mrf.mxu0
        %3187 = vmatprep.mubr.bf16.mxu0 0
        %3188 = vmatmul.mubr.bf16.gmra.mxu0 %v2872
        %v3189 = vpop.f32.mrf.mxu0
        %v3190 = vadd.f32 0.0, %v3189
        %v3191 = vpop.f32.mrf.mxu0
        %v3192 = vpop.f32.mrf.mxu0
        %v3193 = vadd.f32 0.0, %v3192
        %v3194 = vpop.f32.mrf.mxu0
        %3195 = vmatprep.mubr.bf16.mxu0 0
        %3196 = vmatmul.mubr.bf16.gmra.mxu0 %v2873
        %v3197 = vpop.f32.mrf.mxu0
        %v3198 = vadd.f32 0.0, %v3197
        %v3199 = vpop.f32.mrf.mxu0
        %v3200 = vpop.f32.mrf.mxu0
        %v3201 = vadd.f32 0.0, %v3200
        %v3202 = vpop.f32.mrf.mxu0
        %3203 = vmatprep.mubr.bf16.mxu0 0
        %3204 = vmatmul.mubr.bf16.gmra.mxu0 %v2874
        %v3205 = vpop.f32.mrf.mxu0
        %v3206 = vadd.f32 0.0, %v3205
        %v3207 = vpop.f32.mrf.mxu0
        %v3208 = vpop.f32.mrf.mxu0
        %v3209 = vadd.f32 0.0, %v3208
        %v3210 = vpop.f32.mrf.mxu0
        %3211 = vmatprep.mubr.bf16.mxu0 0
        %3212 = vmatmul.mubr.bf16.gmra.mxu0 %v2875
        %v3213 = vpop.f32.mrf.mxu0
        %v3214 = vadd.f32 0.0, %v3213
        %v3215 = vpop.f32.mrf.mxu0
        %v3216 = vpop.f32.mrf.mxu0
        %v3217 = vadd.f32 0.0, %v3216
        %v3218 = vpop.f32.mrf.mxu0
        %3219 = vmatprep.mubr.bf16.mxu0 0
        %3220 = vmatmul.mubr.bf16.gmra.mxu0 %v2876
        %v3221 = vpop.f32.mrf.mxu0
        %v3222 = vadd.f32 0.0, %v3221
        %v3223 = vpop.f32.mrf.mxu0
        %v3224 = vpop.f32.mrf.mxu0
        %v3225 = vadd.f32 0.0, %v3224
        %v3226 = vpop.f32.mrf.mxu0
        %3227 = vmatprep.mubr.bf16.mxu0 0
        %3228 = vmatmul.mubr.bf16.gmra.mxu0 %v2877
        %v3229 = vpop.f32.mrf.mxu0
        %v3230 = vadd.f32 0.0, %v3229
        %v3231 = vpop.f32.mrf.mxu0
        %v3232 = vpop.f32.mrf.mxu0
        %v3233 = vadd.f32 0.0, %v3232
        %v3234 = vpop.f32.mrf.mxu0
        %3235 = vmatprep.mubr.bf16.mxu0 0
        %3236 = vmatmul.mubr.bf16.gmra.mxu0 %v2878
        %v3237 = vpop.f32.mrf.mxu0
        %v3238 = vadd.f32 0.0, %v3237
        %v3239 = vpop.f32.mrf.mxu0
        %v3240 = vpop.f32.mrf.mxu0
        %v3241 = vadd.f32 0.0, %v3240
        %v3242 = vpop.f32.mrf.mxu0
        %3243 = vmatprep.mubr.bf16.mxu0 0
        %3244 = vmatmul.mubr.bf16.gmra.mxu0 %v2879
        %v3245 = vpop.f32.mrf.mxu0
        %v3246 = vadd.f32 0.0, %v3245
        %v3247 = vpop.f32.mrf.mxu0
        %v3248 = vpop.f32.mrf.mxu0
        %v3249 = vadd.f32 0.0, %v3248
        %v3250 = vpop.f32.mrf.mxu0
        %3251 = vmatprep.mubr.bf16.mxu0 0
        %3252 = vmatmul.mubr.bf16.gmra.mxu0 %v2880
        %v3253 = vpop.f32.mrf.mxu0
        %v3254 = vadd.f32 0.0, %v3253
        %v3255 = vpop.f32.mrf.mxu0
        %v3256 = vpop.f32.mrf.mxu0
        %v3257 = vadd.f32 0.0, %v3256
        %v3258 = vpop.f32.mrf.mxu0
        %3259 = vmatprep.mubr.bf16.mxu0 0
        %3260 = vmatmul.mubr.bf16.gmra.mxu0 %v2881
        %v3261 = vpop.f32.mrf.mxu0
        %v3262 = vadd.f32 0.0, %v3261
        %v3263 = vpop.f32.mrf.mxu0
        %v3264 = vpop.f32.mrf.mxu0
        %v3265 = vadd.f32 0.0, %v3264
        %v3266 = vpop.f32.mrf.mxu0
        %3267 = vmatprep.mubr.bf16.mxu0 0
        %3268 = vmatmul.mubr.bf16.gmra.mxu0 %v2882
        %v3269 = vpop.f32.mrf.mxu0
        %v3270 = vadd.f32 0.0, %v3269
        %v3271 = vpop.f32.mrf.mxu0
        %v3272 = vpop.f32.mrf.mxu0
        %v3273 = vadd.f32 0.0, %v3272
        %v3274 = vpop.f32.mrf.mxu0
        %3275 = vmatprep.mubr.bf16.mxu0 0
        %3276 = vmatmul.mubr.bf16.gmra.mxu0 %v2883
        %v3277 = vpop.f32.mrf.mxu0
        %v3278 = vadd.f32 0.0, %v3277
        %v3279 = vpop.f32.mrf.mxu0
        %v3280 = vpop.f32.mrf.mxu0
        %v3281 = vadd.f32 0.0, %v3280
        %v3282 = vpop.f32.mrf.mxu0
        %3283 = vmatprep.mubr.bf16.mxu0 0
        %3284 = vmatmul.mubr.bf16.gmra.mxu0 %v2884
        %v3285 = vpop.f32.mrf.mxu0
        %v3286 = vadd.f32 0.0, %v3285
        %v3287 = vpop.f32.mrf.mxu0
        %v3288 = vpop.f32.mrf.mxu0
        %v3289 = vadd.f32 0.0, %v3288
        %v3290 = vpop.f32.mrf.mxu0
        %3291 = vmatprep.mubr.bf16.mxu0 0
        %3292 = vmatmul.mubr.bf16.gmra.mxu0 %v2885
        %v3293 = vpop.f32.mrf.mxu0
        %v3294 = vadd.f32 0.0, %v3293
        %v3295 = vpop.f32.mrf.mxu0
        %v3296 = vpop.f32.mrf.mxu0
        %v3297 = vadd.f32 0.0, %v3296
        %v3298 = vpop.f32.mrf.mxu0
        %3299 = vmatprep.mubr.bf16.mxu0 0
        %3300 = vmatmul.mubr.bf16.gmra.mxu0 %v2886
        %v3301 = vpop.f32.mrf.mxu0
        %v3302 = vadd.f32 0.0, %v3301
        %v3303 = vpop.f32.mrf.mxu0
        %v3304 = vpop.f32.mrf.mxu0
        %v3305 = vadd.f32 0.0, %v3304
        %v3306 = vpop.f32.mrf.mxu0
        %3307 = vmatprep.mubr.bf16.mxu0 0
        %3308 = vmatmul.mubr.bf16.gmra.mxu0 %v2887
        %v3309 = vpop.f32.mrf.mxu0
        %v3310 = vadd.f32 0.0, %v3309
        %v3311 = vpop.f32.mrf.mxu0
        %v3312 = vpop.f32.mrf.mxu0
        %v3313 = vadd.f32 0.0, %v3312
        %v3314 = vpop.f32.mrf.mxu0
        %3315 = vmatprep.mubr.bf16.mxu0 0
        %3316 = vmatmul.mubr.bf16.gmra.mxu0 %v2888
        %v3317 = vpop.f32.mrf.mxu0
        %v3318 = vadd.f32 0.0, %v3317
        %v3319 = vpop.f32.mrf.mxu0
        %v3320 = vpop.f32.mrf.mxu0
        %v3321 = vadd.f32 0.0, %v3320
        %v3322 = vpop.f32.mrf.mxu0
        %3323 = vmatprep.mubr.bf16.mxu0 0
        %3324 = vmatmul.mubr.bf16.gmra.mxu0 %v2889
        %v3325 = vpop.f32.mrf.mxu0
        %v3326 = vadd.f32 0.0, %v3325
        %v3327 = vpop.f32.mrf.mxu0
        %v3328 = vpop.f32.mrf.mxu0
        %v3329 = vadd.f32 0.0, %v3328
        %v3330 = vpop.f32.mrf.mxu0
        %3331 = vmatprep.mubr.bf16.mxu0 0
        %3332 = vmatmul.mubr.bf16.gmra.mxu0 %v2890
        %v3333 = vpop.f32.mrf.mxu0
        %v3334 = vadd.f32 0.0, %v3333
        %v3335 = vpop.f32.mrf.mxu0
        %v3336 = vpop.f32.mrf.mxu0
        %v3337 = vadd.f32 0.0, %v3336
        %v3338 = vpop.f32.mrf.mxu0
        %3339 = vmatprep.mubr.bf16.mxu0 0
        %3340 = vmatmul.mubr.bf16.gmra.mxu0 %v2891
        %v3341 = vpop.f32.mrf.mxu0
        %v3342 = vadd.f32 0.0, %v3341
        %v3343 = vpop.f32.mrf.mxu0
        %v3344 = vpop.f32.mrf.mxu0
        %v3345 = vadd.f32 0.0, %v3344
        %v3346 = vpop.f32.mrf.mxu0
        %3347 = vmatprep.mubr.bf16.mxu0 0
        %3348 = vmatmul.mubr.bf16.gmra.mxu0 %v2892
        %v3349 = vpop.f32.mrf.mxu0
        %v3350 = vadd.f32 0.0, %v3349
        %v3351 = vpop.f32.mrf.mxu0
        %v3352 = vpop.f32.mrf.mxu0
        %v3353 = vadd.f32 0.0, %v3352
        %v3354 = vpop.f32.mrf.mxu0
        %3355 = vmatprep.mubr.bf16.mxu0 0
        %3356 = vmatmul.mubr.bf16.gmra.mxu0 %v2893
        %v3357 = vpop.f32.mrf.mxu0
        %v3358 = vadd.f32 0.0, %v3357
        %v3359 = vpop.f32.mrf.mxu0
        %v3360 = vpop.f32.mrf.mxu0
        %v3361 = vadd.f32 0.0, %v3360
        %v3362 = vpop.f32.mrf.mxu0
        %3363 = vmatprep.mubr.bf16.mxu0 0
        %3364 = vmatmul.mubr.bf16.gmra.mxu0 %v2894
        %v3365 = vpop.f32.mrf.mxu0
        %v3366 = vadd.f32 0.0, %v3365
        %v3367 = vpop.f32.mrf.mxu0
        %v3368 = vpop.f32.mrf.mxu0
        %v3369 = vadd.f32 0.0, %v3368
        %v3370 = vpop.f32.mrf.mxu0
        %3371 = vmatprep.mubr.bf16.mxu0 0
        %3372 = vmatmul.mubr.bf16.gmra.mxu0 %v2895
        %v3373 = vpop.f32.mrf.mxu0
        %v3374 = vadd.f32 0.0, %v3373
        %v3375 = vpop.f32.mrf.mxu0
        %v3376 = vpop.f32.mrf.mxu0
        %v3377 = vadd.f32 0.0, %v3376
        %v3378 = vpop.f32.mrf.mxu0
        %3379 = vmatprep.mubr.bf16.mxu0 0
        %3380 = vmatmul.mubr.bf16.gmra.mxu0 %v2896
        %v3381 = vpop.f32.mrf.mxu0
        %v3382 = vadd.f32 0.0, %v3381
        %v3383 = vpop.f32.mrf.mxu0
        %v3384 = vpop.f32.mrf.mxu0
        %v3385 = vadd.f32 0.0, %v3384
        %v3386 = vpop.f32.mrf.mxu0
        %3387 = vmatprep.mubr.bf16.mxu0 0
        %3388 = vmatmul.mubr.bf16.gmra.mxu0 %v2897
        %v3389 = vpop.f32.mrf.mxu0
        %v3390 = vadd.f32 0.0, %v3389
        %v3391 = vpop.f32.mrf.mxu0
        %v3392 = vpop.f32.mrf.mxu0
        %v3393 = vadd.f32 0.0, %v3392
        %v3394 = vpop.f32.mrf.mxu0
        %3395 = vmatprep.mubr.bf16.mxu0 0
        %3396 = vmatmul.mubr.bf16.gmra.mxu0 %v2898
        %v3397 = vpop.f32.mrf.mxu0
        %v3398 = vadd.f32 0.0, %v3397
        %v3399 = vpop.f32.mrf.mxu0
        %v3400 = vpop.f32.mrf.mxu0
        %v3401 = vadd.f32 0.0, %v3400
        %v3402 = vpop.f32.mrf.mxu0
        %3403 = vmatprep.mubr.bf16.mxu0 0
        %3404 = vmatmul.mubr.bf16.gmra.mxu0 %v2899
        %v3405 = vpop.f32.mrf.mxu0
        %v3406 = vadd.f32 0.0, %v3405
        %v3407 = vpop.f32.mrf.mxu0
        %v3408 = vpop.f32.mrf.mxu0
        %v3409 = vadd.f32 0.0, %v3408
        %v3410 = vpop.f32.mrf.mxu0
        %3411 = vmatprep.mubr.bf16.mxu0 0
        %3412 = vmatmul.mubr.bf16.gmra.mxu0 %v2900
        %v3413 = vpop.f32.mrf.mxu0
        %v3414 = vadd.f32 0.0, %v3413
        %v3415 = vpop.f32.mrf.mxu0
        %v3416 = vpop.f32.mrf.mxu0
        %v3417 = vadd.f32 0.0, %v3416
        %v3418 = vpop.f32.mrf.mxu0
        %3419 = vmatprep.mubr.bf16.mxu0 0
        %3420 = vmatmul.mubr.bf16.gmra.mxu0 %v2901
        %v3421 = vpop.f32.mrf.mxu0
        %v3422 = vadd.f32 0.0, %v3421
        %v3423 = vpop.f32.mrf.mxu0
        %v3424 = vpop.f32.mrf.mxu0
        %v3425 = vadd.f32 0.0, %v3424
        %v3426 = vpop.f32.mrf.mxu0
        %3427 = vmatprep.mubr.bf16.mxu0 0
        %3428 = vmatmul.mubr.bf16.gmra.mxu0 %v2902
        %v3429 = vpop.f32.mrf.mxu0
        %v3430 = vadd.f32 0.0, %v3429
        %v3431 = vpop.f32.mrf.mxu0
        %v3432 = vpop.f32.mrf.mxu0
        %v3433 = vadd.f32 0.0, %v3432
        %v3434 = vpop.f32.mrf.mxu0
        %3435 = vmatprep.mubr.bf16.mxu0 0
        %3436 = vmatmul.mubr.bf16.gmra.mxu0 %v2903
        %v3437 = vpop.f32.mrf.mxu0
        %v3438 = vadd.f32 0.0, %v3437
        %v3439 = vpop.f32.mrf.mxu0
        %v3440 = vpop.f32.mrf.mxu0
        %v3441 = vadd.f32 0.0, %v3440
        %v3442 = vpop.f32.mrf.mxu0
        %3443 = vmatprep.mubr.bf16.mxu0 0
        %3444 = vmatmul.mubr.bf16.gmra.mxu0 %v2904
        %v3445 = vpop.f32.mrf.mxu0
        %v3446 = vadd.f32 0.0, %v3445
        %v3447 = vpop.f32.mrf.mxu0
        %v3448 = vpop.f32.mrf.mxu0
        %v3449 = vadd.f32 0.0, %v3448
        %v3450 = vpop.f32.mrf.mxu0
        %3451 = vmatprep.mubr.bf16.mxu0 0
        %3452 = vmatmul.mubr.bf16.gmra.mxu0 %v2905
        %v3453 = vpop.f32.mrf.mxu0
        %v3454 = vadd.f32 0.0, %v3453
        %v3455 = vpop.f32.mrf.mxu0
        %v3456 = vpop.f32.mrf.mxu0
        %v3457 = vadd.f32 0.0, %v3456
        %v3458 = vpop.f32.mrf.mxu0
        %3459 = vmatprep.mubr.bf16.mxu0 0
        %3460 = vmatmul.mubr.bf16.gmra.mxu0 %v2906
        %v3461 = vpop.f32.mrf.mxu0
        %v3462 = vadd.f32 0.0, %v3461
        %v3463 = vpop.f32.mrf.mxu0
        %v3464 = vpop.f32.mrf.mxu0
        %v3465 = vadd.f32 0.0, %v3464
        %v3466 = vpop.f32.mrf.mxu0
        %3467 = vmatprep.mubr.bf16.mxu0 0
        %3468 = vmatmul.mubr.bf16.gmra.mxu0 %v2907
        %v3469 = vpop.f32.mrf.mxu0
        %v3470 = vadd.f32 0.0, %v3469
        %v3471 = vpop.f32.mrf.mxu0
        %v3472 = vpop.f32.mrf.mxu0
        %v3473 = vadd.f32 0.0, %v3472
        %v3474 = vpop.f32.mrf.mxu0
        %3475 = vmatprep.mubr.bf16.mxu0 0
        %3476 = vmatmul.mubr.bf16.gmra.mxu0 %v2908
        %v3477 = vpop.f32.mrf.mxu0
        %v3478 = vadd.f32 0.0, %v3477
        %v3479 = vpop.f32.mrf.mxu0
        %v3480 = vpop.f32.mrf.mxu0
        %v3481 = vadd.f32 0.0, %v3480
        %v3482 = vpop.f32.mrf.mxu0
        %3483 = vmatprep.mubr.bf16.mxu0 0
        %3484 = vmatmul.mubr.bf16.gmra.mxu0 %v2909
        %v3485 = vpop.f32.mrf.mxu0
        %v3486 = vadd.f32 0.0, %v3485
        %v3487 = vpop.f32.mrf.mxu0
        %v3488 = vpop.f32.mrf.mxu0
        %v3489 = vadd.f32 0.0, %v3488
        %v3490 = vpop.f32.mrf.mxu0
        %3491 = vmatprep.mubr.bf16.mxu0 0
        %3492 = vmatmul.mubr.bf16.gmra.mxu0 %v2910
        %v3493 = vpop.f32.mrf.mxu0
        %v3494 = vadd.f32 0.0, %v3493
        %v3495 = vpop.f32.mrf.mxu0
        %v3496 = vpop.f32.mrf.mxu0
        %v3497 = vadd.f32 0.0, %v3496
        %v3498 = vpop.f32.mrf.mxu0
        %3499 = vmatprep.mubr.bf16.mxu0 0
        %3500 = vmatmul.mubr.bf16.gmra.mxu0 %v2911
        %v3501 = vpop.f32.mrf.mxu0
        %v3502 = vadd.f32 0.0, %v3501
        %v3503 = vpop.f32.mrf.mxu0
        %v3504 = vpop.f32.mrf.mxu0
        %v3505 = vadd.f32 0.0, %v3504
        %v3506 = vpop.f32.mrf.mxu0
        %3507 = vmatprep.mubr.bf16.mxu0 0
        %3508 = vmatmul.mubr.bf16.gmra.mxu0 %v2912
        %v3509 = vpop.f32.mrf.mxu0
        %v3510 = vadd.f32 0.0, %v3509
        %v3511 = vpop.f32.mrf.mxu0
        %v3512 = vpop.f32.mrf.mxu0
        %v3513 = vadd.f32 0.0, %v3512
        %v3514 = vpop.f32.mrf.mxu0
        %3515 = vmatprep.mubr.bf16.mxu0 0
        %3516 = vmatmul.mubr.bf16.gmra.mxu0 %v2913
        %v3517 = vpop.f32.mrf.mxu0
        %v3518 = vadd.f32 0.0, %v3517
        %v3519 = vpop.f32.mrf.mxu0
        %v3520 = vpop.f32.mrf.mxu0
        %v3521 = vadd.f32 0.0, %v3520
        %v3522 = vpop.f32.mrf.mxu0
        %3523 = vdwg.mxu0
        %v3540 = vunpack.c.l.b16 %v2257
        %v3541 = vunpack.c.l.b16 %v2258
        %v3542 = vunpack.c.l.b16 %v2259
        %v3543 = vunpack.c.l.b16 %v2260
        %v3544 = vunpack.c.l.b16 %v2261
        %v3545 = vunpack.c.l.b16 %v2262
        %v3546 = vunpack.c.l.b16 %v2263
        %v3547 = vunpack.c.l.b16 %v2264
        %v3548 = vunpack.c.l.b16 %v2265
        %v3549 = vunpack.c.l.b16 %v2266
        %v3550 = vunpack.c.l.b16 %v2267
        %v3551 = vunpack.c.l.b16 %v2268
        %v3552 = vunpack.c.l.b16 %v2269
        %v3553 = vunpack.c.l.b16 %v2270
        %v3554 = vunpack.c.l.b16 %v2271
        %v3555 = vunpack.c.l.b16 %v2272
        %v3556 = vpack.c.b16 %v3541, %v3540
        %v3557 = vpack.c.b16 %v3543, %v3542
        %v3558 = vpack.c.b16 %v3545, %v3544
        %v3559 = vpack.c.b16 %v3547, %v3546
        %v3560 = vpack.c.b16 %v3549, %v3548
        %v3561 = vpack.c.b16 %v3551, %v3550
        %v3562 = vpack.c.b16 %v3553, %v3552
        %v3563 = vpack.c.b16 %v3555, %v3554
        %3572 = vmatprep.subr.bf16.mxu0 0
        %3573 = vmatpush1.bf16.msra.mxu0 %v3563
        %3574 = vmatprep.subr.bf16.mxu0 0
        %3575 = vmatpush1.bf16.msra.mxu0 %v3562
        %3576 = vmatprep.subr.bf16.mxu0 0
        %3577 = vmatpush1.bf16.msra.mxu0 %v3561
        %3578 = vmatprep.subr.bf16.mxu0 0
        %3579 = vmatpush1.bf16.msra.mxu0 %v3560
        %3580 = vmatprep.subr.bf16.mxu0 0
        %3581 = vmatpush1.bf16.msra.mxu0 %v3559
        %3582 = vmatprep.subr.bf16.mxu0 0
        %3583 = vmatpush1.bf16.msra.mxu0 %v3558
        %3584 = vmatprep.subr.bf16.mxu0 0
        %3585 = vmatpush1.bf16.msra.mxu0 %v3557
        %3586 = vmatprep.subr.bf16.mxu0 0
        %3587 = vmatpush1.bf16.msra.mxu0 %v3556
        %3588 = vmatprep.subr.bf16.mxu0 0
        %3589 = vmatpush2.bf16.msra.mxu0 0
        %3590 = vmatprep.subr.bf16.mxu0 0
        %3591 = vmatpush2.bf16.msra.mxu0 0
        %3592 = vmatprep.subr.bf16.mxu0 0
        %3593 = vmatpush2.bf16.msra.mxu0 0
        %3594 = vmatprep.subr.bf16.mxu0 0
        %3595 = vmatpush2.bf16.msra.mxu0 0
        %3596 = vmatprep.subr.bf16.mxu0 0
        %3597 = vmatpush2.bf16.msra.mxu0 0
        %3598 = vmatprep.subr.bf16.mxu0 0
        %3599 = vmatpush2.bf16.msra.mxu0 0
        %3600 = vmatprep.subr.bf16.mxu0 0
        %3601 = vmatpush2.bf16.msra.mxu0 0
        %3602 = vmatprep.subr.bf16.mxu0 0
        %3603 = vmatpush2.bf16.msra.mxu0 0
        %3604 = vmatprep.mubr.bf16.mxu0 0
        %3605 = vmatmul.mubr.bf16.gmra.mxu0 %v2193
        %v3606 = vpop.f32.mrf.mxu0
        %v3607 = vadd.f32 %v3014, %v3606
        %v3608 = vpop.f32.mrf.mxu0
        %v3609 = vpop.f32.mrf.mxu0
        %v3610 = vadd.f32 %v3017, %v3609
        %v3611 = vpop.f32.mrf.mxu0
        %3612 = vmatprep.mubr.bf16.mxu0 0
        %3613 = vmatmul.mubr.bf16.gmra.mxu0 %v2194
        %v3614 = vpop.f32.mrf.mxu0
        %v3615 = vadd.f32 %v3022, %v3614
        %v3616 = vpop.f32.mrf.mxu0
        %v3617 = vpop.f32.mrf.mxu0
        %v3618 = vadd.f32 %v3025, %v3617
        %v3619 = vpop.f32.mrf.mxu0
        %3620 = vmatprep.mubr.bf16.mxu0 0
        %3621 = vmatmul.mubr.bf16.gmra.mxu0 %v2195
        %v3622 = vpop.f32.mrf.mxu0
        %v3623 = vadd.f32 %v3030, %v3622
        %v3624 = vpop.f32.mrf.mxu0
        %v3625 = vpop.f32.mrf.mxu0
        %v3626 = vadd.f32 %v3033, %v3625
        %v3627 = vpop.f32.mrf.mxu0
        %3628 = vmatprep.mubr.bf16.mxu0 0
        %3629 = vmatmul.mubr.bf16.gmra.mxu0 %v2196
        %v3630 = vpop.f32.mrf.mxu0
        %v3631 = vadd.f32 %v3038, %v3630
        %v3632 = vpop.f32.mrf.mxu0
        %v3633 = vpop.f32.mrf.mxu0
        %v3634 = vadd.f32 %v3041, %v3633
        %v3635 = vpop.f32.mrf.mxu0
        %3636 = vmatprep.mubr.bf16.mxu0 0
        %3637 = vmatmul.mubr.bf16.gmra.mxu0 %v2197
        %v3638 = vpop.f32.mrf.mxu0
        %v3639 = vadd.f32 %v3046, %v3638
        %v3640 = vpop.f32.mrf.mxu0
        %v3641 = vpop.f32.mrf.mxu0
        %v3642 = vadd.f32 %v3049, %v3641
        %v3643 = vpop.f32.mrf.mxu0
        %3644 = vmatprep.mubr.bf16.mxu0 0
        %3645 = vmatmul.mubr.bf16.gmra.mxu0 %v2198
        %v3646 = vpop.f32.mrf.mxu0
        %v3647 = vadd.f32 %v3054, %v3646
        %v3648 = vpop.f32.mrf.mxu0
        %v3649 = vpop.f32.mrf.mxu0
        %v3650 = vadd.f32 %v3057, %v3649
        %v3651 = vpop.f32.mrf.mxu0
        %3652 = vmatprep.mubr.bf16.mxu0 0
        %3653 = vmatmul.mubr.bf16.gmra.mxu0 %v2199
        %v3654 = vpop.f32.mrf.mxu0
        %v3655 = vadd.f32 %v3062, %v3654
        %v3656 = vpop.f32.mrf.mxu0
        %v3657 = vpop.f32.mrf.mxu0
        %v3658 = vadd.f32 %v3065, %v3657
        %v3659 = vpop.f32.mrf.mxu0
        %3660 = vmatprep.mubr.bf16.mxu0 0
        %3661 = vmatmul.mubr.bf16.gmra.mxu0 %v2200
        %v3662 = vpop.f32.mrf.mxu0
        %v3663 = vadd.f32 %v3070, %v3662
        %v3664 = vpop.f32.mrf.mxu0
        %v3665 = vpop.f32.mrf.mxu0
        %v3666 = vadd.f32 %v3073, %v3665
        %v3667 = vpop.f32.mrf.mxu0
        %3668 = vmatprep.mubr.bf16.mxu0 0
        %3669 = vmatmul.mubr.bf16.gmra.mxu0 %v2201
        %v3670 = vpop.f32.mrf.mxu0
        %v3671 = vadd.f32 %v3078, %v3670
        %v3672 = vpop.f32.mrf.mxu0
        %v3673 = vpop.f32.mrf.mxu0
        %v3674 = vadd.f32 %v3081, %v3673
        %v3675 = vpop.f32.mrf.mxu0
        %3676 = vmatprep.mubr.bf16.mxu0 0
        %3677 = vmatmul.mubr.bf16.gmra.mxu0 %v2202
        %v3678 = vpop.f32.mrf.mxu0
        %v3679 = vadd.f32 %v3086, %v3678
        %v3680 = vpop.f32.mrf.mxu0
        %v3681 = vpop.f32.mrf.mxu0
        %v3682 = vadd.f32 %v3089, %v3681
        %v3683 = vpop.f32.mrf.mxu0
        %3684 = vmatprep.mubr.bf16.mxu0 0
        %3685 = vmatmul.mubr.bf16.gmra.mxu0 %v2203
        %v3686 = vpop.f32.mrf.mxu0
        %v3687 = vadd.f32 %v3094, %v3686
        %v3688 = vpop.f32.mrf.mxu0
        %v3689 = vpop.f32.mrf.mxu0
        %v3690 = vadd.f32 %v3097, %v3689
        %v3691 = vpop.f32.mrf.mxu0
        %3692 = vmatprep.mubr.bf16.mxu0 0
        %3693 = vmatmul.mubr.bf16.gmra.mxu0 %v2204
        %v3694 = vpop.f32.mrf.mxu0
        %v3695 = vadd.f32 %v3102, %v3694
        %v3696 = vpop.f32.mrf.mxu0
        %v3697 = vpop.f32.mrf.mxu0
        %v3698 = vadd.f32 %v3105, %v3697
        %v3699 = vpop.f32.mrf.mxu0
        %3700 = vmatprep.mubr.bf16.mxu0 0
        %3701 = vmatmul.mubr.bf16.gmra.mxu0 %v2205
        %v3702 = vpop.f32.mrf.mxu0
        %v3703 = vadd.f32 %v3110, %v3702
        %v3704 = vpop.f32.mrf.mxu0
        %v3705 = vpop.f32.mrf.mxu0
        %v3706 = vadd.f32 %v3113, %v3705
        %v3707 = vpop.f32.mrf.mxu0
        %3708 = vmatprep.mubr.bf16.mxu0 0
        %3709 = vmatmul.mubr.bf16.gmra.mxu0 %v2206
        %v3710 = vpop.f32.mrf.mxu0
        %v3711 = vadd.f32 %v3118, %v3710
        %v3712 = vpop.f32.mrf.mxu0
        %v3713 = vpop.f32.mrf.mxu0
        %v3714 = vadd.f32 %v3121, %v3713
        %v3715 = vpop.f32.mrf.mxu0
        %3716 = vmatprep.mubr.bf16.mxu0 0
        %3717 = vmatmul.mubr.bf16.gmra.mxu0 %v2207
        %v3718 = vpop.f32.mrf.mxu0
        %v3719 = vadd.f32 %v3126, %v3718
        %v3720 = vpop.f32.mrf.mxu0
        %v3721 = vpop.f32.mrf.mxu0
        %v3722 = vadd.f32 %v3129, %v3721
        %v3723 = vpop.f32.mrf.mxu0
        %3724 = vmatprep.mubr.bf16.mxu0 0
        %3725 = vmatmul.mubr.bf16.gmra.mxu0 %v2208
        %v3726 = vpop.f32.mrf.mxu0
        %v3727 = vadd.f32 %v3134, %v3726
        %v3728 = vpop.f32.mrf.mxu0
        %v3729 = vpop.f32.mrf.mxu0
        %v3730 = vadd.f32 %v3137, %v3729
        %v3731 = vpop.f32.mrf.mxu0
        %3732 = vmatprep.mubr.bf16.mxu0 0
        %3733 = vmatmul.mubr.bf16.gmra.mxu0 %v2209
        %v3734 = vpop.f32.mrf.mxu0
        %v3735 = vadd.f32 %v3142, %v3734
        %v3736 = vpop.f32.mrf.mxu0
        %v3737 = vpop.f32.mrf.mxu0
        %v3738 = vadd.f32 %v3145, %v3737
        %v3739 = vpop.f32.mrf.mxu0
        %3740 = vmatprep.mubr.bf16.mxu0 0
        %3741 = vmatmul.mubr.bf16.gmra.mxu0 %v2210
        %v3742 = vpop.f32.mrf.mxu0
        %v3743 = vadd.f32 %v3150, %v3742
        %v3744 = vpop.f32.mrf.mxu0
        %v3745 = vpop.f32.mrf.mxu0
        %v3746 = vadd.f32 %v3153, %v3745
        %v3747 = vpop.f32.mrf.mxu0
        %3748 = vmatprep.mubr.bf16.mxu0 0
        %3749 = vmatmul.mubr.bf16.gmra.mxu0 %v2211
        %v3750 = vpop.f32.mrf.mxu0
        %v3751 = vadd.f32 %v3158, %v3750
        %v3752 = vpop.f32.mrf.mxu0
        %v3753 = vpop.f32.mrf.mxu0
        %v3754 = vadd.f32 %v3161, %v3753
        %v3755 = vpop.f32.mrf.mxu0
        %3756 = vmatprep.mubr.bf16.mxu0 0
        %3757 = vmatmul.mubr.bf16.gmra.mxu0 %v2212
        %v3758 = vpop.f32.mrf.mxu0
        %v3759 = vadd.f32 %v3166, %v3758
        %v3760 = vpop.f32.mrf.mxu0
        %v3761 = vpop.f32.mrf.mxu0
        %v3762 = vadd.f32 %v3169, %v3761
        %v3763 = vpop.f32.mrf.mxu0
        %3764 = vmatprep.mubr.bf16.mxu0 0
        %3765 = vmatmul.mubr.bf16.gmra.mxu0 %v2213
        %v3766 = vpop.f32.mrf.mxu0
        %v3767 = vadd.f32 %v3174, %v3766
        %v3768 = vpop.f32.mrf.mxu0
        %v3769 = vpop.f32.mrf.mxu0
        %v3770 = vadd.f32 %v3177, %v3769
        %v3771 = vpop.f32.mrf.mxu0
        %3772 = vmatprep.mubr.bf16.mxu0 0
        %3773 = vmatmul.mubr.bf16.gmra.mxu0 %v2214
        %v3774 = vpop.f32.mrf.mxu0
        %v3775 = vadd.f32 %v3182, %v3774
        %v3776 = vpop.f32.mrf.mxu0
        %v3777 = vpop.f32.mrf.mxu0
        %v3778 = vadd.f32 %v3185, %v3777
        %v3779 = vpop.f32.mrf.mxu0
        %3780 = vmatprep.mubr.bf16.mxu0 0
        %3781 = vmatmul.mubr.bf16.gmra.mxu0 %v2215
        %v3782 = vpop.f32.mrf.mxu0
        %v3783 = vadd.f32 %v3190, %v3782
        %v3784 = vpop.f32.mrf.mxu0
        %v3785 = vpop.f32.mrf.mxu0
        %v3786 = vadd.f32 %v3193, %v3785
        %v3787 = vpop.f32.mrf.mxu0
        %3788 = vmatprep.mubr.bf16.mxu0 0
        %3789 = vmatmul.mubr.bf16.gmra.mxu0 %v2216
        %v3790 = vpop.f32.mrf.mxu0
        %v3791 = vadd.f32 %v3198, %v3790
        %v3792 = vpop.f32.mrf.mxu0
        %v3793 = vpop.f32.mrf.mxu0
        %v3794 = vadd.f32 %v3201, %v3793
        %v3795 = vpop.f32.mrf.mxu0
        %3796 = vmatprep.mubr.bf16.mxu0 0
        %3797 = vmatmul.mubr.bf16.gmra.mxu0 %v2217
        %v3798 = vpop.f32.mrf.mxu0
        %v3799 = vadd.f32 %v3206, %v3798
        %v3800 = vpop.f32.mrf.mxu0
        %v3801 = vpop.f32.mrf.mxu0
        %v3802 = vadd.f32 %v3209, %v3801
        %v3803 = vpop.f32.mrf.mxu0
        %3804 = vmatprep.mubr.bf16.mxu0 0
        %3805 = vmatmul.mubr.bf16.gmra.mxu0 %v2218
        %v3806 = vpop.f32.mrf.mxu0
        %v3807 = vadd.f32 %v3214, %v3806
        %v3808 = vpop.f32.mrf.mxu0
        %v3809 = vpop.f32.mrf.mxu0
        %v3810 = vadd.f32 %v3217, %v3809
        %v3811 = vpop.f32.mrf.mxu0
        %3812 = vmatprep.mubr.bf16.mxu0 0
        %3813 = vmatmul.mubr.bf16.gmra.mxu0 %v2219
        %v3814 = vpop.f32.mrf.mxu0
        %v3815 = vadd.f32 %v3222, %v3814
        %v3816 = vpop.f32.mrf.mxu0
        %v3817 = vpop.f32.mrf.mxu0
        %v3818 = vadd.f32 %v3225, %v3817
        %v3819 = vpop.f32.mrf.mxu0
        %3820 = vmatprep.mubr.bf16.mxu0 0
        %3821 = vmatmul.mubr.bf16.gmra.mxu0 %v2220
        %v3822 = vpop.f32.mrf.mxu0
        %v3823 = vadd.f32 %v3230, %v3822
        %v3824 = vpop.f32.mrf.mxu0
        %v3825 = vpop.f32.mrf.mxu0
        %v3826 = vadd.f32 %v3233, %v3825
        %v3827 = vpop.f32.mrf.mxu0
        %3828 = vmatprep.mubr.bf16.mxu0 0
        %3829 = vmatmul.mubr.bf16.gmra.mxu0 %v2221
        %v3830 = vpop.f32.mrf.mxu0
        %v3831 = vadd.f32 %v3238, %v3830
        %v3832 = vpop.f32.mrf.mxu0
        %v3833 = vpop.f32.mrf.mxu0
        %v3834 = vadd.f32 %v3241, %v3833
        %v3835 = vpop.f32.mrf.mxu0
        %3836 = vmatprep.mubr.bf16.mxu0 0
        %3837 = vmatmul.mubr.bf16.gmra.mxu0 %v2222
        %v3838 = vpop.f32.mrf.mxu0
        %v3839 = vadd.f32 %v3246, %v3838
        %v3840 = vpop.f32.mrf.mxu0
        %v3841 = vpop.f32.mrf.mxu0
        %v3842 = vadd.f32 %v3249, %v3841
        %v3843 = vpop.f32.mrf.mxu0
        %3844 = vmatprep.mubr.bf16.mxu0 0
        %3845 = vmatmul.mubr.bf16.gmra.mxu0 %v2223
        %v3846 = vpop.f32.mrf.mxu0
        %v3847 = vadd.f32 %v3254, %v3846
        %v3848 = vpop.f32.mrf.mxu0
        %v3849 = vpop.f32.mrf.mxu0
        %v3850 = vadd.f32 %v3257, %v3849
        %v3851 = vpop.f32.mrf.mxu0
        %3852 = vmatprep.mubr.bf16.mxu0 0
        %3853 = vmatmul.mubr.bf16.gmra.mxu0 %v2224
        %v3854 = vpop.f32.mrf.mxu0
        %v3855 = vadd.f32 %v3262, %v3854
        %v3856 = vpop.f32.mrf.mxu0
        %v3857 = vpop.f32.mrf.mxu0
        %v3858 = vadd.f32 %v3265, %v3857
        %v3859 = vpop.f32.mrf.mxu0
        %3860 = vmatprep.mubr.bf16.mxu0 0
        %3861 = vmatmul.mubr.bf16.gmra.mxu0 %v2225
        %v3862 = vpop.f32.mrf.mxu0
        %v3863 = vadd.f32 %v3270, %v3862
        %v3864 = vpop.f32.mrf.mxu0
        %v3865 = vpop.f32.mrf.mxu0
        %v3866 = vadd.f32 %v3273, %v3865
        %v3867 = vpop.f32.mrf.mxu0
        %3868 = vmatprep.mubr.bf16.mxu0 0
        %3869 = vmatmul.mubr.bf16.gmra.mxu0 %v2226
        %v3870 = vpop.f32.mrf.mxu0
        %v3871 = vadd.f32 %v3278, %v3870
        %v3872 = vpop.f32.mrf.mxu0
        %v3873 = vpop.f32.mrf.mxu0
        %v3874 = vadd.f32 %v3281, %v3873
        %v3875 = vpop.f32.mrf.mxu0
        %3876 = vmatprep.mubr.bf16.mxu0 0
        %3877 = vmatmul.mubr.bf16.gmra.mxu0 %v2227
        %v3878 = vpop.f32.mrf.mxu0
        %v3879 = vadd.f32 %v3286, %v3878
        %v3880 = vpop.f32.mrf.mxu0
        %v3881 = vpop.f32.mrf.mxu0
        %v3882 = vadd.f32 %v3289, %v3881
        %v3883 = vpop.f32.mrf.mxu0
        %3884 = vmatprep.mubr.bf16.mxu0 0
        %3885 = vmatmul.mubr.bf16.gmra.mxu0 %v2228
        %v3886 = vpop.f32.mrf.mxu0
        %v3887 = vadd.f32 %v3294, %v3886
        %v3888 = vpop.f32.mrf.mxu0
        %v3889 = vpop.f32.mrf.mxu0
        %v3890 = vadd.f32 %v3297, %v3889
        %v3891 = vpop.f32.mrf.mxu0
        %3892 = vmatprep.mubr.bf16.mxu0 0
        %3893 = vmatmul.mubr.bf16.gmra.mxu0 %v2229
        %v3894 = vpop.f32.mrf.mxu0
        %v3895 = vadd.f32 %v3302, %v3894
        %v3896 = vpop.f32.mrf.mxu0
        %v3897 = vpop.f32.mrf.mxu0
        %v3898 = vadd.f32 %v3305, %v3897
        %v3899 = vpop.f32.mrf.mxu0
        %3900 = vmatprep.mubr.bf16.mxu0 0
        %3901 = vmatmul.mubr.bf16.gmra.mxu0 %v2230
        %v3902 = vpop.f32.mrf.mxu0
        %v3903 = vadd.f32 %v3310, %v3902
        %v3904 = vpop.f32.mrf.mxu0
        %v3905 = vpop.f32.mrf.mxu0
        %v3906 = vadd.f32 %v3313, %v3905
        %v3907 = vpop.f32.mrf.mxu0
        %3908 = vmatprep.mubr.bf16.mxu0 0
        %3909 = vmatmul.mubr.bf16.gmra.mxu0 %v2231
        %v3910 = vpop.f32.mrf.mxu0
        %v3911 = vadd.f32 %v3318, %v3910
        %v3912 = vpop.f32.mrf.mxu0
        %v3913 = vpop.f32.mrf.mxu0
        %v3914 = vadd.f32 %v3321, %v3913
        %v3915 = vpop.f32.mrf.mxu0
        %3916 = vmatprep.mubr.bf16.mxu0 0
        %3917 = vmatmul.mubr.bf16.gmra.mxu0 %v2232
        %v3918 = vpop.f32.mrf.mxu0
        %v3919 = vadd.f32 %v3326, %v3918
        %v3920 = vpop.f32.mrf.mxu0
        %v3921 = vpop.f32.mrf.mxu0
        %v3922 = vadd.f32 %v3329, %v3921
        %v3923 = vpop.f32.mrf.mxu0
        %3924 = vmatprep.mubr.bf16.mxu0 0
        %3925 = vmatmul.mubr.bf16.gmra.mxu0 %v2233
        %v3926 = vpop.f32.mrf.mxu0
        %v3927 = vadd.f32 %v3334, %v3926
        %v3928 = vpop.f32.mrf.mxu0
        %v3929 = vpop.f32.mrf.mxu0
        %v3930 = vadd.f32 %v3337, %v3929
        %v3931 = vpop.f32.mrf.mxu0
        %3932 = vmatprep.mubr.bf16.mxu0 0
        %3933 = vmatmul.mubr.bf16.gmra.mxu0 %v2234
        %v3934 = vpop.f32.mrf.mxu0
        %v3935 = vadd.f32 %v3342, %v3934
        %v3936 = vpop.f32.mrf.mxu0
        %v3937 = vpop.f32.mrf.mxu0
        %v3938 = vadd.f32 %v3345, %v3937
        %v3939 = vpop.f32.mrf.mxu0
        %3940 = vmatprep.mubr.bf16.mxu0 0
        %3941 = vmatmul.mubr.bf16.gmra.mxu0 %v2235
        %v3942 = vpop.f32.mrf.mxu0
        %v3943 = vadd.f32 %v3350, %v3942
        %v3944 = vpop.f32.mrf.mxu0
        %v3945 = vpop.f32.mrf.mxu0
        %v3946 = vadd.f32 %v3353, %v3945
        %v3947 = vpop.f32.mrf.mxu0
        %3948 = vmatprep.mubr.bf16.mxu0 0
        %3949 = vmatmul.mubr.bf16.gmra.mxu0 %v2236
        %v3950 = vpop.f32.mrf.mxu0
        %v3951 = vadd.f32 %v3358, %v3950
        %v3952 = vpop.f32.mrf.mxu0
        %v3953 = vpop.f32.mrf.mxu0
        %v3954 = vadd.f32 %v3361, %v3953
        %v3955 = vpop.f32.mrf.mxu0
        %3956 = vmatprep.mubr.bf16.mxu0 0
        %3957 = vmatmul.mubr.bf16.gmra.mxu0 %v2237
        %v3958 = vpop.f32.mrf.mxu0
        %v3959 = vadd.f32 %v3366, %v3958
        %v3960 = vpop.f32.mrf.mxu0
        %v3961 = vpop.f32.mrf.mxu0
        %v3962 = vadd.f32 %v3369, %v3961
        %v3963 = vpop.f32.mrf.mxu0
        %3964 = vmatprep.mubr.bf16.mxu0 0
        %3965 = vmatmul.mubr.bf16.gmra.mxu0 %v2238
        %v3966 = vpop.f32.mrf.mxu0
        %v3967 = vadd.f32 %v3374, %v3966
        %v3968 = vpop.f32.mrf.mxu0
        %v3969 = vpop.f32.mrf.mxu0
        %v3970 = vadd.f32 %v3377, %v3969
        %v3971 = vpop.f32.mrf.mxu0
        %3972 = vmatprep.mubr.bf16.mxu0 0
        %3973 = vmatmul.mubr.bf16.gmra.mxu0 %v2239
        %v3974 = vpop.f32.mrf.mxu0
        %v3975 = vadd.f32 %v3382, %v3974
        %v3976 = vpop.f32.mrf.mxu0
        %v3977 = vpop.f32.mrf.mxu0
        %v3978 = vadd.f32 %v3385, %v3977
        %v3979 = vpop.f32.mrf.mxu0
        %3980 = vmatprep.mubr.bf16.mxu0 0
        %3981 = vmatmul.mubr.bf16.gmra.mxu0 %v2240
        %v3982 = vpop.f32.mrf.mxu0
        %v3983 = vadd.f32 %v3390, %v3982
        %v3984 = vpop.f32.mrf.mxu0
        %v3985 = vpop.f32.mrf.mxu0
        %v3986 = vadd.f32 %v3393, %v3985
        %v3987 = vpop.f32.mrf.mxu0
        %3988 = vmatprep.mubr.bf16.mxu0 0
        %3989 = vmatmul.mubr.bf16.gmra.mxu0 %v2241
        %v3990 = vpop.f32.mrf.mxu0
        %v3991 = vadd.f32 %v3398, %v3990
        %v3992 = vpop.f32.mrf.mxu0
        %v3993 = vpop.f32.mrf.mxu0
        %v3994 = vadd.f32 %v3401, %v3993
        %v3995 = vpop.f32.mrf.mxu0
        %3996 = vmatprep.mubr.bf16.mxu0 0
        %3997 = vmatmul.mubr.bf16.gmra.mxu0 %v2242
        %v3998 = vpop.f32.mrf.mxu0
        %v3999 = vadd.f32 %v3406, %v3998
        %v4000 = vpop.f32.mrf.mxu0
        %v4001 = vpop.f32.mrf.mxu0
        %v4002 = vadd.f32 %v3409, %v4001
        %v4003 = vpop.f32.mrf.mxu0
        %4004 = vmatprep.mubr.bf16.mxu0 0
        %4005 = vmatmul.mubr.bf16.gmra.mxu0 %v2243
        %v4006 = vpop.f32.mrf.mxu0
        %v4007 = vadd.f32 %v3414, %v4006
        %v4008 = vpop.f32.mrf.mxu0
        %v4009 = vpop.f32.mrf.mxu0
        %v4010 = vadd.f32 %v3417, %v4009
        %v4011 = vpop.f32.mrf.mxu0
        %4012 = vmatprep.mubr.bf16.mxu0 0
        %4013 = vmatmul.mubr.bf16.gmra.mxu0 %v2244
        %v4014 = vpop.f32.mrf.mxu0
        %v4015 = vadd.f32 %v3422, %v4014
        %v4016 = vpop.f32.mrf.mxu0
        %v4017 = vpop.f32.mrf.mxu0
        %v4018 = vadd.f32 %v3425, %v4017
        %v4019 = vpop.f32.mrf.mxu0
        %4020 = vmatprep.mubr.bf16.mxu0 0
        %4021 = vmatmul.mubr.bf16.gmra.mxu0 %v2245
        %v4022 = vpop.f32.mrf.mxu0
        %v4023 = vadd.f32 %v3430, %v4022
        %v4024 = vpop.f32.mrf.mxu0
        %v4025 = vpop.f32.mrf.mxu0
        %v4026 = vadd.f32 %v3433, %v4025
        %v4027 = vpop.f32.mrf.mxu0
        %4028 = vmatprep.mubr.bf16.mxu0 0
        %4029 = vmatmul.mubr.bf16.gmra.mxu0 %v2246
        %v4030 = vpop.f32.mrf.mxu0
        %v4031 = vadd.f32 %v3438, %v4030
        %v4032 = vpop.f32.mrf.mxu0
        %v4033 = vpop.f32.mrf.mxu0
        %v4034 = vadd.f32 %v3441, %v4033
        %v4035 = vpop.f32.mrf.mxu0
        %4036 = vmatprep.mubr.bf16.mxu0 0
        %4037 = vmatmul.mubr.bf16.gmra.mxu0 %v2247
        %v4038 = vpop.f32.mrf.mxu0
        %v4039 = vadd.f32 %v3446, %v4038
        %v4040 = vpop.f32.mrf.mxu0
        %v4041 = vpop.f32.mrf.mxu0
        %v4042 = vadd.f32 %v3449, %v4041
        %v4043 = vpop.f32.mrf.mxu0
        %4044 = vmatprep.mubr.bf16.mxu0 0
        %4045 = vmatmul.mubr.bf16.gmra.mxu0 %v2248
        %v4046 = vpop.f32.mrf.mxu0
        %v4047 = vadd.f32 %v3454, %v4046
        %v4048 = vpop.f32.mrf.mxu0
        %v4049 = vpop.f32.mrf.mxu0
        %v4050 = vadd.f32 %v3457, %v4049
        %v4051 = vpop.f32.mrf.mxu0
        %4052 = vmatprep.mubr.bf16.mxu0 0
        %4053 = vmatmul.mubr.bf16.gmra.mxu0 %v2249
        %v4054 = vpop.f32.mrf.mxu0
        %v4055 = vadd.f32 %v3462, %v4054
        %v4056 = vpop.f32.mrf.mxu0
        %v4057 = vpop.f32.mrf.mxu0
        %v4058 = vadd.f32 %v3465, %v4057
        %v4059 = vpop.f32.mrf.mxu0
        %4060 = vmatprep.mubr.bf16.mxu0 0
        %4061 = vmatmul.mubr.bf16.gmra.mxu0 %v2250
        %v4062 = vpop.f32.mrf.mxu0
        %v4063 = vadd.f32 %v3470, %v4062
        %v4064 = vpop.f32.mrf.mxu0
        %v4065 = vpop.f32.mrf.mxu0
        %v4066 = vadd.f32 %v3473, %v4065
        %v4067 = vpop.f32.mrf.mxu0
        %4068 = vmatprep.mubr.bf16.mxu0 0
        %4069 = vmatmul.mubr.bf16.gmra.mxu0 %v2251
        %v4070 = vpop.f32.mrf.mxu0
        %v4071 = vadd.f32 %v3478, %v4070
        %v4072 = vpop.f32.mrf.mxu0
        %v4073 = vpop.f32.mrf.mxu0
        %v4074 = vadd.f32 %v3481, %v4073
        %v4075 = vpop.f32.mrf.mxu0
        %4076 = vmatprep.mubr.bf16.mxu0 0
        %4077 = vmatmul.mubr.bf16.gmra.mxu0 %v2252
        %v4078 = vpop.f32.mrf.mxu0
        %v4079 = vadd.f32 %v3486, %v4078
        %v4080 = vpop.f32.mrf.mxu0
        %v4081 = vpop.f32.mrf.mxu0
        %v4082 = vadd.f32 %v3489, %v4081
        %v4083 = vpop.f32.mrf.mxu0
        %4084 = vmatprep.mubr.bf16.mxu0 0
        %4085 = vmatmul.mubr.bf16.gmra.mxu0 %v2253
        %v4086 = vpop.f32.mrf.mxu0
        %v4087 = vadd.f32 %v3494, %v4086
        %v4088 = vpop.f32.mrf.mxu0
        %v4089 = vpop.f32.mrf.mxu0
        %v4090 = vadd.f32 %v3497, %v4089
        %v4091 = vpop.f32.mrf.mxu0
        %4092 = vmatprep.mubr.bf16.mxu0 0
        %4093 = vmatmul.mubr.bf16.gmra.mxu0 %v2254
        %v4094 = vpop.f32.mrf.mxu0
        %v4095 = vadd.f32 %v3502, %v4094
        %v4096 = vpop.f32.mrf.mxu0
        %v4097 = vpop.f32.mrf.mxu0
        %v4098 = vadd.f32 %v3505, %v4097
        %v4099 = vpop.f32.mrf.mxu0
        %4100 = vmatprep.mubr.bf16.mxu0 0
        %4101 = vmatmul.mubr.bf16.gmra.mxu0 %v2255
        %v4102 = vpop.f32.mrf.mxu0
        %v4103 = vadd.f32 %v3510, %v4102
        %v4104 = vpop.f32.mrf.mxu0
        %v4105 = vpop.f32.mrf.mxu0
        %v4106 = vadd.f32 %v3513, %v4105
        %v4107 = vpop.f32.mrf.mxu0
        %4108 = vmatprep.mubr.bf16.mxu0 0
        %4109 = vmatmul.mubr.bf16.gmra.mxu0 %v2256
        %v4110 = vpop.f32.mrf.mxu0
        %v4111 = vadd.f32 %v3518, %v4110
        %v4112 = vpop.f32.mrf.mxu0
        %v4113 = vpop.f32.mrf.mxu0
        %v4114 = vadd.f32 %v3521, %v4113
        %v4115 = vpop.f32.mrf.mxu0
        %4116 = vdwg.mxu0
        %vm4117 = vcmask 1045504
        %v4118 = vrot.slane %v2023, 2
        %v4119 = vrot.slane %v2024, 2
        %v4120 = vsel %vm4117, %v4118, %v4119
        %v4121 = vrot.slane %v2025, 2
        %v4122 = vsel %vm4117, %v4119, %v4121
        %v4123 = vrot.slane %v2026, 2
        %v4124 = vsel %vm4117, %v4121, %v4123
        %v4125 = vrot.slane %v2027, 2
        %v4126 = vsel %vm4117, %v4123, %v4125
        %v4127 = vrot.slane %v2028, 2
        %v4128 = vrot.slane %v2029, 2
        %v4129 = vsel %vm4117, %v4127, %v4128
        %v4130 = vrot.slane %v2030, 2
        %v4131 = vsel %vm4117, %v4128, %v4130
        %v4132 = vrot.slane %v2031, 2
        %v4133 = vsel %vm4117, %v4130, %v4132
        %v4134 = vrot.slane %v2032, 2
        %v4135 = vsel %vm4117, %v4132, %v4134
        %v4136 = vrot.slane %v2033, 2
        %v4137 = vrot.slane %v2034, 2
        %v4138 = vsel %vm4117, %v4136, %v4137
        %v4139 = vrot.slane %v2035, 2
        %v4140 = vsel %vm4117, %v4137, %v4139
        %v4141 = vrot.slane %v2036, 2
        %v4142 = vsel %vm4117, %v4139, %v4141
        %v4143 = vrot.slane %v2037, 2
        %v4144 = vsel %vm4117, %v4141, %v4143
        %v4145 = vrot.slane %v2038, 2
        %v4146 = vrot.slane %v2039, 2
        %v4147 = vsel %vm4117, %v4145, %v4146
        %v4148 = vrot.slane %v2040, 2
        %v4149 = vsel %vm4117, %v4146, %v4148
        %v4150 = vrot.slane %v2041, 2
        %v4151 = vsel %vm4117, %v4148, %v4150
        %v4152 = vrot.slane %v2042, 2
        %v4153 = vsel %vm4117, %v4150, %v4152
        %v4154 = vrot.slane %v2043, 2
        %v4155 = vrot.slane %v2044, 2
        %v4156 = vsel %vm4117, %v4154, %v4155
        %v4157 = vrot.slane %v2045, 2
        %v4158 = vsel %vm4117, %v4155, %v4157
        %v4159 = vrot.slane %v2046, 2
        %v4160 = vsel %vm4117, %v4157, %v4159
        %v4161 = vrot.slane %v2047, 2
        %v4162 = vsel %vm4117, %v4159, %v4161
        %v4163 = vrot.slane %v2048, 2
        %v4164 = vrot.slane %v2049, 2
        %v4165 = vsel %vm4117, %v4163, %v4164
        %v4166 = vrot.slane %v2050, 2
        %v4167 = vsel %vm4117, %v4164, %v4166
        %v4168 = vrot.slane %v2051, 2
        %v4169 = vsel %vm4117, %v4166, %v4168
        %v4170 = vrot.slane %v2052, 2
        %v4171 = vsel %vm4117, %v4168, %v4170
        %v4172 = vrot.slane %v2053, 2
        %v4173 = vrot.slane %v2054, 2
        %v4174 = vsel %vm4117, %v4172, %v4173
        %v4175 = vrot.slane %v2055, 2
        %v4176 = vsel %vm4117, %v4173, %v4175
        %v4177 = vrot.slane %v2056, 2
        %v4178 = vsel %vm4117, %v4175, %v4177
        %v4179 = vrot.slane %v2057, 2
        %v4180 = vsel %vm4117, %v4177, %v4179
        %v4181 = vrot.slane %v2058, 2
        %v4182 = vrot.slane %v2059, 2
        %v4183 = vsel %vm4117, %v4181, %v4182
        %v4184 = vrot.slane %v2060, 2
        %v4185 = vsel %vm4117, %v4182, %v4184
        %v4186 = vrot.slane %v2061, 2
        %v4187 = vsel %vm4117, %v4184, %v4186
        %v4188 = vrot.slane %v2062, 2
        %v4189 = vsel %vm4117, %v4186, %v4188
        %v4190 = vrot.slane %v2063, 2
        %v4191 = vrot.slane %v2064, 2
        %v4192 = vsel %vm4117, %v4190, %v4191
        %v4193 = vrot.slane %v2065, 2
        %v4194 = vsel %vm4117, %v4191, %v4193
        %v4195 = vrot.slane %v2066, 2
        %v4196 = vsel %vm4117, %v4193, %v4195
        %v4197 = vrot.slane %v2067, 2
        %v4198 = vsel %vm4117, %v4195, %v4197
        %v4199 = vrot.slane %v2068, 2
        %v4200 = vrot.slane %v2069, 2
        %v4201 = vsel %vm4117, %v4199, %v4200
        %v4202 = vrot.slane %v2070, 2
        %v4203 = vsel %vm4117, %v4200, %v4202
        %v4204 = vrot.slane %v2071, 2
        %v4205 = vsel %vm4117, %v4202, %v4204
        %v4206 = vrot.slane %v2072, 2
        %v4207 = vsel %vm4117, %v4204, %v4206
        %v4208 = vrot.slane %v2073, 2
        %v4209 = vrot.slane %v2074, 2
        %v4210 = vsel %vm4117, %v4208, %v4209
        %v4211 = vrot.slane %v2075, 2
        %v4212 = vsel %vm4117, %v4209, %v4211
        %v4213 = vrot.slane %v2076, 2
        %v4214 = vsel %vm4117, %v4211, %v4213
        %v4215 = vrot.slane %v2077, 2
        %v4216 = vsel %vm4117, %v4213, %v4215
        %v4217 = vrot.slane %v2078, 2
        %v4218 = vrot.slane %v2079, 2
        %v4219 = vsel %vm4117, %v4217, %v4218
        %v4220 = vrot.slane %v2080, 2
        %v4221 = vsel %vm4117, %v4218, %v4220
        %v4222 = vrot.slane %v2081, 2
        %v4223 = vsel %vm4117, %v4220, %v4222
        %v4224 = vrot.slane %v2082, 2
        %v4225 = vsel %vm4117, %v4222, %v4224
        %v4226 = vrot.slane %v2083, 2
        %v4227 = vrot.slane %v2084, 2
        %v4228 = vsel %vm4117, %v4226, %v4227
        %v4229 = vrot.slane %v2085, 2
        %v4230 = vsel %vm4117, %v4227, %v4229
        %v4231 = vrot.slane %v2086, 2
        %v4232 = vsel %vm4117, %v4229, %v4231
        %v4233 = vrot.slane %v2087, 2
        %v4234 = vsel %vm4117, %v4231, %v4233
        %v4235 = vrot.slane %v2088, 2
        %v4236 = vrot.slane %v2089, 2
        %v4237 = vsel %vm4117, %v4235, %v4236
        %v4238 = vrot.slane %v2090, 2
        %v4239 = vsel %vm4117, %v4236, %v4238
        %v4240 = vrot.slane %v2091, 2
        %v4241 = vsel %vm4117, %v4238, %v4240
        %v4242 = vrot.slane %v2092, 2
        %v4243 = vsel %vm4117, %v4240, %v4242
        %v4244 = vrot.slane %v2093, 2
        %v4245 = vrot.slane %v2094, 2
        %v4246 = vsel %vm4117, %v4244, %v4245
        %v4247 = vrot.slane %v2095, 2
        %v4248 = vsel %vm4117, %v4245, %v4247
        %v4249 = vrot.slane %v2096, 2
        %v4250 = vsel %vm4117, %v4247, %v4249
        %v4251 = vrot.slane %v2097, 2
        %v4252 = vsel %vm4117, %v4249, %v4251
        %v4253 = vrot.slane %v2098, 2
        %v4254 = vrot.slane %v2099, 2
        %v4255 = vsel %vm4117, %v4253, %v4254
        %v4256 = vrot.slane %v2100, 2
        %v4257 = vsel %vm4117, %v4254, %v4256
        %v4258 = vrot.slane %v2101, 2
        %v4259 = vsel %vm4117, %v4256, %v4258
        %v4260 = vrot.slane %v2102, 2
        %v4261 = vsel %vm4117, %v4258, %v4260
        %v4262 = vrot.slane %v2103, 2
        %v4263 = vrot.slane %v2104, 2
        %v4264 = vsel %vm4117, %v4262, %v4263
        %v4265 = vrot.slane %v2105, 2
        %v4266 = vsel %vm4117, %v4263, %v4265
        %v4267 = vrot.slane %v2106, 2
        %v4268 = vsel %vm4117, %v4265, %v4267
        %v4269 = vrot.slane %v2107, 2
        %v4270 = vsel %vm4117, %v4267, %v4269
        %v4271 = vrot.slane %v2108, 2
        %v4272 = vrot.slane %v2109, 2
        %v4273 = vsel %vm4117, %v4271, %v4272
        %v4274 = vrot.slane %v2110, 2
        %v4275 = vsel %vm4117, %v4272, %v4274
        %v4276 = vrot.slane %v2111, 2
        %v4277 = vsel %vm4117, %v4274, %v4276
        %v4278 = vrot.slane %v2112, 2
        %v4279 = vsel %vm4117, %v4276, %v4278
        %v4280 = vrot.slane %v2113, 2
        %v4281 = vrot.slane %v2114, 2
        %v4282 = vsel %vm4117, %v4280, %v4281
        %v4283 = vrot.slane %v2115, 2
        %v4284 = vsel %vm4117, %v4281, %v4283
        %v4285 = vrot.slane %v2116, 2
        %v4286 = vsel %vm4117, %v4283, %v4285
        %v4287 = vrot.slane %v2117, 2
        %v4288 = vsel %vm4117, %v4285, %v4287
        %v4289 = vrot.slane %v2118, 2
        %v4290 = vrot.slane %v2119, 2
        %v4291 = vsel %vm4117, %v4289, %v4290
        %v4292 = vrot.slane %v2120, 2
        %v4293 = vsel %vm4117, %v4290, %v4292
        %v4294 = vrot.slane %v2121, 2
        %v4295 = vsel %vm4117, %v4292, %v4294
        %v4296 = vrot.slane %v2122, 2
        %v4297 = vsel %vm4117, %v4294, %v4296
        %v4298 = vrot.slane %v2123, 2
        %v4299 = vrot.slane %v2124, 2
        %v4300 = vsel %vm4117, %v4298, %v4299
        %v4301 = vrot.slane %v2125, 2
        %v4302 = vsel %vm4117, %v4299, %v4301
        %v4303 = vrot.slane %v2126, 2
        %v4304 = vsel %vm4117, %v4301, %v4303
        %v4305 = vrot.slane %v2127, 2
        %v4306 = vsel %vm4117, %v4303, %v4305
        %v4307 = vrot.slane %v2128, 2
        %v4308 = vrot.slane %v2129, 2
        %v4309 = vsel %vm4117, %v4307, %v4308
        %v4310 = vrot.slane %v2130, 2
        %v4311 = vsel %vm4117, %v4308, %v4310
        %v4312 = vrot.slane %v2131, 2
        %v4313 = vsel %vm4117, %v4310, %v4312
        %v4314 = vrot.slane %v2132, 2
        %v4315 = vsel %vm4117, %v4312, %v4314
        %v4316 = vrot.slane %v2133, 2
        %v4317 = vrot.slane %v2134, 2
        %v4318 = vsel %vm4117, %v4316, %v4317
        %v4319 = vrot.slane %v2135, 2
        %v4320 = vsel %vm4117, %v4317, %v4319
        %v4321 = vrot.slane %v2136, 2
        %v4322 = vsel %vm4117, %v4319, %v4321
        %v4323 = vrot.slane %v2137, 2
        %v4324 = vsel %vm4117, %v4321, %v4323
        %v4325 = vrot.slane %v2138, 2
        %v4326 = vrot.slane %v2139, 2
        %v4327 = vsel %vm4117, %v4325, %v4326
        %v4328 = vrot.slane %v2140, 2
        %v4329 = vsel %vm4117, %v4326, %v4328
        %v4330 = vrot.slane %v2141, 2
        %v4331 = vsel %vm4117, %v4328, %v4330
        %v4332 = vrot.slane %v2142, 2
        %v4333 = vsel %vm4117, %v4330, %v4332
        %v4334 = vrot.slane %v2143, 2
        %v4335 = vrot.slane %v2144, 2
        %v4336 = vsel %vm4117, %v4334, %v4335
        %v4337 = vrot.slane %v2145, 2
        %v4338 = vsel %vm4117, %v4335, %v4337
        %v4339 = vrot.slane %v2146, 2
        %v4340 = vsel %vm4117, %v4337, %v4339
        %v4341 = vrot.slane %v2147, 2
        %v4342 = vsel %vm4117, %v4339, %v4341
        %v4343 = vrot.slane %v2148, 2
        %v4344 = vrot.slane %v2149, 2
        %v4345 = vsel %vm4117, %v4343, %v4344
        %v4346 = vrot.slane %v2150, 2
        %v4347 = vsel %vm4117, %v4344, %v4346
        %v4348 = vrot.slane %v2151, 2
        %v4349 = vsel %vm4117, %v4346, %v4348
        %v4350 = vrot.slane %v2152, 2
        %v4351 = vsel %vm4117, %v4348, %v4350
        %v4352 = vrot.slane %v2153, 2
        %v4353 = vrot.slane %v2154, 2
        %v4354 = vsel %vm4117, %v4352, %v4353
        %v4355 = vrot.slane %v2155, 2
        %v4356 = vsel %vm4117, %v4353, %v4355
        %v4357 = vrot.slane %v2156, 2
        %v4358 = vsel %vm4117, %v4355, %v4357
        %v4359 = vrot.slane %v2157, 2
        %v4360 = vsel %vm4117, %v4357, %v4359
        %v4361 = vrot.slane %v2158, 2
        %v4362 = vrot.slane %v2159, 2
        %v4363 = vsel %vm4117, %v4361, %v4362
        %v4364 = vrot.slane %v2160, 2
        %v4365 = vsel %vm4117, %v4362, %v4364
        %v4366 = vrot.slane %v2161, 2
        %v4367 = vsel %vm4117, %v4364, %v4366
        %v4368 = vrot.slane %v2162, 2
        %v4369 = vsel %vm4117, %v4366, %v4368
        %v4370 = vrot.slane %v2163, 2
        %v4371 = vrot.slane %v2164, 2
        %v4372 = vsel %vm4117, %v4370, %v4371
        %v4373 = vrot.slane %v2165, 2
        %v4374 = vsel %vm4117, %v4371, %v4373
        %v4375 = vrot.slane %v2166, 2
        %v4376 = vsel %vm4117, %v4373, %v4375
        %v4377 = vrot.slane %v2167, 2
        %v4378 = vsel %vm4117, %v4375, %v4377
        %v4379 = vrot.slane %v2168, 2
        %v4380 = vrot.slane %v2169, 2
        %v4381 = vsel %vm4117, %v4379, %v4380
        %v4382 = vrot.slane %v2170, 2
        %v4383 = vsel %vm4117, %v4380, %v4382
        %v4384 = vrot.slane %v2171, 2
        %v4385 = vsel %vm4117, %v4382, %v4384
        %v4386 = vrot.slane %v2172, 2
        %v4387 = vsel %vm4117, %v4384, %v4386
        %v4388 = vrot.slane %v2173, 2
        %v4389 = vrot.slane %v2174, 2
        %v4390 = vsel %vm4117, %v4388, %v4389
        %v4391 = vrot.slane %v2175, 2
        %v4392 = vsel %vm4117, %v4389, %v4391
        %v4393 = vrot.slane %v2176, 2
        %v4394 = vsel %vm4117, %v4391, %v4393
        %v4395 = vrot.slane %v2177, 2
        %v4396 = vsel %vm4117, %v4393, %v4395
        %v4397 = vrot.slane %v2178, 2
        %v4398 = vrot.slane %v2179, 2
        %v4399 = vsel %vm4117, %v4397, %v4398
        %v4400 = vrot.slane %v2180, 2
        %v4401 = vsel %vm4117, %v4398, %v4400
        %v4402 = vrot.slane %v2181, 2
        %v4403 = vsel %vm4117, %v4400, %v4402
        %v4404 = vrot.slane %v2182, 2
        %v4405 = vsel %vm4117, %v4402, %v4404
        %v4534 = vpack.c.bf16 %v4122, %v4120
        %v4535 = vpack.c.bf16 %v4126, %v4124
        %v4536 = vpack.c.bf16 %v4131, %v4129
        %v4537 = vpack.c.bf16 %v4135, %v4133
        %v4538 = vpack.c.bf16 %v4140, %v4138
        %v4539 = vpack.c.bf16 %v4144, %v4142
        %v4540 = vpack.c.bf16 %v4149, %v4147
        %v4541 = vpack.c.bf16 %v4153, %v4151
        %v4542 = vpack.c.bf16 %v4158, %v4156
        %v4543 = vpack.c.bf16 %v4162, %v4160
        %v4544 = vpack.c.bf16 %v4167, %v4165
        %v4545 = vpack.c.bf16 %v4171, %v4169
        %v4546 = vpack.c.bf16 %v4176, %v4174
        %v4547 = vpack.c.bf16 %v4180, %v4178
        %v4548 = vpack.c.bf16 %v4185, %v4183
        %v4549 = vpack.c.bf16 %v4189, %v4187
        %v4550 = vpack.c.bf16 %v4194, %v4192
        %v4551 = vpack.c.bf16 %v4198, %v4196
        %v4552 = vpack.c.bf16 %v4203, %v4201
        %v4553 = vpack.c.bf16 %v4207, %v4205
        %v4554 = vpack.c.bf16 %v4212, %v4210
        %v4555 = vpack.c.bf16 %v4216, %v4214
        %v4556 = vpack.c.bf16 %v4221, %v4219
        %v4557 = vpack.c.bf16 %v4225, %v4223
        %v4558 = vpack.c.bf16 %v4230, %v4228
        %v4559 = vpack.c.bf16 %v4234, %v4232
        %v4560 = vpack.c.bf16 %v4239, %v4237
        %v4561 = vpack.c.bf16 %v4243, %v4241
        %v4562 = vpack.c.bf16 %v4248, %v4246
        %v4563 = vpack.c.bf16 %v4252, %v4250
        %v4564 = vpack.c.bf16 %v4257, %v4255
        %v4565 = vpack.c.bf16 %v4261, %v4259
        %v4566 = vpack.c.bf16 %v4266, %v4264
        %v4567 = vpack.c.bf16 %v4270, %v4268
        %v4568 = vpack.c.bf16 %v4275, %v4273
        %v4569 = vpack.c.bf16 %v4279, %v4277
        %v4570 = vpack.c.bf16 %v4284, %v4282
        %v4571 = vpack.c.bf16 %v4288, %v4286
        %v4572 = vpack.c.bf16 %v4293, %v4291
        %v4573 = vpack.c.bf16 %v4297, %v4295
        %v4574 = vpack.c.bf16 %v4302, %v4300
        %v4575 = vpack.c.bf16 %v4306, %v4304
        %v4576 = vpack.c.bf16 %v4311, %v4309
        %v4577 = vpack.c.bf16 %v4315, %v4313
        %v4578 = vpack.c.bf16 %v4320, %v4318
        %v4579 = vpack.c.bf16 %v4324, %v4322
        %v4580 = vpack.c.bf16 %v4329, %v4327
        %v4581 = vpack.c.bf16 %v4333, %v4331
        %v4582 = vpack.c.bf16 %v4338, %v4336
        %v4583 = vpack.c.bf16 %v4342, %v4340
        %v4584 = vpack.c.bf16 %v4347, %v4345
        %v4585 = vpack.c.bf16 %v4351, %v4349
        %v4586 = vpack.c.bf16 %v4356, %v4354
        %v4587 = vpack.c.bf16 %v4360, %v4358
        %v4588 = vpack.c.bf16 %v4365, %v4363
        %v4589 = vpack.c.bf16 %v4369, %v4367
        %v4590 = vpack.c.bf16 %v4374, %v4372
        %v4591 = vpack.c.bf16 %v4378, %v4376
        %v4592 = vpack.c.bf16 %v4383, %v4381
        %v4593 = vpack.c.bf16 %v4387, %v4385
        %v4594 = vpack.c.bf16 %v4392, %v4390
        %v4595 = vpack.c.bf16 %v4396, %v4394
        %v4596 = vpack.c.bf16 %v4401, %v4399
        %v4597 = vpack.c.bf16 %v4405, %v4403
        %s4598 = scalar_lea.vmem [#allocation11], 128
        %v4599 = vld [vmem:[%s4598] sm:$0xf]
        %v4600 = vld [vmem:[%s4598 + $0x4] sm:$0xf]
        %v4601 = vld [vmem:[%s4598 + $0x8] sm:$0xf]
        %v4602 = vld [vmem:[%s4598 + $0xc] sm:$0xf]
        %v4603 = vld [vmem:[%s4598 + $0x10] sm:$0xf]
        %v4604 = vld [vmem:[%s4598 + $0x14] sm:$0xf]
        %v4605 = vld [vmem:[%s4598 + $0x18] sm:$0xf]
        %v4606 = vld [vmem:[%s4598 + $0x1c] sm:$0xf]
        %v4607 = vld [vmem:[%s4598 + $0x20] sm:$0xf]
        %v4608 = vld [vmem:[%s4598 + $0x24] sm:$0xf]
        %v4609 = vld [vmem:[%s4598 + $0x28] sm:$0xf]
        %v4610 = vld [vmem:[%s4598 + $0x2c] sm:$0xf]
        %v4611 = vld [vmem:[%s4598 + $0x30] sm:$0xf]
        %v4612 = vld [vmem:[%s4598 + $0x34] sm:$0xf]
        %v4613 = vld [vmem:[%s4598 + $0x38] sm:$0xf]
        %v4614 = vld [vmem:[%s4598 + $0x3c] sm:$0xf]
        %v4631 = vunpack.c.l.b16 %v4599
        %v4632 = vunpack.c.l.b16 %v4600
        %v4633 = vunpack.c.l.b16 %v4601
        %v4634 = vunpack.c.l.b16 %v4602
        %v4635 = vunpack.c.l.b16 %v4603
        %v4636 = vunpack.c.l.b16 %v4604
        %v4637 = vunpack.c.l.b16 %v4605
        %v4638 = vunpack.c.l.b16 %v4606
        %v4639 = vunpack.c.l.b16 %v4607
        %v4640 = vunpack.c.l.b16 %v4608
        %v4641 = vunpack.c.l.b16 %v4609
        %v4642 = vunpack.c.l.b16 %v4610
        %v4643 = vunpack.c.l.b16 %v4611
        %v4644 = vunpack.c.l.b16 %v4612
        %v4645 = vunpack.c.l.b16 %v4613
        %v4646 = vunpack.c.l.b16 %v4614
        %v4647 = vpack.c.b16 %v4632, %v4631
        %v4648 = vpack.c.b16 %v4634, %v4633
        %v4649 = vpack.c.b16 %v4636, %v4635
        %v4650 = vpack.c.b16 %v4638, %v4637
        %v4651 = vpack.c.b16 %v4640, %v4639
        %v4652 = vpack.c.b16 %v4642, %v4641
        %v4653 = vpack.c.b16 %v4644, %v4643
        %v4654 = vpack.c.b16 %v4646, %v4645
        %4663 = vmatprep.subr.bf16.mxu0 0
        %4664 = vmatpush1.bf16.msra.mxu0 %v4654
        %4665 = vmatprep.subr.bf16.mxu0 0
        %4666 = vmatpush1.bf16.msra.mxu0 %v4653
        %4667 = vmatprep.subr.bf16.mxu0 0
        %4668 = vmatpush1.bf16.msra.mxu0 %v4652
        %4669 = vmatprep.subr.bf16.mxu0 0
        %4670 = vmatpush1.bf16.msra.mxu0 %v4651
        %4671 = vmatprep.subr.bf16.mxu0 0
        %4672 = vmatpush1.bf16.msra.mxu0 %v4650
        %4673 = vmatprep.subr.bf16.mxu0 0
        %4674 = vmatpush1.bf16.msra.mxu0 %v4649
        %4675 = vmatprep.subr.bf16.mxu0 0
        %4676 = vmatpush1.bf16.msra.mxu0 %v4648
        %4677 = vmatprep.subr.bf16.mxu0 0
        %4678 = vmatpush1.bf16.msra.mxu0 %v4647
        %4679 = vmatprep.subr.bf16.mxu0 0
        %4680 = vmatpush2.bf16.msra.mxu0 0
        %4681 = vmatprep.subr.bf16.mxu0 0
        %4682 = vmatpush2.bf16.msra.mxu0 0
        %4683 = vmatprep.subr.bf16.mxu0 0
        %4684 = vmatpush2.bf16.msra.mxu0 0
        %4685 = vmatprep.subr.bf16.mxu0 0
        %4686 = vmatpush2.bf16.msra.mxu0 0
        %4687 = vmatprep.subr.bf16.mxu0 0
        %4688 = vmatpush2.bf16.msra.mxu0 0
        %4689 = vmatprep.subr.bf16.mxu0 0
        %4690 = vmatpush2.bf16.msra.mxu0 0
        %4691 = vmatprep.subr.bf16.mxu0 0
        %4692 = vmatpush2.bf16.msra.mxu0 0
        %4693 = vmatprep.subr.bf16.mxu0 0
        %4694 = vmatpush2.bf16.msra.mxu0 0
        %4695 = vmatprep.mubr.bf16.mxu0 0
        %4696 = vmatmul.mubr.bf16.gmra.mxu0 %v4534
        %v4697 = vpop.f32.mrf.mxu0
        %v4698 = vadd.f32 0.0, %v4697
        %v4699 = vpop.f32.mrf.mxu0
        %v4700 = vpop.f32.mrf.mxu0
        %v4701 = vadd.f32 0.0, %v4700
        %v4702 = vpop.f32.mrf.mxu0
        %4703 = vmatprep.mubr.bf16.mxu0 0
        %4704 = vmatmul.mubr.bf16.gmra.mxu0 %v4535
        %v4705 = vpop.f32.mrf.mxu0
        %v4706 = vadd.f32 0.0, %v4705
        %v4707 = vpop.f32.mrf.mxu0
        %v4708 = vpop.f32.mrf.mxu0
        %v4709 = vadd.f32 0.0, %v4708
        %v4710 = vpop.f32.mrf.mxu0
        %4711 = vmatprep.mubr.bf16.mxu0 0
        %4712 = vmatmul.mubr.bf16.gmra.mxu0 %v4536
        %v4713 = vpop.f32.mrf.mxu0
        %v4714 = vadd.f32 0.0, %v4713
        %v4715 = vpop.f32.mrf.mxu0
        %v4716 = vpop.f32.mrf.mxu0
        %v4717 = vadd.f32 0.0, %v4716
        %v4718 = vpop.f32.mrf.mxu0
        %4719 = vmatprep.mubr.bf16.mxu0 0
        %4720 = vmatmul.mubr.bf16.gmra.mxu0 %v4537
        %v4721 = vpop.f32.mrf.mxu0
        %v4722 = vadd.f32 0.0, %v4721
        %v4723 = vpop.f32.mrf.mxu0
        %v4724 = vpop.f32.mrf.mxu0
        %v4725 = vadd.f32 0.0, %v4724
        %v4726 = vpop.f32.mrf.mxu0
        %4727 = vmatprep.mubr.bf16.mxu0 0
        %4728 = vmatmul.mubr.bf16.gmra.mxu0 %v4538
        %v4729 = vpop.f32.mrf.mxu0
        %v4730 = vadd.f32 0.0, %v4729
        %v4731 = vpop.f32.mrf.mxu0
        %v4732 = vpop.f32.mrf.mxu0
        %v4733 = vadd.f32 0.0, %v4732
        %v4734 = vpop.f32.mrf.mxu0
        %4735 = vmatprep.mubr.bf16.mxu0 0
        %4736 = vmatmul.mubr.bf16.gmra.mxu0 %v4539
        %v4737 = vpop.f32.mrf.mxu0
        %v4738 = vadd.f32 0.0, %v4737
        %v4739 = vpop.f32.mrf.mxu0
        %v4740 = vpop.f32.mrf.mxu0
        %v4741 = vadd.f32 0.0, %v4740
        %v4742 = vpop.f32.mrf.mxu0
        %4743 = vmatprep.mubr.bf16.mxu0 0
        %4744 = vmatmul.mubr.bf16.gmra.mxu0 %v4540
        %v4745 = vpop.f32.mrf.mxu0
        %v4746 = vadd.f32 0.0, %v4745
        %v4747 = vpop.f32.mrf.mxu0
        %v4748 = vpop.f32.mrf.mxu0
        %v4749 = vadd.f32 0.0, %v4748
        %v4750 = vpop.f32.mrf.mxu0
        %4751 = vmatprep.mubr.bf16.mxu0 0
        %4752 = vmatmul.mubr.bf16.gmra.mxu0 %v4541
        %v4753 = vpop.f32.mrf.mxu0
        %v4754 = vadd.f32 0.0, %v4753
        %v4755 = vpop.f32.mrf.mxu0
        %v4756 = vpop.f32.mrf.mxu0
        %v4757 = vadd.f32 0.0, %v4756
        %v4758 = vpop.f32.mrf.mxu0
        %4759 = vmatprep.mubr.bf16.mxu0 0
        %4760 = vmatmul.mubr.bf16.gmra.mxu0 %v4542
        %v4761 = vpop.f32.mrf.mxu0
        %v4762 = vadd.f32 0.0, %v4761
        %v4763 = vpop.f32.mrf.mxu0
        %v4764 = vpop.f32.mrf.mxu0
        %v4765 = vadd.f32 0.0, %v4764
        %v4766 = vpop.f32.mrf.mxu0
        %4767 = vmatprep.mubr.bf16.mxu0 0
        %4768 = vmatmul.mubr.bf16.gmra.mxu0 %v4543
        %v4769 = vpop.f32.mrf.mxu0
        %v4770 = vadd.f32 0.0, %v4769
        %v4771 = vpop.f32.mrf.mxu0
        %v4772 = vpop.f32.mrf.mxu0
        %v4773 = vadd.f32 0.0, %v4772
        %v4774 = vpop.f32.mrf.mxu0
        %4775 = vmatprep.mubr.bf16.mxu0 0
        %4776 = vmatmul.mubr.bf16.gmra.mxu0 %v4544
        %v4777 = vpop.f32.mrf.mxu0
        %v4778 = vadd.f32 0.0, %v4777
        %v4779 = vpop.f32.mrf.mxu0
        %v4780 = vpop.f32.mrf.mxu0
        %v4781 = vadd.f32 0.0, %v4780
        %v4782 = vpop.f32.mrf.mxu0
        %4783 = vmatprep.mubr.bf16.mxu0 0
        %4784 = vmatmul.mubr.bf16.gmra.mxu0 %v4545
        %v4785 = vpop.f32.mrf.mxu0
        %v4786 = vadd.f32 0.0, %v4785
        %v4787 = vpop.f32.mrf.mxu0
        %v4788 = vpop.f32.mrf.mxu0
        %v4789 = vadd.f32 0.0, %v4788
        %v4790 = vpop.f32.mrf.mxu0
        %4791 = vmatprep.mubr.bf16.mxu0 0
        %4792 = vmatmul.mubr.bf16.gmra.mxu0 %v4546
        %v4793 = vpop.f32.mrf.mxu0
        %v4794 = vadd.f32 0.0, %v4793
        %v4795 = vpop.f32.mrf.mxu0
        %v4796 = vpop.f32.mrf.mxu0
        %v4797 = vadd.f32 0.0, %v4796
        %v4798 = vpop.f32.mrf.mxu0
        %4799 = vmatprep.mubr.bf16.mxu0 0
        %4800 = vmatmul.mubr.bf16.gmra.mxu0 %v4547
        %v4801 = vpop.f32.mrf.mxu0
        %v4802 = vadd.f32 0.0, %v4801
        %v4803 = vpop.f32.mrf.mxu0
        %v4804 = vpop.f32.mrf.mxu0
        %v4805 = vadd.f32 0.0, %v4804
        %v4806 = vpop.f32.mrf.mxu0
        %4807 = vmatprep.mubr.bf16.mxu0 0
        %4808 = vmatmul.mubr.bf16.gmra.mxu0 %v4548
        %v4809 = vpop.f32.mrf.mxu0
        %v4810 = vadd.f32 0.0, %v4809
        %v4811 = vpop.f32.mrf.mxu0
        %v4812 = vpop.f32.mrf.mxu0
        %v4813 = vadd.f32 0.0, %v4812
        %v4814 = vpop.f32.mrf.mxu0
        %4815 = vmatprep.mubr.bf16.mxu0 0
        %4816 = vmatmul.mubr.bf16.gmra.mxu0 %v4549
        %v4817 = vpop.f32.mrf.mxu0
        %v4818 = vadd.f32 0.0, %v4817
        %v4819 = vpop.f32.mrf.mxu0
        %v4820 = vpop.f32.mrf.mxu0
        %v4821 = vadd.f32 0.0, %v4820
        %v4822 = vpop.f32.mrf.mxu0
        %4823 = vmatprep.mubr.bf16.mxu0 0
        %4824 = vmatmul.mubr.bf16.gmra.mxu0 %v4550
        %v4825 = vpop.f32.mrf.mxu0
        %v4826 = vadd.f32 0.0, %v4825
        %v4827 = vpop.f32.mrf.mxu0
        %v4828 = vpop.f32.mrf.mxu0
        %v4829 = vadd.f32 0.0, %v4828
        %v4830 = vpop.f32.mrf.mxu0
        %4831 = vmatprep.mubr.bf16.mxu0 0
        %4832 = vmatmul.mubr.bf16.gmra.mxu0 %v4551
        %v4833 = vpop.f32.mrf.mxu0
        %v4834 = vadd.f32 0.0, %v4833
        %v4835 = vpop.f32.mrf.mxu0
        %v4836 = vpop.f32.mrf.mxu0
        %v4837 = vadd.f32 0.0, %v4836
        %v4838 = vpop.f32.mrf.mxu0
        %4839 = vmatprep.mubr.bf16.mxu0 0
        %4840 = vmatmul.mubr.bf16.gmra.mxu0 %v4552
        %v4841 = vpop.f32.mrf.mxu0
        %v4842 = vadd.f32 0.0, %v4841
        %v4843 = vpop.f32.mrf.mxu0
        %v4844 = vpop.f32.mrf.mxu0
        %v4845 = vadd.f32 0.0, %v4844
        %v4846 = vpop.f32.mrf.mxu0
        %4847 = vmatprep.mubr.bf16.mxu0 0
        %4848 = vmatmul.mubr.bf16.gmra.mxu0 %v4553
        %v4849 = vpop.f32.mrf.mxu0
        %v4850 = vadd.f32 0.0, %v4849
        %v4851 = vpop.f32.mrf.mxu0
        %v4852 = vpop.f32.mrf.mxu0
        %v4853 = vadd.f32 0.0, %v4852
        %v4854 = vpop.f32.mrf.mxu0
        %4855 = vmatprep.mubr.bf16.mxu0 0
        %4856 = vmatmul.mubr.bf16.gmra.mxu0 %v4554
        %v4857 = vpop.f32.mrf.mxu0
        %v4858 = vadd.f32 0.0, %v4857
        %v4859 = vpop.f32.mrf.mxu0
        %v4860 = vpop.f32.mrf.mxu0
        %v4861 = vadd.f32 0.0, %v4860
        %v4862 = vpop.f32.mrf.mxu0
        %4863 = vmatprep.mubr.bf16.mxu0 0
        %4864 = vmatmul.mubr.bf16.gmra.mxu0 %v4555
        %v4865 = vpop.f32.mrf.mxu0
        %v4866 = vadd.f32 0.0, %v4865
        %v4867 = vpop.f32.mrf.mxu0
        %v4868 = vpop.f32.mrf.mxu0
        %v4869 = vadd.f32 0.0, %v4868
        %v4870 = vpop.f32.mrf.mxu0
        %4871 = vmatprep.mubr.bf16.mxu0 0
        %4872 = vmatmul.mubr.bf16.gmra.mxu0 %v4556
        %v4873 = vpop.f32.mrf.mxu0
        %v4874 = vadd.f32 0.0, %v4873
        %v4875 = vpop.f32.mrf.mxu0
        %v4876 = vpop.f32.mrf.mxu0
        %v4877 = vadd.f32 0.0, %v4876
        %v4878 = vpop.f32.mrf.mxu0
        %4879 = vmatprep.mubr.bf16.mxu0 0
        %4880 = vmatmul.mubr.bf16.gmra.mxu0 %v4557
        %v4881 = vpop.f32.mrf.mxu0
        %v4882 = vadd.f32 0.0, %v4881
        %v4883 = vpop.f32.mrf.mxu0
        %v4884 = vpop.f32.mrf.mxu0
        %v4885 = vadd.f32 0.0, %v4884
        %v4886 = vpop.f32.mrf.mxu0
        %4887 = vmatprep.mubr.bf16.mxu0 0
        %4888 = vmatmul.mubr.bf16.gmra.mxu0 %v4558
        %v4889 = vpop.f32.mrf.mxu0
        %v4890 = vadd.f32 0.0, %v4889
        %v4891 = vpop.f32.mrf.mxu0
        %v4892 = vpop.f32.mrf.mxu0
        %v4893 = vadd.f32 0.0, %v4892
        %v4894 = vpop.f32.mrf.mxu0
        %4895 = vmatprep.mubr.bf16.mxu0 0
        %4896 = vmatmul.mubr.bf16.gmra.mxu0 %v4559
        %v4897 = vpop.f32.mrf.mxu0
        %v4898 = vadd.f32 0.0, %v4897
        %v4899 = vpop.f32.mrf.mxu0
        %v4900 = vpop.f32.mrf.mxu0
        %v4901 = vadd.f32 0.0, %v4900
        %v4902 = vpop.f32.mrf.mxu0
        %4903 = vmatprep.mubr.bf16.mxu0 0
        %4904 = vmatmul.mubr.bf16.gmra.mxu0 %v4560
        %v4905 = vpop.f32.mrf.mxu0
        %v4906 = vadd.f32 0.0, %v4905
        %v4907 = vpop.f32.mrf.mxu0
        %v4908 = vpop.f32.mrf.mxu0
        %v4909 = vadd.f32 0.0, %v4908
        %v4910 = vpop.f32.mrf.mxu0
        %4911 = vmatprep.mubr.bf16.mxu0 0
        %4912 = vmatmul.mubr.bf16.gmra.mxu0 %v4561
        %v4913 = vpop.f32.mrf.mxu0
        %v4914 = vadd.f32 0.0, %v4913
        %v4915 = vpop.f32.mrf.mxu0
        %v4916 = vpop.f32.mrf.mxu0
        %v4917 = vadd.f32 0.0, %v4916
        %v4918 = vpop.f32.mrf.mxu0
        %4919 = vmatprep.mubr.bf16.mxu0 0
        %4920 = vmatmul.mubr.bf16.gmra.mxu0 %v4562
        %v4921 = vpop.f32.mrf.mxu0
        %v4922 = vadd.f32 0.0, %v4921
        %v4923 = vpop.f32.mrf.mxu0
        %v4924 = vpop.f32.mrf.mxu0
        %v4925 = vadd.f32 0.0, %v4924
        %v4926 = vpop.f32.mrf.mxu0
        %4927 = vmatprep.mubr.bf16.mxu0 0
        %4928 = vmatmul.mubr.bf16.gmra.mxu0 %v4563
        %v4929 = vpop.f32.mrf.mxu0
        %v4930 = vadd.f32 0.0, %v4929
        %v4931 = vpop.f32.mrf.mxu0
        %v4932 = vpop.f32.mrf.mxu0
        %v4933 = vadd.f32 0.0, %v4932
        %v4934 = vpop.f32.mrf.mxu0
        %4935 = vmatprep.mubr.bf16.mxu0 0
        %4936 = vmatmul.mubr.bf16.gmra.mxu0 %v4564
        %v4937 = vpop.f32.mrf.mxu0
        %v4938 = vadd.f32 0.0, %v4937
        %v4939 = vpop.f32.mrf.mxu0
        %v4940 = vpop.f32.mrf.mxu0
        %v4941 = vadd.f32 0.0, %v4940
        %v4942 = vpop.f32.mrf.mxu0
        %4943 = vmatprep.mubr.bf16.mxu0 0
        %4944 = vmatmul.mubr.bf16.gmra.mxu0 %v4565
        %v4945 = vpop.f32.mrf.mxu0
        %v4946 = vadd.f32 0.0, %v4945
        %v4947 = vpop.f32.mrf.mxu0
        %v4948 = vpop.f32.mrf.mxu0
        %v4949 = vadd.f32 0.0, %v4948
        %v4950 = vpop.f32.mrf.mxu0
        %4951 = vmatprep.mubr.bf16.mxu0 0
        %4952 = vmatmul.mubr.bf16.gmra.mxu0 %v4566
        %v4953 = vpop.f32.mrf.mxu0
        %v4954 = vadd.f32 0.0, %v4953
        %v4955 = vpop.f32.mrf.mxu0
        %v4956 = vpop.f32.mrf.mxu0
        %v4957 = vadd.f32 0.0, %v4956
        %v4958 = vpop.f32.mrf.mxu0
        %4959 = vmatprep.mubr.bf16.mxu0 0
        %4960 = vmatmul.mubr.bf16.gmra.mxu0 %v4567
        %v4961 = vpop.f32.mrf.mxu0
        %v4962 = vadd.f32 0.0, %v4961
        %v4963 = vpop.f32.mrf.mxu0
        %v4964 = vpop.f32.mrf.mxu0
        %v4965 = vadd.f32 0.0, %v4964
        %v4966 = vpop.f32.mrf.mxu0
        %4967 = vmatprep.mubr.bf16.mxu0 0
        %4968 = vmatmul.mubr.bf16.gmra.mxu0 %v4568
        %v4969 = vpop.f32.mrf.mxu0
        %v4970 = vadd.f32 0.0, %v4969
        %v4971 = vpop.f32.mrf.mxu0
        %v4972 = vpop.f32.mrf.mxu0
        %v4973 = vadd.f32 0.0, %v4972
        %v4974 = vpop.f32.mrf.mxu0
        %4975 = vmatprep.mubr.bf16.mxu0 0
        %4976 = vmatmul.mubr.bf16.gmra.mxu0 %v4569
        %v4977 = vpop.f32.mrf.mxu0
        %v4978 = vadd.f32 0.0, %v4977
        %v4979 = vpop.f32.mrf.mxu0
        %v4980 = vpop.f32.mrf.mxu0
        %v4981 = vadd.f32 0.0, %v4980
        %v4982 = vpop.f32.mrf.mxu0
        %4983 = vmatprep.mubr.bf16.mxu0 0
        %4984 = vmatmul.mubr.bf16.gmra.mxu0 %v4570
        %v4985 = vpop.f32.mrf.mxu0
        %v4986 = vadd.f32 0.0, %v4985
        %v4987 = vpop.f32.mrf.mxu0
        %v4988 = vpop.f32.mrf.mxu0
        %v4989 = vadd.f32 0.0, %v4988
        %v4990 = vpop.f32.mrf.mxu0
        %4991 = vmatprep.mubr.bf16.mxu0 0
        %4992 = vmatmul.mubr.bf16.gmra.mxu0 %v4571
        %v4993 = vpop.f32.mrf.mxu0
        %v4994 = vadd.f32 0.0, %v4993
        %v4995 = vpop.f32.mrf.mxu0
        %v4996 = vpop.f32.mrf.mxu0
        %v4997 = vadd.f32 0.0, %v4996
        %v4998 = vpop.f32.mrf.mxu0
        %4999 = vmatprep.mubr.bf16.mxu0 0
        %5000 = vmatmul.mubr.bf16.gmra.mxu0 %v4572
        %v5001 = vpop.f32.mrf.mxu0
        %v5002 = vadd.f32 0.0, %v5001
        %v5003 = vpop.f32.mrf.mxu0
        %v5004 = vpop.f32.mrf.mxu0
        %v5005 = vadd.f32 0.0, %v5004
        %v5006 = vpop.f32.mrf.mxu0
        %5007 = vmatprep.mubr.bf16.mxu0 0
        %5008 = vmatmul.mubr.bf16.gmra.mxu0 %v4573
        %v5009 = vpop.f32.mrf.mxu0
        %v5010 = vadd.f32 0.0, %v5009
        %v5011 = vpop.f32.mrf.mxu0
        %v5012 = vpop.f32.mrf.mxu0
        %v5013 = vadd.f32 0.0, %v5012
        %v5014 = vpop.f32.mrf.mxu0
        %5015 = vmatprep.mubr.bf16.mxu0 0
        %5016 = vmatmul.mubr.bf16.gmra.mxu0 %v4574
        %v5017 = vpop.f32.mrf.mxu0
        %v5018 = vadd.f32 0.0, %v5017
        %v5019 = vpop.f32.mrf.mxu0
        %v5020 = vpop.f32.mrf.mxu0
        %v5021 = vadd.f32 0.0, %v5020
        %v5022 = vpop.f32.mrf.mxu0
        %5023 = vmatprep.mubr.bf16.mxu0 0
        %5024 = vmatmul.mubr.bf16.gmra.mxu0 %v4575
        %v5025 = vpop.f32.mrf.mxu0
        %v5026 = vadd.f32 0.0, %v5025
        %v5027 = vpop.f32.mrf.mxu0
        %v5028 = vpop.f32.mrf.mxu0
        %v5029 = vadd.f32 0.0, %v5028
        %v5030 = vpop.f32.mrf.mxu0
        %5031 = vmatprep.mubr.bf16.mxu0 0
        %5032 = vmatmul.mubr.bf16.gmra.mxu0 %v4576
        %v5033 = vpop.f32.mrf.mxu0
        %v5034 = vadd.f32 0.0, %v5033
        %v5035 = vpop.f32.mrf.mxu0
        %v5036 = vpop.f32.mrf.mxu0
        %v5037 = vadd.f32 0.0, %v5036
        %v5038 = vpop.f32.mrf.mxu0
        %5039 = vmatprep.mubr.bf16.mxu0 0
        %5040 = vmatmul.mubr.bf16.gmra.mxu0 %v4577
        %v5041 = vpop.f32.mrf.mxu0
        %v5042 = vadd.f32 0.0, %v5041
        %v5043 = vpop.f32.mrf.mxu0
        %v5044 = vpop.f32.mrf.mxu0
        %v5045 = vadd.f32 0.0, %v5044
        %v5046 = vpop.f32.mrf.mxu0
        %5047 = vmatprep.mubr.bf16.mxu0 0
        %5048 = vmatmul.mubr.bf16.gmra.mxu0 %v4578
        %v5049 = vpop.f32.mrf.mxu0
        %v5050 = vadd.f32 0.0, %v5049
        %v5051 = vpop.f32.mrf.mxu0
        %v5052 = vpop.f32.mrf.mxu0
        %v5053 = vadd.f32 0.0, %v5052
        %v5054 = vpop.f32.mrf.mxu0
        %5055 = vmatprep.mubr.bf16.mxu0 0
        %5056 = vmatmul.mubr.bf16.gmra.mxu0 %v4579
        %v5057 = vpop.f32.mrf.mxu0
        %v5058 = vadd.f32 0.0, %v5057
        %v5059 = vpop.f32.mrf.mxu0
        %v5060 = vpop.f32.mrf.mxu0
        %v5061 = vadd.f32 0.0, %v5060
        %v5062 = vpop.f32.mrf.mxu0
        %5063 = vmatprep.mubr.bf16.mxu0 0
        %5064 = vmatmul.mubr.bf16.gmra.mxu0 %v4580
        %v5065 = vpop.f32.mrf.mxu0
        %v5066 = vadd.f32 0.0, %v5065
        %v5067 = vpop.f32.mrf.mxu0
        %v5068 = vpop.f32.mrf.mxu0
        %v5069 = vadd.f32 0.0, %v5068
        %v5070 = vpop.f32.mrf.mxu0
        %5071 = vmatprep.mubr.bf16.mxu0 0
        %5072 = vmatmul.mubr.bf16.gmra.mxu0 %v4581
        %v5073 = vpop.f32.mrf.mxu0
        %v5074 = vadd.f32 0.0, %v5073
        %v5075 = vpop.f32.mrf.mxu0
        %v5076 = vpop.f32.mrf.mxu0
        %v5077 = vadd.f32 0.0, %v5076
        %v5078 = vpop.f32.mrf.mxu0
        %5079 = vmatprep.mubr.bf16.mxu0 0
        %5080 = vmatmul.mubr.bf16.gmra.mxu0 %v4582
        %v5081 = vpop.f32.mrf.mxu0
        %v5082 = vadd.f32 0.0, %v5081
        %v5083 = vpop.f32.mrf.mxu0
        %v5084 = vpop.f32.mrf.mxu0
        %v5085 = vadd.f32 0.0, %v5084
        %v5086 = vpop.f32.mrf.mxu0
        %5087 = vmatprep.mubr.bf16.mxu0 0
        %5088 = vmatmul.mubr.bf16.gmra.mxu0 %v4583
        %v5089 = vpop.f32.mrf.mxu0
        %v5090 = vadd.f32 0.0, %v5089
        %v5091 = vpop.f32.mrf.mxu0
        %v5092 = vpop.f32.mrf.mxu0
        %v5093 = vadd.f32 0.0, %v5092
        %v5094 = vpop.f32.mrf.mxu0
        %5095 = vmatprep.mubr.bf16.mxu0 0
        %5096 = vmatmul.mubr.bf16.gmra.mxu0 %v4584
        %v5097 = vpop.f32.mrf.mxu0
        %v5098 = vadd.f32 0.0, %v5097
        %v5099 = vpop.f32.mrf.mxu0
        %v5100 = vpop.f32.mrf.mxu0
        %v5101 = vadd.f32 0.0, %v5100
        %v5102 = vpop.f32.mrf.mxu0
        %5103 = vmatprep.mubr.bf16.mxu0 0
        %5104 = vmatmul.mubr.bf16.gmra.mxu0 %v4585
        %v5105 = vpop.f32.mrf.mxu0
        %v5106 = vadd.f32 0.0, %v5105
        %v5107 = vpop.f32.mrf.mxu0
        %v5108 = vpop.f32.mrf.mxu0
        %v5109 = vadd.f32 0.0, %v5108
        %v5110 = vpop.f32.mrf.mxu0
        %5111 = vmatprep.mubr.bf16.mxu0 0
        %5112 = vmatmul.mubr.bf16.gmra.mxu0 %v4586
        %v5113 = vpop.f32.mrf.mxu0
        %v5114 = vadd.f32 0.0, %v5113
        %v5115 = vpop.f32.mrf.mxu0
        %v5116 = vpop.f32.mrf.mxu0
        %v5117 = vadd.f32 0.0, %v5116
        %v5118 = vpop.f32.mrf.mxu0
        %5119 = vmatprep.mubr.bf16.mxu0 0
        %5120 = vmatmul.mubr.bf16.gmra.mxu0 %v4587
        %v5121 = vpop.f32.mrf.mxu0
        %v5122 = vadd.f32 0.0, %v5121
        %v5123 = vpop.f32.mrf.mxu0
        %v5124 = vpop.f32.mrf.mxu0
        %v5125 = vadd.f32 0.0, %v5124
        %v5126 = vpop.f32.mrf.mxu0
        %5127 = vmatprep.mubr.bf16.mxu0 0
        %5128 = vmatmul.mubr.bf16.gmra.mxu0 %v4588
        %v5129 = vpop.f32.mrf.mxu0
        %v5130 = vadd.f32 0.0, %v5129
        %v5131 = vpop.f32.mrf.mxu0
        %v5132 = vpop.f32.mrf.mxu0
        %v5133 = vadd.f32 0.0, %v5132
        %v5134 = vpop.f32.mrf.mxu0
        %5135 = vmatprep.mubr.bf16.mxu0 0
        %5136 = vmatmul.mubr.bf16.gmra.mxu0 %v4589
        %v5137 = vpop.f32.mrf.mxu0
        %v5138 = vadd.f32 0.0, %v5137
        %v5139 = vpop.f32.mrf.mxu0
        %v5140 = vpop.f32.mrf.mxu0
        %v5141 = vadd.f32 0.0, %v5140
        %v5142 = vpop.f32.mrf.mxu0
        %5143 = vmatprep.mubr.bf16.mxu0 0
        %5144 = vmatmul.mubr.bf16.gmra.mxu0 %v4590
        %v5145 = vpop.f32.mrf.mxu0
        %v5146 = vadd.f32 0.0, %v5145
        %v5147 = vpop.f32.mrf.mxu0
        %v5148 = vpop.f32.mrf.mxu0
        %v5149 = vadd.f32 0.0, %v5148
        %v5150 = vpop.f32.mrf.mxu0
        %5151 = vmatprep.mubr.bf16.mxu0 0
        %5152 = vmatmul.mubr.bf16.gmra.mxu0 %v4591
        %v5153 = vpop.f32.mrf.mxu0
        %v5154 = vadd.f32 0.0, %v5153
        %v5155 = vpop.f32.mrf.mxu0
        %v5156 = vpop.f32.mrf.mxu0
        %v5157 = vadd.f32 0.0, %v5156
        %v5158 = vpop.f32.mrf.mxu0
        %5159 = vmatprep.mubr.bf16.mxu0 0
        %5160 = vmatmul.mubr.bf16.gmra.mxu0 %v4592
        %v5161 = vpop.f32.mrf.mxu0
        %v5162 = vadd.f32 0.0, %v5161
        %v5163 = vpop.f32.mrf.mxu0
        %v5164 = vpop.f32.mrf.mxu0
        %v5165 = vadd.f32 0.0, %v5164
        %v5166 = vpop.f32.mrf.mxu0
        %5167 = vmatprep.mubr.bf16.mxu0 0
        %5168 = vmatmul.mubr.bf16.gmra.mxu0 %v4593
        %v5169 = vpop.f32.mrf.mxu0
        %v5170 = vadd.f32 0.0, %v5169
        %v5171 = vpop.f32.mrf.mxu0
        %v5172 = vpop.f32.mrf.mxu0
        %v5173 = vadd.f32 0.0, %v5172
        %v5174 = vpop.f32.mrf.mxu0
        %5175 = vmatprep.mubr.bf16.mxu0 0
        %5176 = vmatmul.mubr.bf16.gmra.mxu0 %v4594
        %v5177 = vpop.f32.mrf.mxu0
        %v5178 = vadd.f32 0.0, %v5177
        %v5179 = vpop.f32.mrf.mxu0
        %v5180 = vpop.f32.mrf.mxu0
        %v5181 = vadd.f32 0.0, %v5180
        %v5182 = vpop.f32.mrf.mxu0
        %5183 = vmatprep.mubr.bf16.mxu0 0
        %5184 = vmatmul.mubr.bf16.gmra.mxu0 %v4595
        %v5185 = vpop.f32.mrf.mxu0
        %v5186 = vadd.f32 0.0, %v5185
        %v5187 = vpop.f32.mrf.mxu0
        %v5188 = vpop.f32.mrf.mxu0
        %v5189 = vadd.f32 0.0, %v5188
        %v5190 = vpop.f32.mrf.mxu0
        %5191 = vmatprep.mubr.bf16.mxu0 0
        %5192 = vmatmul.mubr.bf16.gmra.mxu0 %v4596
        %v5193 = vpop.f32.mrf.mxu0
        %v5194 = vadd.f32 0.0, %v5193
        %v5195 = vpop.f32.mrf.mxu0
        %v5196 = vpop.f32.mrf.mxu0
        %v5197 = vadd.f32 0.0, %v5196
        %v5198 = vpop.f32.mrf.mxu0
        %5199 = vmatprep.mubr.bf16.mxu0 0
        %5200 = vmatmul.mubr.bf16.gmra.mxu0 %v4597
        %v5201 = vpop.f32.mrf.mxu0
        %v5202 = vadd.f32 0.0, %v5201
        %v5203 = vpop.f32.mrf.mxu0
        %v5204 = vpop.f32.mrf.mxu0
        %v5205 = vadd.f32 0.0, %v5204
        %v5206 = vpop.f32.mrf.mxu0
        %5207 = vdwg.mxu0
        %v5208 = vadd.f32 %v3607, %v4698
        %v5209 = vadd.f32 %v3610, %v4701
        %v5210 = vadd.f32 %v3615, %v4706
        %v5211 = vadd.f32 %v3618, %v4709
        %v5212 = vadd.f32 %v3623, %v4714
        %v5213 = vadd.f32 %v3626, %v4717
        %v5214 = vadd.f32 %v3631, %v4722
        %v5215 = vadd.f32 %v3634, %v4725
        %v5216 = vadd.f32 %v3639, %v4730
        %v5217 = vadd.f32 %v3642, %v4733
        %v5218 = vadd.f32 %v3647, %v4738
        %v5219 = vadd.f32 %v3650, %v4741
        %v5220 = vadd.f32 %v3655, %v4746
        %v5221 = vadd.f32 %v3658, %v4749
        %v5222 = vadd.f32 %v3663, %v4754
        %v5223 = vadd.f32 %v3666, %v4757
        %v5224 = vadd.f32 %v3671, %v4762
        %v5225 = vadd.f32 %v3674, %v4765
        %v5226 = vadd.f32 %v3679, %v4770
        %v5227 = vadd.f32 %v3682, %v4773
        %v5228 = vadd.f32 %v3687, %v4778
        %v5229 = vadd.f32 %v3690, %v4781
        %v5230 = vadd.f32 %v3695, %v4786
        %v5231 = vadd.f32 %v3698, %v4789
        %v5232 = vadd.f32 %v3703, %v4794
        %v5233 = vadd.f32 %v3706, %v4797
        %v5234 = vadd.f32 %v3711, %v4802
        %v5235 = vadd.f32 %v3714, %v4805
        %v5236 = vadd.f32 %v3719, %v4810
        %v5237 = vadd.f32 %v3722, %v4813
        %v5238 = vadd.f32 %v3727, %v4818
        %v5239 = vadd.f32 %v3730, %v4821
        %v5240 = vadd.f32 %v3735, %v4826
        %v5241 = vadd.f32 %v3738, %v4829
        %v5242 = vadd.f32 %v3743, %v4834
        %v5243 = vadd.f32 %v3746, %v4837
        %v5244 = vadd.f32 %v3751, %v4842
        %v5245 = vadd.f32 %v3754, %v4845
        %v5246 = vadd.f32 %v3759, %v4850
        %v5247 = vadd.f32 %v3762, %v4853
        %v5248 = vadd.f32 %v3767, %v4858
        %v5249 = vadd.f32 %v3770, %v4861
        %v5250 = vadd.f32 %v3775, %v4866
        %v5251 = vadd.f32 %v3778, %v4869
        %v5252 = vadd.f32 %v3783, %v4874
        %v5253 = vadd.f32 %v3786, %v4877
        %v5254 = vadd.f32 %v3791, %v4882
        %v5255 = vadd.f32 %v3794, %v4885
        %v5256 = vadd.f32 %v3799, %v4890
        %v5257 = vadd.f32 %v3802, %v4893
        %v5258 = vadd.f32 %v3807, %v4898
        %v5259 = vadd.f32 %v3810, %v4901
        %v5260 = vadd.f32 %v3815, %v4906
        %v5261 = vadd.f32 %v3818, %v4909
        %v5262 = vadd.f32 %v3823, %v4914
        %v5263 = vadd.f32 %v3826, %v4917
        %v5264 = vadd.f32 %v3831, %v4922
        %v5265 = vadd.f32 %v3834, %v4925
        %v5266 = vadd.f32 %v3839, %v4930
        %v5267 = vadd.f32 %v3842, %v4933
        %v5268 = vadd.f32 %v3847, %v4938
        %v5269 = vadd.f32 %v3850, %v4941
        %v5270 = vadd.f32 %v3855, %v4946
        %v5271 = vadd.f32 %v3858, %v4949
        %v5272 = vadd.f32 %v3863, %v4954
        %v5273 = vadd.f32 %v3866, %v4957
        %v5274 = vadd.f32 %v3871, %v4962
        %v5275 = vadd.f32 %v3874, %v4965
        %v5276 = vadd.f32 %v3879, %v4970
        %v5277 = vadd.f32 %v3882, %v4973
        %v5278 = vadd.f32 %v3887, %v4978
        %v5279 = vadd.f32 %v3890, %v4981
        %v5280 = vadd.f32 %v3895, %v4986
        %v5281 = vadd.f32 %v3898, %v4989
        %v5282 = vadd.f32 %v3903, %v4994
        %v5283 = vadd.f32 %v3906, %v4997
        %v5284 = vadd.f32 %v3911, %v5002
        %v5285 = vadd.f32 %v3914, %v5005
        %v5286 = vadd.f32 %v3919, %v5010
        %v5287 = vadd.f32 %v3922, %v5013
        %v5288 = vadd.f32 %v3927, %v5018
        %v5289 = vadd.f32 %v3930, %v5021
        %v5290 = vadd.f32 %v3935, %v5026
        %v5291 = vadd.f32 %v3938, %v5029
        %v5292 = vadd.f32 %v3943, %v5034
        %v5293 = vadd.f32 %v3946, %v5037
        %v5294 = vadd.f32 %v3951, %v5042
        %v5295 = vadd.f32 %v3954, %v5045
        %v5296 = vadd.f32 %v3959, %v5050
        %v5297 = vadd.f32 %v3962, %v5053
        %v5298 = vadd.f32 %v3967, %v5058
        %v5299 = vadd.f32 %v3970, %v5061
        %v5300 = vadd.f32 %v3975, %v5066
        %v5301 = vadd.f32 %v3978, %v5069
        %v5302 = vadd.f32 %v3983, %v5074
        %v5303 = vadd.f32 %v3986, %v5077
        %v5304 = vadd.f32 %v3991, %v5082
        %v5305 = vadd.f32 %v3994, %v5085
        %v5306 = vadd.f32 %v3999, %v5090
        %v5307 = vadd.f32 %v4002, %v5093
        %v5308 = vadd.f32 %v4007, %v5098
        %v5309 = vadd.f32 %v4010, %v5101
        %v5310 = vadd.f32 %v4015, %v5106
        %v5311 = vadd.f32 %v4018, %v5109
        %v5312 = vadd.f32 %v4023, %v5114
        %v5313 = vadd.f32 %v4026, %v5117
        %v5314 = vadd.f32 %v4031, %v5122
        %v5315 = vadd.f32 %v4034, %v5125
        %v5316 = vadd.f32 %v4039, %v5130
        %v5317 = vadd.f32 %v4042, %v5133
        %v5318 = vadd.f32 %v4047, %v5138
        %v5319 = vadd.f32 %v4050, %v5141
        %v5320 = vadd.f32 %v4055, %v5146
        %v5321 = vadd.f32 %v4058, %v5149
        %v5322 = vadd.f32 %v4063, %v5154
        %v5323 = vadd.f32 %v4066, %v5157
        %v5324 = vadd.f32 %v4071, %v5162
        %v5325 = vadd.f32 %v4074, %v5165
        %v5326 = vadd.f32 %v4079, %v5170
        %v5327 = vadd.f32 %v4082, %v5173
        %v5328 = vadd.f32 %v4087, %v5178
        %v5329 = vadd.f32 %v4090, %v5181
        %v5330 = vadd.f32 %v4095, %v5186
        %v5331 = vadd.f32 %v4098, %v5189
        %v5332 = vadd.f32 %v4103, %v5194
        %v5333 = vadd.f32 %v4106, %v5197
        %v5334 = vadd.f32 %v4111, %v5202
        %v5335 = vadd.f32 %v4114, %v5205
        %v5336 = vpack.c.bf16 %v2184, %v2183
        %v5337 = vpack.c.bf16 %v2186, %v2185
        %s5338 = scalar_lea.vmem [#allocation11], 192
        %v5339 = vld [vmem:[%s5338] sm:$0xf]
        %v5340 = vld [vmem:[%s5338 + $0x4] sm:$0xf]
        %v5341 = vld [vmem:[%s5338 + $0x8] sm:$0xf]
        %v5342 = vld [vmem:[%s5338 + $0xc] sm:$0xf]
        %v5343 = vld [vmem:[%s5338 + $0x10] sm:$0xf]
        %v5344 = vld [vmem:[%s5338 + $0x14] sm:$0xf]
        %v5345 = vld [vmem:[%s5338 + $0x18] sm:$0xf]
        %v5346 = vld [vmem:[%s5338 + $0x1c] sm:$0xf]
        %v5347 = vld [vmem:[%s5338 + $0x20] sm:$0xf]
        %v5348 = vld [vmem:[%s5338 + $0x24] sm:$0xf]
        %v5349 = vld [vmem:[%s5338 + $0x28] sm:$0xf]
        %v5350 = vld [vmem:[%s5338 + $0x2c] sm:$0xf]
        %v5351 = vld [vmem:[%s5338 + $0x30] sm:$0xf]
        %v5352 = vld [vmem:[%s5338 + $0x34] sm:$0xf]
        %v5353 = vld [vmem:[%s5338 + $0x38] sm:$0xf]
        %v5354 = vld [vmem:[%s5338 + $0x3c] sm:$0xf]
        %v5371 = vunpack.c.l.b16 %v5339
        %v5372 = vunpack.c.l.b16 %v5340
        %v5373 = vunpack.c.l.b16 %v5341
        %v5374 = vunpack.c.l.b16 %v5342
        %v5375 = vunpack.c.l.b16 %v5343
        %v5376 = vunpack.c.l.b16 %v5344
        %v5377 = vunpack.c.l.b16 %v5345
        %v5378 = vunpack.c.l.b16 %v5346
        %v5379 = vunpack.c.l.b16 %v5347
        %v5380 = vunpack.c.l.b16 %v5348
        %v5381 = vunpack.c.l.b16 %v5349
        %v5382 = vunpack.c.l.b16 %v5350
        %v5383 = vunpack.c.l.b16 %v5351
        %v5384 = vunpack.c.l.b16 %v5352
        %v5385 = vunpack.c.l.b16 %v5353
        %v5386 = vunpack.c.l.b16 %v5354
        %v5387 = vpack.c.b16 %v5372, %v5371
        %v5388 = vpack.c.b16 %v5374, %v5373
        %v5389 = vpack.c.b16 %v5376, %v5375
        %v5390 = vpack.c.b16 %v5378, %v5377
        %v5391 = vpack.c.b16 %v5380, %v5379
        %v5392 = vpack.c.b16 %v5382, %v5381
        %v5393 = vpack.c.b16 %v5384, %v5383
        %v5394 = vpack.c.b16 %v5386, %v5385
        %5403 = vmatprep.subr.bf16.mxu0 0
        %5404 = vmatpush1.bf16.msra.mxu0 %v5394
        %5405 = vmatprep.subr.bf16.mxu0 0
        %5406 = vmatpush1.bf16.msra.mxu0 %v5393
        %5407 = vmatprep.subr.bf16.mxu0 0
        %5408 = vmatpush1.bf16.msra.mxu0 %v5392
        %5409 = vmatprep.subr.bf16.mxu0 0
        %5410 = vmatpush1.bf16.msra.mxu0 %v5391
        %5411 = vmatprep.subr.bf16.mxu0 0
        %5412 = vmatpush1.bf16.msra.mxu0 %v5390
        %5413 = vmatprep.subr.bf16.mxu0 0
        %5414 = vmatpush1.bf16.msra.mxu0 %v5389
        %5415 = vmatprep.subr.bf16.mxu0 0
        %5416 = vmatpush1.bf16.msra.mxu0 %v5388
        %5417 = vmatprep.subr.bf16.mxu0 0
        %5418 = vmatpush1.bf16.msra.mxu0 %v5387
        %5419 = vmatprep.subr.bf16.mxu0 0
        %5420 = vmatpush2.bf16.msra.mxu0 0
        %5421 = vmatprep.subr.bf16.mxu0 0
        %5422 = vmatpush2.bf16.msra.mxu0 0
        %5423 = vmatprep.subr.bf16.mxu0 0
        %5424 = vmatpush2.bf16.msra.mxu0 0
        %5425 = vmatprep.subr.bf16.mxu0 0
        %5426 = vmatpush2.bf16.msra.mxu0 0
        %5427 = vmatprep.subr.bf16.mxu0 0
        %5428 = vmatpush2.bf16.msra.mxu0 0
        %5429 = vmatprep.subr.bf16.mxu0 0
        %5430 = vmatpush2.bf16.msra.mxu0 0
        %5431 = vmatprep.subr.bf16.mxu0 0
        %5432 = vmatpush2.bf16.msra.mxu0 0
        %5433 = vmatprep.subr.bf16.mxu0 0
        %5434 = vmatpush2.bf16.msra.mxu0 0
        %5435 = vmatprep.mubr.bf16.mxu0 0
        %5436 = vmatmul.mubr.bf16.gmra.mxu0 %v2195
        %v5437 = vpop.f32.mrf.mxu0
        %v5438 = vadd.f32 0.0, %v5437
        %v5439 = vpop.f32.mrf.mxu0
        %v5440 = vpop.f32.mrf.mxu0
        %v5441 = vadd.f32 0.0, %v5440
        %v5442 = vpop.f32.mrf.mxu0
        %5443 = vmatprep.mubr.bf16.mxu0 0
        %5444 = vmatmul.mubr.bf16.gmra.mxu0 %v2196
        %v5445 = vpop.f32.mrf.mxu0
        %v5446 = vadd.f32 0.0, %v5445
        %v5447 = vpop.f32.mrf.mxu0
        %v5448 = vpop.f32.mrf.mxu0
        %v5449 = vadd.f32 0.0, %v5448
        %v5450 = vpop.f32.mrf.mxu0
        %5451 = vmatprep.mubr.bf16.mxu0 0
        %5452 = vmatmul.mubr.bf16.gmra.mxu0 %v2197
        %v5453 = vpop.f32.mrf.mxu0
        %v5454 = vadd.f32 0.0, %v5453
        %v5455 = vpop.f32.mrf.mxu0
        %v5456 = vpop.f32.mrf.mxu0
        %v5457 = vadd.f32 0.0, %v5456
        %v5458 = vpop.f32.mrf.mxu0
        %5459 = vmatprep.mubr.bf16.mxu0 0
        %5460 = vmatmul.mubr.bf16.gmra.mxu0 %v2198
        %v5461 = vpop.f32.mrf.mxu0
        %v5462 = vadd.f32 0.0, %v5461
        %v5463 = vpop.f32.mrf.mxu0
        %v5464 = vpop.f32.mrf.mxu0
        %v5465 = vadd.f32 0.0, %v5464
        %v5466 = vpop.f32.mrf.mxu0
        %5467 = vmatprep.mubr.bf16.mxu0 0
        %5468 = vmatmul.mubr.bf16.gmra.mxu0 %v2199
        %v5469 = vpop.f32.mrf.mxu0
        %v5470 = vadd.f32 0.0, %v5469
        %v5471 = vpop.f32.mrf.mxu0
        %v5472 = vpop.f32.mrf.mxu0
        %v5473 = vadd.f32 0.0, %v5472
        %v5474 = vpop.f32.mrf.mxu0
        %5475 = vmatprep.mubr.bf16.mxu0 0
        %5476 = vmatmul.mubr.bf16.gmra.mxu0 %v2200
        %v5477 = vpop.f32.mrf.mxu0
        %v5478 = vadd.f32 0.0, %v5477
        %v5479 = vpop.f32.mrf.mxu0
        %v5480 = vpop.f32.mrf.mxu0
        %v5481 = vadd.f32 0.0, %v5480
        %v5482 = vpop.f32.mrf.mxu0
        %5483 = vmatprep.mubr.bf16.mxu0 0
        %5484 = vmatmul.mubr.bf16.gmra.mxu0 %v2201
        %v5485 = vpop.f32.mrf.mxu0
        %v5486 = vadd.f32 0.0, %v5485
        %v5487 = vpop.f32.mrf.mxu0
        %v5488 = vpop.f32.mrf.mxu0
        %v5489 = vadd.f32 0.0, %v5488
        %v5490 = vpop.f32.mrf.mxu0
        %5491 = vmatprep.mubr.bf16.mxu0 0
        %5492 = vmatmul.mubr.bf16.gmra.mxu0 %v2202
        %v5493 = vpop.f32.mrf.mxu0
        %v5494 = vadd.f32 0.0, %v5493
        %v5495 = vpop.f32.mrf.mxu0
        %v5496 = vpop.f32.mrf.mxu0
        %v5497 = vadd.f32 0.0, %v5496
        %v5498 = vpop.f32.mrf.mxu0
        %5499 = vmatprep.mubr.bf16.mxu0 0
        %5500 = vmatmul.mubr.bf16.gmra.mxu0 %v2203
        %v5501 = vpop.f32.mrf.mxu0
        %v5502 = vadd.f32 0.0, %v5501
        %v5503 = vpop.f32.mrf.mxu0
        %v5504 = vpop.f32.mrf.mxu0
        %v5505 = vadd.f32 0.0, %v5504
        %v5506 = vpop.f32.mrf.mxu0
        %5507 = vmatprep.mubr.bf16.mxu0 0
        %5508 = vmatmul.mubr.bf16.gmra.mxu0 %v2204
        %v5509 = vpop.f32.mrf.mxu0
        %v5510 = vadd.f32 0.0, %v5509
        %v5511 = vpop.f32.mrf.mxu0
        %v5512 = vpop.f32.mrf.mxu0
        %v5513 = vadd.f32 0.0, %v5512
        %v5514 = vpop.f32.mrf.mxu0
        %5515 = vmatprep.mubr.bf16.mxu0 0
        %5516 = vmatmul.mubr.bf16.gmra.mxu0 %v2205
        %v5517 = vpop.f32.mrf.mxu0
        %v5518 = vadd.f32 0.0, %v5517
        %v5519 = vpop.f32.mrf.mxu0
        %v5520 = vpop.f32.mrf.mxu0
        %v5521 = vadd.f32 0.0, %v5520
        %v5522 = vpop.f32.mrf.mxu0
        %5523 = vmatprep.mubr.bf16.mxu0 0
        %5524 = vmatmul.mubr.bf16.gmra.mxu0 %v2206
        %v5525 = vpop.f32.mrf.mxu0
        %v5526 = vadd.f32 0.0, %v5525
        %v5527 = vpop.f32.mrf.mxu0
        %v5528 = vpop.f32.mrf.mxu0
        %v5529 = vadd.f32 0.0, %v5528
        %v5530 = vpop.f32.mrf.mxu0
        %5531 = vmatprep.mubr.bf16.mxu0 0
        %5532 = vmatmul.mubr.bf16.gmra.mxu0 %v2207
        %v5533 = vpop.f32.mrf.mxu0
        %v5534 = vadd.f32 0.0, %v5533
        %v5535 = vpop.f32.mrf.mxu0
        %v5536 = vpop.f32.mrf.mxu0
        %v5537 = vadd.f32 0.0, %v5536
        %v5538 = vpop.f32.mrf.mxu0
        %5539 = vmatprep.mubr.bf16.mxu0 0
        %5540 = vmatmul.mubr.bf16.gmra.mxu0 %v2208
        %v5541 = vpop.f32.mrf.mxu0
        %v5542 = vadd.f32 0.0, %v5541
        %v5543 = vpop.f32.mrf.mxu0
        %v5544 = vpop.f32.mrf.mxu0
        %v5545 = vadd.f32 0.0, %v5544
        %v5546 = vpop.f32.mrf.mxu0
        %5547 = vmatprep.mubr.bf16.mxu0 0
        %5548 = vmatmul.mubr.bf16.gmra.mxu0 %v2209
        %v5549 = vpop.f32.mrf.mxu0
        %v5550 = vadd.f32 0.0, %v5549
        %v5551 = vpop.f32.mrf.mxu0
        %v5552 = vpop.f32.mrf.mxu0
        %v5553 = vadd.f32 0.0, %v5552
        %v5554 = vpop.f32.mrf.mxu0
        %5555 = vmatprep.mubr.bf16.mxu0 0
        %5556 = vmatmul.mubr.bf16.gmra.mxu0 %v2210
        %v5557 = vpop.f32.mrf.mxu0
        %v5558 = vadd.f32 0.0, %v5557
        %v5559 = vpop.f32.mrf.mxu0
        %v5560 = vpop.f32.mrf.mxu0
        %v5561 = vadd.f32 0.0, %v5560
        %v5562 = vpop.f32.mrf.mxu0
        %5563 = vmatprep.mubr.bf16.mxu0 0
        %5564 = vmatmul.mubr.bf16.gmra.mxu0 %v2211
        %v5565 = vpop.f32.mrf.mxu0
        %v5566 = vadd.f32 0.0, %v5565
        %v5567 = vpop.f32.mrf.mxu0
        %v5568 = vpop.f32.mrf.mxu0
        %v5569 = vadd.f32 0.0, %v5568
        %v5570 = vpop.f32.mrf.mxu0
        %5571 = vmatprep.mubr.bf16.mxu0 0
        %5572 = vmatmul.mubr.bf16.gmra.mxu0 %v2212
        %v5573 = vpop.f32.mrf.mxu0
        %v5574 = vadd.f32 0.0, %v5573
        %v5575 = vpop.f32.mrf.mxu0
        %v5576 = vpop.f32.mrf.mxu0
        %v5577 = vadd.f32 0.0, %v5576
        %v5578 = vpop.f32.mrf.mxu0
        %5579 = vmatprep.mubr.bf16.mxu0 0
        %5580 = vmatmul.mubr.bf16.gmra.mxu0 %v2213
        %v5581 = vpop.f32.mrf.mxu0
        %v5582 = vadd.f32 0.0, %v5581
        %v5583 = vpop.f32.mrf.mxu0
        %v5584 = vpop.f32.mrf.mxu0
        %v5585 = vadd.f32 0.0, %v5584
        %v5586 = vpop.f32.mrf.mxu0
        %5587 = vmatprep.mubr.bf16.mxu0 0
        %5588 = vmatmul.mubr.bf16.gmra.mxu0 %v2214
        %v5589 = vpop.f32.mrf.mxu0
        %v5590 = vadd.f32 0.0, %v5589
        %v5591 = vpop.f32.mrf.mxu0
        %v5592 = vpop.f32.mrf.mxu0
        %v5593 = vadd.f32 0.0, %v5592
        %v5594 = vpop.f32.mrf.mxu0
        %5595 = vmatprep.mubr.bf16.mxu0 0
        %5596 = vmatmul.mubr.bf16.gmra.mxu0 %v2215
        %v5597 = vpop.f32.mrf.mxu0
        %v5598 = vadd.f32 0.0, %v5597
        %v5599 = vpop.f32.mrf.mxu0
        %v5600 = vpop.f32.mrf.mxu0
        %v5601 = vadd.f32 0.0, %v5600
        %v5602 = vpop.f32.mrf.mxu0
        %5603 = vmatprep.mubr.bf16.mxu0 0
        %5604 = vmatmul.mubr.bf16.gmra.mxu0 %v2216
        %v5605 = vpop.f32.mrf.mxu0
        %v5606 = vadd.f32 0.0, %v5605
        %v5607 = vpop.f32.mrf.mxu0
        %v5608 = vpop.f32.mrf.mxu0
        %v5609 = vadd.f32 0.0, %v5608
        %v5610 = vpop.f32.mrf.mxu0
        %5611 = vmatprep.mubr.bf16.mxu0 0
        %5612 = vmatmul.mubr.bf16.gmra.mxu0 %v2217
        %v5613 = vpop.f32.mrf.mxu0
        %v5614 = vadd.f32 0.0, %v5613
        %v5615 = vpop.f32.mrf.mxu0
        %v5616 = vpop.f32.mrf.mxu0
        %v5617 = vadd.f32 0.0, %v5616
        %v5618 = vpop.f32.mrf.mxu0
        %5619 = vmatprep.mubr.bf16.mxu0 0
        %5620 = vmatmul.mubr.bf16.gmra.mxu0 %v2218
        %v5621 = vpop.f32.mrf.mxu0
        %v5622 = vadd.f32 0.0, %v5621
        %v5623 = vpop.f32.mrf.mxu0
        %v5624 = vpop.f32.mrf.mxu0
        %v5625 = vadd.f32 0.0, %v5624
        %v5626 = vpop.f32.mrf.mxu0
        %5627 = vmatprep.mubr.bf16.mxu0 0
        %5628 = vmatmul.mubr.bf16.gmra.mxu0 %v2219
        %v5629 = vpop.f32.mrf.mxu0
        %v5630 = vadd.f32 0.0, %v5629
        %v5631 = vpop.f32.mrf.mxu0
        %v5632 = vpop.f32.mrf.mxu0
        %v5633 = vadd.f32 0.0, %v5632
        %v5634 = vpop.f32.mrf.mxu0
        %5635 = vmatprep.mubr.bf16.mxu0 0
        %5636 = vmatmul.mubr.bf16.gmra.mxu0 %v2220
        %v5637 = vpop.f32.mrf.mxu0
        %v5638 = vadd.f32 0.0, %v5637
        %v5639 = vpop.f32.mrf.mxu0
        %v5640 = vpop.f32.mrf.mxu0
        %v5641 = vadd.f32 0.0, %v5640
        %v5642 = vpop.f32.mrf.mxu0
        %5643 = vmatprep.mubr.bf16.mxu0 0
        %5644 = vmatmul.mubr.bf16.gmra.mxu0 %v2221
        %v5645 = vpop.f32.mrf.mxu0
        %v5646 = vadd.f32 0.0, %v5645
        %v5647 = vpop.f32.mrf.mxu0
        %v5648 = vpop.f32.mrf.mxu0
        %v5649 = vadd.f32 0.0, %v5648
        %v5650 = vpop.f32.mrf.mxu0
        %5651 = vmatprep.mubr.bf16.mxu0 0
        %5652 = vmatmul.mubr.bf16.gmra.mxu0 %v2222
        %v5653 = vpop.f32.mrf.mxu0
        %v5654 = vadd.f32 0.0, %v5653
        %v5655 = vpop.f32.mrf.mxu0
        %v5656 = vpop.f32.mrf.mxu0
        %v5657 = vadd.f32 0.0, %v5656
        %v5658 = vpop.f32.mrf.mxu0
        %5659 = vmatprep.mubr.bf16.mxu0 0
        %5660 = vmatmul.mubr.bf16.gmra.mxu0 %v2223
        %v5661 = vpop.f32.mrf.mxu0
        %v5662 = vadd.f32 0.0, %v5661
        %v5663 = vpop.f32.mrf.mxu0
        %v5664 = vpop.f32.mrf.mxu0
        %v5665 = vadd.f32 0.0, %v5664
        %v5666 = vpop.f32.mrf.mxu0
        %5667 = vmatprep.mubr.bf16.mxu0 0
        %5668 = vmatmul.mubr.bf16.gmra.mxu0 %v2224
        %v5669 = vpop.f32.mrf.mxu0
        %v5670 = vadd.f32 0.0, %v5669
        %v5671 = vpop.f32.mrf.mxu0
        %v5672 = vpop.f32.mrf.mxu0
        %v5673 = vadd.f32 0.0, %v5672
        %v5674 = vpop.f32.mrf.mxu0
        %5675 = vmatprep.mubr.bf16.mxu0 0
        %5676 = vmatmul.mubr.bf16.gmra.mxu0 %v2225
        %v5677 = vpop.f32.mrf.mxu0
        %v5678 = vadd.f32 0.0, %v5677
        %v5679 = vpop.f32.mrf.mxu0
        %v5680 = vpop.f32.mrf.mxu0
        %v5681 = vadd.f32 0.0, %v5680
        %v5682 = vpop.f32.mrf.mxu0
        %5683 = vmatprep.mubr.bf16.mxu0 0
        %5684 = vmatmul.mubr.bf16.gmra.mxu0 %v2226
        %v5685 = vpop.f32.mrf.mxu0
        %v5686 = vadd.f32 0.0, %v5685
        %v5687 = vpop.f32.mrf.mxu0
        %v5688 = vpop.f32.mrf.mxu0
        %v5689 = vadd.f32 0.0, %v5688
        %v5690 = vpop.f32.mrf.mxu0
        %5691 = vmatprep.mubr.bf16.mxu0 0
        %5692 = vmatmul.mubr.bf16.gmra.mxu0 %v2227
        %v5693 = vpop.f32.mrf.mxu0
        %v5694 = vadd.f32 0.0, %v5693
        %v5695 = vpop.f32.mrf.mxu0
        %v5696 = vpop.f32.mrf.mxu0
        %v5697 = vadd.f32 0.0, %v5696
        %v5698 = vpop.f32.mrf.mxu0
        %5699 = vmatprep.mubr.bf16.mxu0 0
        %5700 = vmatmul.mubr.bf16.gmra.mxu0 %v2228
        %v5701 = vpop.f32.mrf.mxu0
        %v5702 = vadd.f32 0.0, %v5701
        %v5703 = vpop.f32.mrf.mxu0
        %v5704 = vpop.f32.mrf.mxu0
        %v5705 = vadd.f32 0.0, %v5704
        %v5706 = vpop.f32.mrf.mxu0
        %5707 = vmatprep.mubr.bf16.mxu0 0
        %5708 = vmatmul.mubr.bf16.gmra.mxu0 %v2229
        %v5709 = vpop.f32.mrf.mxu0
        %v5710 = vadd.f32 0.0, %v5709
        %v5711 = vpop.f32.mrf.mxu0
        %v5712 = vpop.f32.mrf.mxu0
        %v5713 = vadd.f32 0.0, %v5712
        %v5714 = vpop.f32.mrf.mxu0
        %5715 = vmatprep.mubr.bf16.mxu0 0
        %5716 = vmatmul.mubr.bf16.gmra.mxu0 %v2230
        %v5717 = vpop.f32.mrf.mxu0
        %v5718 = vadd.f32 0.0, %v5717
        %v5719 = vpop.f32.mrf.mxu0
        %v5720 = vpop.f32.mrf.mxu0
        %v5721 = vadd.f32 0.0, %v5720
        %v5722 = vpop.f32.mrf.mxu0
        %5723 = vmatprep.mubr.bf16.mxu0 0
        %5724 = vmatmul.mubr.bf16.gmra.mxu0 %v2231
        %v5725 = vpop.f32.mrf.mxu0
        %v5726 = vadd.f32 0.0, %v5725
        %v5727 = vpop.f32.mrf.mxu0
        %v5728 = vpop.f32.mrf.mxu0
        %v5729 = vadd.f32 0.0, %v5728
        %v5730 = vpop.f32.mrf.mxu0
        %5731 = vmatprep.mubr.bf16.mxu0 0
        %5732 = vmatmul.mubr.bf16.gmra.mxu0 %v2232
        %v5733 = vpop.f32.mrf.mxu0
        %v5734 = vadd.f32 0.0, %v5733
        %v5735 = vpop.f32.mrf.mxu0
        %v5736 = vpop.f32.mrf.mxu0
        %v5737 = vadd.f32 0.0, %v5736
        %v5738 = vpop.f32.mrf.mxu0
        %5739 = vmatprep.mubr.bf16.mxu0 0
        %5740 = vmatmul.mubr.bf16.gmra.mxu0 %v2233
        %v5741 = vpop.f32.mrf.mxu0
        %v5742 = vadd.f32 0.0, %v5741
        %v5743 = vpop.f32.mrf.mxu0
        %v5744 = vpop.f32.mrf.mxu0
        %v5745 = vadd.f32 0.0, %v5744
        %v5746 = vpop.f32.mrf.mxu0
        %5747 = vmatprep.mubr.bf16.mxu0 0
        %5748 = vmatmul.mubr.bf16.gmra.mxu0 %v2234
        %v5749 = vpop.f32.mrf.mxu0
        %v5750 = vadd.f32 0.0, %v5749
        %v5751 = vpop.f32.mrf.mxu0
        %v5752 = vpop.f32.mrf.mxu0
        %v5753 = vadd.f32 0.0, %v5752
        %v5754 = vpop.f32.mrf.mxu0
        %5755 = vmatprep.mubr.bf16.mxu0 0
        %5756 = vmatmul.mubr.bf16.gmra.mxu0 %v2235
        %v5757 = vpop.f32.mrf.mxu0
        %v5758 = vadd.f32 0.0, %v5757
        %v5759 = vpop.f32.mrf.mxu0
        %v5760 = vpop.f32.mrf.mxu0
        %v5761 = vadd.f32 0.0, %v5760
        %v5762 = vpop.f32.mrf.mxu0
        %5763 = vmatprep.mubr.bf16.mxu0 0
        %5764 = vmatmul.mubr.bf16.gmra.mxu0 %v2236
        %v5765 = vpop.f32.mrf.mxu0
        %v5766 = vadd.f32 0.0, %v5765
        %v5767 = vpop.f32.mrf.mxu0
        %v5768 = vpop.f32.mrf.mxu0
        %v5769 = vadd.f32 0.0, %v5768
        %v5770 = vpop.f32.mrf.mxu0
        %5771 = vmatprep.mubr.bf16.mxu0 0
        %5772 = vmatmul.mubr.bf16.gmra.mxu0 %v2237
        %v5773 = vpop.f32.mrf.mxu0
        %v5774 = vadd.f32 0.0, %v5773
        %v5775 = vpop.f32.mrf.mxu0
        %v5776 = vpop.f32.mrf.mxu0
        %v5777 = vadd.f32 0.0, %v5776
        %v5778 = vpop.f32.mrf.mxu0
        %5779 = vmatprep.mubr.bf16.mxu0 0
        %5780 = vmatmul.mubr.bf16.gmra.mxu0 %v2238
        %v5781 = vpop.f32.mrf.mxu0
        %v5782 = vadd.f32 0.0, %v5781
        %v5783 = vpop.f32.mrf.mxu0
        %v5784 = vpop.f32.mrf.mxu0
        %v5785 = vadd.f32 0.0, %v5784
        %v5786 = vpop.f32.mrf.mxu0
        %5787 = vmatprep.mubr.bf16.mxu0 0
        %5788 = vmatmul.mubr.bf16.gmra.mxu0 %v2239
        %v5789 = vpop.f32.mrf.mxu0
        %v5790 = vadd.f32 0.0, %v5789
        %v5791 = vpop.f32.mrf.mxu0
        %v5792 = vpop.f32.mrf.mxu0
        %v5793 = vadd.f32 0.0, %v5792
        %v5794 = vpop.f32.mrf.mxu0
        %5795 = vmatprep.mubr.bf16.mxu0 0
        %5796 = vmatmul.mubr.bf16.gmra.mxu0 %v2240
        %v5797 = vpop.f32.mrf.mxu0
        %v5798 = vadd.f32 0.0, %v5797
        %v5799 = vpop.f32.mrf.mxu0
        %v5800 = vpop.f32.mrf.mxu0
        %v5801 = vadd.f32 0.0, %v5800
        %v5802 = vpop.f32.mrf.mxu0
        %5803 = vmatprep.mubr.bf16.mxu0 0
        %5804 = vmatmul.mubr.bf16.gmra.mxu0 %v2241
        %v5805 = vpop.f32.mrf.mxu0
        %v5806 = vadd.f32 0.0, %v5805
        %v5807 = vpop.f32.mrf.mxu0
        %v5808 = vpop.f32.mrf.mxu0
        %v5809 = vadd.f32 0.0, %v5808
        %v5810 = vpop.f32.mrf.mxu0
        %5811 = vmatprep.mubr.bf16.mxu0 0
        %5812 = vmatmul.mubr.bf16.gmra.mxu0 %v2242
        %v5813 = vpop.f32.mrf.mxu0
        %v5814 = vadd.f32 0.0, %v5813
        %v5815 = vpop.f32.mrf.mxu0
        %v5816 = vpop.f32.mrf.mxu0
        %v5817 = vadd.f32 0.0, %v5816
        %v5818 = vpop.f32.mrf.mxu0
        %5819 = vmatprep.mubr.bf16.mxu0 0
        %5820 = vmatmul.mubr.bf16.gmra.mxu0 %v2243
        %v5821 = vpop.f32.mrf.mxu0
        %v5822 = vadd.f32 0.0, %v5821
        %v5823 = vpop.f32.mrf.mxu0
        %v5824 = vpop.f32.mrf.mxu0
        %v5825 = vadd.f32 0.0, %v5824
        %v5826 = vpop.f32.mrf.mxu0
        %5827 = vmatprep.mubr.bf16.mxu0 0
        %5828 = vmatmul.mubr.bf16.gmra.mxu0 %v2244
        %v5829 = vpop.f32.mrf.mxu0
        %v5830 = vadd.f32 0.0, %v5829
        %v5831 = vpop.f32.mrf.mxu0
        %v5832 = vpop.f32.mrf.mxu0
        %v5833 = vadd.f32 0.0, %v5832
        %v5834 = vpop.f32.mrf.mxu0
        %5835 = vmatprep.mubr.bf16.mxu0 0
        %5836 = vmatmul.mubr.bf16.gmra.mxu0 %v2245
        %v5837 = vpop.f32.mrf.mxu0
        %v5838 = vadd.f32 0.0, %v5837
        %v5839 = vpop.f32.mrf.mxu0
        %v5840 = vpop.f32.mrf.mxu0
        %v5841 = vadd.f32 0.0, %v5840
        %v5842 = vpop.f32.mrf.mxu0
        %5843 = vmatprep.mubr.bf16.mxu0 0
        %5844 = vmatmul.mubr.bf16.gmra.mxu0 %v2246
        %v5845 = vpop.f32.mrf.mxu0
        %v5846 = vadd.f32 0.0, %v5845
        %v5847 = vpop.f32.mrf.mxu0
        %v5848 = vpop.f32.mrf.mxu0
        %v5849 = vadd.f32 0.0, %v5848
        %v5850 = vpop.f32.mrf.mxu0
        %5851 = vmatprep.mubr.bf16.mxu0 0
        %5852 = vmatmul.mubr.bf16.gmra.mxu0 %v2247
        %v5853 = vpop.f32.mrf.mxu0
        %v5854 = vadd.f32 0.0, %v5853
        %v5855 = vpop.f32.mrf.mxu0
        %v5856 = vpop.f32.mrf.mxu0
        %v5857 = vadd.f32 0.0, %v5856
        %v5858 = vpop.f32.mrf.mxu0
        %5859 = vmatprep.mubr.bf16.mxu0 0
        %5860 = vmatmul.mubr.bf16.gmra.mxu0 %v2248
        %v5861 = vpop.f32.mrf.mxu0
        %v5862 = vadd.f32 0.0, %v5861
        %v5863 = vpop.f32.mrf.mxu0
        %v5864 = vpop.f32.mrf.mxu0
        %v5865 = vadd.f32 0.0, %v5864
        %v5866 = vpop.f32.mrf.mxu0
        %5867 = vmatprep.mubr.bf16.mxu0 0
        %5868 = vmatmul.mubr.bf16.gmra.mxu0 %v2249
        %v5869 = vpop.f32.mrf.mxu0
        %v5870 = vadd.f32 0.0, %v5869
        %v5871 = vpop.f32.mrf.mxu0
        %v5872 = vpop.f32.mrf.mxu0
        %v5873 = vadd.f32 0.0, %v5872
        %v5874 = vpop.f32.mrf.mxu0
        %5875 = vmatprep.mubr.bf16.mxu0 0
        %5876 = vmatmul.mubr.bf16.gmra.mxu0 %v2250
        %v5877 = vpop.f32.mrf.mxu0
        %v5878 = vadd.f32 0.0, %v5877
        %v5879 = vpop.f32.mrf.mxu0
        %v5880 = vpop.f32.mrf.mxu0
        %v5881 = vadd.f32 0.0, %v5880
        %v5882 = vpop.f32.mrf.mxu0
        %5883 = vmatprep.mubr.bf16.mxu0 0
        %5884 = vmatmul.mubr.bf16.gmra.mxu0 %v2251
        %v5885 = vpop.f32.mrf.mxu0
        %v5886 = vadd.f32 0.0, %v5885
        %v5887 = vpop.f32.mrf.mxu0
        %v5888 = vpop.f32.mrf.mxu0
        %v5889 = vadd.f32 0.0, %v5888
        %v5890 = vpop.f32.mrf.mxu0
        %5891 = vmatprep.mubr.bf16.mxu0 0
        %5892 = vmatmul.mubr.bf16.gmra.mxu0 %v2252
        %v5893 = vpop.f32.mrf.mxu0
        %v5894 = vadd.f32 0.0, %v5893
        %v5895 = vpop.f32.mrf.mxu0
        %v5896 = vpop.f32.mrf.mxu0
        %v5897 = vadd.f32 0.0, %v5896
        %v5898 = vpop.f32.mrf.mxu0
        %5899 = vmatprep.mubr.bf16.mxu0 0
        %5900 = vmatmul.mubr.bf16.gmra.mxu0 %v2253
        %v5901 = vpop.f32.mrf.mxu0
        %v5902 = vadd.f32 0.0, %v5901
        %v5903 = vpop.f32.mrf.mxu0
        %v5904 = vpop.f32.mrf.mxu0
        %v5905 = vadd.f32 0.0, %v5904
        %v5906 = vpop.f32.mrf.mxu0
        %5907 = vmatprep.mubr.bf16.mxu0 0
        %5908 = vmatmul.mubr.bf16.gmra.mxu0 %v2254
        %v5909 = vpop.f32.mrf.mxu0
        %v5910 = vadd.f32 0.0, %v5909
        %v5911 = vpop.f32.mrf.mxu0
        %v5912 = vpop.f32.mrf.mxu0
        %v5913 = vadd.f32 0.0, %v5912
        %v5914 = vpop.f32.mrf.mxu0
        %5915 = vmatprep.mubr.bf16.mxu0 0
        %5916 = vmatmul.mubr.bf16.gmra.mxu0 %v2255
        %v5917 = vpop.f32.mrf.mxu0
        %v5918 = vadd.f32 0.0, %v5917
        %v5919 = vpop.f32.mrf.mxu0
        %v5920 = vpop.f32.mrf.mxu0
        %v5921 = vadd.f32 0.0, %v5920
        %v5922 = vpop.f32.mrf.mxu0
        %5923 = vmatprep.mubr.bf16.mxu0 0
        %5924 = vmatmul.mubr.bf16.gmra.mxu0 %v2256
        %v5925 = vpop.f32.mrf.mxu0
        %v5926 = vadd.f32 0.0, %v5925
        %v5927 = vpop.f32.mrf.mxu0
        %v5928 = vpop.f32.mrf.mxu0
        %v5929 = vadd.f32 0.0, %v5928
        %v5930 = vpop.f32.mrf.mxu0
        %5931 = vmatprep.mubr.bf16.mxu0 0
        %5932 = vmatmul.mubr.bf16.gmra.mxu0 %v5336
        %v5933 = vpop.f32.mrf.mxu0
        %v5934 = vadd.f32 0.0, %v5933
        %v5935 = vpop.f32.mrf.mxu0
        %v5936 = vpop.f32.mrf.mxu0
        %v5937 = vadd.f32 0.0, %v5936
        %v5938 = vpop.f32.mrf.mxu0
        %5939 = vmatprep.mubr.bf16.mxu0 0
        %5940 = vmatmul.mubr.bf16.gmra.mxu0 %v5337
        %v5941 = vpop.f32.mrf.mxu0
        %v5942 = vadd.f32 0.0, %v5941
        %v5943 = vpop.f32.mrf.mxu0
        %v5944 = vpop.f32.mrf.mxu0
        %v5945 = vadd.f32 0.0, %v5944
        %v5946 = vpop.f32.mrf.mxu0
        %5947 = vdwg.mxu0
        %v5948 = vadd.f32 %v5208, %v5438
        %v5949 = vadd.f32 %v5209, %v5441
        %v5950 = vadd.f32 %v5210, %v5446
        %v5951 = vadd.f32 %v5211, %v5449
        %v5952 = vadd.f32 %v5212, %v5454
        %v5953 = vadd.f32 %v5213, %v5457
        %v5954 = vadd.f32 %v5214, %v5462
        %v5955 = vadd.f32 %v5215, %v5465
        %v5956 = vadd.f32 %v5216, %v5470
        %v5957 = vadd.f32 %v5217, %v5473
        %v5958 = vadd.f32 %v5218, %v5478
        %v5959 = vadd.f32 %v5219, %v5481
        %v5960 = vadd.f32 %v5220, %v5486
        %v5961 = vadd.f32 %v5221, %v5489
        %v5962 = vadd.f32 %v5222, %v5494
        %v5963 = vadd.f32 %v5223, %v5497
        %v5964 = vadd.f32 %v5224, %v5502
        %v5965 = vadd.f32 %v5225, %v5505
        %v5966 = vadd.f32 %v5226, %v5510
        %v5967 = vadd.f32 %v5227, %v5513
        %v5968 = vadd.f32 %v5228, %v5518
        %v5969 = vadd.f32 %v5229, %v5521
        %v5970 = vadd.f32 %v5230, %v5526
        %v5971 = vadd.f32 %v5231, %v5529
        %v5972 = vadd.f32 %v5232, %v5534
        %v5973 = vadd.f32 %v5233, %v5537
        %v5974 = vadd.f32 %v5234, %v5542
        %v5975 = vadd.f32 %v5235, %v5545
        %v5976 = vadd.f32 %v5236, %v5550
        %v5977 = vadd.f32 %v5237, %v5553
        %v5978 = vadd.f32 %v5238, %v5558
        %v5979 = vadd.f32 %v5239, %v5561
        %v5980 = vadd.f32 %v5240, %v5566
        %v5981 = vadd.f32 %v5241, %v5569
        %v5982 = vadd.f32 %v5242, %v5574
        %v5983 = vadd.f32 %v5243, %v5577
        %v5984 = vadd.f32 %v5244, %v5582
        %v5985 = vadd.f32 %v5245, %v5585
        %v5986 = vadd.f32 %v5246, %v5590
        %v5987 = vadd.f32 %v5247, %v5593
        %v5988 = vadd.f32 %v5248, %v5598
        %v5989 = vadd.f32 %v5249, %v5601
        %v5990 = vadd.f32 %v5250, %v5606
        %v5991 = vadd.f32 %v5251, %v5609
        %v5992 = vadd.f32 %v5252, %v5614
        %v5993 = vadd.f32 %v5253, %v5617
        %v5994 = vadd.f32 %v5254, %v5622
        %v5995 = vadd.f32 %v5255, %v5625
        %v5996 = vadd.f32 %v5256, %v5630
        %v5997 = vadd.f32 %v5257, %v5633
        %v5998 = vadd.f32 %v5258, %v5638
        %v5999 = vadd.f32 %v5259, %v5641
        %v6000 = vadd.f32 %v5260, %v5646
        %v6001 = vadd.f32 %v5261, %v5649
        %v6002 = vadd.f32 %v5262, %v5654
        %v6003 = vadd.f32 %v5263, %v5657
        %v6004 = vadd.f32 %v5264, %v5662
        %v6005 = vadd.f32 %v5265, %v5665
        %v6006 = vadd.f32 %v5266, %v5670
        %v6007 = vadd.f32 %v5267, %v5673
        %v6008 = vadd.f32 %v5268, %v5678
        %v6009 = vadd.f32 %v5269, %v5681
        %v6010 = vadd.f32 %v5270, %v5686
        %v6011 = vadd.f32 %v5271, %v5689
        %v6012 = vadd.f32 %v5272, %v5694
        %v6013 = vadd.f32 %v5273, %v5697
        %v6014 = vadd.f32 %v5274, %v5702
        %v6015 = vadd.f32 %v5275, %v5705
        %v6016 = vadd.f32 %v5276, %v5710
        %v6017 = vadd.f32 %v5277, %v5713
        %v6018 = vadd.f32 %v5278, %v5718
        %v6019 = vadd.f32 %v5279, %v5721
        %v6020 = vadd.f32 %v5280, %v5726
        %v6021 = vadd.f32 %v5281, %v5729
        %v6022 = vadd.f32 %v5282, %v5734
        %v6023 = vadd.f32 %v5283, %v5737
        %v6024 = vadd.f32 %v5284, %v5742
        %v6025 = vadd.f32 %v5285, %v5745
        %v6026 = vadd.f32 %v5286, %v5750
        %v6027 = vadd.f32 %v5287, %v5753
        %v6028 = vadd.f32 %v5288, %v5758
        %v6029 = vadd.f32 %v5289, %v5761
        %v6030 = vadd.f32 %v5290, %v5766
        %v6031 = vadd.f32 %v5291, %v5769
        %v6032 = vadd.f32 %v5292, %v5774
        %v6033 = vadd.f32 %v5293, %v5777
        %v6034 = vadd.f32 %v5294, %v5782
        %v6035 = vadd.f32 %v5295, %v5785
        %v6036 = vadd.f32 %v5296, %v5790
        %v6037 = vadd.f32 %v5297, %v5793
        %v6038 = vadd.f32 %v5298, %v5798
        %v6039 = vadd.f32 %v5299, %v5801
        %v6040 = vadd.f32 %v5300, %v5806
        %v6041 = vadd.f32 %v5301, %v5809
        %v6042 = vadd.f32 %v5302, %v5814
        %v6043 = vadd.f32 %v5303, %v5817
        %v6044 = vadd.f32 %v5304, %v5822
        %v6045 = vadd.f32 %v5305, %v5825
        %v6046 = vadd.f32 %v5306, %v5830
        %v6047 = vadd.f32 %v5307, %v5833
        %v6048 = vadd.f32 %v5308, %v5838
        %v6049 = vadd.f32 %v5309, %v5841
        %v6050 = vadd.f32 %v5310, %v5846
        %v6051 = vadd.f32 %v5311, %v5849
        %v6052 = vadd.f32 %v5312, %v5854
        %v6053 = vadd.f32 %v5313, %v5857
        %v6054 = vadd.f32 %v5314, %v5862
        %v6055 = vadd.f32 %v5315, %v5865
        %v6056 = vadd.f32 %v5316, %v5870
        %v6057 = vadd.f32 %v5317, %v5873
        %v6058 = vadd.f32 %v5318, %v5878
        %v6059 = vadd.f32 %v5319, %v5881
        %v6060 = vadd.f32 %v5320, %v5886
        %v6061 = vadd.f32 %v5321, %v5889
        %v6062 = vadd.f32 %v5322, %v5894
        %v6063 = vadd.f32 %v5323, %v5897
        %v6064 = vadd.f32 %v5324, %v5902
        %v6065 = vadd.f32 %v5325, %v5905
        %v6066 = vadd.f32 %v5326, %v5910
        %v6067 = vadd.f32 %v5327, %v5913
        %v6068 = vadd.f32 %v5328, %v5918
        %v6069 = vadd.f32 %v5329, %v5921
        %v6070 = vadd.f32 %v5330, %v5926
        %v6071 = vadd.f32 %v5331, %v5929
        %v6072 = vadd.f32 %v5332, %v5934
        %v6073 = vadd.f32 %v5333, %v5937
        %v6074 = vadd.f32 %v5334, %v5942
        %v6075 = vadd.f32 %v5335, %v5945
        %v6081 = vrot.slane %v2183, 1
        %v6082 = vrot.slane %v2184, 1
        %v6083 = vsel %vm2433, %v6081, %v6082
        %v6084 = vrot.slane %v2185, 1
        %v6085 = vsel %vm2433, %v6082, %v6084
        %v6086 = vrot.slane %v2186, 1
        %v6087 = vsel %vm2433, %v6084, %v6086
        %v6088 = vrot.slane %v2187, 1
        %v6089 = vsel %vm2433, %v6086, %v6088
        %v6094 = vpack.c.bf16 %v6085, %v6083
        %v6095 = vpack.c.bf16 %v6089, %v6087
        %s6096 = scalar_lea.vmem [#allocation11], 256
        %v6097 = vld [vmem:[%s6096] sm:$0xf]
        %v6098 = vld [vmem:[%s6096 + $0x4] sm:$0xf]
        %v6099 = vld [vmem:[%s6096 + $0x8] sm:$0xf]
        %v6100 = vld [vmem:[%s6096 + $0xc] sm:$0xf]
        %v6101 = vld [vmem:[%s6096 + $0x10] sm:$0xf]
        %v6102 = vld [vmem:[%s6096 + $0x14] sm:$0xf]
        %v6103 = vld [vmem:[%s6096 + $0x18] sm:$0xf]
        %v6104 = vld [vmem:[%s6096 + $0x1c] sm:$0xf]
        %v6105 = vld [vmem:[%s6096 + $0x20] sm:$0xf]
        %v6106 = vld [vmem:[%s6096 + $0x24] sm:$0xf]
        %v6107 = vld [vmem:[%s6096 + $0x28] sm:$0xf]
        %v6108 = vld [vmem:[%s6096 + $0x2c] sm:$0xf]
        %v6109 = vld [vmem:[%s6096 + $0x30] sm:$0xf]
        %v6110 = vld [vmem:[%s6096 + $0x34] sm:$0xf]
        %v6111 = vld [vmem:[%s6096 + $0x38] sm:$0xf]
        %v6112 = vld [vmem:[%s6096 + $0x3c] sm:$0xf]
        %v6129 = vunpack.c.l.b16 %v6097
        %v6130 = vunpack.c.l.b16 %v6098
        %v6131 = vunpack.c.l.b16 %v6099
        %v6132 = vunpack.c.l.b16 %v6100
        %v6133 = vunpack.c.l.b16 %v6101
        %v6134 = vunpack.c.l.b16 %v6102
        %v6135 = vunpack.c.l.b16 %v6103
        %v6136 = vunpack.c.l.b16 %v6104
        %v6137 = vunpack.c.l.b16 %v6105
        %v6138 = vunpack.c.l.b16 %v6106
        %v6139 = vunpack.c.l.b16 %v6107
        %v6140 = vunpack.c.l.b16 %v6108
        %v6141 = vunpack.c.l.b16 %v6109
        %v6142 = vunpack.c.l.b16 %v6110
        %v6143 = vunpack.c.l.b16 %v6111
        %v6144 = vunpack.c.l.b16 %v6112
        %v6145 = vpack.c.b16 %v6130, %v6129
        %v6146 = vpack.c.b16 %v6132, %v6131
        %v6147 = vpack.c.b16 %v6134, %v6133
        %v6148 = vpack.c.b16 %v6136, %v6135
        %v6149 = vpack.c.b16 %v6138, %v6137
        %v6150 = vpack.c.b16 %v6140, %v6139
        %v6151 = vpack.c.b16 %v6142, %v6141
        %v6152 = vpack.c.b16 %v6144, %v6143
        %6161 = vmatprep.subr.bf16.mxu0 0
        %6162 = vmatpush1.bf16.msra.mxu0 %v6152
        %6163 = vmatprep.subr.bf16.mxu0 0
        %6164 = vmatpush1.bf16.msra.mxu0 %v6151
        %6165 = vmatprep.subr.bf16.mxu0 0
        %6166 = vmatpush1.bf16.msra.mxu0 %v6150
        %6167 = vmatprep.subr.bf16.mxu0 0
        %6168 = vmatpush1.bf16.msra.mxu0 %v6149
        %6169 = vmatprep.subr.bf16.mxu0 0
        %6170 = vmatpush1.bf16.msra.mxu0 %v6148
        %6171 = vmatprep.subr.bf16.mxu0 0
        %6172 = vmatpush1.bf16.msra.mxu0 %v6147
        %6173 = vmatprep.subr.bf16.mxu0 0
        %6174 = vmatpush1.bf16.msra.mxu0 %v6146
        %6175 = vmatprep.subr.bf16.mxu0 0
        %6176 = vmatpush1.bf16.msra.mxu0 %v6145
        %6177 = vmatprep.subr.bf16.mxu0 0
        %6178 = vmatpush2.bf16.msra.mxu0 0
        %6179 = vmatprep.subr.bf16.mxu0 0
        %6180 = vmatpush2.bf16.msra.mxu0 0
        %6181 = vmatprep.subr.bf16.mxu0 0
        %6182 = vmatpush2.bf16.msra.mxu0 0
        %6183 = vmatprep.subr.bf16.mxu0 0
        %6184 = vmatpush2.bf16.msra.mxu0 0
        %6185 = vmatprep.subr.bf16.mxu0 0
        %6186 = vmatpush2.bf16.msra.mxu0 0
        %6187 = vmatprep.subr.bf16.mxu0 0
        %6188 = vmatpush2.bf16.msra.mxu0 0
        %6189 = vmatprep.subr.bf16.mxu0 0
        %6190 = vmatpush2.bf16.msra.mxu0 0
        %6191 = vmatprep.subr.bf16.mxu0 0
        %6192 = vmatpush2.bf16.msra.mxu0 0
        %6193 = vmatprep.mubr.bf16.mxu0 0
        %6194 = vmatmul.mubr.bf16.gmra.mxu0 %v2852
        %v6195 = vpop.f32.mrf.mxu0
        %v6196 = vadd.f32 0.0, %v6195
        %v6197 = vpop.f32.mrf.mxu0
        %v6198 = vpop.f32.mrf.mxu0
        %v6199 = vadd.f32 0.0, %v6198
        %v6200 = vpop.f32.mrf.mxu0
        %6201 = vmatprep.mubr.bf16.mxu0 0
        %6202 = vmatmul.mubr.bf16.gmra.mxu0 %v2853
        %v6203 = vpop.f32.mrf.mxu0
        %v6204 = vadd.f32 0.0, %v6203
        %v6205 = vpop.f32.mrf.mxu0
        %v6206 = vpop.f32.mrf.mxu0
        %v6207 = vadd.f32 0.0, %v6206
        %v6208 = vpop.f32.mrf.mxu0
        %6209 = vmatprep.mubr.bf16.mxu0 0
        %6210 = vmatmul.mubr.bf16.gmra.mxu0 %v2854
        %v6211 = vpop.f32.mrf.mxu0
        %v6212 = vadd.f32 0.0, %v6211
        %v6213 = vpop.f32.mrf.mxu0
        %v6214 = vpop.f32.mrf.mxu0
        %v6215 = vadd.f32 0.0, %v6214
        %v6216 = vpop.f32.mrf.mxu0
        %6217 = vmatprep.mubr.bf16.mxu0 0
        %6218 = vmatmul.mubr.bf16.gmra.mxu0 %v2855
        %v6219 = vpop.f32.mrf.mxu0
        %v6220 = vadd.f32 0.0, %v6219
        %v6221 = vpop.f32.mrf.mxu0
        %v6222 = vpop.f32.mrf.mxu0
        %v6223 = vadd.f32 0.0, %v6222
        %v6224 = vpop.f32.mrf.mxu0
        %6225 = vmatprep.mubr.bf16.mxu0 0
        %6226 = vmatmul.mubr.bf16.gmra.mxu0 %v2856
        %v6227 = vpop.f32.mrf.mxu0
        %v6228 = vadd.f32 0.0, %v6227
        %v6229 = vpop.f32.mrf.mxu0
        %v6230 = vpop.f32.mrf.mxu0
        %v6231 = vadd.f32 0.0, %v6230
        %v6232 = vpop.f32.mrf.mxu0
        %6233 = vmatprep.mubr.bf16.mxu0 0
        %6234 = vmatmul.mubr.bf16.gmra.mxu0 %v2857
        %v6235 = vpop.f32.mrf.mxu0
        %v6236 = vadd.f32 0.0, %v6235
        %v6237 = vpop.f32.mrf.mxu0
        %v6238 = vpop.f32.mrf.mxu0
        %v6239 = vadd.f32 0.0, %v6238
        %v6240 = vpop.f32.mrf.mxu0
        %6241 = vmatprep.mubr.bf16.mxu0 0
        %6242 = vmatmul.mubr.bf16.gmra.mxu0 %v2858
        %v6243 = vpop.f32.mrf.mxu0
        %v6244 = vadd.f32 0.0, %v6243
        %v6245 = vpop.f32.mrf.mxu0
        %v6246 = vpop.f32.mrf.mxu0
        %v6247 = vadd.f32 0.0, %v6246
        %v6248 = vpop.f32.mrf.mxu0
        %6249 = vmatprep.mubr.bf16.mxu0 0
        %6250 = vmatmul.mubr.bf16.gmra.mxu0 %v2859
        %v6251 = vpop.f32.mrf.mxu0
        %v6252 = vadd.f32 0.0, %v6251
        %v6253 = vpop.f32.mrf.mxu0
        %v6254 = vpop.f32.mrf.mxu0
        %v6255 = vadd.f32 0.0, %v6254
        %v6256 = vpop.f32.mrf.mxu0
        %6257 = vmatprep.mubr.bf16.mxu0 0
        %6258 = vmatmul.mubr.bf16.gmra.mxu0 %v2860
        %v6259 = vpop.f32.mrf.mxu0
        %v6260 = vadd.f32 0.0, %v6259
        %v6261 = vpop.f32.mrf.mxu0
        %v6262 = vpop.f32.mrf.mxu0
        %v6263 = vadd.f32 0.0, %v6262
        %v6264 = vpop.f32.mrf.mxu0
        %6265 = vmatprep.mubr.bf16.mxu0 0
        %6266 = vmatmul.mubr.bf16.gmra.mxu0 %v2861
        %v6267 = vpop.f32.mrf.mxu0
        %v6268 = vadd.f32 0.0, %v6267
        %v6269 = vpop.f32.mrf.mxu0
        %v6270 = vpop.f32.mrf.mxu0
        %v6271 = vadd.f32 0.0, %v6270
        %v6272 = vpop.f32.mrf.mxu0
        %6273 = vmatprep.mubr.bf16.mxu0 0
        %6274 = vmatmul.mubr.bf16.gmra.mxu0 %v2862
        %v6275 = vpop.f32.mrf.mxu0
        %v6276 = vadd.f32 0.0, %v6275
        %v6277 = vpop.f32.mrf.mxu0
        %v6278 = vpop.f32.mrf.mxu0
        %v6279 = vadd.f32 0.0, %v6278
        %v6280 = vpop.f32.mrf.mxu0
        %6281 = vmatprep.mubr.bf16.mxu0 0
        %6282 = vmatmul.mubr.bf16.gmra.mxu0 %v2863
        %v6283 = vpop.f32.mrf.mxu0
        %v6284 = vadd.f32 0.0, %v6283
        %v6285 = vpop.f32.mrf.mxu0
        %v6286 = vpop.f32.mrf.mxu0
        %v6287 = vadd.f32 0.0, %v6286
        %v6288 = vpop.f32.mrf.mxu0
        %6289 = vmatprep.mubr.bf16.mxu0 0
        %6290 = vmatmul.mubr.bf16.gmra.mxu0 %v2864
        %v6291 = vpop.f32.mrf.mxu0
        %v6292 = vadd.f32 0.0, %v6291
        %v6293 = vpop.f32.mrf.mxu0
        %v6294 = vpop.f32.mrf.mxu0
        %v6295 = vadd.f32 0.0, %v6294
        %v6296 = vpop.f32.mrf.mxu0
        %6297 = vmatprep.mubr.bf16.mxu0 0
        %6298 = vmatmul.mubr.bf16.gmra.mxu0 %v2865
        %v6299 = vpop.f32.mrf.mxu0
        %v6300 = vadd.f32 0.0, %v6299
        %v6301 = vpop.f32.mrf.mxu0
        %v6302 = vpop.f32.mrf.mxu0
        %v6303 = vadd.f32 0.0, %v6302
        %v6304 = vpop.f32.mrf.mxu0
        %6305 = vmatprep.mubr.bf16.mxu0 0
        %6306 = vmatmul.mubr.bf16.gmra.mxu0 %v2866
        %v6307 = vpop.f32.mrf.mxu0
        %v6308 = vadd.f32 0.0, %v6307
        %v6309 = vpop.f32.mrf.mxu0
        %v6310 = vpop.f32.mrf.mxu0
        %v6311 = vadd.f32 0.0, %v6310
        %v6312 = vpop.f32.mrf.mxu0
        %6313 = vmatprep.mubr.bf16.mxu0 0
        %6314 = vmatmul.mubr.bf16.gmra.mxu0 %v2867
        %v6315 = vpop.f32.mrf.mxu0
        %v6316 = vadd.f32 0.0, %v6315
        %v6317 = vpop.f32.mrf.mxu0
        %v6318 = vpop.f32.mrf.mxu0
        %v6319 = vadd.f32 0.0, %v6318
        %v6320 = vpop.f32.mrf.mxu0
        %6321 = vmatprep.mubr.bf16.mxu0 0
        %6322 = vmatmul.mubr.bf16.gmra.mxu0 %v2868
        %v6323 = vpop.f32.mrf.mxu0
        %v6324 = vadd.f32 0.0, %v6323
        %v6325 = vpop.f32.mrf.mxu0
        %v6326 = vpop.f32.mrf.mxu0
        %v6327 = vadd.f32 0.0, %v6326
        %v6328 = vpop.f32.mrf.mxu0
        %6329 = vmatprep.mubr.bf16.mxu0 0
        %6330 = vmatmul.mubr.bf16.gmra.mxu0 %v2869
        %v6331 = vpop.f32.mrf.mxu0
        %v6332 = vadd.f32 0.0, %v6331
        %v6333 = vpop.f32.mrf.mxu0
        %v6334 = vpop.f32.mrf.mxu0
        %v6335 = vadd.f32 0.0, %v6334
        %v6336 = vpop.f32.mrf.mxu0
        %6337 = vmatprep.mubr.bf16.mxu0 0
        %6338 = vmatmul.mubr.bf16.gmra.mxu0 %v2870
        %v6339 = vpop.f32.mrf.mxu0
        %v6340 = vadd.f32 0.0, %v6339
        %v6341 = vpop.f32.mrf.mxu0
        %v6342 = vpop.f32.mrf.mxu0
        %v6343 = vadd.f32 0.0, %v6342
        %v6344 = vpop.f32.mrf.mxu0
        %6345 = vmatprep.mubr.bf16.mxu0 0
        %6346 = vmatmul.mubr.bf16.gmra.mxu0 %v2871
        %v6347 = vpop.f32.mrf.mxu0
        %v6348 = vadd.f32 0.0, %v6347
        %v6349 = vpop.f32.mrf.mxu0
        %v6350 = vpop.f32.mrf.mxu0
        %v6351 = vadd.f32 0.0, %v6350
        %v6352 = vpop.f32.mrf.mxu0
        %6353 = vmatprep.mubr.bf16.mxu0 0
        %6354 = vmatmul.mubr.bf16.gmra.mxu0 %v2872
        %v6355 = vpop.f32.mrf.mxu0
        %v6356 = vadd.f32 0.0, %v6355
        %v6357 = vpop.f32.mrf.mxu0
        %v6358 = vpop.f32.mrf.mxu0
        %v6359 = vadd.f32 0.0, %v6358
        %v6360 = vpop.f32.mrf.mxu0
        %6361 = vmatprep.mubr.bf16.mxu0 0
        %6362 = vmatmul.mubr.bf16.gmra.mxu0 %v2873
        %v6363 = vpop.f32.mrf.mxu0
        %v6364 = vadd.f32 0.0, %v6363
        %v6365 = vpop.f32.mrf.mxu0
        %v6366 = vpop.f32.mrf.mxu0
        %v6367 = vadd.f32 0.0, %v6366
        %v6368 = vpop.f32.mrf.mxu0
        %6369 = vmatprep.mubr.bf16.mxu0 0
        %6370 = vmatmul.mubr.bf16.gmra.mxu0 %v2874
        %v6371 = vpop.f32.mrf.mxu0
        %v6372 = vadd.f32 0.0, %v6371
        %v6373 = vpop.f32.mrf.mxu0
        %v6374 = vpop.f32.mrf.mxu0
        %v6375 = vadd.f32 0.0, %v6374
        %v6376 = vpop.f32.mrf.mxu0
        %6377 = vmatprep.mubr.bf16.mxu0 0
        %6378 = vmatmul.mubr.bf16.gmra.mxu0 %v2875
        %v6379 = vpop.f32.mrf.mxu0
        %v6380 = vadd.f32 0.0, %v6379
        %v6381 = vpop.f32.mrf.mxu0
        %v6382 = vpop.f32.mrf.mxu0
        %v6383 = vadd.f32 0.0, %v6382
        %v6384 = vpop.f32.mrf.mxu0
        %6385 = vmatprep.mubr.bf16.mxu0 0
        %6386 = vmatmul.mubr.bf16.gmra.mxu0 %v2876
        %v6387 = vpop.f32.mrf.mxu0
        %v6388 = vadd.f32 0.0, %v6387
        %v6389 = vpop.f32.mrf.mxu0
        %v6390 = vpop.f32.mrf.mxu0
        %v6391 = vadd.f32 0.0, %v6390
        %v6392 = vpop.f32.mrf.mxu0
        %6393 = vmatprep.mubr.bf16.mxu0 0
        %6394 = vmatmul.mubr.bf16.gmra.mxu0 %v2877
        %v6395 = vpop.f32.mrf.mxu0
        %v6396 = vadd.f32 0.0, %v6395
        %v6397 = vpop.f32.mrf.mxu0
        %v6398 = vpop.f32.mrf.mxu0
        %v6399 = vadd.f32 0.0, %v6398
        %v6400 = vpop.f32.mrf.mxu0
        %6401 = vmatprep.mubr.bf16.mxu0 0
        %6402 = vmatmul.mubr.bf16.gmra.mxu0 %v2878
        %v6403 = vpop.f32.mrf.mxu0
        %v6404 = vadd.f32 0.0, %v6403
        %v6405 = vpop.f32.mrf.mxu0
        %v6406 = vpop.f32.mrf.mxu0
        %v6407 = vadd.f32 0.0, %v6406
        %v6408 = vpop.f32.mrf.mxu0
        %6409 = vmatprep.mubr.bf16.mxu0 0
        %6410 = vmatmul.mubr.bf16.gmra.mxu0 %v2879
        %v6411 = vpop.f32.mrf.mxu0
        %v6412 = vadd.f32 0.0, %v6411
        %v6413 = vpop.f32.mrf.mxu0
        %v6414 = vpop.f32.mrf.mxu0
        %v6415 = vadd.f32 0.0, %v6414
        %v6416 = vpop.f32.mrf.mxu0
        %6417 = vmatprep.mubr.bf16.mxu0 0
        %6418 = vmatmul.mubr.bf16.gmra.mxu0 %v2880
        %v6419 = vpop.f32.mrf.mxu0
        %v6420 = vadd.f32 0.0, %v6419
        %v6421 = vpop.f32.mrf.mxu0
        %v6422 = vpop.f32.mrf.mxu0
        %v6423 = vadd.f32 0.0, %v6422
        %v6424 = vpop.f32.mrf.mxu0
        %6425 = vmatprep.mubr.bf16.mxu0 0
        %6426 = vmatmul.mubr.bf16.gmra.mxu0 %v2881
        %v6427 = vpop.f32.mrf.mxu0
        %v6428 = vadd.f32 0.0, %v6427
        %v6429 = vpop.f32.mrf.mxu0
        %v6430 = vpop.f32.mrf.mxu0
        %v6431 = vadd.f32 0.0, %v6430
        %v6432 = vpop.f32.mrf.mxu0
        %6433 = vmatprep.mubr.bf16.mxu0 0
        %6434 = vmatmul.mubr.bf16.gmra.mxu0 %v2882
        %v6435 = vpop.f32.mrf.mxu0
        %v6436 = vadd.f32 0.0, %v6435
        %v6437 = vpop.f32.mrf.mxu0
        %v6438 = vpop.f32.mrf.mxu0
        %v6439 = vadd.f32 0.0, %v6438
        %v6440 = vpop.f32.mrf.mxu0
        %6441 = vmatprep.mubr.bf16.mxu0 0
        %6442 = vmatmul.mubr.bf16.gmra.mxu0 %v2883
        %v6443 = vpop.f32.mrf.mxu0
        %v6444 = vadd.f32 0.0, %v6443
        %v6445 = vpop.f32.mrf.mxu0
        %v6446 = vpop.f32.mrf.mxu0
        %v6447 = vadd.f32 0.0, %v6446
        %v6448 = vpop.f32.mrf.mxu0
        %6449 = vmatprep.mubr.bf16.mxu0 0
        %6450 = vmatmul.mubr.bf16.gmra.mxu0 %v2884
        %v6451 = vpop.f32.mrf.mxu0
        %v6452 = vadd.f32 0.0, %v6451
        %v6453 = vpop.f32.mrf.mxu0
        %v6454 = vpop.f32.mrf.mxu0
        %v6455 = vadd.f32 0.0, %v6454
        %v6456 = vpop.f32.mrf.mxu0
        %6457 = vmatprep.mubr.bf16.mxu0 0
        %6458 = vmatmul.mubr.bf16.gmra.mxu0 %v2885
        %v6459 = vpop.f32.mrf.mxu0
        %v6460 = vadd.f32 0.0, %v6459
        %v6461 = vpop.f32.mrf.mxu0
        %v6462 = vpop.f32.mrf.mxu0
        %v6463 = vadd.f32 0.0, %v6462
        %v6464 = vpop.f32.mrf.mxu0
        %6465 = vmatprep.mubr.bf16.mxu0 0
        %6466 = vmatmul.mubr.bf16.gmra.mxu0 %v2886
        %v6467 = vpop.f32.mrf.mxu0
        %v6468 = vadd.f32 0.0, %v6467
        %v6469 = vpop.f32.mrf.mxu0
        %v6470 = vpop.f32.mrf.mxu0
        %v6471 = vadd.f32 0.0, %v6470
        %v6472 = vpop.f32.mrf.mxu0
        %6473 = vmatprep.mubr.bf16.mxu0 0
        %6474 = vmatmul.mubr.bf16.gmra.mxu0 %v2887
        %v6475 = vpop.f32.mrf.mxu0
        %v6476 = vadd.f32 0.0, %v6475
        %v6477 = vpop.f32.mrf.mxu0
        %v6478 = vpop.f32.mrf.mxu0
        %v6479 = vadd.f32 0.0, %v6478
        %v6480 = vpop.f32.mrf.mxu0
        %6481 = vmatprep.mubr.bf16.mxu0 0
        %6482 = vmatmul.mubr.bf16.gmra.mxu0 %v2888
        %v6483 = vpop.f32.mrf.mxu0
        %v6484 = vadd.f32 0.0, %v6483
        %v6485 = vpop.f32.mrf.mxu0
        %v6486 = vpop.f32.mrf.mxu0
        %v6487 = vadd.f32 0.0, %v6486
        %v6488 = vpop.f32.mrf.mxu0
        %6489 = vmatprep.mubr.bf16.mxu0 0
        %6490 = vmatmul.mubr.bf16.gmra.mxu0 %v2889
        %v6491 = vpop.f32.mrf.mxu0
        %v6492 = vadd.f32 0.0, %v6491
        %v6493 = vpop.f32.mrf.mxu0
        %v6494 = vpop.f32.mrf.mxu0
        %v6495 = vadd.f32 0.0, %v6494
        %v6496 = vpop.f32.mrf.mxu0
        %6497 = vmatprep.mubr.bf16.mxu0 0
        %6498 = vmatmul.mubr.bf16.gmra.mxu0 %v2890
        %v6499 = vpop.f32.mrf.mxu0
        %v6500 = vadd.f32 0.0, %v6499
        %v6501 = vpop.f32.mrf.mxu0
        %v6502 = vpop.f32.mrf.mxu0
        %v6503 = vadd.f32 0.0, %v6502
        %v6504 = vpop.f32.mrf.mxu0
        %6505 = vmatprep.mubr.bf16.mxu0 0
        %6506 = vmatmul.mubr.bf16.gmra.mxu0 %v2891
        %v6507 = vpop.f32.mrf.mxu0
        %v6508 = vadd.f32 0.0, %v6507
        %v6509 = vpop.f32.mrf.mxu0
        %v6510 = vpop.f32.mrf.mxu0
        %v6511 = vadd.f32 0.0, %v6510
        %v6512 = vpop.f32.mrf.mxu0
        %6513 = vmatprep.mubr.bf16.mxu0 0
        %6514 = vmatmul.mubr.bf16.gmra.mxu0 %v2892
        %v6515 = vpop.f32.mrf.mxu0
        %v6516 = vadd.f32 0.0, %v6515
        %v6517 = vpop.f32.mrf.mxu0
        %v6518 = vpop.f32.mrf.mxu0
        %v6519 = vadd.f32 0.0, %v6518
        %v6520 = vpop.f32.mrf.mxu0
        %6521 = vmatprep.mubr.bf16.mxu0 0
        %6522 = vmatmul.mubr.bf16.gmra.mxu0 %v2893
        %v6523 = vpop.f32.mrf.mxu0
        %v6524 = vadd.f32 0.0, %v6523
        %v6525 = vpop.f32.mrf.mxu0
        %v6526 = vpop.f32.mrf.mxu0
        %v6527 = vadd.f32 0.0, %v6526
        %v6528 = vpop.f32.mrf.mxu0
        %6529 = vmatprep.mubr.bf16.mxu0 0
        %6530 = vmatmul.mubr.bf16.gmra.mxu0 %v2894
        %v6531 = vpop.f32.mrf.mxu0
        %v6532 = vadd.f32 0.0, %v6531
        %v6533 = vpop.f32.mrf.mxu0
        %v6534 = vpop.f32.mrf.mxu0
        %v6535 = vadd.f32 0.0, %v6534
        %v6536 = vpop.f32.mrf.mxu0
        %6537 = vmatprep.mubr.bf16.mxu0 0
        %6538 = vmatmul.mubr.bf16.gmra.mxu0 %v2895
        %v6539 = vpop.f32.mrf.mxu0
        %v6540 = vadd.f32 0.0, %v6539
        %v6541 = vpop.f32.mrf.mxu0
        %v6542 = vpop.f32.mrf.mxu0
        %v6543 = vadd.f32 0.0, %v6542
        %v6544 = vpop.f32.mrf.mxu0
        %6545 = vmatprep.mubr.bf16.mxu0 0
        %6546 = vmatmul.mubr.bf16.gmra.mxu0 %v2896
        %v6547 = vpop.f32.mrf.mxu0
        %v6548 = vadd.f32 0.0, %v6547
        %v6549 = vpop.f32.mrf.mxu0
        %v6550 = vpop.f32.mrf.mxu0
        %v6551 = vadd.f32 0.0, %v6550
        %v6552 = vpop.f32.mrf.mxu0
        %6553 = vmatprep.mubr.bf16.mxu0 0
        %6554 = vmatmul.mubr.bf16.gmra.mxu0 %v2897
        %v6555 = vpop.f32.mrf.mxu0
        %v6556 = vadd.f32 0.0, %v6555
        %v6557 = vpop.f32.mrf.mxu0
        %v6558 = vpop.f32.mrf.mxu0
        %v6559 = vadd.f32 0.0, %v6558
        %v6560 = vpop.f32.mrf.mxu0
        %6561 = vmatprep.mubr.bf16.mxu0 0
        %6562 = vmatmul.mubr.bf16.gmra.mxu0 %v2898
        %v6563 = vpop.f32.mrf.mxu0
        %v6564 = vadd.f32 0.0, %v6563
        %v6565 = vpop.f32.mrf.mxu0
        %v6566 = vpop.f32.mrf.mxu0
        %v6567 = vadd.f32 0.0, %v6566
        %v6568 = vpop.f32.mrf.mxu0
        %6569 = vmatprep.mubr.bf16.mxu0 0
        %6570 = vmatmul.mubr.bf16.gmra.mxu0 %v2899
        %v6571 = vpop.f32.mrf.mxu0
        %v6572 = vadd.f32 0.0, %v6571
        %v6573 = vpop.f32.mrf.mxu0
        %v6574 = vpop.f32.mrf.mxu0
        %v6575 = vadd.f32 0.0, %v6574
        %v6576 = vpop.f32.mrf.mxu0
        %6577 = vmatprep.mubr.bf16.mxu0 0
        %6578 = vmatmul.mubr.bf16.gmra.mxu0 %v2900
        %v6579 = vpop.f32.mrf.mxu0
        %v6580 = vadd.f32 0.0, %v6579
        %v6581 = vpop.f32.mrf.mxu0
        %v6582 = vpop.f32.mrf.mxu0
        %v6583 = vadd.f32 0.0, %v6582
        %v6584 = vpop.f32.mrf.mxu0
        %6585 = vmatprep.mubr.bf16.mxu0 0
        %6586 = vmatmul.mubr.bf16.gmra.mxu0 %v2901
        %v6587 = vpop.f32.mrf.mxu0
        %v6588 = vadd.f32 0.0, %v6587
        %v6589 = vpop.f32.mrf.mxu0
        %v6590 = vpop.f32.mrf.mxu0
        %v6591 = vadd.f32 0.0, %v6590
        %v6592 = vpop.f32.mrf.mxu0
        %6593 = vmatprep.mubr.bf16.mxu0 0
        %6594 = vmatmul.mubr.bf16.gmra.mxu0 %v2902
        %v6595 = vpop.f32.mrf.mxu0
        %v6596 = vadd.f32 0.0, %v6595
        %v6597 = vpop.f32.mrf.mxu0
        %v6598 = vpop.f32.mrf.mxu0
        %v6599 = vadd.f32 0.0, %v6598
        %v6600 = vpop.f32.mrf.mxu0
        %6601 = vmatprep.mubr.bf16.mxu0 0
        %6602 = vmatmul.mubr.bf16.gmra.mxu0 %v2903
        %v6603 = vpop.f32.mrf.mxu0
        %v6604 = vadd.f32 0.0, %v6603
        %v6605 = vpop.f32.mrf.mxu0
        %v6606 = vpop.f32.mrf.mxu0
        %v6607 = vadd.f32 0.0, %v6606
        %v6608 = vpop.f32.mrf.mxu0
        %6609 = vmatprep.mubr.bf16.mxu0 0
        %6610 = vmatmul.mubr.bf16.gmra.mxu0 %v2904
        %v6611 = vpop.f32.mrf.mxu0
        %v6612 = vadd.f32 0.0, %v6611
        %v6613 = vpop.f32.mrf.mxu0
        %v6614 = vpop.f32.mrf.mxu0
        %v6615 = vadd.f32 0.0, %v6614
        %v6616 = vpop.f32.mrf.mxu0
        %6617 = vmatprep.mubr.bf16.mxu0 0
        %6618 = vmatmul.mubr.bf16.gmra.mxu0 %v2905
        %v6619 = vpop.f32.mrf.mxu0
        %v6620 = vadd.f32 0.0, %v6619
        %v6621 = vpop.f32.mrf.mxu0
        %v6622 = vpop.f32.mrf.mxu0
        %v6623 = vadd.f32 0.0, %v6622
        %v6624 = vpop.f32.mrf.mxu0
        %6625 = vmatprep.mubr.bf16.mxu0 0
        %6626 = vmatmul.mubr.bf16.gmra.mxu0 %v2906
        %v6627 = vpop.f32.mrf.mxu0
        %v6628 = vadd.f32 0.0, %v6627
        %v6629 = vpop.f32.mrf.mxu0
        %v6630 = vpop.f32.mrf.mxu0
        %v6631 = vadd.f32 0.0, %v6630
        %v6632 = vpop.f32.mrf.mxu0
        %6633 = vmatprep.mubr.bf16.mxu0 0
        %6634 = vmatmul.mubr.bf16.gmra.mxu0 %v2907
        %v6635 = vpop.f32.mrf.mxu0
        %v6636 = vadd.f32 0.0, %v6635
        %v6637 = vpop.f32.mrf.mxu0
        %v6638 = vpop.f32.mrf.mxu0
        %v6639 = vadd.f32 0.0, %v6638
        %v6640 = vpop.f32.mrf.mxu0
        %6641 = vmatprep.mubr.bf16.mxu0 0
        %6642 = vmatmul.mubr.bf16.gmra.mxu0 %v2908
        %v6643 = vpop.f32.mrf.mxu0
        %v6644 = vadd.f32 0.0, %v6643
        %v6645 = vpop.f32.mrf.mxu0
        %v6646 = vpop.f32.mrf.mxu0
        %v6647 = vadd.f32 0.0, %v6646
        %v6648 = vpop.f32.mrf.mxu0
        %6649 = vmatprep.mubr.bf16.mxu0 0
        %6650 = vmatmul.mubr.bf16.gmra.mxu0 %v2909
        %v6651 = vpop.f32.mrf.mxu0
        %v6652 = vadd.f32 0.0, %v6651
        %v6653 = vpop.f32.mrf.mxu0
        %v6654 = vpop.f32.mrf.mxu0
        %v6655 = vadd.f32 0.0, %v6654
        %v6656 = vpop.f32.mrf.mxu0
        %6657 = vmatprep.mubr.bf16.mxu0 0
        %6658 = vmatmul.mubr.bf16.gmra.mxu0 %v2910
        %v6659 = vpop.f32.mrf.mxu0
        %v6660 = vadd.f32 0.0, %v6659
        %v6661 = vpop.f32.mrf.mxu0
        %v6662 = vpop.f32.mrf.mxu0
        %v6663 = vadd.f32 0.0, %v6662
        %v6664 = vpop.f32.mrf.mxu0
        %6665 = vmatprep.mubr.bf16.mxu0 0
        %6666 = vmatmul.mubr.bf16.gmra.mxu0 %v2911
        %v6667 = vpop.f32.mrf.mxu0
        %v6668 = vadd.f32 0.0, %v6667
        %v6669 = vpop.f32.mrf.mxu0
        %v6670 = vpop.f32.mrf.mxu0
        %v6671 = vadd.f32 0.0, %v6670
        %v6672 = vpop.f32.mrf.mxu0
        %6673 = vmatprep.mubr.bf16.mxu0 0
        %6674 = vmatmul.mubr.bf16.gmra.mxu0 %v2912
        %v6675 = vpop.f32.mrf.mxu0
        %v6676 = vadd.f32 0.0, %v6675
        %v6677 = vpop.f32.mrf.mxu0
        %v6678 = vpop.f32.mrf.mxu0
        %v6679 = vadd.f32 0.0, %v6678
        %v6680 = vpop.f32.mrf.mxu0
        %6681 = vmatprep.mubr.bf16.mxu0 0
        %6682 = vmatmul.mubr.bf16.gmra.mxu0 %v2913
        %v6683 = vpop.f32.mrf.mxu0
        %v6684 = vadd.f32 0.0, %v6683
        %v6685 = vpop.f32.mrf.mxu0
        %v6686 = vpop.f32.mrf.mxu0
        %v6687 = vadd.f32 0.0, %v6686
        %v6688 = vpop.f32.mrf.mxu0
        %6689 = vmatprep.mubr.bf16.mxu0 0
        %6690 = vmatmul.mubr.bf16.gmra.mxu0 %v6094
        %v6691 = vpop.f32.mrf.mxu0
        %v6692 = vadd.f32 0.0, %v6691
        %v6693 = vpop.f32.mrf.mxu0
        %v6694 = vpop.f32.mrf.mxu0
        %v6695 = vadd.f32 0.0, %v6694
        %v6696 = vpop.f32.mrf.mxu0
        %6697 = vmatprep.mubr.bf16.mxu0 0
        %6698 = vmatmul.mubr.bf16.gmra.mxu0 %v6095
        %v6699 = vpop.f32.mrf.mxu0
        %v6700 = vadd.f32 0.0, %v6699
        %v6701 = vpop.f32.mrf.mxu0
        %v6702 = vpop.f32.mrf.mxu0
        %v6703 = vadd.f32 0.0, %v6702
        %v6704 = vpop.f32.mrf.mxu0
        %6705 = vdwg.mxu0
        %v6706 = vadd.f32 %v5948, %v6196
        %v6707 = vadd.f32 %v5949, %v6199
        %v6708 = vadd.f32 %v5950, %v6204
        %v6709 = vadd.f32 %v5951, %v6207
        %v6710 = vadd.f32 %v5952, %v6212
        %v6711 = vadd.f32 %v5953, %v6215
        %v6712 = vadd.f32 %v5954, %v6220
        %v6713 = vadd.f32 %v5955, %v6223
        %v6714 = vadd.f32 %v5956, %v6228
        %v6715 = vadd.f32 %v5957, %v6231
        %v6716 = vadd.f32 %v5958, %v6236
        %v6717 = vadd.f32 %v5959, %v6239
        %v6718 = vadd.f32 %v5960, %v6244
        %v6719 = vadd.f32 %v5961, %v6247
        %v6720 = vadd.f32 %v5962, %v6252
        %v6721 = vadd.f32 %v5963, %v6255
        %v6722 = vadd.f32 %v5964, %v6260
        %v6723 = vadd.f32 %v5965, %v6263
        %v6724 = vadd.f32 %v5966, %v6268
        %v6725 = vadd.f32 %v5967, %v6271
        %v6726 = vadd.f32 %v5968, %v6276
        %v6727 = vadd.f32 %v5969, %v6279
        %v6728 = vadd.f32 %v5970, %v6284
        %v6729 = vadd.f32 %v5971, %v6287
        %v6730 = vadd.f32 %v5972, %v6292
        %v6731 = vadd.f32 %v5973, %v6295
        %v6732 = vadd.f32 %v5974, %v6300
        %v6733 = vadd.f32 %v5975, %v6303
        %v6734 = vadd.f32 %v5976, %v6308
        %v6735 = vadd.f32 %v5977, %v6311
        %v6736 = vadd.f32 %v5978, %v6316
        %v6737 = vadd.f32 %v5979, %v6319
        %v6738 = vadd.f32 %v5980, %v6324
        %v6739 = vadd.f32 %v5981, %v6327
        %v6740 = vadd.f32 %v5982, %v6332
        %v6741 = vadd.f32 %v5983, %v6335
        %v6742 = vadd.f32 %v5984, %v6340
        %v6743 = vadd.f32 %v5985, %v6343
        %v6744 = vadd.f32 %v5986, %v6348
        %v6745 = vadd.f32 %v5987, %v6351
        %v6746 = vadd.f32 %v5988, %v6356
        %v6747 = vadd.f32 %v5989, %v6359
        %v6748 = vadd.f32 %v5990, %v6364
        %v6749 = vadd.f32 %v5991, %v6367
        %v6750 = vadd.f32 %v5992, %v6372
        %v6751 = vadd.f32 %v5993, %v6375
        %v6752 = vadd.f32 %v5994, %v6380
        %v6753 = vadd.f32 %v5995, %v6383
        %v6754 = vadd.f32 %v5996, %v6388
        %v6755 = vadd.f32 %v5997, %v6391
        %v6756 = vadd.f32 %v5998, %v6396
        %v6757 = vadd.f32 %v5999, %v6399
        %v6758 = vadd.f32 %v6000, %v6404
        %v6759 = vadd.f32 %v6001, %v6407
        %v6760 = vadd.f32 %v6002, %v6412
        %v6761 = vadd.f32 %v6003, %v6415
        %v6762 = vadd.f32 %v6004, %v6420
        %v6763 = vadd.f32 %v6005, %v6423
        %v6764 = vadd.f32 %v6006, %v6428
        %v6765 = vadd.f32 %v6007, %v6431
        %v6766 = vadd.f32 %v6008, %v6436
        %v6767 = vadd.f32 %v6009, %v6439
        %v6768 = vadd.f32 %v6010, %v6444
        %v6769 = vadd.f32 %v6011, %v6447
        %v6770 = vadd.f32 %v6012, %v6452
        %v6771 = vadd.f32 %v6013, %v6455
        %v6772 = vadd.f32 %v6014, %v6460
        %v6773 = vadd.f32 %v6015, %v6463
        %v6774 = vadd.f32 %v6016, %v6468
        %v6775 = vadd.f32 %v6017, %v6471
        %v6776 = vadd.f32 %v6018, %v6476
        %v6777 = vadd.f32 %v6019, %v6479
        %v6778 = vadd.f32 %v6020, %v6484
        %v6779 = vadd.f32 %v6021, %v6487
        %v6780 = vadd.f32 %v6022, %v6492
        %v6781 = vadd.f32 %v6023, %v6495
        %v6782 = vadd.f32 %v6024, %v6500
        %v6783 = vadd.f32 %v6025, %v6503
        %v6784 = vadd.f32 %v6026, %v6508
        %v6785 = vadd.f32 %v6027, %v6511
        %v6786 = vadd.f32 %v6028, %v6516
        %v6787 = vadd.f32 %v6029, %v6519
        %v6788 = vadd.f32 %v6030, %v6524
        %v6789 = vadd.f32 %v6031, %v6527
        %v6790 = vadd.f32 %v6032, %v6532
        %v6791 = vadd.f32 %v6033, %v6535
        %v6792 = vadd.f32 %v6034, %v6540
        %v6793 = vadd.f32 %v6035, %v6543
        %v6794 = vadd.f32 %v6036, %v6548
        %v6795 = vadd.f32 %v6037, %v6551
        %v6796 = vadd.f32 %v6038, %v6556
        %v6797 = vadd.f32 %v6039, %v6559
        %v6798 = vadd.f32 %v6040, %v6564
        %v6799 = vadd.f32 %v6041, %v6567
        %v6800 = vadd.f32 %v6042, %v6572
        %v6801 = vadd.f32 %v6043, %v6575
        %v6802 = vadd.f32 %v6044, %v6580
        %v6803 = vadd.f32 %v6045, %v6583
        %v6804 = vadd.f32 %v6046, %v6588
        %v6805 = vadd.f32 %v6047, %v6591
        %v6806 = vadd.f32 %v6048, %v6596
        %v6807 = vadd.f32 %v6049, %v6599
        %v6808 = vadd.f32 %v6050, %v6604
        %v6809 = vadd.f32 %v6051, %v6607
        %v6810 = vadd.f32 %v6052, %v6612
        %v6811 = vadd.f32 %v6053, %v6615
        %v6812 = vadd.f32 %v6054, %v6620
        %v6813 = vadd.f32 %v6055, %v6623
        %v6814 = vadd.f32 %v6056, %v6628
        %v6815 = vadd.f32 %v6057, %v6631
        %v6816 = vadd.f32 %v6058, %v6636
        %v6817 = vadd.f32 %v6059, %v6639
        %v6818 = vadd.f32 %v6060, %v6644
        %v6819 = vadd.f32 %v6061, %v6647
        %v6820 = vadd.f32 %v6062, %v6652
        %v6821 = vadd.f32 %v6063, %v6655
        %v6822 = vadd.f32 %v6064, %v6660
        %v6823 = vadd.f32 %v6065, %v6663
        %v6824 = vadd.f32 %v6066, %v6668
        %v6825 = vadd.f32 %v6067, %v6671
        %v6826 = vadd.f32 %v6068, %v6676
        %v6827 = vadd.f32 %v6069, %v6679
        %v6828 = vadd.f32 %v6070, %v6684
        %v6829 = vadd.f32 %v6071, %v6687
        %v6830 = vadd.f32 %v6072, %v6692
        %v6831 = vadd.f32 %v6073, %v6695
        %v6832 = vadd.f32 %v6074, %v6700
        %v6833 = vadd.f32 %v6075, %v6703
        %v6834 = vrot.slane %v2183, 2
        %v6835 = vrot.slane %v2184, 2
        %v6836 = vsel %vm4117, %v6834, %v6835
        %v6837 = vrot.slane %v2185, 2
        %v6838 = vsel %vm4117, %v6835, %v6837
        %v6839 = vrot.slane %v2186, 2
        %v6840 = vsel %vm4117, %v6837, %v6839
        %v6841 = vrot.slane %v2187, 2
        %v6842 = vsel %vm4117, %v6839, %v6841
        %v6847 = vpack.c.bf16 %v6838, %v6836
        %v6848 = vpack.c.bf16 %v6842, %v6840
        %s6849 = scalar_lea.vmem [#allocation11], 320
        %v6850 = vld [vmem:[%s6849] sm:$0xf]
        %v6851 = vld [vmem:[%s6849 + $0x4] sm:$0xf]
        %v6852 = vld [vmem:[%s6849 + $0x8] sm:$0xf]
        %v6853 = vld [vmem:[%s6849 + $0xc] sm:$0xf]
        %v6854 = vld [vmem:[%s6849 + $0x10] sm:$0xf]
        %v6855 = vld [vmem:[%s6849 + $0x14] sm:$0xf]
        %v6856 = vld [vmem:[%s6849 + $0x18] sm:$0xf]
        %v6857 = vld [vmem:[%s6849 + $0x1c] sm:$0xf]
        %v6858 = vld [vmem:[%s6849 + $0x20] sm:$0xf]
        %v6859 = vld [vmem:[%s6849 + $0x24] sm:$0xf]
        %v6860 = vld [vmem:[%s6849 + $0x28] sm:$0xf]
        %v6861 = vld [vmem:[%s6849 + $0x2c] sm:$0xf]
        %v6862 = vld [vmem:[%s6849 + $0x30] sm:$0xf]
        %v6863 = vld [vmem:[%s6849 + $0x34] sm:$0xf]
        %v6864 = vld [vmem:[%s6849 + $0x38] sm:$0xf]
        %v6865 = vld [vmem:[%s6849 + $0x3c] sm:$0xf]
        %v6882 = vunpack.c.l.b16 %v6850
        %v6883 = vunpack.c.l.b16 %v6851
        %v6884 = vunpack.c.l.b16 %v6852
        %v6885 = vunpack.c.l.b16 %v6853
        %v6886 = vunpack.c.l.b16 %v6854
        %v6887 = vunpack.c.l.b16 %v6855
        %v6888 = vunpack.c.l.b16 %v6856
        %v6889 = vunpack.c.l.b16 %v6857
        %v6890 = vunpack.c.l.b16 %v6858
        %v6891 = vunpack.c.l.b16 %v6859
        %v6892 = vunpack.c.l.b16 %v6860
        %v6893 = vunpack.c.l.b16 %v6861
        %v6894 = vunpack.c.l.b16 %v6862
        %v6895 = vunpack.c.l.b16 %v6863
        %v6896 = vunpack.c.l.b16 %v6864
        %v6897 = vunpack.c.l.b16 %v6865
        %v6898 = vpack.c.b16 %v6883, %v6882
        %v6899 = vpack.c.b16 %v6885, %v6884
        %v6900 = vpack.c.b16 %v6887, %v6886
        %v6901 = vpack.c.b16 %v6889, %v6888
        %v6902 = vpack.c.b16 %v6891, %v6890
        %v6903 = vpack.c.b16 %v6893, %v6892
        %v6904 = vpack.c.b16 %v6895, %v6894
        %v6905 = vpack.c.b16 %v6897, %v6896
        %6914 = vmatprep.subr.bf16.mxu0 0
        %6915 = vmatpush1.bf16.msra.mxu0 %v6905
        %6916 = vmatprep.subr.bf16.mxu0 0
        %6917 = vmatpush1.bf16.msra.mxu0 %v6904
        %6918 = vmatprep.subr.bf16.mxu0 0
        %6919 = vmatpush1.bf16.msra.mxu0 %v6903
        %6920 = vmatprep.subr.bf16.mxu0 0
        %6921 = vmatpush1.bf16.msra.mxu0 %v6902
        %6922 = vmatprep.subr.bf16.mxu0 0
        %6923 = vmatpush1.bf16.msra.mxu0 %v6901
        %6924 = vmatprep.subr.bf16.mxu0 0
        %6925 = vmatpush1.bf16.msra.mxu0 %v6900
        %6926 = vmatprep.subr.bf16.mxu0 0
        %6927 = vmatpush1.bf16.msra.mxu0 %v6899
        %6928 = vmatprep.subr.bf16.mxu0 0
        %6929 = vmatpush1.bf16.msra.mxu0 %v6898
        %6930 = vmatprep.subr.bf16.mxu0 0
        %6931 = vmatpush2.bf16.msra.mxu0 0
        %6932 = vmatprep.subr.bf16.mxu0 0
        %6933 = vmatpush2.bf16.msra.mxu0 0
        %6934 = vmatprep.subr.bf16.mxu0 0
        %6935 = vmatpush2.bf16.msra.mxu0 0
        %6936 = vmatprep.subr.bf16.mxu0 0
        %6937 = vmatpush2.bf16.msra.mxu0 0
        %6938 = vmatprep.subr.bf16.mxu0 0
        %6939 = vmatpush2.bf16.msra.mxu0 0
        %6940 = vmatprep.subr.bf16.mxu0 0
        %6941 = vmatpush2.bf16.msra.mxu0 0
        %6942 = vmatprep.subr.bf16.mxu0 0
        %6943 = vmatpush2.bf16.msra.mxu0 0
        %6944 = vmatprep.subr.bf16.mxu0 0
        %6945 = vmatpush2.bf16.msra.mxu0 0
        %6946 = vmatprep.mubr.bf16.mxu0 0
        %6947 = vmatmul.mubr.bf16.gmra.mxu0 %v4536
        %v6948 = vpop.f32.mrf.mxu0
        %v6949 = vadd.f32 0.0, %v6948
        %v6950 = vpop.f32.mrf.mxu0
        %v6951 = vpop.f32.mrf.mxu0
        %v6952 = vadd.f32 0.0, %v6951
        %v6953 = vpop.f32.mrf.mxu0
        %6954 = vmatprep.mubr.bf16.mxu0 0
        %6955 = vmatmul.mubr.bf16.gmra.mxu0 %v4537
        %v6956 = vpop.f32.mrf.mxu0
        %v6957 = vadd.f32 0.0, %v6956
        %v6958 = vpop.f32.mrf.mxu0
        %v6959 = vpop.f32.mrf.mxu0
        %v6960 = vadd.f32 0.0, %v6959
        %v6961 = vpop.f32.mrf.mxu0
        %6962 = vmatprep.mubr.bf16.mxu0 0
        %6963 = vmatmul.mubr.bf16.gmra.mxu0 %v4538
        %v6964 = vpop.f32.mrf.mxu0
        %v6965 = vadd.f32 0.0, %v6964
        %v6966 = vpop.f32.mrf.mxu0
        %v6967 = vpop.f32.mrf.mxu0
        %v6968 = vadd.f32 0.0, %v6967
        %v6969 = vpop.f32.mrf.mxu0
        %6970 = vmatprep.mubr.bf16.mxu0 0
        %6971 = vmatmul.mubr.bf16.gmra.mxu0 %v4539
        %v6972 = vpop.f32.mrf.mxu0
        %v6973 = vadd.f32 0.0, %v6972
        %v6974 = vpop.f32.mrf.mxu0
        %v6975 = vpop.f32.mrf.mxu0
        %v6976 = vadd.f32 0.0, %v6975
        %v6977 = vpop.f32.mrf.mxu0
        %6978 = vmatprep.mubr.bf16.mxu0 0
        %6979 = vmatmul.mubr.bf16.gmra.mxu0 %v4540
        %v6980 = vpop.f32.mrf.mxu0
        %v6981 = vadd.f32 0.0, %v6980
        %v6982 = vpop.f32.mrf.mxu0
        %v6983 = vpop.f32.mrf.mxu0
        %v6984 = vadd.f32 0.0, %v6983
        %v6985 = vpop.f32.mrf.mxu0
        %6986 = vmatprep.mubr.bf16.mxu0 0
        %6987 = vmatmul.mubr.bf16.gmra.mxu0 %v4541
        %v6988 = vpop.f32.mrf.mxu0
        %v6989 = vadd.f32 0.0, %v6988
        %v6990 = vpop.f32.mrf.mxu0
        %v6991 = vpop.f32.mrf.mxu0
        %v6992 = vadd.f32 0.0, %v6991
        %v6993 = vpop.f32.mrf.mxu0
        %6994 = vmatprep.mubr.bf16.mxu0 0
        %6995 = vmatmul.mubr.bf16.gmra.mxu0 %v4542
        %v6996 = vpop.f32.mrf.mxu0
        %v6997 = vadd.f32 0.0, %v6996
        %v6998 = vpop.f32.mrf.mxu0
        %v6999 = vpop.f32.mrf.mxu0
        %v7000 = vadd.f32 0.0, %v6999
        %v7001 = vpop.f32.mrf.mxu0
        %7002 = vmatprep.mubr.bf16.mxu0 0
        %7003 = vmatmul.mubr.bf16.gmra.mxu0 %v4543
        %v7004 = vpop.f32.mrf.mxu0
        %v7005 = vadd.f32 0.0, %v7004
        %v7006 = vpop.f32.mrf.mxu0
        %v7007 = vpop.f32.mrf.mxu0
        %v7008 = vadd.f32 0.0, %v7007
        %v7009 = vpop.f32.mrf.mxu0
        %7010 = vmatprep.mubr.bf16.mxu0 0
        %7011 = vmatmul.mubr.bf16.gmra.mxu0 %v4544
        %v7012 = vpop.f32.mrf.mxu0
        %v7013 = vadd.f32 0.0, %v7012
        %v7014 = vpop.f32.mrf.mxu0
        %v7015 = vpop.f32.mrf.mxu0
        %v7016 = vadd.f32 0.0, %v7015
        %v7017 = vpop.f32.mrf.mxu0
        %7018 = vmatprep.mubr.bf16.mxu0 0
        %7019 = vmatmul.mubr.bf16.gmra.mxu0 %v4545
        %v7020 = vpop.f32.mrf.mxu0
        %v7021 = vadd.f32 0.0, %v7020
        %v7022 = vpop.f32.mrf.mxu0
        %v7023 = vpop.f32.mrf.mxu0
        %v7024 = vadd.f32 0.0, %v7023
        %v7025 = vpop.f32.mrf.mxu0
        %7026 = vmatprep.mubr.bf16.mxu0 0
        %7027 = vmatmul.mubr.bf16.gmra.mxu0 %v4546
        %v7028 = vpop.f32.mrf.mxu0
        %v7029 = vadd.f32 0.0, %v7028
        %v7030 = vpop.f32.mrf.mxu0
        %v7031 = vpop.f32.mrf.mxu0
        %v7032 = vadd.f32 0.0, %v7031
        %v7033 = vpop.f32.mrf.mxu0
        %7034 = vmatprep.mubr.bf16.mxu0 0
        %7035 = vmatmul.mubr.bf16.gmra.mxu0 %v4547
        %v7036 = vpop.f32.mrf.mxu0
        %v7037 = vadd.f32 0.0, %v7036
        %v7038 = vpop.f32.mrf.mxu0
        %v7039 = vpop.f32.mrf.mxu0
        %v7040 = vadd.f32 0.0, %v7039
        %v7041 = vpop.f32.mrf.mxu0
        %7042 = vmatprep.mubr.bf16.mxu0 0
        %7043 = vmatmul.mubr.bf16.gmra.mxu0 %v4548
        %v7044 = vpop.f32.mrf.mxu0
        %v7045 = vadd.f32 0.0, %v7044
        %v7046 = vpop.f32.mrf.mxu0
        %v7047 = vpop.f32.mrf.mxu0
        %v7048 = vadd.f32 0.0, %v7047
        %v7049 = vpop.f32.mrf.mxu0
        %7050 = vmatprep.mubr.bf16.mxu0 0
        %7051 = vmatmul.mubr.bf16.gmra.mxu0 %v4549
        %v7052 = vpop.f32.mrf.mxu0
        %v7053 = vadd.f32 0.0, %v7052
        %v7054 = vpop.f32.mrf.mxu0
        %v7055 = vpop.f32.mrf.mxu0
        %v7056 = vadd.f32 0.0, %v7055
        %v7057 = vpop.f32.mrf.mxu0
        %7058 = vmatprep.mubr.bf16.mxu0 0
        %7059 = vmatmul.mubr.bf16.gmra.mxu0 %v4550
        %v7060 = vpop.f32.mrf.mxu0
        %v7061 = vadd.f32 0.0, %v7060
        %v7062 = vpop.f32.mrf.mxu0
        %v7063 = vpop.f32.mrf.mxu0
        %v7064 = vadd.f32 0.0, %v7063
        %v7065 = vpop.f32.mrf.mxu0
        %7066 = vmatprep.mubr.bf16.mxu0 0
        %7067 = vmatmul.mubr.bf16.gmra.mxu0 %v4551
        %v7068 = vpop.f32.mrf.mxu0
        %v7069 = vadd.f32 0.0, %v7068
        %v7070 = vpop.f32.mrf.mxu0
        %v7071 = vpop.f32.mrf.mxu0
        %v7072 = vadd.f32 0.0, %v7071
        %v7073 = vpop.f32.mrf.mxu0
        %7074 = vmatprep.mubr.bf16.mxu0 0
        %7075 = vmatmul.mubr.bf16.gmra.mxu0 %v4552
        %v7076 = vpop.f32.mrf.mxu0
        %v7077 = vadd.f32 0.0, %v7076
        %v7078 = vpop.f32.mrf.mxu0
        %v7079 = vpop.f32.mrf.mxu0
        %v7080 = vadd.f32 0.0, %v7079
        %v7081 = vpop.f32.mrf.mxu0
        %7082 = vmatprep.mubr.bf16.mxu0 0
        %7083 = vmatmul.mubr.bf16.gmra.mxu0 %v4553
        %v7084 = vpop.f32.mrf.mxu0
        %v7085 = vadd.f32 0.0, %v7084
        %v7086 = vpop.f32.mrf.mxu0
        %v7087 = vpop.f32.mrf.mxu0
        %v7088 = vadd.f32 0.0, %v7087
        %v7089 = vpop.f32.mrf.mxu0
        %7090 = vmatprep.mubr.bf16.mxu0 0
        %7091 = vmatmul.mubr.bf16.gmra.mxu0 %v4554
        %v7092 = vpop.f32.mrf.mxu0
        %v7093 = vadd.f32 0.0, %v7092
        %v7094 = vpop.f32.mrf.mxu0
        %v7095 = vpop.f32.mrf.mxu0
        %v7096 = vadd.f32 0.0, %v7095
        %v7097 = vpop.f32.mrf.mxu0
        %7098 = vmatprep.mubr.bf16.mxu0 0
        %7099 = vmatmul.mubr.bf16.gmra.mxu0 %v4555
        %v7100 = vpop.f32.mrf.mxu0
        %v7101 = vadd.f32 0.0, %v7100
        %v7102 = vpop.f32.mrf.mxu0
        %v7103 = vpop.f32.mrf.mxu0
        %v7104 = vadd.f32 0.0, %v7103
        %v7105 = vpop.f32.mrf.mxu0
        %7106 = vmatprep.mubr.bf16.mxu0 0
        %7107 = vmatmul.mubr.bf16.gmra.mxu0 %v4556
        %v7108 = vpop.f32.mrf.mxu0
        %v7109 = vadd.f32 0.0, %v7108
        %v7110 = vpop.f32.mrf.mxu0
        %v7111 = vpop.f32.mrf.mxu0
        %v7112 = vadd.f32 0.0, %v7111
        %v7113 = vpop.f32.mrf.mxu0
        %7114 = vmatprep.mubr.bf16.mxu0 0
        %7115 = vmatmul.mubr.bf16.gmra.mxu0 %v4557
        %v7116 = vpop.f32.mrf.mxu0
        %v7117 = vadd.f32 0.0, %v7116
        %v7118 = vpop.f32.mrf.mxu0
        %v7119 = vpop.f32.mrf.mxu0
        %v7120 = vadd.f32 0.0, %v7119
        %v7121 = vpop.f32.mrf.mxu0
        %7122 = vmatprep.mubr.bf16.mxu0 0
        %7123 = vmatmul.mubr.bf16.gmra.mxu0 %v4558
        %v7124 = vpop.f32.mrf.mxu0
        %v7125 = vadd.f32 0.0, %v7124
        %v7126 = vpop.f32.mrf.mxu0
        %v7127 = vpop.f32.mrf.mxu0
        %v7128 = vadd.f32 0.0, %v7127
        %v7129 = vpop.f32.mrf.mxu0
        %7130 = vmatprep.mubr.bf16.mxu0 0
        %7131 = vmatmul.mubr.bf16.gmra.mxu0 %v4559
        %v7132 = vpop.f32.mrf.mxu0
        %v7133 = vadd.f32 0.0, %v7132
        %v7134 = vpop.f32.mrf.mxu0
        %v7135 = vpop.f32.mrf.mxu0
        %v7136 = vadd.f32 0.0, %v7135
        %v7137 = vpop.f32.mrf.mxu0
        %7138 = vmatprep.mubr.bf16.mxu0 0
        %7139 = vmatmul.mubr.bf16.gmra.mxu0 %v4560
        %v7140 = vpop.f32.mrf.mxu0
        %v7141 = vadd.f32 0.0, %v7140
        %v7142 = vpop.f32.mrf.mxu0
        %v7143 = vpop.f32.mrf.mxu0
        %v7144 = vadd.f32 0.0, %v7143
        %v7145 = vpop.f32.mrf.mxu0
        %7146 = vmatprep.mubr.bf16.mxu0 0
        %7147 = vmatmul.mubr.bf16.gmra.mxu0 %v4561
        %v7148 = vpop.f32.mrf.mxu0
        %v7149 = vadd.f32 0.0, %v7148
        %v7150 = vpop.f32.mrf.mxu0
        %v7151 = vpop.f32.mrf.mxu0
        %v7152 = vadd.f32 0.0, %v7151
        %v7153 = vpop.f32.mrf.mxu0
        %7154 = vmatprep.mubr.bf16.mxu0 0
        %7155 = vmatmul.mubr.bf16.gmra.mxu0 %v4562
        %v7156 = vpop.f32.mrf.mxu0
        %v7157 = vadd.f32 0.0, %v7156
        %v7158 = vpop.f32.mrf.mxu0
        %v7159 = vpop.f32.mrf.mxu0
        %v7160 = vadd.f32 0.0, %v7159
        %v7161 = vpop.f32.mrf.mxu0
        %7162 = vmatprep.mubr.bf16.mxu0 0
        %7163 = vmatmul.mubr.bf16.gmra.mxu0 %v4563
        %v7164 = vpop.f32.mrf.mxu0
        %v7165 = vadd.f32 0.0, %v7164
        %v7166 = vpop.f32.mrf.mxu0
        %v7167 = vpop.f32.mrf.mxu0
        %v7168 = vadd.f32 0.0, %v7167
        %v7169 = vpop.f32.mrf.mxu0
        %7170 = vmatprep.mubr.bf16.mxu0 0
        %7171 = vmatmul.mubr.bf16.gmra.mxu0 %v4564
        %v7172 = vpop.f32.mrf.mxu0
        %v7173 = vadd.f32 0.0, %v7172
        %v7174 = vpop.f32.mrf.mxu0
        %v7175 = vpop.f32.mrf.mxu0
        %v7176 = vadd.f32 0.0, %v7175
        %v7177 = vpop.f32.mrf.mxu0
        %7178 = vmatprep.mubr.bf16.mxu0 0
        %7179 = vmatmul.mubr.bf16.gmra.mxu0 %v4565
        %v7180 = vpop.f32.mrf.mxu0
        %v7181 = vadd.f32 0.0, %v7180
        %v7182 = vpop.f32.mrf.mxu0
        %v7183 = vpop.f32.mrf.mxu0
        %v7184 = vadd.f32 0.0, %v7183
        %v7185 = vpop.f32.mrf.mxu0
        %7186 = vmatprep.mubr.bf16.mxu0 0
        %7187 = vmatmul.mubr.bf16.gmra.mxu0 %v4566
        %v7188 = vpop.f32.mrf.mxu0
        %v7189 = vadd.f32 0.0, %v7188
        %v7190 = vpop.f32.mrf.mxu0
        %v7191 = vpop.f32.mrf.mxu0
        %v7192 = vadd.f32 0.0, %v7191
        %v7193 = vpop.f32.mrf.mxu0
        %7194 = vmatprep.mubr.bf16.mxu0 0
        %7195 = vmatmul.mubr.bf16.gmra.mxu0 %v4567
        %v7196 = vpop.f32.mrf.mxu0
        %v7197 = vadd.f32 0.0, %v7196
        %v7198 = vpop.f32.mrf.mxu0
        %v7199 = vpop.f32.mrf.mxu0
        %v7200 = vadd.f32 0.0, %v7199
        %v7201 = vpop.f32.mrf.mxu0
        %7202 = vmatprep.mubr.bf16.mxu0 0
        %7203 = vmatmul.mubr.bf16.gmra.mxu0 %v4568
        %v7204 = vpop.f32.mrf.mxu0
        %v7205 = vadd.f32 0.0, %v7204
        %v7206 = vpop.f32.mrf.mxu0
        %v7207 = vpop.f32.mrf.mxu0
        %v7208 = vadd.f32 0.0, %v7207
        %v7209 = vpop.f32.mrf.mxu0
        %7210 = vmatprep.mubr.bf16.mxu0 0
        %7211 = vmatmul.mubr.bf16.gmra.mxu0 %v4569
        %v7212 = vpop.f32.mrf.mxu0
        %v7213 = vadd.f32 0.0, %v7212
        %v7214 = vpop.f32.mrf.mxu0
        %v7215 = vpop.f32.mrf.mxu0
        %v7216 = vadd.f32 0.0, %v7215
        %v7217 = vpop.f32.mrf.mxu0
        %7218 = vmatprep.mubr.bf16.mxu0 0
        %7219 = vmatmul.mubr.bf16.gmra.mxu0 %v4570
        %v7220 = vpop.f32.mrf.mxu0
        %v7221 = vadd.f32 0.0, %v7220
        %v7222 = vpop.f32.mrf.mxu0
        %v7223 = vpop.f32.mrf.mxu0
        %v7224 = vadd.f32 0.0, %v7223
        %v7225 = vpop.f32.mrf.mxu0
        %7226 = vmatprep.mubr.bf16.mxu0 0
        %7227 = vmatmul.mubr.bf16.gmra.mxu0 %v4571
        %v7228 = vpop.f32.mrf.mxu0
        %v7229 = vadd.f32 0.0, %v7228
        %v7230 = vpop.f32.mrf.mxu0
        %v7231 = vpop.f32.mrf.mxu0
        %v7232 = vadd.f32 0.0, %v7231
        %v7233 = vpop.f32.mrf.mxu0
        %7234 = vmatprep.mubr.bf16.mxu0 0
        %7235 = vmatmul.mubr.bf16.gmra.mxu0 %v4572
        %v7236 = vpop.f32.mrf.mxu0
        %v7237 = vadd.f32 0.0, %v7236
        %v7238 = vpop.f32.mrf.mxu0
        %v7239 = vpop.f32.mrf.mxu0
        %v7240 = vadd.f32 0.0, %v7239
        %v7241 = vpop.f32.mrf.mxu0
        %7242 = vmatprep.mubr.bf16.mxu0 0
        %7243 = vmatmul.mubr.bf16.gmra.mxu0 %v4573
        %v7244 = vpop.f32.mrf.mxu0
        %v7245 = vadd.f32 0.0, %v7244
        %v7246 = vpop.f32.mrf.mxu0
        %v7247 = vpop.f32.mrf.mxu0
        %v7248 = vadd.f32 0.0, %v7247
        %v7249 = vpop.f32.mrf.mxu0
        %7250 = vmatprep.mubr.bf16.mxu0 0
        %7251 = vmatmul.mubr.bf16.gmra.mxu0 %v4574
        %v7252 = vpop.f32.mrf.mxu0
        %v7253 = vadd.f32 0.0, %v7252
        %v7254 = vpop.f32.mrf.mxu0
        %v7255 = vpop.f32.mrf.mxu0
        %v7256 = vadd.f32 0.0, %v7255
        %v7257 = vpop.f32.mrf.mxu0
        %7258 = vmatprep.mubr.bf16.mxu0 0
        %7259 = vmatmul.mubr.bf16.gmra.mxu0 %v4575
        %v7260 = vpop.f32.mrf.mxu0
        %v7261 = vadd.f32 0.0, %v7260
        %v7262 = vpop.f32.mrf.mxu0
        %v7263 = vpop.f32.mrf.mxu0
        %v7264 = vadd.f32 0.0, %v7263
        %v7265 = vpop.f32.mrf.mxu0
        %7266 = vmatprep.mubr.bf16.mxu0 0
        %7267 = vmatmul.mubr.bf16.gmra.mxu0 %v4576
        %v7268 = vpop.f32.mrf.mxu0
        %v7269 = vadd.f32 0.0, %v7268
        %v7270 = vpop.f32.mrf.mxu0
        %v7271 = vpop.f32.mrf.mxu0
        %v7272 = vadd.f32 0.0, %v7271
        %v7273 = vpop.f32.mrf.mxu0
        %7274 = vmatprep.mubr.bf16.mxu0 0
        %7275 = vmatmul.mubr.bf16.gmra.mxu0 %v4577
        %v7276 = vpop.f32.mrf.mxu0
        %v7277 = vadd.f32 0.0, %v7276
        %v7278 = vpop.f32.mrf.mxu0
        %v7279 = vpop.f32.mrf.mxu0
        %v7280 = vadd.f32 0.0, %v7279
        %v7281 = vpop.f32.mrf.mxu0
        %7282 = vmatprep.mubr.bf16.mxu0 0
        %7283 = vmatmul.mubr.bf16.gmra.mxu0 %v4578
        %v7284 = vpop.f32.mrf.mxu0
        %v7285 = vadd.f32 0.0, %v7284
        %v7286 = vpop.f32.mrf.mxu0
        %v7287 = vpop.f32.mrf.mxu0
        %v7288 = vadd.f32 0.0, %v7287
        %v7289 = vpop.f32.mrf.mxu0
        %7290 = vmatprep.mubr.bf16.mxu0 0
        %7291 = vmatmul.mubr.bf16.gmra.mxu0 %v4579
        %v7292 = vpop.f32.mrf.mxu0
        %v7293 = vadd.f32 0.0, %v7292
        %v7294 = vpop.f32.mrf.mxu0
        %v7295 = vpop.f32.mrf.mxu0
        %v7296 = vadd.f32 0.0, %v7295
        %v7297 = vpop.f32.mrf.mxu0
        %7298 = vmatprep.mubr.bf16.mxu0 0
        %7299 = vmatmul.mubr.bf16.gmra.mxu0 %v4580
        %v7300 = vpop.f32.mrf.mxu0
        %v7301 = vadd.f32 0.0, %v7300
        %v7302 = vpop.f32.mrf.mxu0
        %v7303 = vpop.f32.mrf.mxu0
        %v7304 = vadd.f32 0.0, %v7303
        %v7305 = vpop.f32.mrf.mxu0
        %7306 = vmatprep.mubr.bf16.mxu0 0
        %7307 = vmatmul.mubr.bf16.gmra.mxu0 %v4581
        %v7308 = vpop.f32.mrf.mxu0
        %v7309 = vadd.f32 0.0, %v7308
        %v7310 = vpop.f32.mrf.mxu0
        %v7311 = vpop.f32.mrf.mxu0
        %v7312 = vadd.f32 0.0, %v7311
        %v7313 = vpop.f32.mrf.mxu0
        %7314 = vmatprep.mubr.bf16.mxu0 0
        %7315 = vmatmul.mubr.bf16.gmra.mxu0 %v4582
        %v7316 = vpop.f32.mrf.mxu0
        %v7317 = vadd.f32 0.0, %v7316
        %v7318 = vpop.f32.mrf.mxu0
        %v7319 = vpop.f32.mrf.mxu0
        %v7320 = vadd.f32 0.0, %v7319
        %v7321 = vpop.f32.mrf.mxu0
        %7322 = vmatprep.mubr.bf16.mxu0 0
        %7323 = vmatmul.mubr.bf16.gmra.mxu0 %v4583
        %v7324 = vpop.f32.mrf.mxu0
        %v7325 = vadd.f32 0.0, %v7324
        %v7326 = vpop.f32.mrf.mxu0
        %v7327 = vpop.f32.mrf.mxu0
        %v7328 = vadd.f32 0.0, %v7327
        %v7329 = vpop.f32.mrf.mxu0
        %7330 = vmatprep.mubr.bf16.mxu0 0
        %7331 = vmatmul.mubr.bf16.gmra.mxu0 %v4584
        %v7332 = vpop.f32.mrf.mxu0
        %v7333 = vadd.f32 0.0, %v7332
        %v7334 = vpop.f32.mrf.mxu0
        %v7335 = vpop.f32.mrf.mxu0
        %v7336 = vadd.f32 0.0, %v7335
        %v7337 = vpop.f32.mrf.mxu0
        %7338 = vmatprep.mubr.bf16.mxu0 0
        %7339 = vmatmul.mubr.bf16.gmra.mxu0 %v4585
        %v7340 = vpop.f32.mrf.mxu0
        %v7341 = vadd.f32 0.0, %v7340
        %v7342 = vpop.f32.mrf.mxu0
        %v7343 = vpop.f32.mrf.mxu0
        %v7344 = vadd.f32 0.0, %v7343
        %v7345 = vpop.f32.mrf.mxu0
        %7346 = vmatprep.mubr.bf16.mxu0 0
        %7347 = vmatmul.mubr.bf16.gmra.mxu0 %v4586
        %v7348 = vpop.f32.mrf.mxu0
        %v7349 = vadd.f32 0.0, %v7348
        %v7350 = vpop.f32.mrf.mxu0
        %v7351 = vpop.f32.mrf.mxu0
        %v7352 = vadd.f32 0.0, %v7351
        %v7353 = vpop.f32.mrf.mxu0
        %7354 = vmatprep.mubr.bf16.mxu0 0
        %7355 = vmatmul.mubr.bf16.gmra.mxu0 %v4587
        %v7356 = vpop.f32.mrf.mxu0
        %v7357 = vadd.f32 0.0, %v7356
        %v7358 = vpop.f32.mrf.mxu0
        %v7359 = vpop.f32.mrf.mxu0
        %v7360 = vadd.f32 0.0, %v7359
        %v7361 = vpop.f32.mrf.mxu0
        %7362 = vmatprep.mubr.bf16.mxu0 0
        %7363 = vmatmul.mubr.bf16.gmra.mxu0 %v4588
        %v7364 = vpop.f32.mrf.mxu0
        %v7365 = vadd.f32 0.0, %v7364
        %v7366 = vpop.f32.mrf.mxu0
        %v7367 = vpop.f32.mrf.mxu0
        %v7368 = vadd.f32 0.0, %v7367
        %v7369 = vpop.f32.mrf.mxu0
        %7370 = vmatprep.mubr.bf16.mxu0 0
        %7371 = vmatmul.mubr.bf16.gmra.mxu0 %v4589
        %v7372 = vpop.f32.mrf.mxu0
        %v7373 = vadd.f32 0.0, %v7372
        %v7374 = vpop.f32.mrf.mxu0
        %v7375 = vpop.f32.mrf.mxu0
        %v7376 = vadd.f32 0.0, %v7375
        %v7377 = vpop.f32.mrf.mxu0
        %7378 = vmatprep.mubr.bf16.mxu0 0
        %7379 = vmatmul.mubr.bf16.gmra.mxu0 %v4590
        %v7380 = vpop.f32.mrf.mxu0
        %v7381 = vadd.f32 0.0, %v7380
        %v7382 = vpop.f32.mrf.mxu0
        %v7383 = vpop.f32.mrf.mxu0
        %v7384 = vadd.f32 0.0, %v7383
        %v7385 = vpop.f32.mrf.mxu0
        %7386 = vmatprep.mubr.bf16.mxu0 0
        %7387 = vmatmul.mubr.bf16.gmra.mxu0 %v4591
        %v7388 = vpop.f32.mrf.mxu0
        %v7389 = vadd.f32 0.0, %v7388
        %v7390 = vpop.f32.mrf.mxu0
        %v7391 = vpop.f32.mrf.mxu0
        %v7392 = vadd.f32 0.0, %v7391
        %v7393 = vpop.f32.mrf.mxu0
        %7394 = vmatprep.mubr.bf16.mxu0 0
        %7395 = vmatmul.mubr.bf16.gmra.mxu0 %v4592
        %v7396 = vpop.f32.mrf.mxu0
        %v7397 = vadd.f32 0.0, %v7396
        %v7398 = vpop.f32.mrf.mxu0
        %v7399 = vpop.f32.mrf.mxu0
        %v7400 = vadd.f32 0.0, %v7399
        %v7401 = vpop.f32.mrf.mxu0
        %7402 = vmatprep.mubr.bf16.mxu0 0
        %7403 = vmatmul.mubr.bf16.gmra.mxu0 %v4593
        %v7404 = vpop.f32.mrf.mxu0
        %v7405 = vadd.f32 0.0, %v7404
        %v7406 = vpop.f32.mrf.mxu0
        %v7407 = vpop.f32.mrf.mxu0
        %v7408 = vadd.f32 0.0, %v7407
        %v7409 = vpop.f32.mrf.mxu0
        %7410 = vmatprep.mubr.bf16.mxu0 0
        %7411 = vmatmul.mubr.bf16.gmra.mxu0 %v4594
        %v7412 = vpop.f32.mrf.mxu0
        %v7413 = vadd.f32 0.0, %v7412
        %v7414 = vpop.f32.mrf.mxu0
        %v7415 = vpop.f32.mrf.mxu0
        %v7416 = vadd.f32 0.0, %v7415
        %v7417 = vpop.f32.mrf.mxu0
        %7418 = vmatprep.mubr.bf16.mxu0 0
        %7419 = vmatmul.mubr.bf16.gmra.mxu0 %v4595
        %v7420 = vpop.f32.mrf.mxu0
        %v7421 = vadd.f32 0.0, %v7420
        %v7422 = vpop.f32.mrf.mxu0
        %v7423 = vpop.f32.mrf.mxu0
        %v7424 = vadd.f32 0.0, %v7423
        %v7425 = vpop.f32.mrf.mxu0
        %7426 = vmatprep.mubr.bf16.mxu0 0
        %7427 = vmatmul.mubr.bf16.gmra.mxu0 %v4596
        %v7428 = vpop.f32.mrf.mxu0
        %v7429 = vadd.f32 0.0, %v7428
        %v7430 = vpop.f32.mrf.mxu0
        %v7431 = vpop.f32.mrf.mxu0
        %v7432 = vadd.f32 0.0, %v7431
        %v7433 = vpop.f32.mrf.mxu0
        %7434 = vmatprep.mubr.bf16.mxu0 0
        %7435 = vmatmul.mubr.bf16.gmra.mxu0 %v4597
        %v7436 = vpop.f32.mrf.mxu0
        %v7437 = vadd.f32 0.0, %v7436
        %v7438 = vpop.f32.mrf.mxu0
        %v7439 = vpop.f32.mrf.mxu0
        %v7440 = vadd.f32 0.0, %v7439
        %v7441 = vpop.f32.mrf.mxu0
        %7442 = vmatprep.mubr.bf16.mxu0 0
        %7443 = vmatmul.mubr.bf16.gmra.mxu0 %v6847
        %v7444 = vpop.f32.mrf.mxu0
        %v7445 = vadd.f32 0.0, %v7444
        %v7446 = vpop.f32.mrf.mxu0
        %v7447 = vpop.f32.mrf.mxu0
        %v7448 = vadd.f32 0.0, %v7447
        %v7449 = vpop.f32.mrf.mxu0
        %7450 = vmatprep.mubr.bf16.mxu0 0
        %7451 = vmatmul.mubr.bf16.gmra.mxu0 %v6848
        %v7452 = vpop.f32.mrf.mxu0
        %v7453 = vadd.f32 0.0, %v7452
        %v7454 = vpop.f32.mrf.mxu0
        %v7455 = vpop.f32.mrf.mxu0
        %v7456 = vadd.f32 0.0, %v7455
        %v7457 = vpop.f32.mrf.mxu0
        %7458 = vdwg.mxu0
        %v7459 = vadd.f32 %v6706, %v6949
        %v7460 = vadd.f32 %v6707, %v6952
        %v7461 = vadd.f32 %v6708, %v6957
        %v7462 = vadd.f32 %v6709, %v6960
        %v7463 = vadd.f32 %v6710, %v6965
        %v7464 = vadd.f32 %v6711, %v6968
        %v7465 = vadd.f32 %v6712, %v6973
        %v7466 = vadd.f32 %v6713, %v6976
        %v7467 = vadd.f32 %v6714, %v6981
        %v7468 = vadd.f32 %v6715, %v6984
        %v7469 = vadd.f32 %v6716, %v6989
        %v7470 = vadd.f32 %v6717, %v6992
        %v7471 = vadd.f32 %v6718, %v6997
        %v7472 = vadd.f32 %v6719, %v7000
        %v7473 = vadd.f32 %v6720, %v7005
        %v7474 = vadd.f32 %v6721, %v7008
        %v7475 = vadd.f32 %v6722, %v7013
        %v7476 = vadd.f32 %v6723, %v7016
        %v7477 = vadd.f32 %v6724, %v7021
        %v7478 = vadd.f32 %v6725, %v7024
        %v7479 = vadd.f32 %v6726, %v7029
        %v7480 = vadd.f32 %v6727, %v7032
        %v7481 = vadd.f32 %v6728, %v7037
        %v7482 = vadd.f32 %v6729, %v7040
        %v7483 = vadd.f32 %v6730, %v7045
        %v7484 = vadd.f32 %v6731, %v7048
        %v7485 = vadd.f32 %v6732, %v7053
        %v7486 = vadd.f32 %v6733, %v7056
        %v7487 = vadd.f32 %v6734, %v7061
        %v7488 = vadd.f32 %v6735, %v7064
        %v7489 = vadd.f32 %v6736, %v7069
        %v7490 = vadd.f32 %v6737, %v7072
        %v7491 = vadd.f32 %v6738, %v7077
        %v7492 = vadd.f32 %v6739, %v7080
        %v7493 = vadd.f32 %v6740, %v7085
        %v7494 = vadd.f32 %v6741, %v7088
        %v7495 = vadd.f32 %v6742, %v7093
        %v7496 = vadd.f32 %v6743, %v7096
        %v7497 = vadd.f32 %v6744, %v7101
        %v7498 = vadd.f32 %v6745, %v7104
        %v7499 = vadd.f32 %v6746, %v7109
        %v7500 = vadd.f32 %v6747, %v7112
        %v7501 = vadd.f32 %v6748, %v7117
        %v7502 = vadd.f32 %v6749, %v7120
        %v7503 = vadd.f32 %v6750, %v7125
        %v7504 = vadd.f32 %v6751, %v7128
        %v7505 = vadd.f32 %v6752, %v7133
        %v7506 = vadd.f32 %v6753, %v7136
        %v7507 = vadd.f32 %v6754, %v7141
        %v7508 = vadd.f32 %v6755, %v7144
        %v7509 = vadd.f32 %v6756, %v7149
        %v7510 = vadd.f32 %v6757, %v7152
        %v7511 = vadd.f32 %v6758, %v7157
        %v7512 = vadd.f32 %v6759, %v7160
        %v7513 = vadd.f32 %v6760, %v7165
        %v7514 = vadd.f32 %v6761, %v7168
        %v7515 = vadd.f32 %v6762, %v7173
        %v7516 = vadd.f32 %v6763, %v7176
        %v7517 = vadd.f32 %v6764, %v7181
        %v7518 = vadd.f32 %v6765, %v7184
        %v7519 = vadd.f32 %v6766, %v7189
        %v7520 = vadd.f32 %v6767, %v7192
        %v7521 = vadd.f32 %v6768, %v7197
        %v7522 = vadd.f32 %v6769, %v7200
        %v7523 = vadd.f32 %v6770, %v7205
        %v7524 = vadd.f32 %v6771, %v7208
        %v7525 = vadd.f32 %v6772, %v7213
        %v7526 = vadd.f32 %v6773, %v7216
        %v7527 = vadd.f32 %v6774, %v7221
        %v7528 = vadd.f32 %v6775, %v7224
        %v7529 = vadd.f32 %v6776, %v7229
        %v7530 = vadd.f32 %v6777, %v7232
        %v7531 = vadd.f32 %v6778, %v7237
        %v7532 = vadd.f32 %v6779, %v7240
        %v7533 = vadd.f32 %v6780, %v7245
        %v7534 = vadd.f32 %v6781, %v7248
        %v7535 = vadd.f32 %v6782, %v7253
        %v7536 = vadd.f32 %v6783, %v7256
        %v7537 = vadd.f32 %v6784, %v7261
        %v7538 = vadd.f32 %v6785, %v7264
        %v7539 = vadd.f32 %v6786, %v7269
        %v7540 = vadd.f32 %v6787, %v7272
        %v7541 = vadd.f32 %v6788, %v7277
        %v7542 = vadd.f32 %v6789, %v7280
        %v7543 = vadd.f32 %v6790, %v7285
        %v7544 = vadd.f32 %v6791, %v7288
        %v7545 = vadd.f32 %v6792, %v7293
        %v7546 = vadd.f32 %v6793, %v7296
        %v7547 = vadd.f32 %v6794, %v7301
        %v7548 = vadd.f32 %v6795, %v7304
        %v7549 = vadd.f32 %v6796, %v7309
        %v7550 = vadd.f32 %v6797, %v7312
        %v7551 = vadd.f32 %v6798, %v7317
        %v7552 = vadd.f32 %v6799, %v7320
        %v7553 = vadd.f32 %v6800, %v7325
        %v7554 = vadd.f32 %v6801, %v7328
        %v7555 = vadd.f32 %v6802, %v7333
        %v7556 = vadd.f32 %v6803, %v7336
        %v7557 = vadd.f32 %v6804, %v7341
        %v7558 = vadd.f32 %v6805, %v7344
        %v7559 = vadd.f32 %v6806, %v7349
        %v7560 = vadd.f32 %v6807, %v7352
        %v7561 = vadd.f32 %v6808, %v7357
        %v7562 = vadd.f32 %v6809, %v7360
        %v7563 = vadd.f32 %v6810, %v7365
        %v7564 = vadd.f32 %v6811, %v7368
        %v7565 = vadd.f32 %v6812, %v7373
        %v7566 = vadd.f32 %v6813, %v7376
        %v7567 = vadd.f32 %v6814, %v7381
        %v7568 = vadd.f32 %v6815, %v7384
        %v7569 = vadd.f32 %v6816, %v7389
        %v7570 = vadd.f32 %v6817, %v7392
        %v7571 = vadd.f32 %v6818, %v7397
        %v7572 = vadd.f32 %v6819, %v7400
        %v7573 = vadd.f32 %v6820, %v7405
        %v7574 = vadd.f32 %v6821, %v7408
        %v7575 = vadd.f32 %v6822, %v7413
        %v7576 = vadd.f32 %v6823, %v7416
        %v7577 = vadd.f32 %v6824, %v7421
        %v7578 = vadd.f32 %v6825, %v7424
        %v7579 = vadd.f32 %v6826, %v7429
        %v7580 = vadd.f32 %v6827, %v7432
        %v7581 = vadd.f32 %v6828, %v7437
        %v7582 = vadd.f32 %v6829, %v7440
        %v7583 = vadd.f32 %v6830, %v7445
        %v7584 = vadd.f32 %v6831, %v7448
        %v7585 = vadd.f32 %v6832, %v7453
        %v7586 = vadd.f32 %v6833, %v7456
        %v7587 = vpack.c.bf16 %v2189, %v2188
        %v7588 = vpack.c.bf16 %v2191, %v2190
        %s7589 = scalar_lea.vmem [#allocation11], 384
        %v7590 = vld [vmem:[%s7589] sm:$0xf]
        %v7591 = vld [vmem:[%s7589 + $0x4] sm:$0xf]
        %v7592 = vld [vmem:[%s7589 + $0x8] sm:$0xf]
        %v7593 = vld [vmem:[%s7589 + $0xc] sm:$0xf]
        %v7594 = vld [vmem:[%s7589 + $0x10] sm:$0xf]
        %v7595 = vld [vmem:[%s7589 + $0x14] sm:$0xf]
        %v7596 = vld [vmem:[%s7589 + $0x18] sm:$0xf]
        %v7597 = vld [vmem:[%s7589 + $0x1c] sm:$0xf]
        %v7598 = vld [vmem:[%s7589 + $0x20] sm:$0xf]
        %v7599 = vld [vmem:[%s7589 + $0x24] sm:$0xf]
        %v7600 = vld [vmem:[%s7589 + $0x28] sm:$0xf]
        %v7601 = vld [vmem:[%s7589 + $0x2c] sm:$0xf]
        %v7602 = vld [vmem:[%s7589 + $0x30] sm:$0xf]
        %v7603 = vld [vmem:[%s7589 + $0x34] sm:$0xf]
        %v7604 = vld [vmem:[%s7589 + $0x38] sm:$0xf]
        %v7605 = vld [vmem:[%s7589 + $0x3c] sm:$0xf]
        %v7622 = vunpack.c.l.b16 %v7590
        %v7623 = vunpack.c.l.b16 %v7591
        %v7624 = vunpack.c.l.b16 %v7592
        %v7625 = vunpack.c.l.b16 %v7593
        %v7626 = vunpack.c.l.b16 %v7594
        %v7627 = vunpack.c.l.b16 %v7595
        %v7628 = vunpack.c.l.b16 %v7596
        %v7629 = vunpack.c.l.b16 %v7597
        %v7630 = vunpack.c.l.b16 %v7598
        %v7631 = vunpack.c.l.b16 %v7599
        %v7632 = vunpack.c.l.b16 %v7600
        %v7633 = vunpack.c.l.b16 %v7601
        %v7634 = vunpack.c.l.b16 %v7602
        %v7635 = vunpack.c.l.b16 %v7603
        %v7636 = vunpack.c.l.b16 %v7604
        %v7637 = vunpack.c.l.b16 %v7605
        %v7638 = vpack.c.b16 %v7623, %v7622
        %v7639 = vpack.c.b16 %v7625, %v7624
        %v7640 = vpack.c.b16 %v7627, %v7626
        %v7641 = vpack.c.b16 %v7629, %v7628
        %v7642 = vpack.c.b16 %v7631, %v7630
        %v7643 = vpack.c.b16 %v7633, %v7632
        %v7644 = vpack.c.b16 %v7635, %v7634
        %v7645 = vpack.c.b16 %v7637, %v7636
        %7654 = vmatprep.subr.bf16.mxu0 0
        %7655 = vmatpush1.bf16.msra.mxu0 %v7645
        %7656 = vmatprep.subr.bf16.mxu0 0
        %7657 = vmatpush1.bf16.msra.mxu0 %v7644
        %7658 = vmatprep.subr.bf16.mxu0 0
        %7659 = vmatpush1.bf16.msra.mxu0 %v7643
        %7660 = vmatprep.subr.bf16.mxu0 0
        %7661 = vmatpush1.bf16.msra.mxu0 %v7642
        %7662 = vmatprep.subr.bf16.mxu0 0
        %7663 = vmatpush1.bf16.msra.mxu0 %v7641
        %7664 = vmatprep.subr.bf16.mxu0 0
        %7665 = vmatpush1.bf16.msra.mxu0 %v7640
        %7666 = vmatprep.subr.bf16.mxu0 0
        %7667 = vmatpush1.bf16.msra.mxu0 %v7639
        %7668 = vmatprep.subr.bf16.mxu0 0
        %7669 = vmatpush1.bf16.msra.mxu0 %v7638
        %7670 = vmatprep.subr.bf16.mxu0 0
        %7671 = vmatpush2.bf16.msra.mxu0 0
        %7672 = vmatprep.subr.bf16.mxu0 0
        %7673 = vmatpush2.bf16.msra.mxu0 0
        %7674 = vmatprep.subr.bf16.mxu0 0
        %7675 = vmatpush2.bf16.msra.mxu0 0
        %7676 = vmatprep.subr.bf16.mxu0 0
        %7677 = vmatpush2.bf16.msra.mxu0 0
        %7678 = vmatprep.subr.bf16.mxu0 0
        %7679 = vmatpush2.bf16.msra.mxu0 0
        %7680 = vmatprep.subr.bf16.mxu0 0
        %7681 = vmatpush2.bf16.msra.mxu0 0
        %7682 = vmatprep.subr.bf16.mxu0 0
        %7683 = vmatpush2.bf16.msra.mxu0 0
        %7684 = vmatprep.subr.bf16.mxu0 0
        %7685 = vmatpush2.bf16.msra.mxu0 0
        %7686 = vmatprep.mubr.bf16.mxu0 0
        %7687 = vmatmul.mubr.bf16.gmra.mxu0 %v2197
        %v7688 = vpop.f32.mrf.mxu0
        %v7689 = vadd.f32 0.0, %v7688
        %v7690 = vpop.f32.mrf.mxu0
        %v7691 = vpop.f32.mrf.mxu0
        %v7692 = vadd.f32 0.0, %v7691
        %v7693 = vpop.f32.mrf.mxu0
        %7694 = vmatprep.mubr.bf16.mxu0 0
        %7695 = vmatmul.mubr.bf16.gmra.mxu0 %v2198
        %v7696 = vpop.f32.mrf.mxu0
        %v7697 = vadd.f32 0.0, %v7696
        %v7698 = vpop.f32.mrf.mxu0
        %v7699 = vpop.f32.mrf.mxu0
        %v7700 = vadd.f32 0.0, %v7699
        %v7701 = vpop.f32.mrf.mxu0
        %7702 = vmatprep.mubr.bf16.mxu0 0
        %7703 = vmatmul.mubr.bf16.gmra.mxu0 %v2199
        %v7704 = vpop.f32.mrf.mxu0
        %v7705 = vadd.f32 0.0, %v7704
        %v7706 = vpop.f32.mrf.mxu0
        %v7707 = vpop.f32.mrf.mxu0
        %v7708 = vadd.f32 0.0, %v7707
        %v7709 = vpop.f32.mrf.mxu0
        %7710 = vmatprep.mubr.bf16.mxu0 0
        %7711 = vmatmul.mubr.bf16.gmra.mxu0 %v2200
        %v7712 = vpop.f32.mrf.mxu0
        %v7713 = vadd.f32 0.0, %v7712
        %v7714 = vpop.f32.mrf.mxu0
        %v7715 = vpop.f32.mrf.mxu0
        %v7716 = vadd.f32 0.0, %v7715
        %v7717 = vpop.f32.mrf.mxu0
        %7718 = vmatprep.mubr.bf16.mxu0 0
        %7719 = vmatmul.mubr.bf16.gmra.mxu0 %v2201
        %v7720 = vpop.f32.mrf.mxu0
        %v7721 = vadd.f32 0.0, %v7720
        %v7722 = vpop.f32.mrf.mxu0
        %v7723 = vpop.f32.mrf.mxu0
        %v7724 = vadd.f32 0.0, %v7723
        %v7725 = vpop.f32.mrf.mxu0
        %7726 = vmatprep.mubr.bf16.mxu0 0
        %7727 = vmatmul.mubr.bf16.gmra.mxu0 %v2202
        %v7728 = vpop.f32.mrf.mxu0
        %v7729 = vadd.f32 0.0, %v7728
        %v7730 = vpop.f32.mrf.mxu0
        %v7731 = vpop.f32.mrf.mxu0
        %v7732 = vadd.f32 0.0, %v7731
        %v7733 = vpop.f32.mrf.mxu0
        %7734 = vmatprep.mubr.bf16.mxu0 0
        %7735 = vmatmul.mubr.bf16.gmra.mxu0 %v2203
        %v7736 = vpop.f32.mrf.mxu0
        %v7737 = vadd.f32 0.0, %v7736
        %v7738 = vpop.f32.mrf.mxu0
        %v7739 = vpop.f32.mrf.mxu0
        %v7740 = vadd.f32 0.0, %v7739
        %v7741 = vpop.f32.mrf.mxu0
        %7742 = vmatprep.mubr.bf16.mxu0 0
        %7743 = vmatmul.mubr.bf16.gmra.mxu0 %v2204
        %v7744 = vpop.f32.mrf.mxu0
        %v7745 = vadd.f32 0.0, %v7744
        %v7746 = vpop.f32.mrf.mxu0
        %v7747 = vpop.f32.mrf.mxu0
        %v7748 = vadd.f32 0.0, %v7747
        %v7749 = vpop.f32.mrf.mxu0
        %7750 = vmatprep.mubr.bf16.mxu0 0
        %7751 = vmatmul.mubr.bf16.gmra.mxu0 %v2205
        %v7752 = vpop.f32.mrf.mxu0
        %v7753 = vadd.f32 0.0, %v7752
        %v7754 = vpop.f32.mrf.mxu0
        %v7755 = vpop.f32.mrf.mxu0
        %v7756 = vadd.f32 0.0, %v7755
        %v7757 = vpop.f32.mrf.mxu0
        %7758 = vmatprep.mubr.bf16.mxu0 0
        %7759 = vmatmul.mubr.bf16.gmra.mxu0 %v2206
        %v7760 = vpop.f32.mrf.mxu0
        %v7761 = vadd.f32 0.0, %v7760
        %v7762 = vpop.f32.mrf.mxu0
        %v7763 = vpop.f32.mrf.mxu0
        %v7764 = vadd.f32 0.0, %v7763
        %v7765 = vpop.f32.mrf.mxu0
        %7766 = vmatprep.mubr.bf16.mxu0 0
        %7767 = vmatmul.mubr.bf16.gmra.mxu0 %v2207
        %v7768 = vpop.f32.mrf.mxu0
        %v7769 = vadd.f32 0.0, %v7768
        %v7770 = vpop.f32.mrf.mxu0
        %v7771 = vpop.f32.mrf.mxu0
        %v7772 = vadd.f32 0.0, %v7771
        %v7773 = vpop.f32.mrf.mxu0
        %7774 = vmatprep.mubr.bf16.mxu0 0
        %7775 = vmatmul.mubr.bf16.gmra.mxu0 %v2208
        %v7776 = vpop.f32.mrf.mxu0
        %v7777 = vadd.f32 0.0, %v7776
        %v7778 = vpop.f32.mrf.mxu0
        %v7779 = vpop.f32.mrf.mxu0
        %v7780 = vadd.f32 0.0, %v7779
        %v7781 = vpop.f32.mrf.mxu0
        %7782 = vmatprep.mubr.bf16.mxu0 0
        %7783 = vmatmul.mubr.bf16.gmra.mxu0 %v2209
        %v7784 = vpop.f32.mrf.mxu0
        %v7785 = vadd.f32 0.0, %v7784
        %v7786 = vpop.f32.mrf.mxu0
        %v7787 = vpop.f32.mrf.mxu0
        %v7788 = vadd.f32 0.0, %v7787
        %v7789 = vpop.f32.mrf.mxu0
        %7790 = vmatprep.mubr.bf16.mxu0 0
        %7791 = vmatmul.mubr.bf16.gmra.mxu0 %v2210
        %v7792 = vpop.f32.mrf.mxu0
        %v7793 = vadd.f32 0.0, %v7792
        %v7794 = vpop.f32.mrf.mxu0
        %v7795 = vpop.f32.mrf.mxu0
        %v7796 = vadd.f32 0.0, %v7795
        %v7797 = vpop.f32.mrf.mxu0
        %7798 = vmatprep.mubr.bf16.mxu0 0
        %7799 = vmatmul.mubr.bf16.gmra.mxu0 %v2211
        %v7800 = vpop.f32.mrf.mxu0
        %v7801 = vadd.f32 0.0, %v7800
        %v7802 = vpop.f32.mrf.mxu0
        %v7803 = vpop.f32.mrf.mxu0
        %v7804 = vadd.f32 0.0, %v7803
        %v7805 = vpop.f32.mrf.mxu0
        %7806 = vmatprep.mubr.bf16.mxu0 0
        %7807 = vmatmul.mubr.bf16.gmra.mxu0 %v2212
        %v7808 = vpop.f32.mrf.mxu0
        %v7809 = vadd.f32 0.0, %v7808
        %v7810 = vpop.f32.mrf.mxu0
        %v7811 = vpop.f32.mrf.mxu0
        %v7812 = vadd.f32 0.0, %v7811
        %v7813 = vpop.f32.mrf.mxu0
        %7814 = vmatprep.mubr.bf16.mxu0 0
        %7815 = vmatmul.mubr.bf16.gmra.mxu0 %v2213
        %v7816 = vpop.f32.mrf.mxu0
        %v7817 = vadd.f32 0.0, %v7816
        %v7818 = vpop.f32.mrf.mxu0
        %v7819 = vpop.f32.mrf.mxu0
        %v7820 = vadd.f32 0.0, %v7819
        %v7821 = vpop.f32.mrf.mxu0
        %7822 = vmatprep.mubr.bf16.mxu0 0
        %7823 = vmatmul.mubr.bf16.gmra.mxu0 %v2214
        %v7824 = vpop.f32.mrf.mxu0
        %v7825 = vadd.f32 0.0, %v7824
        %v7826 = vpop.f32.mrf.mxu0
        %v7827 = vpop.f32.mrf.mxu0
        %v7828 = vadd.f32 0.0, %v7827
        %v7829 = vpop.f32.mrf.mxu0
        %7830 = vmatprep.mubr.bf16.mxu0 0
        %7831 = vmatmul.mubr.bf16.gmra.mxu0 %v2215
        %v7832 = vpop.f32.mrf.mxu0
        %v7833 = vadd.f32 0.0, %v7832
        %v7834 = vpop.f32.mrf.mxu0
        %v7835 = vpop.f32.mrf.mxu0
        %v7836 = vadd.f32 0.0, %v7835
        %v7837 = vpop.f32.mrf.mxu0
        %7838 = vmatprep.mubr.bf16.mxu0 0
        %7839 = vmatmul.mubr.bf16.gmra.mxu0 %v2216
        %v7840 = vpop.f32.mrf.mxu0
        %v7841 = vadd.f32 0.0, %v7840
        %v7842 = vpop.f32.mrf.mxu0
        %v7843 = vpop.f32.mrf.mxu0
        %v7844 = vadd.f32 0.0, %v7843
        %v7845 = vpop.f32.mrf.mxu0
        %7846 = vmatprep.mubr.bf16.mxu0 0
        %7847 = vmatmul.mubr.bf16.gmra.mxu0 %v2217
        %v7848 = vpop.f32.mrf.mxu0
        %v7849 = vadd.f32 0.0, %v7848
        %v7850 = vpop.f32.mrf.mxu0
        %v7851 = vpop.f32.mrf.mxu0
        %v7852 = vadd.f32 0.0, %v7851
        %v7853 = vpop.f32.mrf.mxu0
        %7854 = vmatprep.mubr.bf16.mxu0 0
        %7855 = vmatmul.mubr.bf16.gmra.mxu0 %v2218
        %v7856 = vpop.f32.mrf.mxu0
        %v7857 = vadd.f32 0.0, %v7856
        %v7858 = vpop.f32.mrf.mxu0
        %v7859 = vpop.f32.mrf.mxu0
        %v7860 = vadd.f32 0.0, %v7859
        %v7861 = vpop.f32.mrf.mxu0
        %7862 = vmatprep.mubr.bf16.mxu0 0
        %7863 = vmatmul.mubr.bf16.gmra.mxu0 %v2219
        %v7864 = vpop.f32.mrf.mxu0
        %v7865 = vadd.f32 0.0, %v7864
        %v7866 = vpop.f32.mrf.mxu0
        %v7867 = vpop.f32.mrf.mxu0
        %v7868 = vadd.f32 0.0, %v7867
        %v7869 = vpop.f32.mrf.mxu0
        %7870 = vmatprep.mubr.bf16.mxu0 0
        %7871 = vmatmul.mubr.bf16.gmra.mxu0 %v2220
        %v7872 = vpop.f32.mrf.mxu0
        %v7873 = vadd.f32 0.0, %v7872
        %v7874 = vpop.f32.mrf.mxu0
        %v7875 = vpop.f32.mrf.mxu0
        %v7876 = vadd.f32 0.0, %v7875
        %v7877 = vpop.f32.mrf.mxu0
        %7878 = vmatprep.mubr.bf16.mxu0 0
        %7879 = vmatmul.mubr.bf16.gmra.mxu0 %v2221
        %v7880 = vpop.f32.mrf.mxu0
        %v7881 = vadd.f32 0.0, %v7880
        %v7882 = vpop.f32.mrf.mxu0
        %v7883 = vpop.f32.mrf.mxu0
        %v7884 = vadd.f32 0.0, %v7883
        %v7885 = vpop.f32.mrf.mxu0
        %7886 = vmatprep.mubr.bf16.mxu0 0
        %7887 = vmatmul.mubr.bf16.gmra.mxu0 %v2222
        %v7888 = vpop.f32.mrf.mxu0
        %v7889 = vadd.f32 0.0, %v7888
        %v7890 = vpop.f32.mrf.mxu0
        %v7891 = vpop.f32.mrf.mxu0
        %v7892 = vadd.f32 0.0, %v7891
        %v7893 = vpop.f32.mrf.mxu0
        %7894 = vmatprep.mubr.bf16.mxu0 0
        %7895 = vmatmul.mubr.bf16.gmra.mxu0 %v2223
        %v7896 = vpop.f32.mrf.mxu0
        %v7897 = vadd.f32 0.0, %v7896
        %v7898 = vpop.f32.mrf.mxu0
        %v7899 = vpop.f32.mrf.mxu0
        %v7900 = vadd.f32 0.0, %v7899
        %v7901 = vpop.f32.mrf.mxu0
        %7902 = vmatprep.mubr.bf16.mxu0 0
        %7903 = vmatmul.mubr.bf16.gmra.mxu0 %v2224
        %v7904 = vpop.f32.mrf.mxu0
        %v7905 = vadd.f32 0.0, %v7904
        %v7906 = vpop.f32.mrf.mxu0
        %v7907 = vpop.f32.mrf.mxu0
        %v7908 = vadd.f32 0.0, %v7907
        %v7909 = vpop.f32.mrf.mxu0
        %7910 = vmatprep.mubr.bf16.mxu0 0
        %7911 = vmatmul.mubr.bf16.gmra.mxu0 %v2225
        %v7912 = vpop.f32.mrf.mxu0
        %v7913 = vadd.f32 0.0, %v7912
        %v7914 = vpop.f32.mrf.mxu0
        %v7915 = vpop.f32.mrf.mxu0
        %v7916 = vadd.f32 0.0, %v7915
        %v7917 = vpop.f32.mrf.mxu0
        %7918 = vmatprep.mubr.bf16.mxu0 0
        %7919 = vmatmul.mubr.bf16.gmra.mxu0 %v2226
        %v7920 = vpop.f32.mrf.mxu0
        %v7921 = vadd.f32 0.0, %v7920
        %v7922 = vpop.f32.mrf.mxu0
        %v7923 = vpop.f32.mrf.mxu0
        %v7924 = vadd.f32 0.0, %v7923
        %v7925 = vpop.f32.mrf.mxu0
        %7926 = vmatprep.mubr.bf16.mxu0 0
        %7927 = vmatmul.mubr.bf16.gmra.mxu0 %v2227
        %v7928 = vpop.f32.mrf.mxu0
        %v7929 = vadd.f32 0.0, %v7928
        %v7930 = vpop.f32.mrf.mxu0
        %v7931 = vpop.f32.mrf.mxu0
        %v7932 = vadd.f32 0.0, %v7931
        %v7933 = vpop.f32.mrf.mxu0
        %7934 = vmatprep.mubr.bf16.mxu0 0
        %7935 = vmatmul.mubr.bf16.gmra.mxu0 %v2228
        %v7936 = vpop.f32.mrf.mxu0
        %v7937 = vadd.f32 0.0, %v7936
        %v7938 = vpop.f32.mrf.mxu0
        %v7939 = vpop.f32.mrf.mxu0
        %v7940 = vadd.f32 0.0, %v7939
        %v7941 = vpop.f32.mrf.mxu0
        %7942 = vmatprep.mubr.bf16.mxu0 0
        %7943 = vmatmul.mubr.bf16.gmra.mxu0 %v2229
        %v7944 = vpop.f32.mrf.mxu0
        %v7945 = vadd.f32 0.0, %v7944
        %v7946 = vpop.f32.mrf.mxu0
        %v7947 = vpop.f32.mrf.mxu0
        %v7948 = vadd.f32 0.0, %v7947
        %v7949 = vpop.f32.mrf.mxu0
        %7950 = vmatprep.mubr.bf16.mxu0 0
        %7951 = vmatmul.mubr.bf16.gmra.mxu0 %v2230
        %v7952 = vpop.f32.mrf.mxu0
        %v7953 = vadd.f32 0.0, %v7952
        %v7954 = vpop.f32.mrf.mxu0
        %v7955 = vpop.f32.mrf.mxu0
        %v7956 = vadd.f32 0.0, %v7955
        %v7957 = vpop.f32.mrf.mxu0
        %7958 = vmatprep.mubr.bf16.mxu0 0
        %7959 = vmatmul.mubr.bf16.gmra.mxu0 %v2231
        %v7960 = vpop.f32.mrf.mxu0
        %v7961 = vadd.f32 0.0, %v7960
        %v7962 = vpop.f32.mrf.mxu0
        %v7963 = vpop.f32.mrf.mxu0
        %v7964 = vadd.f32 0.0, %v7963
        %v7965 = vpop.f32.mrf.mxu0
        %7966 = vmatprep.mubr.bf16.mxu0 0
        %7967 = vmatmul.mubr.bf16.gmra.mxu0 %v2232
        %v7968 = vpop.f32.mrf.mxu0
        %v7969 = vadd.f32 0.0, %v7968
        %v7970 = vpop.f32.mrf.mxu0
        %v7971 = vpop.f32.mrf.mxu0
        %v7972 = vadd.f32 0.0, %v7971
        %v7973 = vpop.f32.mrf.mxu0
        %7974 = vmatprep.mubr.bf16.mxu0 0
        %7975 = vmatmul.mubr.bf16.gmra.mxu0 %v2233
        %v7976 = vpop.f32.mrf.mxu0
        %v7977 = vadd.f32 0.0, %v7976
        %v7978 = vpop.f32.mrf.mxu0
        %v7979 = vpop.f32.mrf.mxu0
        %v7980 = vadd.f32 0.0, %v7979
        %v7981 = vpop.f32.mrf.mxu0
        %7982 = vmatprep.mubr.bf16.mxu0 0
        %7983 = vmatmul.mubr.bf16.gmra.mxu0 %v2234
        %v7984 = vpop.f32.mrf.mxu0
        %v7985 = vadd.f32 0.0, %v7984
        %v7986 = vpop.f32.mrf.mxu0
        %v7987 = vpop.f32.mrf.mxu0
        %v7988 = vadd.f32 0.0, %v7987
        %v7989 = vpop.f32.mrf.mxu0
        %7990 = vmatprep.mubr.bf16.mxu0 0
        %7991 = vmatmul.mubr.bf16.gmra.mxu0 %v2235
        %v7992 = vpop.f32.mrf.mxu0
        %v7993 = vadd.f32 0.0, %v7992
        %v7994 = vpop.f32.mrf.mxu0
        %v7995 = vpop.f32.mrf.mxu0
        %v7996 = vadd.f32 0.0, %v7995
        %v7997 = vpop.f32.mrf.mxu0
        %7998 = vmatprep.mubr.bf16.mxu0 0
        %7999 = vmatmul.mubr.bf16.gmra.mxu0 %v2236
        %v8000 = vpop.f32.mrf.mxu0
        %v8001 = vadd.f32 0.0, %v8000
        %v8002 = vpop.f32.mrf.mxu0
        %v8003 = vpop.f32.mrf.mxu0
        %v8004 = vadd.f32 0.0, %v8003
        %v8005 = vpop.f32.mrf.mxu0
        %8006 = vmatprep.mubr.bf16.mxu0 0
        %8007 = vmatmul.mubr.bf16.gmra.mxu0 %v2237
        %v8008 = vpop.f32.mrf.mxu0
        %v8009 = vadd.f32 0.0, %v8008
        %v8010 = vpop.f32.mrf.mxu0
        %v8011 = vpop.f32.mrf.mxu0
        %v8012 = vadd.f32 0.0, %v8011
        %v8013 = vpop.f32.mrf.mxu0
        %8014 = vmatprep.mubr.bf16.mxu0 0
        %8015 = vmatmul.mubr.bf16.gmra.mxu0 %v2238
        %v8016 = vpop.f32.mrf.mxu0
        %v8017 = vadd.f32 0.0, %v8016
        %v8018 = vpop.f32.mrf.mxu0
        %v8019 = vpop.f32.mrf.mxu0
        %v8020 = vadd.f32 0.0, %v8019
        %v8021 = vpop.f32.mrf.mxu0
        %8022 = vmatprep.mubr.bf16.mxu0 0
        %8023 = vmatmul.mubr.bf16.gmra.mxu0 %v2239
        %v8024 = vpop.f32.mrf.mxu0
        %v8025 = vadd.f32 0.0, %v8024
        %v8026 = vpop.f32.mrf.mxu0
        %v8027 = vpop.f32.mrf.mxu0
        %v8028 = vadd.f32 0.0, %v8027
        %v8029 = vpop.f32.mrf.mxu0
        %8030 = vmatprep.mubr.bf16.mxu0 0
        %8031 = vmatmul.mubr.bf16.gmra.mxu0 %v2240
        %v8032 = vpop.f32.mrf.mxu0
        %v8033 = vadd.f32 0.0, %v8032
        %v8034 = vpop.f32.mrf.mxu0
        %v8035 = vpop.f32.mrf.mxu0
        %v8036 = vadd.f32 0.0, %v8035
        %v8037 = vpop.f32.mrf.mxu0
        %8038 = vmatprep.mubr.bf16.mxu0 0
        %8039 = vmatmul.mubr.bf16.gmra.mxu0 %v2241
        %v8040 = vpop.f32.mrf.mxu0
        %v8041 = vadd.f32 0.0, %v8040
        %v8042 = vpop.f32.mrf.mxu0
        %v8043 = vpop.f32.mrf.mxu0
        %v8044 = vadd.f32 0.0, %v8043
        %v8045 = vpop.f32.mrf.mxu0
        %8046 = vmatprep.mubr.bf16.mxu0 0
        %8047 = vmatmul.mubr.bf16.gmra.mxu0 %v2242
        %v8048 = vpop.f32.mrf.mxu0
        %v8049 = vadd.f32 0.0, %v8048
        %v8050 = vpop.f32.mrf.mxu0
        %v8051 = vpop.f32.mrf.mxu0
        %v8052 = vadd.f32 0.0, %v8051
        %v8053 = vpop.f32.mrf.mxu0
        %8054 = vmatprep.mubr.bf16.mxu0 0
        %8055 = vmatmul.mubr.bf16.gmra.mxu0 %v2243
        %v8056 = vpop.f32.mrf.mxu0
        %v8057 = vadd.f32 0.0, %v8056
        %v8058 = vpop.f32.mrf.mxu0
        %v8059 = vpop.f32.mrf.mxu0
        %v8060 = vadd.f32 0.0, %v8059
        %v8061 = vpop.f32.mrf.mxu0
        %8062 = vmatprep.mubr.bf16.mxu0 0
        %8063 = vmatmul.mubr.bf16.gmra.mxu0 %v2244
        %v8064 = vpop.f32.mrf.mxu0
        %v8065 = vadd.f32 0.0, %v8064
        %v8066 = vpop.f32.mrf.mxu0
        %v8067 = vpop.f32.mrf.mxu0
        %v8068 = vadd.f32 0.0, %v8067
        %v8069 = vpop.f32.mrf.mxu0
        %8070 = vmatprep.mubr.bf16.mxu0 0
        %8071 = vmatmul.mubr.bf16.gmra.mxu0 %v2245
        %v8072 = vpop.f32.mrf.mxu0
        %v8073 = vadd.f32 0.0, %v8072
        %v8074 = vpop.f32.mrf.mxu0
        %v8075 = vpop.f32.mrf.mxu0
        %v8076 = vadd.f32 0.0, %v8075
        %v8077 = vpop.f32.mrf.mxu0
        %8078 = vmatprep.mubr.bf16.mxu0 0
        %8079 = vmatmul.mubr.bf16.gmra.mxu0 %v2246
        %v8080 = vpop.f32.mrf.mxu0
        %v8081 = vadd.f32 0.0, %v8080
        %v8082 = vpop.f32.mrf.mxu0
        %v8083 = vpop.f32.mrf.mxu0
        %v8084 = vadd.f32 0.0, %v8083
        %v8085 = vpop.f32.mrf.mxu0
        %8086 = vmatprep.mubr.bf16.mxu0 0
        %8087 = vmatmul.mubr.bf16.gmra.mxu0 %v2247
        %v8088 = vpop.f32.mrf.mxu0
        %v8089 = vadd.f32 0.0, %v8088
        %v8090 = vpop.f32.mrf.mxu0
        %v8091 = vpop.f32.mrf.mxu0
        %v8092 = vadd.f32 0.0, %v8091
        %v8093 = vpop.f32.mrf.mxu0
        %8094 = vmatprep.mubr.bf16.mxu0 0
        %8095 = vmatmul.mubr.bf16.gmra.mxu0 %v2248
        %v8096 = vpop.f32.mrf.mxu0
        %v8097 = vadd.f32 0.0, %v8096
        %v8098 = vpop.f32.mrf.mxu0
        %v8099 = vpop.f32.mrf.mxu0
        %v8100 = vadd.f32 0.0, %v8099
        %v8101 = vpop.f32.mrf.mxu0
        %8102 = vmatprep.mubr.bf16.mxu0 0
        %8103 = vmatmul.mubr.bf16.gmra.mxu0 %v2249
        %v8104 = vpop.f32.mrf.mxu0
        %v8105 = vadd.f32 0.0, %v8104
        %v8106 = vpop.f32.mrf.mxu0
        %v8107 = vpop.f32.mrf.mxu0
        %v8108 = vadd.f32 0.0, %v8107
        %v8109 = vpop.f32.mrf.mxu0
        %8110 = vmatprep.mubr.bf16.mxu0 0
        %8111 = vmatmul.mubr.bf16.gmra.mxu0 %v2250
        %v8112 = vpop.f32.mrf.mxu0
        %v8113 = vadd.f32 0.0, %v8112
        %v8114 = vpop.f32.mrf.mxu0
        %v8115 = vpop.f32.mrf.mxu0
        %v8116 = vadd.f32 0.0, %v8115
        %v8117 = vpop.f32.mrf.mxu0
        %8118 = vmatprep.mubr.bf16.mxu0 0
        %8119 = vmatmul.mubr.bf16.gmra.mxu0 %v2251
        %v8120 = vpop.f32.mrf.mxu0
        %v8121 = vadd.f32 0.0, %v8120
        %v8122 = vpop.f32.mrf.mxu0
        %v8123 = vpop.f32.mrf.mxu0
        %v8124 = vadd.f32 0.0, %v8123
        %v8125 = vpop.f32.mrf.mxu0
        %8126 = vmatprep.mubr.bf16.mxu0 0
        %8127 = vmatmul.mubr.bf16.gmra.mxu0 %v2252
        %v8128 = vpop.f32.mrf.mxu0
        %v8129 = vadd.f32 0.0, %v8128
        %v8130 = vpop.f32.mrf.mxu0
        %v8131 = vpop.f32.mrf.mxu0
        %v8132 = vadd.f32 0.0, %v8131
        %v8133 = vpop.f32.mrf.mxu0
        %8134 = vmatprep.mubr.bf16.mxu0 0
        %8135 = vmatmul.mubr.bf16.gmra.mxu0 %v2253
        %v8136 = vpop.f32.mrf.mxu0
        %v8137 = vadd.f32 0.0, %v8136
        %v8138 = vpop.f32.mrf.mxu0
        %v8139 = vpop.f32.mrf.mxu0
        %v8140 = vadd.f32 0.0, %v8139
        %v8141 = vpop.f32.mrf.mxu0
        %8142 = vmatprep.mubr.bf16.mxu0 0
        %8143 = vmatmul.mubr.bf16.gmra.mxu0 %v2254
        %v8144 = vpop.f32.mrf.mxu0
        %v8145 = vadd.f32 0.0, %v8144
        %v8146 = vpop.f32.mrf.mxu0
        %v8147 = vpop.f32.mrf.mxu0
        %v8148 = vadd.f32 0.0, %v8147
        %v8149 = vpop.f32.mrf.mxu0
        %8150 = vmatprep.mubr.bf16.mxu0 0
        %8151 = vmatmul.mubr.bf16.gmra.mxu0 %v2255
        %v8152 = vpop.f32.mrf.mxu0
        %v8153 = vadd.f32 0.0, %v8152
        %v8154 = vpop.f32.mrf.mxu0
        %v8155 = vpop.f32.mrf.mxu0
        %v8156 = vadd.f32 0.0, %v8155
        %v8157 = vpop.f32.mrf.mxu0
        %8158 = vmatprep.mubr.bf16.mxu0 0
        %8159 = vmatmul.mubr.bf16.gmra.mxu0 %v2256
        %v8160 = vpop.f32.mrf.mxu0
        %v8161 = vadd.f32 0.0, %v8160
        %v8162 = vpop.f32.mrf.mxu0
        %v8163 = vpop.f32.mrf.mxu0
        %v8164 = vadd.f32 0.0, %v8163
        %v8165 = vpop.f32.mrf.mxu0
        %8166 = vmatprep.mubr.bf16.mxu0 0
        %8167 = vmatmul.mubr.bf16.gmra.mxu0 %v5336
        %v8168 = vpop.f32.mrf.mxu0
        %v8169 = vadd.f32 0.0, %v8168
        %v8170 = vpop.f32.mrf.mxu0
        %v8171 = vpop.f32.mrf.mxu0
        %v8172 = vadd.f32 0.0, %v8171
        %v8173 = vpop.f32.mrf.mxu0
        %8174 = vmatprep.mubr.bf16.mxu0 0
        %8175 = vmatmul.mubr.bf16.gmra.mxu0 %v5337
        %v8176 = vpop.f32.mrf.mxu0
        %v8177 = vadd.f32 0.0, %v8176
        %v8178 = vpop.f32.mrf.mxu0
        %v8179 = vpop.f32.mrf.mxu0
        %v8180 = vadd.f32 0.0, %v8179
        %v8181 = vpop.f32.mrf.mxu0
        %8182 = vmatprep.mubr.bf16.mxu0 0
        %8183 = vmatmul.mubr.bf16.gmra.mxu0 %v7587
        %v8184 = vpop.f32.mrf.mxu0
        %v8185 = vadd.f32 0.0, %v8184
        %v8186 = vpop.f32.mrf.mxu0
        %v8187 = vpop.f32.mrf.mxu0
        %v8188 = vadd.f32 0.0, %v8187
        %v8189 = vpop.f32.mrf.mxu0
        %8190 = vmatprep.mubr.bf16.mxu0 0
        %8191 = vmatmul.mubr.bf16.gmra.mxu0 %v7588
        %v8192 = vpop.f32.mrf.mxu0
        %v8193 = vadd.f32 0.0, %v8192
        %v8194 = vpop.f32.mrf.mxu0
        %v8195 = vpop.f32.mrf.mxu0
        %v8196 = vadd.f32 0.0, %v8195
        %v8197 = vpop.f32.mrf.mxu0
        %8198 = vdwg.mxu0
        %v8199 = vadd.f32 %v7459, %v7689
        %v8200 = vadd.f32 %v7460, %v7692
        %v8201 = vadd.f32 %v7461, %v7697
        %v8202 = vadd.f32 %v7462, %v7700
        %v8203 = vadd.f32 %v7463, %v7705
        %v8204 = vadd.f32 %v7464, %v7708
        %v8205 = vadd.f32 %v7465, %v7713
        %v8206 = vadd.f32 %v7466, %v7716
        %v8207 = vadd.f32 %v7467, %v7721
        %v8208 = vadd.f32 %v7468, %v7724
        %v8209 = vadd.f32 %v7469, %v7729
        %v8210 = vadd.f32 %v7470, %v7732
        %v8211 = vadd.f32 %v7471, %v7737
        %v8212 = vadd.f32 %v7472, %v7740
        %v8213 = vadd.f32 %v7473, %v7745
        %v8214 = vadd.f32 %v7474, %v7748
        %v8215 = vadd.f32 %v7475, %v7753
        %v8216 = vadd.f32 %v7476, %v7756
        %v8217 = vadd.f32 %v7477, %v7761
        %v8218 = vadd.f32 %v7478, %v7764
        %v8219 = vadd.f32 %v7479, %v7769
        %v8220 = vadd.f32 %v7480, %v7772
        %v8221 = vadd.f32 %v7481, %v7777
        %v8222 = vadd.f32 %v7482, %v7780
        %v8223 = vadd.f32 %v7483, %v7785
        %v8224 = vadd.f32 %v7484, %v7788
        %v8225 = vadd.f32 %v7485, %v7793
        %v8226 = vadd.f32 %v7486, %v7796
        %v8227 = vadd.f32 %v7487, %v7801
        %v8228 = vadd.f32 %v7488, %v7804
        %v8229 = vadd.f32 %v7489, %v7809
        %v8230 = vadd.f32 %v7490, %v7812
        %v8231 = vadd.f32 %v7491, %v7817
        %v8232 = vadd.f32 %v7492, %v7820
        %v8233 = vadd.f32 %v7493, %v7825
        %v8234 = vadd.f32 %v7494, %v7828
        %v8235 = vadd.f32 %v7495, %v7833
        %v8236 = vadd.f32 %v7496, %v7836
        %v8237 = vadd.f32 %v7497, %v7841
        %v8238 = vadd.f32 %v7498, %v7844
        %v8239 = vadd.f32 %v7499, %v7849
        %v8240 = vadd.f32 %v7500, %v7852
        %v8241 = vadd.f32 %v7501, %v7857
        %v8242 = vadd.f32 %v7502, %v7860
        %v8243 = vadd.f32 %v7503, %v7865
        %v8244 = vadd.f32 %v7504, %v7868
        %v8245 = vadd.f32 %v7505, %v7873
        %v8246 = vadd.f32 %v7506, %v7876
        %v8247 = vadd.f32 %v7507, %v7881
        %v8248 = vadd.f32 %v7508, %v7884
        %v8249 = vadd.f32 %v7509, %v7889
        %v8250 = vadd.f32 %v7510, %v7892
        %v8251 = vadd.f32 %v7511, %v7897
        %v8252 = vadd.f32 %v7512, %v7900
        %v8253 = vadd.f32 %v7513, %v7905
        %v8254 = vadd.f32 %v7514, %v7908
        %v8255 = vadd.f32 %v7515, %v7913
        %v8256 = vadd.f32 %v7516, %v7916
        %v8257 = vadd.f32 %v7517, %v7921
        %v8258 = vadd.f32 %v7518, %v7924
        %v8259 = vadd.f32 %v7519, %v7929
        %v8260 = vadd.f32 %v7520, %v7932
        %v8261 = vadd.f32 %v7521, %v7937
        %v8262 = vadd.f32 %v7522, %v7940
        %v8263 = vadd.f32 %v7523, %v7945
        %v8264 = vadd.f32 %v7524, %v7948
        %v8265 = vadd.f32 %v7525, %v7953
        %v8266 = vadd.f32 %v7526, %v7956
        %v8267 = vadd.f32 %v7527, %v7961
        %v8268 = vadd.f32 %v7528, %v7964
        %v8269 = vadd.f32 %v7529, %v7969
        %v8270 = vadd.f32 %v7530, %v7972
        %v8271 = vadd.f32 %v7531, %v7977
        %v8272 = vadd.f32 %v7532, %v7980
        %v8273 = vadd.f32 %v7533, %v7985
        %v8274 = vadd.f32 %v7534, %v7988
        %v8275 = vadd.f32 %v7535, %v7993
        %v8276 = vadd.f32 %v7536, %v7996
        %v8277 = vadd.f32 %v7537, %v8001
        %v8278 = vadd.f32 %v7538, %v8004
        %v8279 = vadd.f32 %v7539, %v8009
        %v8280 = vadd.f32 %v7540, %v8012
        %v8281 = vadd.f32 %v7541, %v8017
        %v8282 = vadd.f32 %v7542, %v8020
        %v8283 = vadd.f32 %v7543, %v8025
        %v8284 = vadd.f32 %v7544, %v8028
        %v8285 = vadd.f32 %v7545, %v8033
        %v8286 = vadd.f32 %v7546, %v8036
        %v8287 = vadd.f32 %v7547, %v8041
        %v8288 = vadd.f32 %v7548, %v8044
        %v8289 = vadd.f32 %v7549, %v8049
        %v8290 = vadd.f32 %v7550, %v8052
        %v8291 = vadd.f32 %v7551, %v8057
        %v8292 = vadd.f32 %v7552, %v8060
        %v8293 = vadd.f32 %v7553, %v8065
        %v8294 = vadd.f32 %v7554, %v8068
        %v8295 = vadd.f32 %v7555, %v8073
        %v8296 = vadd.f32 %v7556, %v8076
        %v8297 = vadd.f32 %v7557, %v8081
        %v8298 = vadd.f32 %v7558, %v8084
        %v8299 = vadd.f32 %v7559, %v8089
        %v8300 = vadd.f32 %v7560, %v8092
        %v8301 = vadd.f32 %v7561, %v8097
        %v8302 = vadd.f32 %v7562, %v8100
        %v8303 = vadd.f32 %v7563, %v8105
        %v8304 = vadd.f32 %v7564, %v8108
        %v8305 = vadd.f32 %v7565, %v8113
        %v8306 = vadd.f32 %v7566, %v8116
        %v8307 = vadd.f32 %v7567, %v8121
        %v8308 = vadd.f32 %v7568, %v8124
        %v8309 = vadd.f32 %v7569, %v8129
        %v8310 = vadd.f32 %v7570, %v8132
        %v8311 = vadd.f32 %v7571, %v8137
        %v8312 = vadd.f32 %v7572, %v8140
        %v8313 = vadd.f32 %v7573, %v8145
        %v8314 = vadd.f32 %v7574, %v8148
        %v8315 = vadd.f32 %v7575, %v8153
        %v8316 = vadd.f32 %v7576, %v8156
        %v8317 = vadd.f32 %v7577, %v8161
        %v8318 = vadd.f32 %v7578, %v8164
        %v8319 = vadd.f32 %v7579, %v8169
        %v8320 = vadd.f32 %v7580, %v8172
        %v8321 = vadd.f32 %v7581, %v8177
        %v8322 = vadd.f32 %v7582, %v8180
        %v8323 = vadd.f32 %v7583, %v8185
        %v8324 = vadd.f32 %v7584, %v8188
        %v8325 = vadd.f32 %v7585, %v8193
        %v8326 = vadd.f32 %v7586, %v8196
        %v8332 = vrot.slane %v2188, 1
        %v8333 = vrot.slane %v2189, 1
        %v8334 = vsel %vm2433, %v8332, %v8333
        %v8335 = vrot.slane %v2190, 1
        %v8336 = vsel %vm2433, %v8333, %v8335
        %v8337 = vrot.slane %v2191, 1
        %v8338 = vsel %vm2433, %v8335, %v8337
        %v8339 = vrot.slane %v2192, 1
        %v8340 = vsel %vm2433, %v8337, %v8339
        %v8345 = vpack.c.bf16 %v8336, %v8334
        %v8346 = vpack.c.bf16 %v8340, %v8338
        %s8347 = scalar_lea.vmem [#allocation11], 448
        %v8348 = vld [vmem:[%s8347] sm:$0xf]
        %v8349 = vld [vmem:[%s8347 + $0x4] sm:$0xf]
        %v8350 = vld [vmem:[%s8347 + $0x8] sm:$0xf]
        %v8351 = vld [vmem:[%s8347 + $0xc] sm:$0xf]
        %v8352 = vld [vmem:[%s8347 + $0x10] sm:$0xf]
        %v8353 = vld [vmem:[%s8347 + $0x14] sm:$0xf]
        %v8354 = vld [vmem:[%s8347 + $0x18] sm:$0xf]
        %v8355 = vld [vmem:[%s8347 + $0x1c] sm:$0xf]
        %v8356 = vld [vmem:[%s8347 + $0x20] sm:$0xf]
        %v8357 = vld [vmem:[%s8347 + $0x24] sm:$0xf]
        %v8358 = vld [vmem:[%s8347 + $0x28] sm:$0xf]
        %v8359 = vld [vmem:[%s8347 + $0x2c] sm:$0xf]
        %v8360 = vld [vmem:[%s8347 + $0x30] sm:$0xf]
        %v8361 = vld [vmem:[%s8347 + $0x34] sm:$0xf]
        %v8362 = vld [vmem:[%s8347 + $0x38] sm:$0xf]
        %v8363 = vld [vmem:[%s8347 + $0x3c] sm:$0xf]
        %v8380 = vunpack.c.l.b16 %v8348
        %v8381 = vunpack.c.l.b16 %v8349
        %v8382 = vunpack.c.l.b16 %v8350
        %v8383 = vunpack.c.l.b16 %v8351
        %v8384 = vunpack.c.l.b16 %v8352
        %v8385 = vunpack.c.l.b16 %v8353
        %v8386 = vunpack.c.l.b16 %v8354
        %v8387 = vunpack.c.l.b16 %v8355
        %v8388 = vunpack.c.l.b16 %v8356
        %v8389 = vunpack.c.l.b16 %v8357
        %v8390 = vunpack.c.l.b16 %v8358
        %v8391 = vunpack.c.l.b16 %v8359
        %v8392 = vunpack.c.l.b16 %v8360
        %v8393 = vunpack.c.l.b16 %v8361
        %v8394 = vunpack.c.l.b16 %v8362
        %v8395 = vunpack.c.l.b16 %v8363
        %v8396 = vpack.c.b16 %v8381, %v8380
        %v8397 = vpack.c.b16 %v8383, %v8382
        %v8398 = vpack.c.b16 %v8385, %v8384
        %v8399 = vpack.c.b16 %v8387, %v8386
        %v8400 = vpack.c.b16 %v8389, %v8388
        %v8401 = vpack.c.b16 %v8391, %v8390
        %v8402 = vpack.c.b16 %v8393, %v8392
        %v8403 = vpack.c.b16 %v8395, %v8394
        %8412 = vmatprep.subr.bf16.mxu0 0
        %8413 = vmatpush1.bf16.msra.mxu0 %v8403
        %8414 = vmatprep.subr.bf16.mxu0 0
        %8415 = vmatpush1.bf16.msra.mxu0 %v8402
        %8416 = vmatprep.subr.bf16.mxu0 0
        %8417 = vmatpush1.bf16.msra.mxu0 %v8401
        %8418 = vmatprep.subr.bf16.mxu0 0
        %8419 = vmatpush1.bf16.msra.mxu0 %v8400
        %8420 = vmatprep.subr.bf16.mxu0 0
        %8421 = vmatpush1.bf16.msra.mxu0 %v8399
        %8422 = vmatprep.subr.bf16.mxu0 0
        %8423 = vmatpush1.bf16.msra.mxu0 %v8398
        %8424 = vmatprep.subr.bf16.mxu0 0
        %8425 = vmatpush1.bf16.msra.mxu0 %v8397
        %8426 = vmatprep.subr.bf16.mxu0 0
        %8427 = vmatpush1.bf16.msra.mxu0 %v8396
        %8428 = vmatprep.subr.bf16.mxu0 0
        %8429 = vmatpush2.bf16.msra.mxu0 0
        %8430 = vmatprep.subr.bf16.mxu0 0
        %8431 = vmatpush2.bf16.msra.mxu0 0
        %8432 = vmatprep.subr.bf16.mxu0 0
        %8433 = vmatpush2.bf16.msra.mxu0 0
        %8434 = vmatprep.subr.bf16.mxu0 0
        %8435 = vmatpush2.bf16.msra.mxu0 0
        %8436 = vmatprep.subr.bf16.mxu0 0
        %8437 = vmatpush2.bf16.msra.mxu0 0
        %8438 = vmatprep.subr.bf16.mxu0 0
        %8439 = vmatpush2.bf16.msra.mxu0 0
        %8440 = vmatprep.subr.bf16.mxu0 0
        %8441 = vmatpush2.bf16.msra.mxu0 0
        %8442 = vmatprep.subr.bf16.mxu0 0
        %8443 = vmatpush2.bf16.msra.mxu0 0
        %8444 = vmatprep.mubr.bf16.mxu0 0
        %8445 = vmatmul.mubr.bf16.gmra.mxu0 %v2854
        %v8446 = vpop.f32.mrf.mxu0
        %v8447 = vadd.f32 0.0, %v8446
        %v8448 = vpop.f32.mrf.mxu0
        %v8449 = vpop.f32.mrf.mxu0
        %v8450 = vadd.f32 0.0, %v8449
        %v8451 = vpop.f32.mrf.mxu0
        %8452 = vmatprep.mubr.bf16.mxu0 0
        %8453 = vmatmul.mubr.bf16.gmra.mxu0 %v2855
        %v8454 = vpop.f32.mrf.mxu0
        %v8455 = vadd.f32 0.0, %v8454
        %v8456 = vpop.f32.mrf.mxu0
        %v8457 = vpop.f32.mrf.mxu0
        %v8458 = vadd.f32 0.0, %v8457
        %v8459 = vpop.f32.mrf.mxu0
        %8460 = vmatprep.mubr.bf16.mxu0 0
        %8461 = vmatmul.mubr.bf16.gmra.mxu0 %v2856
        %v8462 = vpop.f32.mrf.mxu0
        %v8463 = vadd.f32 0.0, %v8462
        %v8464 = vpop.f32.mrf.mxu0
        %v8465 = vpop.f32.mrf.mxu0
        %v8466 = vadd.f32 0.0, %v8465
        %v8467 = vpop.f32.mrf.mxu0
        %8468 = vmatprep.mubr.bf16.mxu0 0
        %8469 = vmatmul.mubr.bf16.gmra.mxu0 %v2857
        %v8470 = vpop.f32.mrf.mxu0
        %v8471 = vadd.f32 0.0, %v8470
        %v8472 = vpop.f32.mrf.mxu0
        %v8473 = vpop.f32.mrf.mxu0
        %v8474 = vadd.f32 0.0, %v8473
        %v8475 = vpop.f32.mrf.mxu0
        %8476 = vmatprep.mubr.bf16.mxu0 0
        %8477 = vmatmul.mubr.bf16.gmra.mxu0 %v2858
        %v8478 = vpop.f32.mrf.mxu0
        %v8479 = vadd.f32 0.0, %v8478
        %v8480 = vpop.f32.mrf.mxu0
        %v8481 = vpop.f32.mrf.mxu0
        %v8482 = vadd.f32 0.0, %v8481
        %v8483 = vpop.f32.mrf.mxu0
        %8484 = vmatprep.mubr.bf16.mxu0 0
        %8485 = vmatmul.mubr.bf16.gmra.mxu0 %v2859
        %v8486 = vpop.f32.mrf.mxu0
        %v8487 = vadd.f32 0.0, %v8486
        %v8488 = vpop.f32.mrf.mxu0
        %v8489 = vpop.f32.mrf.mxu0
        %v8490 = vadd.f32 0.0, %v8489
        %v8491 = vpop.f32.mrf.mxu0
        %8492 = vmatprep.mubr.bf16.mxu0 0
        %8493 = vmatmul.mubr.bf16.gmra.mxu0 %v2860
        %v8494 = vpop.f32.mrf.mxu0
        %v8495 = vadd.f32 0.0, %v8494
        %v8496 = vpop.f32.mrf.mxu0
        %v8497 = vpop.f32.mrf.mxu0
        %v8498 = vadd.f32 0.0, %v8497
        %v8499 = vpop.f32.mrf.mxu0
        %8500 = vmatprep.mubr.bf16.mxu0 0
        %8501 = vmatmul.mubr.bf16.gmra.mxu0 %v2861
        %v8502 = vpop.f32.mrf.mxu0
        %v8503 = vadd.f32 0.0, %v8502
        %v8504 = vpop.f32.mrf.mxu0
        %v8505 = vpop.f32.mrf.mxu0
        %v8506 = vadd.f32 0.0, %v8505
        %v8507 = vpop.f32.mrf.mxu0
        %8508 = vmatprep.mubr.bf16.mxu0 0
        %8509 = vmatmul.mubr.bf16.gmra.mxu0 %v2862
        %v8510 = vpop.f32.mrf.mxu0
        %v8511 = vadd.f32 0.0, %v8510
        %v8512 = vpop.f32.mrf.mxu0
        %v8513 = vpop.f32.mrf.mxu0
        %v8514 = vadd.f32 0.0, %v8513
        %v8515 = vpop.f32.mrf.mxu0
        %8516 = vmatprep.mubr.bf16.mxu0 0
        %8517 = vmatmul.mubr.bf16.gmra.mxu0 %v2863
        %v8518 = vpop.f32.mrf.mxu0
        %v8519 = vadd.f32 0.0, %v8518
        %v8520 = vpop.f32.mrf.mxu0
        %v8521 = vpop.f32.mrf.mxu0
        %v8522 = vadd.f32 0.0, %v8521
        %v8523 = vpop.f32.mrf.mxu0
        %8524 = vmatprep.mubr.bf16.mxu0 0
        %8525 = vmatmul.mubr.bf16.gmra.mxu0 %v2864
        %v8526 = vpop.f32.mrf.mxu0
        %v8527 = vadd.f32 0.0, %v8526
        %v8528 = vpop.f32.mrf.mxu0
        %v8529 = vpop.f32.mrf.mxu0
        %v8530 = vadd.f32 0.0, %v8529
        %v8531 = vpop.f32.mrf.mxu0
        %8532 = vmatprep.mubr.bf16.mxu0 0
        %8533 = vmatmul.mubr.bf16.gmra.mxu0 %v2865
        %v8534 = vpop.f32.mrf.mxu0
        %v8535 = vadd.f32 0.0, %v8534
        %v8536 = vpop.f32.mrf.mxu0
        %v8537 = vpop.f32.mrf.mxu0
        %v8538 = vadd.f32 0.0, %v8537
        %v8539 = vpop.f32.mrf.mxu0
        %8540 = vmatprep.mubr.bf16.mxu0 0
        %8541 = vmatmul.mubr.bf16.gmra.mxu0 %v2866
        %v8542 = vpop.f32.mrf.mxu0
        %v8543 = vadd.f32 0.0, %v8542
        %v8544 = vpop.f32.mrf.mxu0
        %v8545 = vpop.f32.mrf.mxu0
        %v8546 = vadd.f32 0.0, %v8545
        %v8547 = vpop.f32.mrf.mxu0
        %8548 = vmatprep.mubr.bf16.mxu0 0
        %8549 = vmatmul.mubr.bf16.gmra.mxu0 %v2867
        %v8550 = vpop.f32.mrf.mxu0
        %v8551 = vadd.f32 0.0, %v8550
        %v8552 = vpop.f32.mrf.mxu0
        %v8553 = vpop.f32.mrf.mxu0
        %v8554 = vadd.f32 0.0, %v8553
        %v8555 = vpop.f32.mrf.mxu0
        %8556 = vmatprep.mubr.bf16.mxu0 0
        %8557 = vmatmul.mubr.bf16.gmra.mxu0 %v2868
        %v8558 = vpop.f32.mrf.mxu0
        %v8559 = vadd.f32 0.0, %v8558
        %v8560 = vpop.f32.mrf.mxu0
        %v8561 = vpop.f32.mrf.mxu0
        %v8562 = vadd.f32 0.0, %v8561
        %v8563 = vpop.f32.mrf.mxu0
        %8564 = vmatprep.mubr.bf16.mxu0 0
        %8565 = vmatmul.mubr.bf16.gmra.mxu0 %v2869
        %v8566 = vpop.f32.mrf.mxu0
        %v8567 = vadd.f32 0.0, %v8566
        %v8568 = vpop.f32.mrf.mxu0
        %v8569 = vpop.f32.mrf.mxu0
        %v8570 = vadd.f32 0.0, %v8569
        %v8571 = vpop.f32.mrf.mxu0
        %8572 = vmatprep.mubr.bf16.mxu0 0
        %8573 = vmatmul.mubr.bf16.gmra.mxu0 %v2870
        %v8574 = vpop.f32.mrf.mxu0
        %v8575 = vadd.f32 0.0, %v8574
        %v8576 = vpop.f32.mrf.mxu0
        %v8577 = vpop.f32.mrf.mxu0
        %v8578 = vadd.f32 0.0, %v8577
        %v8579 = vpop.f32.mrf.mxu0
        %8580 = vmatprep.mubr.bf16.mxu0 0
        %8581 = vmatmul.mubr.bf16.gmra.mxu0 %v2871
        %v8582 = vpop.f32.mrf.mxu0
        %v8583 = vadd.f32 0.0, %v8582
        %v8584 = vpop.f32.mrf.mxu0
        %v8585 = vpop.f32.mrf.mxu0
        %v8586 = vadd.f32 0.0, %v8585
        %v8587 = vpop.f32.mrf.mxu0
        %8588 = vmatprep.mubr.bf16.mxu0 0
        %8589 = vmatmul.mubr.bf16.gmra.mxu0 %v2872
        %v8590 = vpop.f32.mrf.mxu0
        %v8591 = vadd.f32 0.0, %v8590
        %v8592 = vpop.f32.mrf.mxu0
        %v8593 = vpop.f32.mrf.mxu0
        %v8594 = vadd.f32 0.0, %v8593
        %v8595 = vpop.f32.mrf.mxu0
        %8596 = vmatprep.mubr.bf16.mxu0 0
        %8597 = vmatmul.mubr.bf16.gmra.mxu0 %v2873
        %v8598 = vpop.f32.mrf.mxu0
        %v8599 = vadd.f32 0.0, %v8598
        %v8600 = vpop.f32.mrf.mxu0
        %v8601 = vpop.f32.mrf.mxu0
        %v8602 = vadd.f32 0.0, %v8601
        %v8603 = vpop.f32.mrf.mxu0
        %8604 = vmatprep.mubr.bf16.mxu0 0
        %8605 = vmatmul.mubr.bf16.gmra.mxu0 %v2874
        %v8606 = vpop.f32.mrf.mxu0
        %v8607 = vadd.f32 0.0, %v8606
        %v8608 = vpop.f32.mrf.mxu0
        %v8609 = vpop.f32.mrf.mxu0
        %v8610 = vadd.f32 0.0, %v8609
        %v8611 = vpop.f32.mrf.mxu0
        %8612 = vmatprep.mubr.bf16.mxu0 0
        %8613 = vmatmul.mubr.bf16.gmra.mxu0 %v2875
        %v8614 = vpop.f32.mrf.mxu0
        %v8615 = vadd.f32 0.0, %v8614
        %v8616 = vpop.f32.mrf.mxu0
        %v8617 = vpop.f32.mrf.mxu0
        %v8618 = vadd.f32 0.0, %v8617
        %v8619 = vpop.f32.mrf.mxu0
        %8620 = vmatprep.mubr.bf16.mxu0 0
        %8621 = vmatmul.mubr.bf16.gmra.mxu0 %v2876
        %v8622 = vpop.f32.mrf.mxu0
        %v8623 = vadd.f32 0.0, %v8622
        %v8624 = vpop.f32.mrf.mxu0
        %v8625 = vpop.f32.mrf.mxu0
        %v8626 = vadd.f32 0.0, %v8625
        %v8627 = vpop.f32.mrf.mxu0
        %8628 = vmatprep.mubr.bf16.mxu0 0
        %8629 = vmatmul.mubr.bf16.gmra.mxu0 %v2877
        %v8630 = vpop.f32.mrf.mxu0
        %v8631 = vadd.f32 0.0, %v8630
        %v8632 = vpop.f32.mrf.mxu0
        %v8633 = vpop.f32.mrf.mxu0
        %v8634 = vadd.f32 0.0, %v8633
        %v8635 = vpop.f32.mrf.mxu0
        %8636 = vmatprep.mubr.bf16.mxu0 0
        %8637 = vmatmul.mubr.bf16.gmra.mxu0 %v2878
        %v8638 = vpop.f32.mrf.mxu0
        %v8639 = vadd.f32 0.0, %v8638
        %v8640 = vpop.f32.mrf.mxu0
        %v8641 = vpop.f32.mrf.mxu0
        %v8642 = vadd.f32 0.0, %v8641
        %v8643 = vpop.f32.mrf.mxu0
        %8644 = vmatprep.mubr.bf16.mxu0 0
        %8645 = vmatmul.mubr.bf16.gmra.mxu0 %v2879
        %v8646 = vpop.f32.mrf.mxu0
        %v8647 = vadd.f32 0.0, %v8646
        %v8648 = vpop.f32.mrf.mxu0
        %v8649 = vpop.f32.mrf.mxu0
        %v8650 = vadd.f32 0.0, %v8649
        %v8651 = vpop.f32.mrf.mxu0
        %8652 = vmatprep.mubr.bf16.mxu0 0
        %8653 = vmatmul.mubr.bf16.gmra.mxu0 %v2880
        %v8654 = vpop.f32.mrf.mxu0
        %v8655 = vadd.f32 0.0, %v8654
        %v8656 = vpop.f32.mrf.mxu0
        %v8657 = vpop.f32.mrf.mxu0
        %v8658 = vadd.f32 0.0, %v8657
        %v8659 = vpop.f32.mrf.mxu0
        %8660 = vmatprep.mubr.bf16.mxu0 0
        %8661 = vmatmul.mubr.bf16.gmra.mxu0 %v2881
        %v8662 = vpop.f32.mrf.mxu0
        %v8663 = vadd.f32 0.0, %v8662
        %v8664 = vpop.f32.mrf.mxu0
        %v8665 = vpop.f32.mrf.mxu0
        %v8666 = vadd.f32 0.0, %v8665
        %v8667 = vpop.f32.mrf.mxu0
        %8668 = vmatprep.mubr.bf16.mxu0 0
        %8669 = vmatmul.mubr.bf16.gmra.mxu0 %v2882
        %v8670 = vpop.f32.mrf.mxu0
        %v8671 = vadd.f32 0.0, %v8670
        %v8672 = vpop.f32.mrf.mxu0
        %v8673 = vpop.f32.mrf.mxu0
        %v8674 = vadd.f32 0.0, %v8673
        %v8675 = vpop.f32.mrf.mxu0
        %8676 = vmatprep.mubr.bf16.mxu0 0
        %8677 = vmatmul.mubr.bf16.gmra.mxu0 %v2883
        %v8678 = vpop.f32.mrf.mxu0
        %v8679 = vadd.f32 0.0, %v8678
        %v8680 = vpop.f32.mrf.mxu0
        %v8681 = vpop.f32.mrf.mxu0
        %v8682 = vadd.f32 0.0, %v8681
        %v8683 = vpop.f32.mrf.mxu0
        %8684 = vmatprep.mubr.bf16.mxu0 0
        %8685 = vmatmul.mubr.bf16.gmra.mxu0 %v2884
        %v8686 = vpop.f32.mrf.mxu0
        %v8687 = vadd.f32 0.0, %v8686
        %v8688 = vpop.f32.mrf.mxu0
        %v8689 = vpop.f32.mrf.mxu0
        %v8690 = vadd.f32 0.0, %v8689
        %v8691 = vpop.f32.mrf.mxu0
        %8692 = vmatprep.mubr.bf16.mxu0 0
        %8693 = vmatmul.mubr.bf16.gmra.mxu0 %v2885
        %v8694 = vpop.f32.mrf.mxu0
        %v8695 = vadd.f32 0.0, %v8694
        %v8696 = vpop.f32.mrf.mxu0
        %v8697 = vpop.f32.mrf.mxu0
        %v8698 = vadd.f32 0.0, %v8697
        %v8699 = vpop.f32.mrf.mxu0
        %8700 = vmatprep.mubr.bf16.mxu0 0
        %8701 = vmatmul.mubr.bf16.gmra.mxu0 %v2886
        %v8702 = vpop.f32.mrf.mxu0
        %v8703 = vadd.f32 0.0, %v8702
        %v8704 = vpop.f32.mrf.mxu0
        %v8705 = vpop.f32.mrf.mxu0
        %v8706 = vadd.f32 0.0, %v8705
        %v8707 = vpop.f32.mrf.mxu0
        %8708 = vmatprep.mubr.bf16.mxu0 0
        %8709 = vmatmul.mubr.bf16.gmra.mxu0 %v2887
        %v8710 = vpop.f32.mrf.mxu0
        %v8711 = vadd.f32 0.0, %v8710
        %v8712 = vpop.f32.mrf.mxu0
        %v8713 = vpop.f32.mrf.mxu0
        %v8714 = vadd.f32 0.0, %v8713
        %v8715 = vpop.f32.mrf.mxu0
        %8716 = vmatprep.mubr.bf16.mxu0 0
        %8717 = vmatmul.mubr.bf16.gmra.mxu0 %v2888
        %v8718 = vpop.f32.mrf.mxu0
        %v8719 = vadd.f32 0.0, %v8718
        %v8720 = vpop.f32.mrf.mxu0
        %v8721 = vpop.f32.mrf.mxu0
        %v8722 = vadd.f32 0.0, %v8721
        %v8723 = vpop.f32.mrf.mxu0
        %8724 = vmatprep.mubr.bf16.mxu0 0
        %8725 = vmatmul.mubr.bf16.gmra.mxu0 %v2889
        %v8726 = vpop.f32.mrf.mxu0
        %v8727 = vadd.f32 0.0, %v8726
        %v8728 = vpop.f32.mrf.mxu0
        %v8729 = vpop.f32.mrf.mxu0
        %v8730 = vadd.f32 0.0, %v8729
        %v8731 = vpop.f32.mrf.mxu0
        %8732 = vmatprep.mubr.bf16.mxu0 0
        %8733 = vmatmul.mubr.bf16.gmra.mxu0 %v2890
        %v8734 = vpop.f32.mrf.mxu0
        %v8735 = vadd.f32 0.0, %v8734
        %v8736 = vpop.f32.mrf.mxu0
        %v8737 = vpop.f32.mrf.mxu0
        %v8738 = vadd.f32 0.0, %v8737
        %v8739 = vpop.f32.mrf.mxu0
        %8740 = vmatprep.mubr.bf16.mxu0 0
        %8741 = vmatmul.mubr.bf16.gmra.mxu0 %v2891
        %v8742 = vpop.f32.mrf.mxu0
        %v8743 = vadd.f32 0.0, %v8742
        %v8744 = vpop.f32.mrf.mxu0
        %v8745 = vpop.f32.mrf.mxu0
        %v8746 = vadd.f32 0.0, %v8745
        %v8747 = vpop.f32.mrf.mxu0
        %8748 = vmatprep.mubr.bf16.mxu0 0
        %8749 = vmatmul.mubr.bf16.gmra.mxu0 %v2892
        %v8750 = vpop.f32.mrf.mxu0
        %v8751 = vadd.f32 0.0, %v8750
        %v8752 = vpop.f32.mrf.mxu0
        %v8753 = vpop.f32.mrf.mxu0
        %v8754 = vadd.f32 0.0, %v8753
        %v8755 = vpop.f32.mrf.mxu0
        %8756 = vmatprep.mubr.bf16.mxu0 0
        %8757 = vmatmul.mubr.bf16.gmra.mxu0 %v2893
        %v8758 = vpop.f32.mrf.mxu0
        %v8759 = vadd.f32 0.0, %v8758
        %v8760 = vpop.f32.mrf.mxu0
        %v8761 = vpop.f32.mrf.mxu0
        %v8762 = vadd.f32 0.0, %v8761
        %v8763 = vpop.f32.mrf.mxu0
        %8764 = vmatprep.mubr.bf16.mxu0 0
        %8765 = vmatmul.mubr.bf16.gmra.mxu0 %v2894
        %v8766 = vpop.f32.mrf.mxu0
        %v8767 = vadd.f32 0.0, %v8766
        %v8768 = vpop.f32.mrf.mxu0
        %v8769 = vpop.f32.mrf.mxu0
        %v8770 = vadd.f32 0.0, %v8769
        %v8771 = vpop.f32.mrf.mxu0
        %8772 = vmatprep.mubr.bf16.mxu0 0
        %8773 = vmatmul.mubr.bf16.gmra.mxu0 %v2895
        %v8774 = vpop.f32.mrf.mxu0
        %v8775 = vadd.f32 0.0, %v8774
        %v8776 = vpop.f32.mrf.mxu0
        %v8777 = vpop.f32.mrf.mxu0
        %v8778 = vadd.f32 0.0, %v8777
        %v8779 = vpop.f32.mrf.mxu0
        %8780 = vmatprep.mubr.bf16.mxu0 0
        %8781 = vmatmul.mubr.bf16.gmra.mxu0 %v2896
        %v8782 = vpop.f32.mrf.mxu0
        %v8783 = vadd.f32 0.0, %v8782
        %v8784 = vpop.f32.mrf.mxu0
        %v8785 = vpop.f32.mrf.mxu0
        %v8786 = vadd.f32 0.0, %v8785
        %v8787 = vpop.f32.mrf.mxu0
        %8788 = vmatprep.mubr.bf16.mxu0 0
        %8789 = vmatmul.mubr.bf16.gmra.mxu0 %v2897
        %v8790 = vpop.f32.mrf.mxu0
        %v8791 = vadd.f32 0.0, %v8790
        %v8792 = vpop.f32.mrf.mxu0
        %v8793 = vpop.f32.mrf.mxu0
        %v8794 = vadd.f32 0.0, %v8793
        %v8795 = vpop.f32.mrf.mxu0
        %8796 = vmatprep.mubr.bf16.mxu0 0
        %8797 = vmatmul.mubr.bf16.gmra.mxu0 %v2898
        %v8798 = vpop.f32.mrf.mxu0
        %v8799 = vadd.f32 0.0, %v8798
        %v8800 = vpop.f32.mrf.mxu0
        %v8801 = vpop.f32.mrf.mxu0
        %v8802 = vadd.f32 0.0, %v8801
        %v8803 = vpop.f32.mrf.mxu0
        %8804 = vmatprep.mubr.bf16.mxu0 0
        %8805 = vmatmul.mubr.bf16.gmra.mxu0 %v2899
        %v8806 = vpop.f32.mrf.mxu0
        %v8807 = vadd.f32 0.0, %v8806
        %v8808 = vpop.f32.mrf.mxu0
        %v8809 = vpop.f32.mrf.mxu0
        %v8810 = vadd.f32 0.0, %v8809
        %v8811 = vpop.f32.mrf.mxu0
        %8812 = vmatprep.mubr.bf16.mxu0 0
        %8813 = vmatmul.mubr.bf16.gmra.mxu0 %v2900
        %v8814 = vpop.f32.mrf.mxu0
        %v8815 = vadd.f32 0.0, %v8814
        %v8816 = vpop.f32.mrf.mxu0
        %v8817 = vpop.f32.mrf.mxu0
        %v8818 = vadd.f32 0.0, %v8817
        %v8819 = vpop.f32.mrf.mxu0
        %8820 = vmatprep.mubr.bf16.mxu0 0
        %8821 = vmatmul.mubr.bf16.gmra.mxu0 %v2901
        %v8822 = vpop.f32.mrf.mxu0
        %v8823 = vadd.f32 0.0, %v8822
        %v8824 = vpop.f32.mrf.mxu0
        %v8825 = vpop.f32.mrf.mxu0
        %v8826 = vadd.f32 0.0, %v8825
        %v8827 = vpop.f32.mrf.mxu0
        %8828 = vmatprep.mubr.bf16.mxu0 0
        %8829 = vmatmul.mubr.bf16.gmra.mxu0 %v2902
        %v8830 = vpop.f32.mrf.mxu0
        %v8831 = vadd.f32 0.0, %v8830
        %v8832 = vpop.f32.mrf.mxu0
        %v8833 = vpop.f32.mrf.mxu0
        %v8834 = vadd.f32 0.0, %v8833
        %v8835 = vpop.f32.mrf.mxu0
        %8836 = vmatprep.mubr.bf16.mxu0 0
        %8837 = vmatmul.mubr.bf16.gmra.mxu0 %v2903
        %v8838 = vpop.f32.mrf.mxu0
        %v8839 = vadd.f32 0.0, %v8838
        %v8840 = vpop.f32.mrf.mxu0
        %v8841 = vpop.f32.mrf.mxu0
        %v8842 = vadd.f32 0.0, %v8841
        %v8843 = vpop.f32.mrf.mxu0
        %8844 = vmatprep.mubr.bf16.mxu0 0
        %8845 = vmatmul.mubr.bf16.gmra.mxu0 %v2904
        %v8846 = vpop.f32.mrf.mxu0
        %v8847 = vadd.f32 0.0, %v8846
        %v8848 = vpop.f32.mrf.mxu0
        %v8849 = vpop.f32.mrf.mxu0
        %v8850 = vadd.f32 0.0, %v8849
        %v8851 = vpop.f32.mrf.mxu0
        %8852 = vmatprep.mubr.bf16.mxu0 0
        %8853 = vmatmul.mubr.bf16.gmra.mxu0 %v2905
        %v8854 = vpop.f32.mrf.mxu0
        %v8855 = vadd.f32 0.0, %v8854
        %v8856 = vpop.f32.mrf.mxu0
        %v8857 = vpop.f32.mrf.mxu0
        %v8858 = vadd.f32 0.0, %v8857
        %v8859 = vpop.f32.mrf.mxu0
        %8860 = vmatprep.mubr.bf16.mxu0 0
        %8861 = vmatmul.mubr.bf16.gmra.mxu0 %v2906
        %v8862 = vpop.f32.mrf.mxu0
        %v8863 = vadd.f32 0.0, %v8862
        %v8864 = vpop.f32.mrf.mxu0
        %v8865 = vpop.f32.mrf.mxu0
        %v8866 = vadd.f32 0.0, %v8865
        %v8867 = vpop.f32.mrf.mxu0
        %8868 = vmatprep.mubr.bf16.mxu0 0
        %8869 = vmatmul.mubr.bf16.gmra.mxu0 %v2907
        %v8870 = vpop.f32.mrf.mxu0
        %v8871 = vadd.f32 0.0, %v8870
        %v8872 = vpop.f32.mrf.mxu0
        %v8873 = vpop.f32.mrf.mxu0
        %v8874 = vadd.f32 0.0, %v8873
        %v8875 = vpop.f32.mrf.mxu0
        %8876 = vmatprep.mubr.bf16.mxu0 0
        %8877 = vmatmul.mubr.bf16.gmra.mxu0 %v2908
        %v8878 = vpop.f32.mrf.mxu0
        %v8879 = vadd.f32 0.0, %v8878
        %v8880 = vpop.f32.mrf.mxu0
        %v8881 = vpop.f32.mrf.mxu0
        %v8882 = vadd.f32 0.0, %v8881
        %v8883 = vpop.f32.mrf.mxu0
        %8884 = vmatprep.mubr.bf16.mxu0 0
        %8885 = vmatmul.mubr.bf16.gmra.mxu0 %v2909
        %v8886 = vpop.f32.mrf.mxu0
        %v8887 = vadd.f32 0.0, %v8886
        %v8888 = vpop.f32.mrf.mxu0
        %v8889 = vpop.f32.mrf.mxu0
        %v8890 = vadd.f32 0.0, %v8889
        %v8891 = vpop.f32.mrf.mxu0
        %8892 = vmatprep.mubr.bf16.mxu0 0
        %8893 = vmatmul.mubr.bf16.gmra.mxu0 %v2910
        %v8894 = vpop.f32.mrf.mxu0
        %v8895 = vadd.f32 0.0, %v8894
        %v8896 = vpop.f32.mrf.mxu0
        %v8897 = vpop.f32.mrf.mxu0
        %v8898 = vadd.f32 0.0, %v8897
        %v8899 = vpop.f32.mrf.mxu0
        %8900 = vmatprep.mubr.bf16.mxu0 0
        %8901 = vmatmul.mubr.bf16.gmra.mxu0 %v2911
        %v8902 = vpop.f32.mrf.mxu0
        %v8903 = vadd.f32 0.0, %v8902
        %v8904 = vpop.f32.mrf.mxu0
        %v8905 = vpop.f32.mrf.mxu0
        %v8906 = vadd.f32 0.0, %v8905
        %v8907 = vpop.f32.mrf.mxu0
        %8908 = vmatprep.mubr.bf16.mxu0 0
        %8909 = vmatmul.mubr.bf16.gmra.mxu0 %v2912
        %v8910 = vpop.f32.mrf.mxu0
        %v8911 = vadd.f32 0.0, %v8910
        %v8912 = vpop.f32.mrf.mxu0
        %v8913 = vpop.f32.mrf.mxu0
        %v8914 = vadd.f32 0.0, %v8913
        %v8915 = vpop.f32.mrf.mxu0
        %8916 = vmatprep.mubr.bf16.mxu0 0
        %8917 = vmatmul.mubr.bf16.gmra.mxu0 %v2913
        %v8918 = vpop.f32.mrf.mxu0
        %v8919 = vadd.f32 0.0, %v8918
        %v8920 = vpop.f32.mrf.mxu0
        %v8921 = vpop.f32.mrf.mxu0
        %v8922 = vadd.f32 0.0, %v8921
        %v8923 = vpop.f32.mrf.mxu0
        %8924 = vmatprep.mubr.bf16.mxu0 0
        %8925 = vmatmul.mubr.bf16.gmra.mxu0 %v6094
        %v8926 = vpop.f32.mrf.mxu0
        %v8927 = vadd.f32 0.0, %v8926
        %v8928 = vpop.f32.mrf.mxu0
        %v8929 = vpop.f32.mrf.mxu0
        %v8930 = vadd.f32 0.0, %v8929
        %v8931 = vpop.f32.mrf.mxu0
        %8932 = vmatprep.mubr.bf16.mxu0 0
        %8933 = vmatmul.mubr.bf16.gmra.mxu0 %v6095
        %v8934 = vpop.f32.mrf.mxu0
        %v8935 = vadd.f32 0.0, %v8934
        %v8936 = vpop.f32.mrf.mxu0
        %v8937 = vpop.f32.mrf.mxu0
        %v8938 = vadd.f32 0.0, %v8937
        %v8939 = vpop.f32.mrf.mxu0
        %8940 = vmatprep.mubr.bf16.mxu0 0
        %8941 = vmatmul.mubr.bf16.gmra.mxu0 %v8345
        %v8942 = vpop.f32.mrf.mxu0
        %v8943 = vadd.f32 0.0, %v8942
        %v8944 = vpop.f32.mrf.mxu0
        %v8945 = vpop.f32.mrf.mxu0
        %v8946 = vadd.f32 0.0, %v8945
        %v8947 = vpop.f32.mrf.mxu0
        %8948 = vmatprep.mubr.bf16.mxu0 0
        %8949 = vmatmul.mubr.bf16.gmra.mxu0 %v8346
        %v8950 = vpop.f32.mrf.mxu0
        %v8951 = vadd.f32 0.0, %v8950
        %v8952 = vpop.f32.mrf.mxu0
        %v8953 = vpop.f32.mrf.mxu0
        %v8954 = vadd.f32 0.0, %v8953
        %v8955 = vpop.f32.mrf.mxu0
        %8956 = vdwg.mxu0
        %v8957 = vadd.f32 %v8199, %v8447
        %v8958 = vadd.f32 %v8200, %v8450
        %v8959 = vadd.f32 %v8201, %v8455
        %v8960 = vadd.f32 %v8202, %v8458
        %v8961 = vadd.f32 %v8203, %v8463
        %v8962 = vadd.f32 %v8204, %v8466
        %v8963 = vadd.f32 %v8205, %v8471
        %v8964 = vadd.f32 %v8206, %v8474
        %v8965 = vadd.f32 %v8207, %v8479
        %v8966 = vadd.f32 %v8208, %v8482
        %v8967 = vadd.f32 %v8209, %v8487
        %v8968 = vadd.f32 %v8210, %v8490
        %v8969 = vadd.f32 %v8211, %v8495
        %v8970 = vadd.f32 %v8212, %v8498
        %v8971 = vadd.f32 %v8213, %v8503
        %v8972 = vadd.f32 %v8214, %v8506
        %v8973 = vadd.f32 %v8215, %v8511
        %v8974 = vadd.f32 %v8216, %v8514
        %v8975 = vadd.f32 %v8217, %v8519
        %v8976 = vadd.f32 %v8218, %v8522
        %v8977 = vadd.f32 %v8219, %v8527
        %v8978 = vadd.f32 %v8220, %v8530
        %v8979 = vadd.f32 %v8221, %v8535
        %v8980 = vadd.f32 %v8222, %v8538
        %v8981 = vadd.f32 %v8223, %v8543
        %v8982 = vadd.f32 %v8224, %v8546
        %v8983 = vadd.f32 %v8225, %v8551
        %v8984 = vadd.f32 %v8226, %v8554
        %v8985 = vadd.f32 %v8227, %v8559
        %v8986 = vadd.f32 %v8228, %v8562
        %v8987 = vadd.f32 %v8229, %v8567
        %v8988 = vadd.f32 %v8230, %v8570
        %v8989 = vadd.f32 %v8231, %v8575
        %v8990 = vadd.f32 %v8232, %v8578
        %v8991 = vadd.f32 %v8233, %v8583
        %v8992 = vadd.f32 %v8234, %v8586
        %v8993 = vadd.f32 %v8235, %v8591
        %v8994 = vadd.f32 %v8236, %v8594
        %v8995 = vadd.f32 %v8237, %v8599
        %v8996 = vadd.f32 %v8238, %v8602
        %v8997 = vadd.f32 %v8239, %v8607
        %v8998 = vadd.f32 %v8240, %v8610
        %v8999 = vadd.f32 %v8241, %v8615
        %v9000 = vadd.f32 %v8242, %v8618
        %v9001 = vadd.f32 %v8243, %v8623
        %v9002 = vadd.f32 %v8244, %v8626
        %v9003 = vadd.f32 %v8245, %v8631
        %v9004 = vadd.f32 %v8246, %v8634
        %v9005 = vadd.f32 %v8247, %v8639
        %v9006 = vadd.f32 %v8248, %v8642
        %v9007 = vadd.f32 %v8249, %v8647
        %v9008 = vadd.f32 %v8250, %v8650
        %v9009 = vadd.f32 %v8251, %v8655
        %v9010 = vadd.f32 %v8252, %v8658
        %v9011 = vadd.f32 %v8253, %v8663
        %v9012 = vadd.f32 %v8254, %v8666
        %v9013 = vadd.f32 %v8255, %v8671
        %v9014 = vadd.f32 %v8256, %v8674
        %v9015 = vadd.f32 %v8257, %v8679
        %v9016 = vadd.f32 %v8258, %v8682
        %v9017 = vadd.f32 %v8259, %v8687
        %v9018 = vadd.f32 %v8260, %v8690
        %v9019 = vadd.f32 %v8261, %v8695
        %v9020 = vadd.f32 %v8262, %v8698
        %v9021 = vadd.f32 %v8263, %v8703
        %v9022 = vadd.f32 %v8264, %v8706
        %v9023 = vadd.f32 %v8265, %v8711
        %v9024 = vadd.f32 %v8266, %v8714
        %v9025 = vadd.f32 %v8267, %v8719
        %v9026 = vadd.f32 %v8268, %v8722
        %v9027 = vadd.f32 %v8269, %v8727
        %v9028 = vadd.f32 %v8270, %v8730
        %v9029 = vadd.f32 %v8271, %v8735
        %v9030 = vadd.f32 %v8272, %v8738
        %v9031 = vadd.f32 %v8273, %v8743
        %v9032 = vadd.f32 %v8274, %v8746
        %v9033 = vadd.f32 %v8275, %v8751
        %v9034 = vadd.f32 %v8276, %v8754
        %v9035 = vadd.f32 %v8277, %v8759
        %v9036 = vadd.f32 %v8278, %v8762
        %v9037 = vadd.f32 %v8279, %v8767
        %v9038 = vadd.f32 %v8280, %v8770
        %v9039 = vadd.f32 %v8281, %v8775
        %v9040 = vadd.f32 %v8282, %v8778
        %v9041 = vadd.f32 %v8283, %v8783
        %v9042 = vadd.f32 %v8284, %v8786
        %v9043 = vadd.f32 %v8285, %v8791
        %v9044 = vadd.f32 %v8286, %v8794
        %v9045 = vadd.f32 %v8287, %v8799
        %v9046 = vadd.f32 %v8288, %v8802
        %v9047 = vadd.f32 %v8289, %v8807
        %v9048 = vadd.f32 %v8290, %v8810
        %v9049 = vadd.f32 %v8291, %v8815
        %v9050 = vadd.f32 %v8292, %v8818
        %v9051 = vadd.f32 %v8293, %v8823
        %v9052 = vadd.f32 %v8294, %v8826
        %v9053 = vadd.f32 %v8295, %v8831
        %v9054 = vadd.f32 %v8296, %v8834
        %v9055 = vadd.f32 %v8297, %v8839
        %v9056 = vadd.f32 %v8298, %v8842
        %v9057 = vadd.f32 %v8299, %v8847
        %v9058 = vadd.f32 %v8300, %v8850
        %v9059 = vadd.f32 %v8301, %v8855
        %v9060 = vadd.f32 %v8302, %v8858
        %v9061 = vadd.f32 %v8303, %v8863
        %v9062 = vadd.f32 %v8304, %v8866
        %v9063 = vadd.f32 %v8305, %v8871
        %v9064 = vadd.f32 %v8306, %v8874
        %v9065 = vadd.f32 %v8307, %v8879
        %v9066 = vadd.f32 %v8308, %v8882
        %v9067 = vadd.f32 %v8309, %v8887
        %v9068 = vadd.f32 %v8310, %v8890
        %v9069 = vadd.f32 %v8311, %v8895
        %v9070 = vadd.f32 %v8312, %v8898
        %v9071 = vadd.f32 %v8313, %v8903
        %v9072 = vadd.f32 %v8314, %v8906
        %v9073 = vadd.f32 %v8315, %v8911
        %v9074 = vadd.f32 %v8316, %v8914
        %v9075 = vadd.f32 %v8317, %v8919
        %v9076 = vadd.f32 %v8318, %v8922
        %v9077 = vadd.f32 %v8319, %v8927
        %v9078 = vadd.f32 %v8320, %v8930
        %v9079 = vadd.f32 %v8321, %v8935
        %v9080 = vadd.f32 %v8322, %v8938
        %v9081 = vadd.f32 %v8323, %v8943
        %v9082 = vadd.f32 %v8324, %v8946
        %v9083 = vadd.f32 %v8325, %v8951
        %v9084 = vadd.f32 %v8326, %v8954
        %v9085 = vrot.slane %v2188, 2
        %v9086 = vrot.slane %v2189, 2
        %v9087 = vsel %vm4117, %v9085, %v9086
        %v9088 = vrot.slane %v2190, 2
        %v9089 = vsel %vm4117, %v9086, %v9088
        %v9090 = vrot.slane %v2191, 2
        %v9091 = vsel %vm4117, %v9088, %v9090
        %v9092 = vrot.slane %v2192, 2
        %v9093 = vsel %vm4117, %v9090, %v9092
        %v9098 = vpack.c.bf16 %v9089, %v9087
        %v9099 = vpack.c.bf16 %v9093, %v9091
        %s9100 = scalar_lea.vmem [#allocation11], 512
        %v9101 = vld [vmem:[%s9100] sm:$0xf]
        %v9102 = vld [vmem:[%s9100 + $0x4] sm:$0xf]
        %v9103 = vld [vmem:[%s9100 + $0x8] sm:$0xf]
        %v9104 = vld [vmem:[%s9100 + $0xc] sm:$0xf]
        %v9105 = vld [vmem:[%s9100 + $0x10] sm:$0xf]
        %v9106 = vld [vmem:[%s9100 + $0x14] sm:$0xf]
        %v9107 = vld [vmem:[%s9100 + $0x18] sm:$0xf]
        %v9108 = vld [vmem:[%s9100 + $0x1c] sm:$0xf]
        %v9109 = vld [vmem:[%s9100 + $0x20] sm:$0xf]
        %v9110 = vld [vmem:[%s9100 + $0x24] sm:$0xf]
        %v9111 = vld [vmem:[%s9100 + $0x28] sm:$0xf]
        %v9112 = vld [vmem:[%s9100 + $0x2c] sm:$0xf]
        %v9113 = vld [vmem:[%s9100 + $0x30] sm:$0xf]
        %v9114 = vld [vmem:[%s9100 + $0x34] sm:$0xf]
        %v9115 = vld [vmem:[%s9100 + $0x38] sm:$0xf]
        %v9116 = vld [vmem:[%s9100 + $0x3c] sm:$0xf]
        %v9133 = vunpack.c.l.b16 %v9101
        %v9134 = vunpack.c.l.b16 %v9102
        %v9135 = vunpack.c.l.b16 %v9103
        %v9136 = vunpack.c.l.b16 %v9104
        %v9137 = vunpack.c.l.b16 %v9105
        %v9138 = vunpack.c.l.b16 %v9106
        %v9139 = vunpack.c.l.b16 %v9107
        %v9140 = vunpack.c.l.b16 %v9108
        %v9141 = vunpack.c.l.b16 %v9109
        %v9142 = vunpack.c.l.b16 %v9110
        %v9143 = vunpack.c.l.b16 %v9111
        %v9144 = vunpack.c.l.b16 %v9112
        %v9145 = vunpack.c.l.b16 %v9113
        %v9146 = vunpack.c.l.b16 %v9114
        %v9147 = vunpack.c.l.b16 %v9115
        %v9148 = vunpack.c.l.b16 %v9116
        %v9149 = vpack.c.b16 %v9134, %v9133
        %v9150 = vpack.c.b16 %v9136, %v9135
        %v9151 = vpack.c.b16 %v9138, %v9137
        %v9152 = vpack.c.b16 %v9140, %v9139
        %v9153 = vpack.c.b16 %v9142, %v9141
        %v9154 = vpack.c.b16 %v9144, %v9143
        %v9155 = vpack.c.b16 %v9146, %v9145
        %v9156 = vpack.c.b16 %v9148, %v9147
        %9165 = vmatprep.subr.bf16.mxu0 0
        %9166 = vmatpush1.bf16.msra.mxu0 %v9156
        %9167 = vmatprep.subr.bf16.mxu0 0
        %9168 = vmatpush1.bf16.msra.mxu0 %v9155
        %9169 = vmatprep.subr.bf16.mxu0 0
        %9170 = vmatpush1.bf16.msra.mxu0 %v9154
        %9171 = vmatprep.subr.bf16.mxu0 0
        %9172 = vmatpush1.bf16.msra.mxu0 %v9153
        %9173 = vmatprep.subr.bf16.mxu0 0
        %9174 = vmatpush1.bf16.msra.mxu0 %v9152
        %9175 = vmatprep.subr.bf16.mxu0 0
        %9176 = vmatpush1.bf16.msra.mxu0 %v9151
        %9177 = vmatprep.subr.bf16.mxu0 0
        %9178 = vmatpush1.bf16.msra.mxu0 %v9150
        %9179 = vmatprep.subr.bf16.mxu0 0
        %9180 = vmatpush1.bf16.msra.mxu0 %v9149
        %9181 = vmatprep.subr.bf16.mxu0 0
        %9182 = vmatpush2.bf16.msra.mxu0 0
        %9183 = vmatprep.subr.bf16.mxu0 0
        %9184 = vmatpush2.bf16.msra.mxu0 0
        %9185 = vmatprep.subr.bf16.mxu0 0
        %9186 = vmatpush2.bf16.msra.mxu0 0
        %9187 = vmatprep.subr.bf16.mxu0 0
        %9188 = vmatpush2.bf16.msra.mxu0 0
        %9189 = vmatprep.subr.bf16.mxu0 0
        %9190 = vmatpush2.bf16.msra.mxu0 0
        %9191 = vmatprep.subr.bf16.mxu0 0
        %9192 = vmatpush2.bf16.msra.mxu0 0
        %9193 = vmatprep.subr.bf16.mxu0 0
        %9194 = vmatpush2.bf16.msra.mxu0 0
        %9195 = vmatprep.subr.bf16.mxu0 0
        %9196 = vmatpush2.bf16.msra.mxu0 0
        %9197 = vmatprep.mubr.bf16.mxu0 0
        %9198 = vmatmul.mubr.bf16.gmra.mxu0 %v4538
        %v9199 = vpop.f32.mrf.mxu0
        %v9200 = vadd.f32 0.0, %v9199
        %v9201 = vpop.f32.mrf.mxu0
        %v9202 = vpop.f32.mrf.mxu0
        %v9203 = vadd.f32 0.0, %v9202
        %v9204 = vpop.f32.mrf.mxu0
        %9205 = vmatprep.mubr.bf16.mxu0 0
        %9206 = vmatmul.mubr.bf16.gmra.mxu0 %v4539
        %v9207 = vpop.f32.mrf.mxu0
        %v9208 = vadd.f32 0.0, %v9207
        %v9209 = vpop.f32.mrf.mxu0
        %v9210 = vpop.f32.mrf.mxu0
        %v9211 = vadd.f32 0.0, %v9210
        %v9212 = vpop.f32.mrf.mxu0
        %9213 = vmatprep.mubr.bf16.mxu0 0
        %9214 = vmatmul.mubr.bf16.gmra.mxu0 %v4540
        %v9215 = vpop.f32.mrf.mxu0
        %v9216 = vadd.f32 0.0, %v9215
        %v9217 = vpop.f32.mrf.mxu0
        %v9218 = vpop.f32.mrf.mxu0
        %v9219 = vadd.f32 0.0, %v9218
        %v9220 = vpop.f32.mrf.mxu0
        %9221 = vmatprep.mubr.bf16.mxu0 0
        %9222 = vmatmul.mubr.bf16.gmra.mxu0 %v4541
        %v9223 = vpop.f32.mrf.mxu0
        %v9224 = vadd.f32 0.0, %v9223
        %v9225 = vpop.f32.mrf.mxu0
        %v9226 = vpop.f32.mrf.mxu0
        %v9227 = vadd.f32 0.0, %v9226
        %v9228 = vpop.f32.mrf.mxu0
        %9229 = vmatprep.mubr.bf16.mxu0 0
        %9230 = vmatmul.mubr.bf16.gmra.mxu0 %v4542
        %v9231 = vpop.f32.mrf.mxu0
        %v9232 = vadd.f32 0.0, %v9231
        %v9233 = vpop.f32.mrf.mxu0
        %v9234 = vpop.f32.mrf.mxu0
        %v9235 = vadd.f32 0.0, %v9234
        %v9236 = vpop.f32.mrf.mxu0
        %9237 = vmatprep.mubr.bf16.mxu0 0
        %9238 = vmatmul.mubr.bf16.gmra.mxu0 %v4543
        %v9239 = vpop.f32.mrf.mxu0
        %v9240 = vadd.f32 0.0, %v9239
        %v9241 = vpop.f32.mrf.mxu0
        %v9242 = vpop.f32.mrf.mxu0
        %v9243 = vadd.f32 0.0, %v9242
        %v9244 = vpop.f32.mrf.mxu0
        %9245 = vmatprep.mubr.bf16.mxu0 0
        %9246 = vmatmul.mubr.bf16.gmra.mxu0 %v4544
        %v9247 = vpop.f32.mrf.mxu0
        %v9248 = vadd.f32 0.0, %v9247
        %v9249 = vpop.f32.mrf.mxu0
        %v9250 = vpop.f32.mrf.mxu0
        %v9251 = vadd.f32 0.0, %v9250
        %v9252 = vpop.f32.mrf.mxu0
        %9253 = vmatprep.mubr.bf16.mxu0 0
        %9254 = vmatmul.mubr.bf16.gmra.mxu0 %v4545
        %v9255 = vpop.f32.mrf.mxu0
        %v9256 = vadd.f32 0.0, %v9255
        %v9257 = vpop.f32.mrf.mxu0
        %v9258 = vpop.f32.mrf.mxu0
        %v9259 = vadd.f32 0.0, %v9258
        %v9260 = vpop.f32.mrf.mxu0
        %9261 = vmatprep.mubr.bf16.mxu0 0
        %9262 = vmatmul.mubr.bf16.gmra.mxu0 %v4546
        %v9263 = vpop.f32.mrf.mxu0
        %v9264 = vadd.f32 0.0, %v9263
        %v9265 = vpop.f32.mrf.mxu0
        %v9266 = vpop.f32.mrf.mxu0
        %v9267 = vadd.f32 0.0, %v9266
        %v9268 = vpop.f32.mrf.mxu0
        %9269 = vmatprep.mubr.bf16.mxu0 0
        %9270 = vmatmul.mubr.bf16.gmra.mxu0 %v4547
        %v9271 = vpop.f32.mrf.mxu0
        %v9272 = vadd.f32 0.0, %v9271
        %v9273 = vpop.f32.mrf.mxu0
        %v9274 = vpop.f32.mrf.mxu0
        %v9275 = vadd.f32 0.0, %v9274
        %v9276 = vpop.f32.mrf.mxu0
        %9277 = vmatprep.mubr.bf16.mxu0 0
        %9278 = vmatmul.mubr.bf16.gmra.mxu0 %v4548
        %v9279 = vpop.f32.mrf.mxu0
        %v9280 = vadd.f32 0.0, %v9279
        %v9281 = vpop.f32.mrf.mxu0
        %v9282 = vpop.f32.mrf.mxu0
        %v9283 = vadd.f32 0.0, %v9282
        %v9284 = vpop.f32.mrf.mxu0
        %9285 = vmatprep.mubr.bf16.mxu0 0
        %9286 = vmatmul.mubr.bf16.gmra.mxu0 %v4549
        %v9287 = vpop.f32.mrf.mxu0
        %v9288 = vadd.f32 0.0, %v9287
        %v9289 = vpop.f32.mrf.mxu0
        %v9290 = vpop.f32.mrf.mxu0
        %v9291 = vadd.f32 0.0, %v9290
        %v9292 = vpop.f32.mrf.mxu0
        %9293 = vmatprep.mubr.bf16.mxu0 0
        %9294 = vmatmul.mubr.bf16.gmra.mxu0 %v4550
        %v9295 = vpop.f32.mrf.mxu0
        %v9296 = vadd.f32 0.0, %v9295
        %v9297 = vpop.f32.mrf.mxu0
        %v9298 = vpop.f32.mrf.mxu0
        %v9299 = vadd.f32 0.0, %v9298
        %v9300 = vpop.f32.mrf.mxu0
        %9301 = vmatprep.mubr.bf16.mxu0 0
        %9302 = vmatmul.mubr.bf16.gmra.mxu0 %v4551
        %v9303 = vpop.f32.mrf.mxu0
        %v9304 = vadd.f32 0.0, %v9303
        %v9305 = vpop.f32.mrf.mxu0
        %v9306 = vpop.f32.mrf.mxu0
        %v9307 = vadd.f32 0.0, %v9306
        %v9308 = vpop.f32.mrf.mxu0
        %9309 = vmatprep.mubr.bf16.mxu0 0
        %9310 = vmatmul.mubr.bf16.gmra.mxu0 %v4552
        %v9311 = vpop.f32.mrf.mxu0
        %v9312 = vadd.f32 0.0, %v9311
        %v9313 = vpop.f32.mrf.mxu0
        %v9314 = vpop.f32.mrf.mxu0
        %v9315 = vadd.f32 0.0, %v9314
        %v9316 = vpop.f32.mrf.mxu0
        %9317 = vmatprep.mubr.bf16.mxu0 0
        %9318 = vmatmul.mubr.bf16.gmra.mxu0 %v4553
        %v9319 = vpop.f32.mrf.mxu0
        %v9320 = vadd.f32 0.0, %v9319
        %v9321 = vpop.f32.mrf.mxu0
        %v9322 = vpop.f32.mrf.mxu0
        %v9323 = vadd.f32 0.0, %v9322
        %v9324 = vpop.f32.mrf.mxu0
        %9325 = vmatprep.mubr.bf16.mxu0 0
        %9326 = vmatmul.mubr.bf16.gmra.mxu0 %v4554
        %v9327 = vpop.f32.mrf.mxu0
        %v9328 = vadd.f32 0.0, %v9327
        %v9329 = vpop.f32.mrf.mxu0
        %v9330 = vpop.f32.mrf.mxu0
        %v9331 = vadd.f32 0.0, %v9330
        %v9332 = vpop.f32.mrf.mxu0
        %9333 = vmatprep.mubr.bf16.mxu0 0
        %9334 = vmatmul.mubr.bf16.gmra.mxu0 %v4555
        %v9335 = vpop.f32.mrf.mxu0
        %v9336 = vadd.f32 0.0, %v9335
        %v9337 = vpop.f32.mrf.mxu0
        %v9338 = vpop.f32.mrf.mxu0
        %v9339 = vadd.f32 0.0, %v9338
        %v9340 = vpop.f32.mrf.mxu0
        %9341 = vmatprep.mubr.bf16.mxu0 0
        %9342 = vmatmul.mubr.bf16.gmra.mxu0 %v4556
        %v9343 = vpop.f32.mrf.mxu0
        %v9344 = vadd.f32 0.0, %v9343
        %v9345 = vpop.f32.mrf.mxu0
        %v9346 = vpop.f32.mrf.mxu0
        %v9347 = vadd.f32 0.0, %v9346
        %v9348 = vpop.f32.mrf.mxu0
        %9349 = vmatprep.mubr.bf16.mxu0 0
        %9350 = vmatmul.mubr.bf16.gmra.mxu0 %v4557
        %v9351 = vpop.f32.mrf.mxu0
        %v9352 = vadd.f32 0.0, %v9351
        %v9353 = vpop.f32.mrf.mxu0
        %v9354 = vpop.f32.mrf.mxu0
        %v9355 = vadd.f32 0.0, %v9354
        %v9356 = vpop.f32.mrf.mxu0
        %9357 = vmatprep.mubr.bf16.mxu0 0
        %9358 = vmatmul.mubr.bf16.gmra.mxu0 %v4558
        %v9359 = vpop.f32.mrf.mxu0
        %v9360 = vadd.f32 0.0, %v9359
        %v9361 = vpop.f32.mrf.mxu0
        %v9362 = vpop.f32.mrf.mxu0
        %v9363 = vadd.f32 0.0, %v9362
        %v9364 = vpop.f32.mrf.mxu0
        %9365 = vmatprep.mubr.bf16.mxu0 0
        %9366 = vmatmul.mubr.bf16.gmra.mxu0 %v4559
        %v9367 = vpop.f32.mrf.mxu0
        %v9368 = vadd.f32 0.0, %v9367
        %v9369 = vpop.f32.mrf.mxu0
        %v9370 = vpop.f32.mrf.mxu0
        %v9371 = vadd.f32 0.0, %v9370
        %v9372 = vpop.f32.mrf.mxu0
        %9373 = vmatprep.mubr.bf16.mxu0 0
        %9374 = vmatmul.mubr.bf16.gmra.mxu0 %v4560
        %v9375 = vpop.f32.mrf.mxu0
        %v9376 = vadd.f32 0.0, %v9375
        %v9377 = vpop.f32.mrf.mxu0
        %v9378 = vpop.f32.mrf.mxu0
        %v9379 = vadd.f32 0.0, %v9378
        %v9380 = vpop.f32.mrf.mxu0
        %9381 = vmatprep.mubr.bf16.mxu0 0
        %9382 = vmatmul.mubr.bf16.gmra.mxu0 %v4561
        %v9383 = vpop.f32.mrf.mxu0
        %v9384 = vadd.f32 0.0, %v9383
        %v9385 = vpop.f32.mrf.mxu0
        %v9386 = vpop.f32.mrf.mxu0
        %v9387 = vadd.f32 0.0, %v9386
        %v9388 = vpop.f32.mrf.mxu0
        %9389 = vmatprep.mubr.bf16.mxu0 0
        %9390 = vmatmul.mubr.bf16.gmra.mxu0 %v4562
        %v9391 = vpop.f32.mrf.mxu0
        %v9392 = vadd.f32 0.0, %v9391
        %v9393 = vpop.f32.mrf.mxu0
        %v9394 = vpop.f32.mrf.mxu0
        %v9395 = vadd.f32 0.0, %v9394
        %v9396 = vpop.f32.mrf.mxu0
        %9397 = vmatprep.mubr.bf16.mxu0 0
        %9398 = vmatmul.mubr.bf16.gmra.mxu0 %v4563
        %v9399 = vpop.f32.mrf.mxu0
        %v9400 = vadd.f32 0.0, %v9399
        %v9401 = vpop.f32.mrf.mxu0
        %v9402 = vpop.f32.mrf.mxu0
        %v9403 = vadd.f32 0.0, %v9402
        %v9404 = vpop.f32.mrf.mxu0
        %9405 = vmatprep.mubr.bf16.mxu0 0
        %9406 = vmatmul.mubr.bf16.gmra.mxu0 %v4564
        %v9407 = vpop.f32.mrf.mxu0
        %v9408 = vadd.f32 0.0, %v9407
        %v9409 = vpop.f32.mrf.mxu0
        %v9410 = vpop.f32.mrf.mxu0
        %v9411 = vadd.f32 0.0, %v9410
        %v9412 = vpop.f32.mrf.mxu0
        %9413 = vmatprep.mubr.bf16.mxu0 0
        %9414 = vmatmul.mubr.bf16.gmra.mxu0 %v4565
        %v9415 = vpop.f32.mrf.mxu0
        %v9416 = vadd.f32 0.0, %v9415
        %v9417 = vpop.f32.mrf.mxu0
        %v9418 = vpop.f32.mrf.mxu0
        %v9419 = vadd.f32 0.0, %v9418
        %v9420 = vpop.f32.mrf.mxu0
        %9421 = vmatprep.mubr.bf16.mxu0 0
        %9422 = vmatmul.mubr.bf16.gmra.mxu0 %v4566
        %v9423 = vpop.f32.mrf.mxu0
        %v9424 = vadd.f32 0.0, %v9423
        %v9425 = vpop.f32.mrf.mxu0
        %v9426 = vpop.f32.mrf.mxu0
        %v9427 = vadd.f32 0.0, %v9426
        %v9428 = vpop.f32.mrf.mxu0
        %9429 = vmatprep.mubr.bf16.mxu0 0
        %9430 = vmatmul.mubr.bf16.gmra.mxu0 %v4567
        %v9431 = vpop.f32.mrf.mxu0
        %v9432 = vadd.f32 0.0, %v9431
        %v9433 = vpop.f32.mrf.mxu0
        %v9434 = vpop.f32.mrf.mxu0
        %v9435 = vadd.f32 0.0, %v9434
        %v9436 = vpop.f32.mrf.mxu0
        %9437 = vmatprep.mubr.bf16.mxu0 0
        %9438 = vmatmul.mubr.bf16.gmra.mxu0 %v4568
        %v9439 = vpop.f32.mrf.mxu0
        %v9440 = vadd.f32 0.0, %v9439
        %v9441 = vpop.f32.mrf.mxu0
        %v9442 = vpop.f32.mrf.mxu0
        %v9443 = vadd.f32 0.0, %v9442
        %v9444 = vpop.f32.mrf.mxu0
        %9445 = vmatprep.mubr.bf16.mxu0 0
        %9446 = vmatmul.mubr.bf16.gmra.mxu0 %v4569
        %v9447 = vpop.f32.mrf.mxu0
        %v9448 = vadd.f32 0.0, %v9447
        %v9449 = vpop.f32.mrf.mxu0
        %v9450 = vpop.f32.mrf.mxu0
        %v9451 = vadd.f32 0.0, %v9450
        %v9452 = vpop.f32.mrf.mxu0
        %9453 = vmatprep.mubr.bf16.mxu0 0
        %9454 = vmatmul.mubr.bf16.gmra.mxu0 %v4570
        %v9455 = vpop.f32.mrf.mxu0
        %v9456 = vadd.f32 0.0, %v9455
        %v9457 = vpop.f32.mrf.mxu0
        %v9458 = vpop.f32.mrf.mxu0
        %v9459 = vadd.f32 0.0, %v9458
        %v9460 = vpop.f32.mrf.mxu0
        %9461 = vmatprep.mubr.bf16.mxu0 0
        %9462 = vmatmul.mubr.bf16.gmra.mxu0 %v4571
        %v9463 = vpop.f32.mrf.mxu0
        %v9464 = vadd.f32 0.0, %v9463
        %v9465 = vpop.f32.mrf.mxu0
        %v9466 = vpop.f32.mrf.mxu0
        %v9467 = vadd.f32 0.0, %v9466
        %v9468 = vpop.f32.mrf.mxu0
        %9469 = vmatprep.mubr.bf16.mxu0 0
        %9470 = vmatmul.mubr.bf16.gmra.mxu0 %v4572
        %v9471 = vpop.f32.mrf.mxu0
        %v9472 = vadd.f32 0.0, %v9471
        %v9473 = vpop.f32.mrf.mxu0
        %v9474 = vpop.f32.mrf.mxu0
        %v9475 = vadd.f32 0.0, %v9474
        %v9476 = vpop.f32.mrf.mxu0
        %9477 = vmatprep.mubr.bf16.mxu0 0
        %9478 = vmatmul.mubr.bf16.gmra.mxu0 %v4573
        %v9479 = vpop.f32.mrf.mxu0
        %v9480 = vadd.f32 0.0, %v9479
        %v9481 = vpop.f32.mrf.mxu0
        %v9482 = vpop.f32.mrf.mxu0
        %v9483 = vadd.f32 0.0, %v9482
        %v9484 = vpop.f32.mrf.mxu0
        %9485 = vmatprep.mubr.bf16.mxu0 0
        %9486 = vmatmul.mubr.bf16.gmra.mxu0 %v4574
        %v9487 = vpop.f32.mrf.mxu0
        %v9488 = vadd.f32 0.0, %v9487
        %v9489 = vpop.f32.mrf.mxu0
        %v9490 = vpop.f32.mrf.mxu0
        %v9491 = vadd.f32 0.0, %v9490
        %v9492 = vpop.f32.mrf.mxu0
        %9493 = vmatprep.mubr.bf16.mxu0 0
        %9494 = vmatmul.mubr.bf16.gmra.mxu0 %v4575
        %v9495 = vpop.f32.mrf.mxu0
        %v9496 = vadd.f32 0.0, %v9495
        %v9497 = vpop.f32.mrf.mxu0
        %v9498 = vpop.f32.mrf.mxu0
        %v9499 = vadd.f32 0.0, %v9498
        %v9500 = vpop.f32.mrf.mxu0
        %9501 = vmatprep.mubr.bf16.mxu0 0
        %9502 = vmatmul.mubr.bf16.gmra.mxu0 %v4576
        %v9503 = vpop.f32.mrf.mxu0
        %v9504 = vadd.f32 0.0, %v9503
        %v9505 = vpop.f32.mrf.mxu0
        %v9506 = vpop.f32.mrf.mxu0
        %v9507 = vadd.f32 0.0, %v9506
        %v9508 = vpop.f32.mrf.mxu0
        %9509 = vmatprep.mubr.bf16.mxu0 0
        %9510 = vmatmul.mubr.bf16.gmra.mxu0 %v4577
        %v9511 = vpop.f32.mrf.mxu0
        %v9512 = vadd.f32 0.0, %v9511
        %v9513 = vpop.f32.mrf.mxu0
        %v9514 = vpop.f32.mrf.mxu0
        %v9515 = vadd.f32 0.0, %v9514
        %v9516 = vpop.f32.mrf.mxu0
        %9517 = vmatprep.mubr.bf16.mxu0 0
        %9518 = vmatmul.mubr.bf16.gmra.mxu0 %v4578
        %v9519 = vpop.f32.mrf.mxu0
        %v9520 = vadd.f32 0.0, %v9519
        %v9521 = vpop.f32.mrf.mxu0
        %v9522 = vpop.f32.mrf.mxu0
        %v9523 = vadd.f32 0.0, %v9522
        %v9524 = vpop.f32.mrf.mxu0
        %9525 = vmatprep.mubr.bf16.mxu0 0
        %9526 = vmatmul.mubr.bf16.gmra.mxu0 %v4579
        %v9527 = vpop.f32.mrf.mxu0
        %v9528 = vadd.f32 0.0, %v9527
        %v9529 = vpop.f32.mrf.mxu0
        %v9530 = vpop.f32.mrf.mxu0
        %v9531 = vadd.f32 0.0, %v9530
        %v9532 = vpop.f32.mrf.mxu0
        %9533 = vmatprep.mubr.bf16.mxu0 0
        %9534 = vmatmul.mubr.bf16.gmra.mxu0 %v4580
        %v9535 = vpop.f32.mrf.mxu0
        %v9536 = vadd.f32 0.0, %v9535
        %v9537 = vpop.f32.mrf.mxu0
        %v9538 = vpop.f32.mrf.mxu0
        %v9539 = vadd.f32 0.0, %v9538
        %v9540 = vpop.f32.mrf.mxu0
        %9541 = vmatprep.mubr.bf16.mxu0 0
        %9542 = vmatmul.mubr.bf16.gmra.mxu0 %v4581
        %v9543 = vpop.f32.mrf.mxu0
        %v9544 = vadd.f32 0.0, %v9543
        %v9545 = vpop.f32.mrf.mxu0
        %v9546 = vpop.f32.mrf.mxu0
        %v9547 = vadd.f32 0.0, %v9546
        %v9548 = vpop.f32.mrf.mxu0
        %9549 = vmatprep.mubr.bf16.mxu0 0
        %9550 = vmatmul.mubr.bf16.gmra.mxu0 %v4582
        %v9551 = vpop.f32.mrf.mxu0
        %v9552 = vadd.f32 0.0, %v9551
        %v9553 = vpop.f32.mrf.mxu0
        %v9554 = vpop.f32.mrf.mxu0
        %v9555 = vadd.f32 0.0, %v9554
        %v9556 = vpop.f32.mrf.mxu0
        %9557 = vmatprep.mubr.bf16.mxu0 0
        %9558 = vmatmul.mubr.bf16.gmra.mxu0 %v4583
        %v9559 = vpop.f32.mrf.mxu0
        %v9560 = vadd.f32 0.0, %v9559
        %v9561 = vpop.f32.mrf.mxu0
        %v9562 = vpop.f32.mrf.mxu0
        %v9563 = vadd.f32 0.0, %v9562
        %v9564 = vpop.f32.mrf.mxu0
        %9565 = vmatprep.mubr.bf16.mxu0 0
        %9566 = vmatmul.mubr.bf16.gmra.mxu0 %v4584
        %v9567 = vpop.f32.mrf.mxu0
        %v9568 = vadd.f32 0.0, %v9567
        %v9569 = vpop.f32.mrf.mxu0
        %v9570 = vpop.f32.mrf.mxu0
        %v9571 = vadd.f32 0.0, %v9570
        %v9572 = vpop.f32.mrf.mxu0
        %9573 = vmatprep.mubr.bf16.mxu0 0
        %9574 = vmatmul.mubr.bf16.gmra.mxu0 %v4585
        %v9575 = vpop.f32.mrf.mxu0
        %v9576 = vadd.f32 0.0, %v9575
        %v9577 = vpop.f32.mrf.mxu0
        %v9578 = vpop.f32.mrf.mxu0
        %v9579 = vadd.f32 0.0, %v9578
        %v9580 = vpop.f32.mrf.mxu0
        %9581 = vmatprep.mubr.bf16.mxu0 0
        %9582 = vmatmul.mubr.bf16.gmra.mxu0 %v4586
        %v9583 = vpop.f32.mrf.mxu0
        %v9584 = vadd.f32 0.0, %v9583
        %v9585 = vpop.f32.mrf.mxu0
        %v9586 = vpop.f32.mrf.mxu0
        %v9587 = vadd.f32 0.0, %v9586
        %v9588 = vpop.f32.mrf.mxu0
        %9589 = vmatprep.mubr.bf16.mxu0 0
        %9590 = vmatmul.mubr.bf16.gmra.mxu0 %v4587
        %v9591 = vpop.f32.mrf.mxu0
        %v9592 = vadd.f32 0.0, %v9591
        %v9593 = vpop.f32.mrf.mxu0
        %v9594 = vpop.f32.mrf.mxu0
        %v9595 = vadd.f32 0.0, %v9594
        %v9596 = vpop.f32.mrf.mxu0
        %9597 = vmatprep.mubr.bf16.mxu0 0
        %9598 = vmatmul.mubr.bf16.gmra.mxu0 %v4588
        %v9599 = vpop.f32.mrf.mxu0
        %v9600 = vadd.f32 0.0, %v9599
        %v9601 = vpop.f32.mrf.mxu0
        %v9602 = vpop.f32.mrf.mxu0
        %v9603 = vadd.f32 0.0, %v9602
        %v9604 = vpop.f32.mrf.mxu0
        %9605 = vmatprep.mubr.bf16.mxu0 0
        %9606 = vmatmul.mubr.bf16.gmra.mxu0 %v4589
        %v9607 = vpop.f32.mrf.mxu0
        %v9608 = vadd.f32 0.0, %v9607
        %v9609 = vpop.f32.mrf.mxu0
        %v9610 = vpop.f32.mrf.mxu0
        %v9611 = vadd.f32 0.0, %v9610
        %v9612 = vpop.f32.mrf.mxu0
        %9613 = vmatprep.mubr.bf16.mxu0 0
        %9614 = vmatmul.mubr.bf16.gmra.mxu0 %v4590
        %v9615 = vpop.f32.mrf.mxu0
        %v9616 = vadd.f32 0.0, %v9615
        %v9617 = vpop.f32.mrf.mxu0
        %v9618 = vpop.f32.mrf.mxu0
        %v9619 = vadd.f32 0.0, %v9618
        %v9620 = vpop.f32.mrf.mxu0
        %9621 = vmatprep.mubr.bf16.mxu0 0
        %9622 = vmatmul.mubr.bf16.gmra.mxu0 %v4591
        %v9623 = vpop.f32.mrf.mxu0
        %v9624 = vadd.f32 0.0, %v9623
        %v9625 = vpop.f32.mrf.mxu0
        %v9626 = vpop.f32.mrf.mxu0
        %v9627 = vadd.f32 0.0, %v9626
        %v9628 = vpop.f32.mrf.mxu0
        %9629 = vmatprep.mubr.bf16.mxu0 0
        %9630 = vmatmul.mubr.bf16.gmra.mxu0 %v4592
        %v9631 = vpop.f32.mrf.mxu0
        %v9632 = vadd.f32 0.0, %v9631
        %v9633 = vpop.f32.mrf.mxu0
        %v9634 = vpop.f32.mrf.mxu0
        %v9635 = vadd.f32 0.0, %v9634
        %v9636 = vpop.f32.mrf.mxu0
        %9637 = vmatprep.mubr.bf16.mxu0 0
        %9638 = vmatmul.mubr.bf16.gmra.mxu0 %v4593
        %v9639 = vpop.f32.mrf.mxu0
        %v9640 = vadd.f32 0.0, %v9639
        %v9641 = vpop.f32.mrf.mxu0
        %v9642 = vpop.f32.mrf.mxu0
        %v9643 = vadd.f32 0.0, %v9642
        %v9644 = vpop.f32.mrf.mxu0
        %9645 = vmatprep.mubr.bf16.mxu0 0
        %9646 = vmatmul.mubr.bf16.gmra.mxu0 %v4594
        %v9647 = vpop.f32.mrf.mxu0
        %v9648 = vadd.f32 0.0, %v9647
        %v9649 = vpop.f32.mrf.mxu0
        %v9650 = vpop.f32.mrf.mxu0
        %v9651 = vadd.f32 0.0, %v9650
        %v9652 = vpop.f32.mrf.mxu0
        %9653 = vmatprep.mubr.bf16.mxu0 0
        %9654 = vmatmul.mubr.bf16.gmra.mxu0 %v4595
        %v9655 = vpop.f32.mrf.mxu0
        %v9656 = vadd.f32 0.0, %v9655
        %v9657 = vpop.f32.mrf.mxu0
        %v9658 = vpop.f32.mrf.mxu0
        %v9659 = vadd.f32 0.0, %v9658
        %v9660 = vpop.f32.mrf.mxu0
        %9661 = vmatprep.mubr.bf16.mxu0 0
        %9662 = vmatmul.mubr.bf16.gmra.mxu0 %v4596
        %v9663 = vpop.f32.mrf.mxu0
        %v9664 = vadd.f32 0.0, %v9663
        %v9665 = vpop.f32.mrf.mxu0
        %v9666 = vpop.f32.mrf.mxu0
        %v9667 = vadd.f32 0.0, %v9666
        %v9668 = vpop.f32.mrf.mxu0
        %9669 = vmatprep.mubr.bf16.mxu0 0
        %9670 = vmatmul.mubr.bf16.gmra.mxu0 %v4597
        %v9671 = vpop.f32.mrf.mxu0
        %v9672 = vadd.f32 0.0, %v9671
        %v9673 = vpop.f32.mrf.mxu0
        %v9674 = vpop.f32.mrf.mxu0
        %v9675 = vadd.f32 0.0, %v9674
        %v9676 = vpop.f32.mrf.mxu0
        %9677 = vmatprep.mubr.bf16.mxu0 0
        %9678 = vmatmul.mubr.bf16.gmra.mxu0 %v6847
        %v9679 = vpop.f32.mrf.mxu0
        %v9680 = vadd.f32 0.0, %v9679
        %v9681 = vpop.f32.mrf.mxu0
        %v9682 = vpop.f32.mrf.mxu0
        %v9683 = vadd.f32 0.0, %v9682
        %v9684 = vpop.f32.mrf.mxu0
        %9685 = vmatprep.mubr.bf16.mxu0 0
        %9686 = vmatmul.mubr.bf16.gmra.mxu0 %v6848
        %v9687 = vpop.f32.mrf.mxu0
        %v9688 = vadd.f32 0.0, %v9687
        %v9689 = vpop.f32.mrf.mxu0
        %v9690 = vpop.f32.mrf.mxu0
        %v9691 = vadd.f32 0.0, %v9690
        %v9692 = vpop.f32.mrf.mxu0
        %9693 = vmatprep.mubr.bf16.mxu0 0
        %9694 = vmatmul.mubr.bf16.gmra.mxu0 %v9098
        %v9695 = vpop.f32.mrf.mxu0
        %v9696 = vadd.f32 0.0, %v9695
        %v9697 = vpop.f32.mrf.mxu0
        %v9698 = vpop.f32.mrf.mxu0
        %v9699 = vadd.f32 0.0, %v9698
        %v9700 = vpop.f32.mrf.mxu0
        %9701 = vmatprep.mubr.bf16.mxu0 0
        %9702 = vmatmul.mubr.bf16.gmra.mxu0 %v9099
        %v9703 = vpop.f32.mrf.mxu0
        %v9704 = vadd.f32 0.0, %v9703
        %v9705 = vpop.f32.mrf.mxu0
        %v9706 = vpop.f32.mrf.mxu0
        %v9707 = vadd.f32 0.0, %v9706
        %v9708 = vpop.f32.mrf.mxu0
        %9709 = vdwg.mxu0
        %v9710 = vadd.f32 %v8957, %v9200
        %v9711 = vadd.f32 %v8958, %v9203
        %v9712 = vadd.f32 %v8959, %v9208
        %v9713 = vadd.f32 %v8960, %v9211
        %v9714 = vadd.f32 %v8961, %v9216
        %v9715 = vadd.f32 %v8962, %v9219
        %v9716 = vadd.f32 %v8963, %v9224
        %v9717 = vadd.f32 %v8964, %v9227
        %v9718 = vadd.f32 %v8965, %v9232
        %v9719 = vadd.f32 %v8966, %v9235
        %v9720 = vadd.f32 %v8967, %v9240
        %v9721 = vadd.f32 %v8968, %v9243
        %v9722 = vadd.f32 %v8969, %v9248
        %v9723 = vadd.f32 %v8970, %v9251
        %v9724 = vadd.f32 %v8971, %v9256
        %v9725 = vadd.f32 %v8972, %v9259
        %v9726 = vadd.f32 %v8973, %v9264
        %v9727 = vadd.f32 %v8974, %v9267
        %v9728 = vadd.f32 %v8975, %v9272
        %v9729 = vadd.f32 %v8976, %v9275
        %v9730 = vadd.f32 %v8977, %v9280
        %v9731 = vadd.f32 %v8978, %v9283
        %v9732 = vadd.f32 %v8979, %v9288
        %v9733 = vadd.f32 %v8980, %v9291
        %v9734 = vadd.f32 %v8981, %v9296
        %v9735 = vadd.f32 %v8982, %v9299
        %v9736 = vadd.f32 %v8983, %v9304
        %v9737 = vadd.f32 %v8984, %v9307
        %v9738 = vadd.f32 %v8985, %v9312
        %v9739 = vadd.f32 %v8986, %v9315
        %v9740 = vadd.f32 %v8987, %v9320
        %v9741 = vadd.f32 %v8988, %v9323
        %v9742 = vadd.f32 %v8989, %v9328
        %v9743 = vadd.f32 %v8990, %v9331
        %v9744 = vadd.f32 %v8991, %v9336
        %v9745 = vadd.f32 %v8992, %v9339
        %v9746 = vadd.f32 %v8993, %v9344
        %v9747 = vadd.f32 %v8994, %v9347
        %v9748 = vadd.f32 %v8995, %v9352
        %v9749 = vadd.f32 %v8996, %v9355
        %v9750 = vadd.f32 %v8997, %v9360
        %v9751 = vadd.f32 %v8998, %v9363
        %v9752 = vadd.f32 %v8999, %v9368
        %v9753 = vadd.f32 %v9000, %v9371
        %v9754 = vadd.f32 %v9001, %v9376
        %v9755 = vadd.f32 %v9002, %v9379
        %v9756 = vadd.f32 %v9003, %v9384
        %v9757 = vadd.f32 %v9004, %v9387
        %v9758 = vadd.f32 %v9005, %v9392
        %v9759 = vadd.f32 %v9006, %v9395
        %v9760 = vadd.f32 %v9007, %v9400
        %v9761 = vadd.f32 %v9008, %v9403
        %v9762 = vadd.f32 %v9009, %v9408
        %v9763 = vadd.f32 %v9010, %v9411
        %v9764 = vadd.f32 %v9011, %v9416
        %v9765 = vadd.f32 %v9012, %v9419
        %v9766 = vadd.f32 %v9013, %v9424
        %v9767 = vadd.f32 %v9014, %v9427
        %v9768 = vadd.f32 %v9015, %v9432
        %v9769 = vadd.f32 %v9016, %v9435
        %v9770 = vadd.f32 %v9017, %v9440
        %v9771 = vadd.f32 %v9018, %v9443
        %v9772 = vadd.f32 %v9019, %v9448
        %v9773 = vadd.f32 %v9020, %v9451
        %v9774 = vadd.f32 %v9021, %v9456
        %v9775 = vadd.f32 %v9022, %v9459
        %v9776 = vadd.f32 %v9023, %v9464
        %v9777 = vadd.f32 %v9024, %v9467
        %v9778 = vadd.f32 %v9025, %v9472
        %v9779 = vadd.f32 %v9026, %v9475
        %v9780 = vadd.f32 %v9027, %v9480
        %v9781 = vadd.f32 %v9028, %v9483
        %v9782 = vadd.f32 %v9029, %v9488
        %v9783 = vadd.f32 %v9030, %v9491
        %v9784 = vadd.f32 %v9031, %v9496
        %v9785 = vadd.f32 %v9032, %v9499
        %v9786 = vadd.f32 %v9033, %v9504
        %v9787 = vadd.f32 %v9034, %v9507
        %v9788 = vadd.f32 %v9035, %v9512
        %v9789 = vadd.f32 %v9036, %v9515
        %v9790 = vadd.f32 %v9037, %v9520
        %v9791 = vadd.f32 %v9038, %v9523
        %v9792 = vadd.f32 %v9039, %v9528
        %v9793 = vadd.f32 %v9040, %v9531
        %v9794 = vadd.f32 %v9041, %v9536
        %v9795 = vadd.f32 %v9042, %v9539
        %v9796 = vadd.f32 %v9043, %v9544
        %v9797 = vadd.f32 %v9044, %v9547
        %v9798 = vadd.f32 %v9045, %v9552
        %v9799 = vadd.f32 %v9046, %v9555
        %v9800 = vadd.f32 %v9047, %v9560
        %v9801 = vadd.f32 %v9048, %v9563
        %v9802 = vadd.f32 %v9049, %v9568
        %v9803 = vadd.f32 %v9050, %v9571
        %v9804 = vadd.f32 %v9051, %v9576
        %v9805 = vadd.f32 %v9052, %v9579
        %v9806 = vadd.f32 %v9053, %v9584
        %v9807 = vadd.f32 %v9054, %v9587
        %v9808 = vadd.f32 %v9055, %v9592
        %v9809 = vadd.f32 %v9056, %v9595
        %v9810 = vadd.f32 %v9057, %v9600
        %v9811 = vadd.f32 %v9058, %v9603
        %v9812 = vadd.f32 %v9059, %v9608
        %v9813 = vadd.f32 %v9060, %v9611
        %v9814 = vadd.f32 %v9061, %v9616
        %v9815 = vadd.f32 %v9062, %v9619
        %v9816 = vadd.f32 %v9063, %v9624
        %v9817 = vadd.f32 %v9064, %v9627
        %v9818 = vadd.f32 %v9065, %v9632
        %v9819 = vadd.f32 %v9066, %v9635
        %v9820 = vadd.f32 %v9067, %v9640
        %v9821 = vadd.f32 %v9068, %v9643
        %v9822 = vadd.f32 %v9069, %v9648
        %v9823 = vadd.f32 %v9070, %v9651
        %v9824 = vadd.f32 %v9071, %v9656
        %v9825 = vadd.f32 %v9072, %v9659
        %v9826 = vadd.f32 %v9073, %v9664
        %v9827 = vadd.f32 %v9074, %v9667
        %v9828 = vadd.f32 %v9075, %v9672
        %v9829 = vadd.f32 %v9076, %v9675
        %v9830 = vadd.f32 %v9077, %v9680
        %v9831 = vadd.f32 %v9078, %v9683
        %v9832 = vadd.f32 %v9079, %v9688
        %v9833 = vadd.f32 %v9080, %v9691
        %v9834 = vadd.f32 %v9081, %v9696
        %v9835 = vadd.f32 %v9082, %v9699
        %v9836 = vadd.f32 %v9083, %v9704
        %v9837 = vadd.f32 %v9084, %v9707
        %v9838 = vld [vmem:[%s6] sm:$0x1]
        %v9840 = vlaneseq
        %v9841 = vshrl.u32 %v9840, 7
        %v9842 = vsub.s32 0, %v9841
        %v9843 = vrot.slane %v9838, %v9842
        %v9845 = vadd.f32 %v9710, %v9843
        %v9846 = vadd.f32 %v9711, %v9843
        %v9847 = vadd.f32 %v9712, %v9843
        %v9848 = vadd.f32 %v9713, %v9843
        %v9849 = vadd.f32 %v9714, %v9843
        %v9850 = vadd.f32 %v9715, %v9843
        %v9851 = vadd.f32 %v9716, %v9843
        %v9852 = vadd.f32 %v9717, %v9843
        %v9853 = vadd.f32 %v9718, %v9843
        %v9854 = vadd.f32 %v9719, %v9843
        %v9855 = vadd.f32 %v9720, %v9843
        %v9856 = vadd.f32 %v9721, %v9843
        %v9857 = vadd.f32 %v9722, %v9843
        %v9858 = vadd.f32 %v9723, %v9843
        %v9859 = vadd.f32 %v9724, %v9843
        %v9860 = vadd.f32 %v9725, %v9843
        %v9861 = vadd.f32 %v9726, %v9843
        %v9862 = vadd.f32 %v9727, %v9843
        %v9863 = vadd.f32 %v9728, %v9843
        %v9864 = vadd.f32 %v9729, %v9843
        %v9865 = vadd.f32 %v9730, %v9843
        %v9866 = vadd.f32 %v9731, %v9843
        %v9867 = vadd.f32 %v9732, %v9843
        %v9868 = vadd.f32 %v9733, %v9843
        %v9869 = vadd.f32 %v9734, %v9843
        %v9870 = vadd.f32 %v9735, %v9843
        %v9871 = vadd.f32 %v9736, %v9843
        %v9872 = vadd.f32 %v9737, %v9843
        %v9873 = vadd.f32 %v9738, %v9843
        %v9874 = vadd.f32 %v9739, %v9843
        %v9875 = vadd.f32 %v9740, %v9843
        %v9876 = vadd.f32 %v9741, %v9843
        %v9877 = vadd.f32 %v9742, %v9843
        %v9878 = vadd.f32 %v9743, %v9843
        %v9879 = vadd.f32 %v9744, %v9843
        %v9880 = vadd.f32 %v9745, %v9843
        %v9881 = vadd.f32 %v9746, %v9843
        %v9882 = vadd.f32 %v9747, %v9843
        %v9883 = vadd.f32 %v9748, %v9843
        %v9884 = vadd.f32 %v9749, %v9843
        %v9885 = vadd.f32 %v9750, %v9843
        %v9886 = vadd.f32 %v9751, %v9843
        %v9887 = vadd.f32 %v9752, %v9843
        %v9888 = vadd.f32 %v9753, %v9843
        %v9889 = vadd.f32 %v9754, %v9843
        %v9890 = vadd.f32 %v9755, %v9843
        %v9891 = vadd.f32 %v9756, %v9843
        %v9892 = vadd.f32 %v9757, %v9843
        %v9893 = vadd.f32 %v9758, %v9843
        %v9894 = vadd.f32 %v9759, %v9843
        %v9895 = vadd.f32 %v9760, %v9843
        %v9896 = vadd.f32 %v9761, %v9843
        %v9897 = vadd.f32 %v9762, %v9843
        %v9898 = vadd.f32 %v9763, %v9843
        %v9899 = vadd.f32 %v9764, %v9843
        %v9900 = vadd.f32 %v9765, %v9843
        %v9901 = vadd.f32 %v9766, %v9843
        %v9902 = vadd.f32 %v9767, %v9843
        %v9903 = vadd.f32 %v9768, %v9843
        %v9904 = vadd.f32 %v9769, %v9843
        %v9905 = vadd.f32 %v9770, %v9843
        %v9906 = vadd.f32 %v9771, %v9843
        %v9907 = vadd.f32 %v9772, %v9843
        %v9908 = vadd.f32 %v9773, %v9843
        %v9909 = vadd.f32 %v9774, %v9843
        %v9910 = vadd.f32 %v9775, %v9843
        %v9911 = vadd.f32 %v9776, %v9843
        %v9912 = vadd.f32 %v9777, %v9843
        %v9913 = vadd.f32 %v9778, %v9843
        %v9914 = vadd.f32 %v9779, %v9843
        %v9915 = vadd.f32 %v9780, %v9843
        %v9916 = vadd.f32 %v9781, %v9843
        %v9917 = vadd.f32 %v9782, %v9843
        %v9918 = vadd.f32 %v9783, %v9843
        %v9919 = vadd.f32 %v9784, %v9843
        %v9920 = vadd.f32 %v9785, %v9843
        %v9921 = vadd.f32 %v9786, %v9843
        %v9922 = vadd.f32 %v9787, %v9843
        %v9923 = vadd.f32 %v9788, %v9843
        %v9924 = vadd.f32 %v9789, %v9843
        %v9925 = vadd.f32 %v9790, %v9843
        %v9926 = vadd.f32 %v9791, %v9843
        %v9927 = vadd.f32 %v9792, %v9843
        %v9928 = vadd.f32 %v9793, %v9843
        %v9929 = vadd.f32 %v9794, %v9843
        %v9930 = vadd.f32 %v9795, %v9843
        %v9931 = vadd.f32 %v9796, %v9843
        %v9932 = vadd.f32 %v9797, %v9843
        %v9933 = vadd.f32 %v9798, %v9843
        %v9934 = vadd.f32 %v9799, %v9843
        %v9935 = vadd.f32 %v9800, %v9843
        %v9936 = vadd.f32 %v9801, %v9843
        %v9937 = vadd.f32 %v9802, %v9843
        %v9938 = vadd.f32 %v9803, %v9843
        %v9939 = vadd.f32 %v9804, %v9843
        %v9940 = vadd.f32 %v9805, %v9843
        %v9941 = vadd.f32 %v9806, %v9843
        %v9942 = vadd.f32 %v9807, %v9843
        %v9943 = vadd.f32 %v9808, %v9843
        %v9944 = vadd.f32 %v9809, %v9843
        %v9945 = vadd.f32 %v9810, %v9843
        %v9946 = vadd.f32 %v9811, %v9843
        %v9947 = vadd.f32 %v9812, %v9843
        %v9948 = vadd.f32 %v9813, %v9843
        %v9949 = vadd.f32 %v9814, %v9843
        %v9950 = vadd.f32 %v9815, %v9843
        %v9951 = vadd.f32 %v9816, %v9843
        %v9952 = vadd.f32 %v9817, %v9843
        %v9953 = vadd.f32 %v9818, %v9843
        %v9954 = vadd.f32 %v9819, %v9843
        %v9955 = vadd.f32 %v9820, %v9843
        %v9956 = vadd.f32 %v9821, %v9843
        %v9957 = vadd.f32 %v9822, %v9843
        %v9958 = vadd.f32 %v9823, %v9843
        %v9959 = vadd.f32 %v9824, %v9843
        %v9960 = vadd.f32 %v9825, %v9843
        %v9961 = vadd.f32 %v9826, %v9843
        %v9962 = vadd.f32 %v9827, %v9843
        %v9963 = vadd.f32 %v9828, %v9843
        %v9964 = vadd.f32 %v9829, %v9843
        %v9965 = vadd.f32 %v9830, %v9843
        %v9966 = vadd.f32 %v9831, %v9843
        %v9967 = vadd.f32 %v9832, %v9843
        %v9968 = vadd.f32 %v9833, %v9843
        %v9969 = vadd.f32 %v9834, %v9843
        %v9970 = vadd.f32 %v9835, %v9843
        %v9971 = vadd.f32 %v9836, %v9843
        %v9972 = vadd.f32 %v9837, %v9843
        %v9973 = vmax.f32 %v9845, 0.0
        %v9974 = vmax.f32 %v9846, 0.0
        %v9975 = vmax.f32 %v9847, 0.0
        %v9976 = vmax.f32 %v9848, 0.0
        %v9977 = vmax.f32 %v9849, 0.0
        %v9978 = vmax.f32 %v9850, 0.0
        %v9979 = vmax.f32 %v9851, 0.0
        %v9980 = vmax.f32 %v9852, 0.0
        %v9981 = vmax.f32 %v9853, 0.0
        %v9982 = vmax.f32 %v9854, 0.0
        %v9983 = vmax.f32 %v9855, 0.0
        %v9984 = vmax.f32 %v9856, 0.0
        %v9985 = vmax.f32 %v9857, 0.0
        %v9986 = vmax.f32 %v9858, 0.0
        %v9987 = vmax.f32 %v9859, 0.0
        %v9988 = vmax.f32 %v9860, 0.0
        %v9989 = vmax.f32 %v9861, 0.0
        %v9990 = vmax.f32 %v9862, 0.0
        %v9991 = vmax.f32 %v9863, 0.0
        %v9992 = vmax.f32 %v9864, 0.0
        %v9993 = vmax.f32 %v9865, 0.0
        %v9994 = vmax.f32 %v9866, 0.0
        %v9995 = vmax.f32 %v9867, 0.0
        %v9996 = vmax.f32 %v9868, 0.0
        %v9997 = vmax.f32 %v9869, 0.0
        %v9998 = vmax.f32 %v9870, 0.0
        %v9999 = vmax.f32 %v9871, 0.0
        %v10000 = vmax.f32 %v9872, 0.0
        %v10001 = vmax.f32 %v9873, 0.0
        %v10002 = vmax.f32 %v9874, 0.0
        %v10003 = vmax.f32 %v9875, 0.0
        %v10004 = vmax.f32 %v9876, 0.0
        %v10005 = vmax.f32 %v9877, 0.0
        %v10006 = vmax.f32 %v9878, 0.0
        %v10007 = vmax.f32 %v9879, 0.0
        %v10008 = vmax.f32 %v9880, 0.0
        %v10009 = vmax.f32 %v9881, 0.0
        %v10010 = vmax.f32 %v9882, 0.0
        %v10011 = vmax.f32 %v9883, 0.0
        %v10012 = vmax.f32 %v9884, 0.0
        %v10013 = vmax.f32 %v9885, 0.0
        %v10014 = vmax.f32 %v9886, 0.0
        %v10015 = vmax.f32 %v9887, 0.0
        %v10016 = vmax.f32 %v9888, 0.0
        %v10017 = vmax.f32 %v9889, 0.0
        %v10018 = vmax.f32 %v9890, 0.0
        %v10019 = vmax.f32 %v9891, 0.0
        %v10020 = vmax.f32 %v9892, 0.0
        %v10021 = vmax.f32 %v9893, 0.0
        %v10022 = vmax.f32 %v9894, 0.0
        %v10023 = vmax.f32 %v9895, 0.0
        %v10024 = vmax.f32 %v9896, 0.0
        %v10025 = vmax.f32 %v9897, 0.0
        %v10026 = vmax.f32 %v9898, 0.0
        %v10027 = vmax.f32 %v9899, 0.0
        %v10028 = vmax.f32 %v9900, 0.0
        %v10029 = vmax.f32 %v9901, 0.0
        %v10030 = vmax.f32 %v9902, 0.0
        %v10031 = vmax.f32 %v9903, 0.0
        %v10032 = vmax.f32 %v9904, 0.0
        %v10033 = vmax.f32 %v9905, 0.0
        %v10034 = vmax.f32 %v9906, 0.0
        %v10035 = vmax.f32 %v9907, 0.0
        %v10036 = vmax.f32 %v9908, 0.0
        %v10037 = vmax.f32 %v9909, 0.0
        %v10038 = vmax.f32 %v9910, 0.0
        %v10039 = vmax.f32 %v9911, 0.0
        %v10040 = vmax.f32 %v9912, 0.0
        %v10041 = vmax.f32 %v9913, 0.0
        %v10042 = vmax.f32 %v9914, 0.0
        %v10043 = vmax.f32 %v9915, 0.0
        %v10044 = vmax.f32 %v9916, 0.0
        %v10045 = vmax.f32 %v9917, 0.0
        %v10046 = vmax.f32 %v9918, 0.0
        %v10047 = vmax.f32 %v9919, 0.0
        %v10048 = vmax.f32 %v9920, 0.0
        %v10049 = vmax.f32 %v9921, 0.0
        %v10050 = vmax.f32 %v9922, 0.0
        %v10051 = vmax.f32 %v9923, 0.0
        %v10052 = vmax.f32 %v9924, 0.0
        %v10053 = vmax.f32 %v9925, 0.0
        %v10054 = vmax.f32 %v9926, 0.0
        %v10055 = vmax.f32 %v9927, 0.0
        %v10056 = vmax.f32 %v9928, 0.0
        %v10057 = vmax.f32 %v9929, 0.0
        %v10058 = vmax.f32 %v9930, 0.0
        %v10059 = vmax.f32 %v9931, 0.0
        %v10060 = vmax.f32 %v9932, 0.0
        %v10061 = vmax.f32 %v9933, 0.0
        %v10062 = vmax.f32 %v9934, 0.0
        %v10063 = vmax.f32 %v9935, 0.0
        %v10064 = vmax.f32 %v9936, 0.0
        %v10065 = vmax.f32 %v9937, 0.0
        %v10066 = vmax.f32 %v9938, 0.0
        %v10067 = vmax.f32 %v9939, 0.0
        %v10068 = vmax.f32 %v9940, 0.0
        %v10069 = vmax.f32 %v9941, 0.0
        %v10070 = vmax.f32 %v9942, 0.0
        %v10071 = vmax.f32 %v9943, 0.0
        %v10072 = vmax.f32 %v9944, 0.0
        %v10073 = vmax.f32 %v9945, 0.0
        %v10074 = vmax.f32 %v9946, 0.0
        %v10075 = vmax.f32 %v9947, 0.0
        %v10076 = vmax.f32 %v9948, 0.0
        %v10077 = vmax.f32 %v9949, 0.0
        %v10078 = vmax.f32 %v9950, 0.0
        %v10079 = vmax.f32 %v9951, 0.0
        %v10080 = vmax.f32 %v9952, 0.0
        %v10081 = vmax.f32 %v9953, 0.0
        %v10082 = vmax.f32 %v9954, 0.0
        %v10083 = vmax.f32 %v9955, 0.0
        %v10084 = vmax.f32 %v9956, 0.0
        %v10085 = vmax.f32 %v9957, 0.0
        %v10086 = vmax.f32 %v9958, 0.0
        %v10087 = vmax.f32 %v9959, 0.0
        %v10088 = vmax.f32 %v9960, 0.0
        %v10089 = vmax.f32 %v9961, 0.0
        %v10090 = vmax.f32 %v9962, 0.0
        %v10091 = vmax.f32 %v9963, 0.0
        %v10092 = vmax.f32 %v9964, 0.0
        %v10093 = vmax.f32 %v9965, 0.0
        %v10094 = vmax.f32 %v9966, 0.0
        %v10095 = vmax.f32 %v9967, 0.0
        %v10096 = vmax.f32 %v9968, 0.0
        %v10097 = vmax.f32 %v9969, 0.0
        %v10098 = vmax.f32 %v9970, 0.0
        %v10099 = vmax.f32 %v9971, 0.0
        %v10100 = vmax.f32 %v9972, 0.0
        %v10101 = vld [vmem:[%s354] sm:$0xff]
        %v10102 = vld [vmem:[%s354 + $0x8] sm:$0xff]
        %v10103 = vld [vmem:[%s354 + $0x10] sm:$0xff]
        %v10104 = vld [vmem:[%s354 + $0x18] sm:$0xff]
        %v10105 = vld [vmem:[%s354 + $0x20] sm:$0xff]
        %v10106 = vld [vmem:[%s354 + $0x28] sm:$0xff]
        %v10107 = vld [vmem:[%s354 + $0x30] sm:$0xff]
        %v10108 = vld [vmem:[%s354 + $0x38] sm:$0xff]
        %v10109 = vld [vmem:[%s354 + $0x40] sm:$0xff]
        %v10110 = vld [vmem:[%s354 + $0x48] sm:$0xff]
        %v10111 = vld [vmem:[%s354 + $0x50] sm:$0xff]
        %v10112 = vld [vmem:[%s354 + $0x58] sm:$0xff]
        %v10113 = vld [vmem:[%s354 + $0x60] sm:$0xff]
        %v10114 = vld [vmem:[%s354 + $0x68] sm:$0xff]
        %v10115 = vld [vmem:[%s354 + $0x70] sm:$0xff]
        %v10116 = vld [vmem:[%s354 + $0x78] sm:$0xff]
        %v10117 = vld [vmem:[%s354 + $0x80] sm:$0xff]
        %v10118 = vld [vmem:[%s354 + $0x88] sm:$0xff]
        %v10119 = vld [vmem:[%s354 + $0x90] sm:$0xff]
        %v10120 = vld [vmem:[%s354 + $0x98] sm:$0xff]
        %v10121 = vld [vmem:[%s354 + $0xa0] sm:$0xff]
        %v10122 = vld [vmem:[%s354 + $0xa8] sm:$0xff]
        %v10123 = vld [vmem:[%s354 + $0xb0] sm:$0xff]
        %v10124 = vld [vmem:[%s354 + $0xb8] sm:$0xff]
        %v10125 = vld [vmem:[%s354 + $0xc0] sm:$0xff]
        %v10126 = vld [vmem:[%s354 + $0xc8] sm:$0xff]
        %v10127 = vld [vmem:[%s354 + $0xd0] sm:$0xff]
        %v10128 = vld [vmem:[%s354 + $0xd8] sm:$0xff]
        %v10129 = vld [vmem:[%s354 + $0xe0] sm:$0xff]
        %v10130 = vld [vmem:[%s354 + $0xe8] sm:$0xff]
        %v10131 = vld [vmem:[%s354 + $0xf0] sm:$0xff]
        %v10132 = vld [vmem:[%s354 + $0xf8] sm:$0xff]
        %v10133 = vld [vmem:[%s354 + $0x100] sm:$0xff]
        %v10134 = vld [vmem:[%s354 + $0x108] sm:$0xff]
        %v10135 = vld [vmem:[%s354 + $0x110] sm:$0xff]
        %v10136 = vld [vmem:[%s354 + $0x118] sm:$0xff]
        %v10137 = vld [vmem:[%s354 + $0x120] sm:$0xff]
        %v10138 = vld [vmem:[%s354 + $0x128] sm:$0xff]
        %v10139 = vld [vmem:[%s354 + $0x130] sm:$0xff]
        %v10140 = vld [vmem:[%s354 + $0x138] sm:$0xff]
        %v10141 = vld [vmem:[%s354 + $0x140] sm:$0xff]
        %v10142 = vld [vmem:[%s354 + $0x148] sm:$0xff]
        %v10143 = vld [vmem:[%s354 + $0x150] sm:$0xff]
        %v10144 = vld [vmem:[%s354 + $0x158] sm:$0xff]
        %v10145 = vld [vmem:[%s354 + $0x160] sm:$0xff]
        %v10146 = vld [vmem:[%s354 + $0x168] sm:$0xff]
        %v10147 = vld [vmem:[%s354 + $0x170] sm:$0xff]
        %v10148 = vld [vmem:[%s354 + $0x178] sm:$0xff]
        %v10149 = vld [vmem:[%s354 + $0x180] sm:$0xff]
        %v10150 = vld [vmem:[%s354 + $0x188] sm:$0xff]
        %v10151 = vld [vmem:[%s354 + $0x190] sm:$0xff]
        %v10152 = vld [vmem:[%s354 + $0x198] sm:$0xff]
        %v10153 = vld [vmem:[%s354 + $0x1a0] sm:$0xff]
        %v10154 = vld [vmem:[%s354 + $0x1a8] sm:$0xff]
        %v10155 = vld [vmem:[%s354 + $0x1b0] sm:$0xff]
        %v10156 = vld [vmem:[%s354 + $0x1b8] sm:$0xff]
        %v10157 = vld [vmem:[%s354 + $0x1c0] sm:$0xff]
        %v10158 = vld [vmem:[%s354 + $0x1c8] sm:$0xff]
        %v10159 = vld [vmem:[%s354 + $0x1d0] sm:$0xff]
        %v10160 = vld [vmem:[%s354 + $0x1d8] sm:$0xff]
        %v10161 = vld [vmem:[%s354 + $0x1e0] sm:$0xff]
        %v10162 = vld [vmem:[%s354 + $0x1e8] sm:$0xff]
        %v10163 = vld [vmem:[%s354 + $0x1f0] sm:$0xff]
        %v10164 = vld [vmem:[%s354 + $0x1f8] sm:$0xff]
        %v10165 = vld [vmem:[%s354 + $0x200] sm:$0xff]
        %v10166 = vld [vmem:[%s354 + $0x208] sm:$0xff]
        %v10167 = vld [vmem:[%s354 + $0x210] sm:$0xff]
        %v10168 = vld [vmem:[%s354 + $0x218] sm:$0xff]
        %v10169 = vld [vmem:[%s354 + $0x220] sm:$0xff]
        %v10170 = vld [vmem:[%s354 + $0x228] sm:$0xff]
        %v10171 = vld [vmem:[%s354 + $0x230] sm:$0xff]
        %v10172 = vld [vmem:[%s354 + $0x238] sm:$0xff]
        %v10173 = vld [vmem:[%s354 + $0x240] sm:$0xff]
        %v10174 = vld [vmem:[%s354 + $0x248] sm:$0xff]
        %v10175 = vld [vmem:[%s354 + $0x250] sm:$0xff]
        %v10176 = vld [vmem:[%s354 + $0x258] sm:$0xff]
        %v10177 = vld [vmem:[%s354 + $0x260] sm:$0xff]
        %v10178 = vld [vmem:[%s354 + $0x268] sm:$0xff]
        %v10179 = vld [vmem:[%s354 + $0x270] sm:$0xff]
        %v10180 = vld [vmem:[%s354 + $0x278] sm:$0xff]
        %v10181 = vld [vmem:[%s354 + $0x280] sm:$0xff]
        %v10182 = vld [vmem:[%s354 + $0x288] sm:$0xff]
        %v10183 = vld [vmem:[%s354 + $0x290] sm:$0xff]
        %v10184 = vld [vmem:[%s354 + $0x298] sm:$0xff]
        %v10185 = vld [vmem:[%s354 + $0x2a0] sm:$0xff]
        %v10186 = vld [vmem:[%s354 + $0x2a8] sm:$0xff]
        %v10187 = vld [vmem:[%s354 + $0x2b0] sm:$0xff]
        %v10188 = vld [vmem:[%s354 + $0x2b8] sm:$0xff]
        %v10189 = vld [vmem:[%s354 + $0x2c0] sm:$0xff]
        %v10190 = vld [vmem:[%s354 + $0x2c8] sm:$0xff]
        %v10191 = vld [vmem:[%s354 + $0x2d0] sm:$0xff]
        %v10192 = vld [vmem:[%s354 + $0x2d8] sm:$0xff]
        %v10193 = vld [vmem:[%s354 + $0x2e0] sm:$0xff]
        %v10194 = vld [vmem:[%s354 + $0x2e8] sm:$0xff]
        %v10195 = vld [vmem:[%s354 + $0x2f0] sm:$0xff]
        %v10196 = vld [vmem:[%s354 + $0x2f8] sm:$0xff]
        %v10197 = vld [vmem:[%s354 + $0x300] sm:$0xff]
        %v10198 = vld [vmem:[%s354 + $0x308] sm:$0xff]
        %v10199 = vld [vmem:[%s354 + $0x310] sm:$0xff]
        %v10200 = vld [vmem:[%s354 + $0x318] sm:$0xff]
        %v10201 = vld [vmem:[%s354 + $0x320] sm:$0xff]
        %v10202 = vld [vmem:[%s354 + $0x328] sm:$0xff]
        %v10203 = vld [vmem:[%s354 + $0x330] sm:$0xff]
        %v10204 = vld [vmem:[%s354 + $0x338] sm:$0xff]
        %v10205 = vld [vmem:[%s354 + $0x340] sm:$0xff]
        %v10206 = vld [vmem:[%s354 + $0x348] sm:$0xff]
        %v10207 = vld [vmem:[%s354 + $0x350] sm:$0xff]
        %v10208 = vld [vmem:[%s354 + $0x358] sm:$0xff]
        %v10209 = vld [vmem:[%s354 + $0x360] sm:$0xff]
        %v10210 = vld [vmem:[%s354 + $0x368] sm:$0xff]
        %v10211 = vld [vmem:[%s354 + $0x370] sm:$0xff]
        %v10212 = vld [vmem:[%s354 + $0x378] sm:$0xff]
        %v10213 = vld [vmem:[%s354 + $0x380] sm:$0xff]
        %v10214 = vld [vmem:[%s354 + $0x388] sm:$0xff]
        %v10215 = vld [vmem:[%s354 + $0x390] sm:$0xff]
        %v10216 = vld [vmem:[%s354 + $0x398] sm:$0xff]
        %v10217 = vld [vmem:[%s354 + $0x3a0] sm:$0xff]
        %v10218 = vld [vmem:[%s354 + $0x3a8] sm:$0xff]
        %v10219 = vld [vmem:[%s354 + $0x3b0] sm:$0xff]
        %v10220 = vld [vmem:[%s354 + $0x3b8] sm:$0xff]
        %v10221 = vld [vmem:[%s354 + $0x3c0] sm:$0xff]
        %v10222 = vld [vmem:[%s354 + $0x3c8] sm:$0xff]
        %v10223 = vld [vmem:[%s354 + $0x3d0] sm:$0xff]
        %v10224 = vld [vmem:[%s354 + $0x3d8] sm:$0xff]
        %v10225 = vld [vmem:[%s354 + $0x3e0] sm:$0xff]
        %v10226 = vld [vmem:[%s354 + $0x3e8] sm:$0xff]
        %v10227 = vld [vmem:[%s354 + $0x3f0] sm:$0xff]
        %v10228 = vld [vmem:[%s354 + $0x3f8] sm:$0xff]
        %v10229 = vadd.f32 %v9973, %v10101
        %v10230 = vadd.f32 %v9974, %v10102
        %v10231 = vadd.f32 %v9975, %v10103
        %v10232 = vadd.f32 %v9976, %v10104
        %v10233 = vadd.f32 %v9977, %v10105
        %v10234 = vadd.f32 %v9978, %v10106
        %v10235 = vadd.f32 %v9979, %v10107
        %v10236 = vadd.f32 %v9980, %v10108
        %v10237 = vadd.f32 %v9981, %v10109
        %v10238 = vadd.f32 %v9982, %v10110
        %v10239 = vadd.f32 %v9983, %v10111
        %v10240 = vadd.f32 %v9984, %v10112
        %v10241 = vadd.f32 %v9985, %v10113
        %v10242 = vadd.f32 %v9986, %v10114
        %v10243 = vadd.f32 %v9987, %v10115
        %v10244 = vadd.f32 %v9988, %v10116
        %v10245 = vadd.f32 %v9989, %v10117
        %v10246 = vadd.f32 %v9990, %v10118
        %v10247 = vadd.f32 %v9991, %v10119
        %v10248 = vadd.f32 %v9992, %v10120
        %v10249 = vadd.f32 %v9993, %v10121
        %v10250 = vadd.f32 %v9994, %v10122
        %v10251 = vadd.f32 %v9995, %v10123
        %v10252 = vadd.f32 %v9996, %v10124
        %v10253 = vadd.f32 %v9997, %v10125
        %v10254 = vadd.f32 %v9998, %v10126
        %v10255 = vadd.f32 %v9999, %v10127
        %v10256 = vadd.f32 %v10000, %v10128
        %v10257 = vadd.f32 %v10001, %v10129
        %v10258 = vadd.f32 %v10002, %v10130
        %v10259 = vadd.f32 %v10003, %v10131
        %v10260 = vadd.f32 %v10004, %v10132
        %v10261 = vadd.f32 %v10005, %v10133
        %v10262 = vadd.f32 %v10006, %v10134
        %v10263 = vadd.f32 %v10007, %v10135
        %v10264 = vadd.f32 %v10008, %v10136
        %v10265 = vadd.f32 %v10009, %v10137
        %v10266 = vadd.f32 %v10010, %v10138
        %v10267 = vadd.f32 %v10011, %v10139
        %v10268 = vadd.f32 %v10012, %v10140
        %v10269 = vadd.f32 %v10013, %v10141
        %v10270 = vadd.f32 %v10014, %v10142
        %v10271 = vadd.f32 %v10015, %v10143
        %v10272 = vadd.f32 %v10016, %v10144
        %v10273 = vadd.f32 %v10017, %v10145
        %v10274 = vadd.f32 %v10018, %v10146
        %v10275 = vadd.f32 %v10019, %v10147
        %v10276 = vadd.f32 %v10020, %v10148
        %v10277 = vadd.f32 %v10021, %v10149
        %v10278 = vadd.f32 %v10022, %v10150
        %v10279 = vadd.f32 %v10023, %v10151
        %v10280 = vadd.f32 %v10024, %v10152
        %v10281 = vadd.f32 %v10025, %v10153
        %v10282 = vadd.f32 %v10026, %v10154
        %v10283 = vadd.f32 %v10027, %v10155
        %v10284 = vadd.f32 %v10028, %v10156
        %v10285 = vadd.f32 %v10029, %v10157
        %v10286 = vadd.f32 %v10030, %v10158
        %v10287 = vadd.f32 %v10031, %v10159
        %v10288 = vadd.f32 %v10032, %v10160
        %v10289 = vadd.f32 %v10033, %v10161
        %v10290 = vadd.f32 %v10034, %v10162
        %v10291 = vadd.f32 %v10035, %v10163
        %v10292 = vadd.f32 %v10036, %v10164
        %v10293 = vadd.f32 %v10037, %v10165
        %v10294 = vadd.f32 %v10038, %v10166
        %v10295 = vadd.f32 %v10039, %v10167
        %v10296 = vadd.f32 %v10040, %v10168
        %v10297 = vadd.f32 %v10041, %v10169
        %v10298 = vadd.f32 %v10042, %v10170
        %v10299 = vadd.f32 %v10043, %v10171
        %v10300 = vadd.f32 %v10044, %v10172
        %v10301 = vadd.f32 %v10045, %v10173
        %v10302 = vadd.f32 %v10046, %v10174
        %v10303 = vadd.f32 %v10047, %v10175
        %v10304 = vadd.f32 %v10048, %v10176
        %v10305 = vadd.f32 %v10049, %v10177
        %v10306 = vadd.f32 %v10050, %v10178
        %v10307 = vadd.f32 %v10051, %v10179
        %v10308 = vadd.f32 %v10052, %v10180
        %v10309 = vadd.f32 %v10053, %v10181
        %v10310 = vadd.f32 %v10054, %v10182
        %v10311 = vadd.f32 %v10055, %v10183
        %v10312 = vadd.f32 %v10056, %v10184
        %v10313 = vadd.f32 %v10057, %v10185
        %v10314 = vadd.f32 %v10058, %v10186
        %v10315 = vadd.f32 %v10059, %v10187
        %v10316 = vadd.f32 %v10060, %v10188
        %v10317 = vadd.f32 %v10061, %v10189
        %v10318 = vadd.f32 %v10062, %v10190
        %v10319 = vadd.f32 %v10063, %v10191
        %v10320 = vadd.f32 %v10064, %v10192
        %v10321 = vadd.f32 %v10065, %v10193
        %v10322 = vadd.f32 %v10066, %v10194
        %v10323 = vadd.f32 %v10067, %v10195
        %v10324 = vadd.f32 %v10068, %v10196
        %v10325 = vadd.f32 %v10069, %v10197
        %v10326 = vadd.f32 %v10070, %v10198
        %v10327 = vadd.f32 %v10071, %v10199
        %v10328 = vadd.f32 %v10072, %v10200
        %v10329 = vadd.f32 %v10073, %v10201
        %v10330 = vadd.f32 %v10074, %v10202
        %v10331 = vadd.f32 %v10075, %v10203
        %v10332 = vadd.f32 %v10076, %v10204
        %v10333 = vadd.f32 %v10077, %v10205
        %v10334 = vadd.f32 %v10078, %v10206
        %v10335 = vadd.f32 %v10079, %v10207
        %v10336 = vadd.f32 %v10080, %v10208
        %v10337 = vadd.f32 %v10081, %v10209
        %v10338 = vadd.f32 %v10082, %v10210
        %v10339 = vadd.f32 %v10083, %v10211
        %v10340 = vadd.f32 %v10084, %v10212
        %v10341 = vadd.f32 %v10085, %v10213
        %v10342 = vadd.f32 %v10086, %v10214
        %v10343 = vadd.f32 %v10087, %v10215
        %v10344 = vadd.f32 %v10088, %v10216
        %v10345 = vadd.f32 %v10089, %v10217
        %v10346 = vadd.f32 %v10090, %v10218
        %v10347 = vadd.f32 %v10091, %v10219
        %v10348 = vadd.f32 %v10092, %v10220
        %v10349 = vadd.f32 %v10093, %v10221
        %v10350 = vadd.f32 %v10094, %v10222
        %v10351 = vadd.f32 %v10095, %v10223
        %v10352 = vadd.f32 %v10096, %v10224
        %v10353 = vadd.f32 %v10097, %v10225
        %v10354 = vadd.f32 %v10098, %v10226
        %v10355 = vadd.f32 %v10099, %v10227
        %v10356 = vadd.f32 %v10100, %v10228
        %10357 = vst [vmem:[%s402] sm:$0xff] %v10229
        %10358 = vst [vmem:[%s402 + $0x8] sm:$0xff] %v10230
        %10359 = vst [vmem:[%s402 + $0x10] sm:$0xff] %v10231
        %10360 = vst [vmem:[%s402 + $0x18] sm:$0xff] %v10232
        %10361 = vst [vmem:[%s402 + $0x20] sm:$0xff] %v10233
        %10362 = vst [vmem:[%s402 + $0x28] sm:$0xff] %v10234
        %10363 = vst [vmem:[%s402 + $0x30] sm:$0xff] %v10235
        %10364 = vst [vmem:[%s402 + $0x38] sm:$0xff] %v10236
        %10365 = vst [vmem:[%s402 + $0x40] sm:$0xff] %v10237
        %10366 = vst [vmem:[%s402 + $0x48] sm:$0xff] %v10238
        %10367 = vst [vmem:[%s402 + $0x50] sm:$0xff] %v10239
        %10368 = vst [vmem:[%s402 + $0x58] sm:$0xff] %v10240
        %10369 = vst [vmem:[%s402 + $0x60] sm:$0xff] %v10241
        %10370 = vst [vmem:[%s402 + $0x68] sm:$0xff] %v10242
        %10371 = vst [vmem:[%s402 + $0x70] sm:$0xff] %v10243
        %10372 = vst [vmem:[%s402 + $0x78] sm:$0xff] %v10244
        %10373 = vst [vmem:[%s402 + $0x80] sm:$0xff] %v10245
        %10374 = vst [vmem:[%s402 + $0x88] sm:$0xff] %v10246
        %10375 = vst [vmem:[%s402 + $0x90] sm:$0xff] %v10247
        %10376 = vst [vmem:[%s402 + $0x98] sm:$0xff] %v10248
        %10377 = vst [vmem:[%s402 + $0xa0] sm:$0xff] %v10249
        %10378 = vst [vmem:[%s402 + $0xa8] sm:$0xff] %v10250
        %10379 = vst [vmem:[%s402 + $0xb0] sm:$0xff] %v10251
        %10380 = vst [vmem:[%s402 + $0xb8] sm:$0xff] %v10252
        %10381 = vst [vmem:[%s402 + $0xc0] sm:$0xff] %v10253
        %10382 = vst [vmem:[%s402 + $0xc8] sm:$0xff] %v10254
        %10383 = vst [vmem:[%s402 + $0xd0] sm:$0xff] %v10255
        %10384 = vst [vmem:[%s402 + $0xd8] sm:$0xff] %v10256
        %10385 = vst [vmem:[%s402 + $0xe0] sm:$0xff] %v10257
        %10386 = vst [vmem:[%s402 + $0xe8] sm:$0xff] %v10258
        %10387 = vst [vmem:[%s402 + $0xf0] sm:$0xff] %v10259
        %10388 = vst [vmem:[%s402 + $0xf8] sm:$0xff] %v10260
        %10389 = vst [vmem:[%s402 + $0x100] sm:$0xff] %v10261
        %10390 = vst [vmem:[%s402 + $0x108] sm:$0xff] %v10262
        %10391 = vst [vmem:[%s402 + $0x110] sm:$0xff] %v10263
        %10392 = vst [vmem:[%s402 + $0x118] sm:$0xff] %v10264
        %10393 = vst [vmem:[%s402 + $0x120] sm:$0xff] %v10265
        %10394 = vst [vmem:[%s402 + $0x128] sm:$0xff] %v10266
        %10395 = vst [vmem:[%s402 + $0x130] sm:$0xff] %v10267
        %10396 = vst [vmem:[%s402 + $0x138] sm:$0xff] %v10268
        %10397 = vst [vmem:[%s402 + $0x140] sm:$0xff] %v10269
        %10398 = vst [vmem:[%s402 + $0x148] sm:$0xff] %v10270
        %10399 = vst [vmem:[%s402 + $0x150] sm:$0xff] %v10271
        %10400 = vst [vmem:[%s402 + $0x158] sm:$0xff] %v10272
        %10401 = vst [vmem:[%s402 + $0x160] sm:$0xff] %v10273
        %10402 = vst [vmem:[%s402 + $0x168] sm:$0xff] %v10274
        %10403 = vst [vmem:[%s402 + $0x170] sm:$0xff] %v10275
        %10404 = vst [vmem:[%s402 + $0x178] sm:$0xff] %v10276
        %10405 = vst [vmem:[%s402 + $0x180] sm:$0xff] %v10277
        %10406 = vst [vmem:[%s402 + $0x188] sm:$0xff] %v10278
        %10407 = vst [vmem:[%s402 + $0x190] sm:$0xff] %v10279
        %10408 = vst [vmem:[%s402 + $0x198] sm:$0xff] %v10280
        %10409 = vst [vmem:[%s402 + $0x1a0] sm:$0xff] %v10281
        %10410 = vst [vmem:[%s402 + $0x1a8] sm:$0xff] %v10282
        %10411 = vst [vmem:[%s402 + $0x1b0] sm:$0xff] %v10283
        %10412 = vst [vmem:[%s402 + $0x1b8] sm:$0xff] %v10284
        %10413 = vst [vmem:[%s402 + $0x1c0] sm:$0xff] %v10285
        %10414 = vst [vmem:[%s402 + $0x1c8] sm:$0xff] %v10286
        %10415 = vst [vmem:[%s402 + $0x1d0] sm:$0xff] %v10287
        %10416 = vst [vmem:[%s402 + $0x1d8] sm:$0xff] %v10288
        %10417 = vst [vmem:[%s402 + $0x1e0] sm:$0xff] %v10289
        %10418 = vst [vmem:[%s402 + $0x1e8] sm:$0xff] %v10290
        %10419 = vst [vmem:[%s402 + $0x1f0] sm:$0xff] %v10291
        %10420 = vst [vmem:[%s402 + $0x1f8] sm:$0xff] %v10292
        %10421 = vst [vmem:[%s402 + $0x200] sm:$0xff] %v10293
        %10422 = vst [vmem:[%s402 + $0x208] sm:$0xff] %v10294
        %10423 = vst [vmem:[%s402 + $0x210] sm:$0xff] %v10295
        %10424 = vst [vmem:[%s402 + $0x218] sm:$0xff] %v10296
        %10425 = vst [vmem:[%s402 + $0x220] sm:$0xff] %v10297
        %10426 = vst [vmem:[%s402 + $0x228] sm:$0xff] %v10298
        %10427 = vst [vmem:[%s402 + $0x230] sm:$0xff] %v10299
        %10428 = vst [vmem:[%s402 + $0x238] sm:$0xff] %v10300
        %10429 = vst [vmem:[%s402 + $0x240] sm:$0xff] %v10301
        %10430 = vst [vmem:[%s402 + $0x248] sm:$0xff] %v10302
        %10431 = vst [vmem:[%s402 + $0x250] sm:$0xff] %v10303
        %10432 = vst [vmem:[%s402 + $0x258] sm:$0xff] %v10304
        %10433 = vst [vmem:[%s402 + $0x260] sm:$0xff] %v10305
        %10434 = vst [vmem:[%s402 + $0x268] sm:$0xff] %v10306
        %10435 = vst [vmem:[%s402 + $0x270] sm:$0xff] %v10307
        %10436 = vst [vmem:[%s402 + $0x278] sm:$0xff] %v10308
        %10437 = vst [vmem:[%s402 + $0x280] sm:$0xff] %v10309
        %10438 = vst [vmem:[%s402 + $0x288] sm:$0xff] %v10310
        %10439 = vst [vmem:[%s402 + $0x290] sm:$0xff] %v10311
        %10440 = vst [vmem:[%s402 + $0x298] sm:$0xff] %v10312
        %10441 = vst [vmem:[%s402 + $0x2a0] sm:$0xff] %v10313
        %10442 = vst [vmem:[%s402 + $0x2a8] sm:$0xff] %v10314
        %10443 = vst [vmem:[%s402 + $0x2b0] sm:$0xff] %v10315
        %10444 = vst [vmem:[%s402 + $0x2b8] sm:$0xff] %v10316
        %10445 = vst [vmem:[%s402 + $0x2c0] sm:$0xff] %v10317
        %10446 = vst [vmem:[%s402 + $0x2c8] sm:$0xff] %v10318
        %10447 = vst [vmem:[%s402 + $0x2d0] sm:$0xff] %v10319
        %10448 = vst [vmem:[%s402 + $0x2d8] sm:$0xff] %v10320
        %10449 = vst [vmem:[%s402 + $0x2e0] sm:$0xff] %v10321
        %10450 = vst [vmem:[%s402 + $0x2e8] sm:$0xff] %v10322
        %10451 = vst [vmem:[%s402 + $0x2f0] sm:$0xff] %v10323
        %10452 = vst [vmem:[%s402 + $0x2f8] sm:$0xff] %v10324
        %10453 = vst [vmem:[%s402 + $0x300] sm:$0xff] %v10325
        %10454 = vst [vmem:[%s402 + $0x308] sm:$0xff] %v10326
        %10455 = vst [vmem:[%s402 + $0x310] sm:$0xff] %v10327
        %10456 = vst [vmem:[%s402 + $0x318] sm:$0xff] %v10328
        %10457 = vst [vmem:[%s402 + $0x320] sm:$0xff] %v10329
        %10458 = vst [vmem:[%s402 + $0x328] sm:$0xff] %v10330
        %10459 = vst [vmem:[%s402 + $0x330] sm:$0xff] %v10331
        %10460 = vst [vmem:[%s402 + $0x338] sm:$0xff] %v10332
        %10461 = vst [vmem:[%s402 + $0x340] sm:$0xff] %v10333
        %10462 = vst [vmem:[%s402 + $0x348] sm:$0xff] %v10334
        %10463 = vst [vmem:[%s402 + $0x350] sm:$0xff] %v10335
        %10464 = vst [vmem:[%s402 + $0x358] sm:$0xff] %v10336
        %10465 = vst [vmem:[%s402 + $0x360] sm:$0xff] %v10337
        %10466 = vst [vmem:[%s402 + $0x368] sm:$0xff] %v10338
        %10467 = vst [vmem:[%s402 + $0x370] sm:$0xff] %v10339
        %10468 = vst [vmem:[%s402 + $0x378] sm:$0xff] %v10340
        %10469 = vst [vmem:[%s402 + $0x380] sm:$0xff] %v10341
        %10470 = vst [vmem:[%s402 + $0x388] sm:$0xff] %v10342
        %10471 = vst [vmem:[%s402 + $0x390] sm:$0xff] %v10343
        %10472 = vst [vmem:[%s402 + $0x398] sm:$0xff] %v10344
        %10473 = vst [vmem:[%s402 + $0x3a0] sm:$0xff] %v10345
        %10474 = vst [vmem:[%s402 + $0x3a8] sm:$0xff] %v10346
        %10475 = vst [vmem:[%s402 + $0x3b0] sm:$0xff] %v10347
        %10476 = vst [vmem:[%s402 + $0x3b8] sm:$0xff] %v10348
        %10477 = vst [vmem:[%s402 + $0x3c0] sm:$0xff] %v10349
        %10478 = vst [vmem:[%s402 + $0x3c8] sm:$0xff] %v10350
        %10479 = vst [vmem:[%s402 + $0x3d0] sm:$0xff] %v10351
        %10480 = vst [vmem:[%s402 + $0x3d8] sm:$0xff] %v10352
        %10481 = vst [vmem:[%s402 + $0x3e0] sm:$0xff] %v10353
        %10482 = vst [vmem:[%s402 + $0x3e8] sm:$0xff] %v10354
        %10483 = vst [vmem:[%s402 + $0x3f0] sm:$0xff] %v10355
        %10484 = vst [vmem:[%s402 + $0x3f8] sm:$0xff] %v10356
        %s10485 = sand.u32 %s198, 1
        %s10486 = scalar_lea.sflag [#allocation5], %s10485
        %s10487 = sand.u32 %s198, 1
        %s10488 = smul.addr %s10487, 1024
        %s10489 = scalar_lea.vmem [#allocation12], %s10488
        // Predicated region
        $region69: #{tpu_custom_call.1} parent=47 // pred_check
          %p10490 = pneg %p208
        $region70: #{tpu_custom_call.1} parent=47 // pred_check_branch
          %10492 = sbr.rel (%p10490) target = $region72
        $region71: #{tpu_custom_call.1} parent=47 // pred_region
          %s10494 = ssub.s32 16384, 16384
          %10495 = vsyncadd %s10486, %s10494
          %s10496 = smul.addr %s28, 128
          %s10497 = smul.addr %s10496, 128
          %s10498 = scalar_lea.hbm %s7, %s10497
          %s10499 = sshll.u32 %s10489, 4
          %s10500 = int_to_ptr.vmem [resolvable:$true] %s10499
          %10505 = dma.vmem_to_hbm [thread:$0]  %s10500, 16384, %s10498, %s10486, 128, 128, 8
        $region72: #{tpu_custom_call.1} parent=47 // pred_fallthru
          _
      $region48: #{tpu_custom_call.1} parent=5 // pred_fallthru
        _
      %p10506 = scmp.le.s32.totalorder 2, %s23
      // Predicated region
      $region73: #{tpu_custom_call.1} parent=5 // pred_check
        %p10507 = pneg %p10506
      $region74: #{tpu_custom_call.1} parent=5 // pred_check_branch
        %10509 = sbr.rel (%p10507) target = $region76
      $region75: #{tpu_custom_call.1} parent=5 // pred_region
        %s10510 = ssub.s32 %s23, 2
        // Predicated region
        $region77: #{tpu_custom_call.1} parent=75 // pred_check
          %p10511 = pneg %p214
        $region78: #{tpu_custom_call.1} parent=75 // pred_check_branch
          %10513 = sbr.rel (%p10511) target = $region80
        $region79: #{tpu_custom_call.1} parent=75 // pred_region
          %s10514 = sand.u32 %s199, 1
          %s10515 = scalar_lea.sflag [#allocation5], %s10514
          %s10516 = sand.u32 %s199, 1
          %s10517 = smul.addr %s10516, 1024
          %s10518 = scalar_lea.vmem [#allocation12], %s10517
          %10519 = dma.done %s10515, 16384
        $region80: #{tpu_custom_call.1} parent=75 // pred_fallthru
          _
      $region76: #{tpu_custom_call.1} parent=5 // pred_fallthru
        _
    $region6: #{tpu_custom_call.1} parent=1 // loop_footer
      %s27 = sadd.s32 1, %s23
    $region7: #{tpu_custom_call.1} parent=1 // loop_footer_branch
      %22 = sbr.rel target = $region3
    $region8: #{tpu_custom_call.1} parent=1 // loop_exit
      _
    %10520 = vsyncpa [#allocation4], 1
    %s10521 = scalar_lea.sflag [#allocation4], 1
    %10522 = vsyncpa %s10521, 1
    %10523 = vsyncpa [#allocation7], 1
    %s10524 = scalar_lea.sflag [#allocation7], 1
    %10525 = vsyncpa %s10524, 1
    %10526 = vsyncpa [#allocation10], 1
    %10527 = vsyncpa [#allocation5], 1
    %s10528 = scalar_lea.sflag [#allocation5], 1
    %10529 = vsyncpa %s10528, 1

</llo_original>
